<compile_context>
chip_gen: v7x
topology: tpu7x:2x2x1
jax: 0.10.0
libtpu: 0.0.40
codegen_flags: <defaults>
</compile_context>

<pallas_src>
import functools

import jax
import jax.numpy as jnp
from jax.experimental import pallas as pl
from jax.experimental.pallas import tpu as pltpu


def _round_up(x, m):
    return (x + m - 1) // m * m


# Fixed row tile for conv1's matmul grid (review: fixed TM, scaling grid).
_CONV1_TM = 512
# Fixed batch tile for the fused conv2+FC kernel (>=2 parallel steps at larger batch).
_FC_TB = 32
# Per-step footprints are ~2 MiB (conv1) / ~6 MiB (conv2+FC): 32 MiB scoped VMEM is
# generous everywhere and stays well inside v7x's 64 MiB physical VMEM.
_VMEM_LIMIT = 32 * 1024 * 1024


# ----------------------------------------------------------------------------
# Pallas kernels
# ----------------------------------------------------------------------------
def conv_pool_kernel(pat_ref, w_ref, b_ref, o_ref):
    """Fused conv (im2col matmul) + bias + ReLU + 2x2/2 max-pool.

    pat_ref: (4, TM, Kp) bf16 -- the four conv-output positions feeding each
    pooled output row.  relu(max_q(x_q @ w) + b) == maxpool(relu(x_q @ w + b)).
    Max is interleaved with the dots to keep at most two f32 tiles live.
    """
    w = w_ref[...]
    d = jnp.dot(pat_ref[0], w, preferred_element_type=jnp.float32)
    d = jnp.maximum(d, jnp.dot(pat_ref[1], w, preferred_element_type=jnp.float32))
    d = jnp.maximum(d, jnp.dot(pat_ref[2], w, preferred_element_type=jnp.float32))
    d = jnp.maximum(d, jnp.dot(pat_ref[3], w, preferred_element_type=jnp.float32))
    o_ref[...] = jnp.maximum(d + b_ref[...], 0.0).astype(o_ref.dtype)


def conv2_fc_kernel(pat_ref, w2_ref, b2_ref, f1w_ref, f1b_ref,
                    f2w_ref, f2b_ref, f3w_ref, f3b_ref, o_ref):
    """Fused conv2+bias+ReLU+pool  ->  fc1+ReLU -> fc2+ReLU -> fc3.

    pat_ref: (4, P*TB, Kp2) bf16, rows ordered (position, batch) so the pooled
    conv2 activation feeds fc1 via a per-position weight stack (f1w: (P, C2P, F1P))
    with NO reshape / relayout -- nothing round-trips through HBM.
    """
    TB = o_ref.shape[0]
    P = f1w_ref.shape[0]

    w2 = w2_ref[...]
    d = jnp.dot(pat_ref[0], w2, preferred_element_type=jnp.float32)
    d = jnp.maximum(d, jnp.dot(pat_ref[1], w2, preferred_element_type=jnp.float32))
    d = jnp.maximum(d, jnp.dot(pat_ref[2], w2, preferred_element_type=jnp.float32))
    d = jnp.maximum(d, jnp.dot(pat_ref[3], w2, preferred_element_type=jnp.float32))
    h2 = jnp.maximum(d + b2_ref[...], 0.0)                      # (P*TB, C2P) f32

    # fc1 as a sum over the P pooled positions: acc += h2[p] @ W1[p].
    acc = jnp.zeros((TB, f1w_ref.shape[2]), jnp.float32)
    for p in range(P):                                           # static unroll
        hp = h2[p * TB:(p + 1) * TB, :].astype(jnp.bfloat16)     # aligned slice
        acc = acc + jnp.dot(hp, f1w_ref[p], preferred_element_type=jnp.float32)

    h = jnp.maximum(acc + f1b_ref[...], 0.0).astype(jnp.bfloat16)
    h = jnp.dot(h, f2w_ref[...], preferred_element_type=jnp.float32) + f2b_ref[...]
    h = jnp.maximum(h, 0.0).astype(jnp.bfloat16)
    o_ref[...] = jnp.dot(h, f3w_ref[...], preferred_element_type=jnp.float32) + f3b_ref[...]


# ----------------------------------------------------------------------------
# Wrapper glue (im2col quads, padding, pallas_call setup)
# ----------------------------------------------------------------------------
def _im2col_quads(x, kh=5, kw=5):
    """x: (B, H, W, C) -> (4, B, Ho//2, Wo//2, kh*kw*C), quads = the four conv
    output positions feeding each 2x2 pooled output position."""
    B, H, W, C = x.shape
    Ho, Wo = H - kh + 1, W - kw + 1
    assert Ho % 2 == 0 and Wo % 2 == 0, "conv output dims must be even for 2x2 pool"
    cols = [x[:, i:i + Ho, j:j + Wo, :] for i in range(kh) for j in range(kw)]
    pat = jnp.stack(cols, axis=3).reshape(B, Ho, Wo, kh * kw * C)
    return jnp.stack([pat[:, 0::2, 0::2], pat[:, 0::2, 1::2],
                      pat[:, 1::2, 0::2], pat[:, 1::2, 1::2]], axis=0)


def conv1_relu_pool(x, wp, bp):
    """x: (B, H, W, Cin) bf16.  Returns (B, Ho//2, Wo//2, C1P) bf16 (lane-dense)."""
    Kp1, C1P = wp.shape
    quads = _im2col_quads(x)                         # (4, B, Hp, Wp, K1)
    _, B, Hp, Wp, K1 = quads.shape
    M = B * Hp * Wp

    if M <= _CONV1_TM:                               # small batch: one grid step
        TM = _round_up(M, 16)
        Mp = TM
    else:                                            # fixed tile, scaling grid
        TM = _CONV1_TM
        Mp = _round_up(M, TM)

    # Single packed patch input + single pad (one DMA stream per step).
    pat = jnp.zeros((4, Mp, Kp1), jnp.bfloat16).at[:, :M, :K1].set(
        quads.reshape(4, M, K1))

    out = pl.pallas_call(
        conv_pool_kernel,
        out_shape=jax.ShapeDtypeStruct((Mp, C1P), jnp.bfloat16),
        grid=(Mp // TM,),
        in_specs=[pl.BlockSpec((4, TM, Kp1), lambda i: (0, i, 0)),
                  pl.BlockSpec((Kp1, C1P), lambda i: (0, 0)),
                  pl.BlockSpec((1, C1P), lambda i: (0, 0))],
        out_specs=pl.BlockSpec((TM, C1P), lambda i: (i, 0)),
        compiler_params=pltpu.CompilerParams(
            dimension_semantics=("parallel",),
            vmem_limit_bytes=_VMEM_LIMIT),
    )(pat, wp, bp)
    return out[:M].reshape(B, Hp, Wp, C1P)


def conv2_fc_fused(h, w2, b2, f1w, f1b, f2w, f2b, f3w, f3b, out_dim):
    """h: (B, 14, 14, 8) bf16.  Single pallas_call: conv2+relu+pool+fc1+fc2+fc3."""
    Kp2, C2P = w2.shape
    quads = _im2col_quads(h)                         # (4, B, 5, 5, K2)
    _, B, Hp, Wp, K2 = quads.shape
    P = Hp * Wp                                      # 25 pooled positions

    if B <= _FC_TB:                                  # small batch: one grid step
        TB = _round_up(B, 8)
        Bp = TB
    else:                                            # fixed batch tile, scaling grid
        TB = _FC_TB
        Bp = _round_up(B, TB)
    NB = Bp // TB

    # One pad, then order rows (batch-block, quad, position, batch-in-block).
    pat = jnp.zeros((4, Bp, P, Kp2), jnp.bfloat16).at[:, :B, :, :K2].set(
        quads.reshape(4, B, P, K2))
    pat = pat.reshape(4, NB, TB, P, Kp2).transpose(0, 1, 3, 2, 4)
    pat = pat.reshape(4, NB * P * TB, Kp2)

    OUTP = f3w.shape[1]
    out = pl.pallas_call(
        conv2_fc_kernel,
        out_shape=jax.ShapeDtypeStruct((Bp, OUTP), jnp.float32),
        grid=(NB,),
        in_specs=[pl.BlockSpec((4, P * TB, Kp2), lambda i: (0, i, 0)),
                  pl.BlockSpec((Kp2, C2P), lambda i: (0, 0)),
                  pl.BlockSpec((1, C2P), lambda i: (0, 0)),
                  pl.BlockSpec(f1w.shape, lambda i: (0, 0, 0)),
                  pl.BlockSpec(f1b.shape, lambda i: (0, 0)),
                  pl.BlockSpec(f2w.shape, lambda i: (0, 0)),
                  pl.BlockSpec(f2b.shape, lambda i: (0, 0)),
                  pl.BlockSpec(f3w.shape, lambda i: (0, 0)),
                  pl.BlockSpec(f3b.shape, lambda i: (0, 0))],
        out_specs=pl.BlockSpec((TB, OUTP), lambda i: (i, 0)),
        compiler_params=pltpu.CompilerParams(
            dimension_semantics=("parallel",),
            vmem_limit_bytes=_VMEM_LIMIT),
    )(pat, w2, b2, f1w, f1b, f2w, f2b, f3w, f3b)
    return out[:B, :out_dim]


# ----------------------------------------------------------------------------
# One-time parameter preparation (hoisted out of the forward path)
# ----------------------------------------------------------------------------
def prepare_params(raw, kh=5, kw=5):
    def conv_pack(w, b, cin_pad):
        O, C, _, _ = w.shape
        wt = jnp.transpose(w, (2, 3, 1, 0))                  # (kh, kw, C, O)
        if cin_pad > C:                                      # fold pad channels as zero K-rows
            wt = jnp.zeros((kh, kw, cin_pad, O), w.dtype).at[:, :, :C, :].set(wt)
        K = kh * kw * cin_pad
        wm = wt.reshape(K, O)
        Kp, Np = _round_up(K, 128), _round_up(O, 128)
        wp = jnp.zeros((Kp, Np), jnp.bfloat16).at[:K, :O].set(wm.astype(jnp.bfloat16))
        bp = jnp.zeros((1, Np), jnp.float32).at[0, :O].set(b)
        return wp, bp

    def fc_pack(w, b):                                       # w: (out, in)
        out_f, in_f = w.shape
        Kp, Np = _round_up(in_f, 128), _round_up(out_f, 128)
        wp = jnp.zeros((Kp, Np), jnp.bfloat16).at[:in_f, :out_f].set(
            w.T.astype(jnp.bfloat16))
        bp = jnp.zeros((1, Np), jnp.float32).at[0, :out_f].set(b)
        return wp, bp

    cin = raw["conv1_w"].shape[1]
    c1w, c1b = conv_pack(raw["conv1_w"], raw["conv1_b"], cin)
    c2w, c2b = conv_pack(raw["conv2_w"], raw["conv2_b"], 8)   # conv1 output kept at 8 channels

    # fc1: PyTorch flattens (C=16, H=5, W=5) NCHW; repack per pooled position p=h*5+w:
    # f1w[p, c, n] = fc1_w[n, c*25 + p], padded to (25, C2P, F1P) with zero rows for c>=16.
    O1 = raw["fc1_w"].shape[0]
    f1 = raw["fc1_w"].reshape(O1, 16, 5, 5)
    f1 = jnp.transpose(f1, (2, 3, 1, 0)).reshape(25, 16, O1)
    C2P = c2w.shape[1]
    F1P = _round_up(O1, 128)
    f1w = jnp.zeros((25, C2P, F1P), jnp.bfloat16).at[:, :16, :O1].set(
        f1.astype(jnp.bfloat16))
    f1b = jnp.zeros((1, F1P), jnp.float32).at[0, :O1].set(raw["fc1_b"])

    f2w, f2b = fc_pack(raw["fc2_w"], raw["fc2_b"])
    f3w, f3b = fc_pack(raw["fc3_w"], raw["fc3_b"])
    return dict(c1w=c1w, c1b=c1b, c2w=c2w, c2b=c2b,
                f1w=f1w, f1b=f1b, f2w=f2w, f2b=f2b, f3w=f3w, f3b=f3b)


# ----------------------------------------------------------------------------
# Full forward pass
# ----------------------------------------------------------------------------
def lenet_forward(x, prep, *, out_dim):
    # x: (B, C, H, W) f32 (PyTorch layout at the boundary) -> NHWC bf16 internally.
    x = jnp.transpose(x, (0, 2, 3, 1)).astype(jnp.bfloat16)
    h = conv1_relu_pool(x, prep["c1w"], prep["c1b"])          # (B, 14, 14, 128)
    h = h[..., :8]   # 6 real + 2 zero channels; conv2's weight has matching zero rows
    return conv2_fc_fused(h, prep["c2w"], prep["c2b"], prep["f1w"], prep["f1b"],
                          prep["f2w"], prep["f2b"], prep["f3w"], prep["f3b"], out_dim)


def init_params(key, in_channels=3, out_dim=10):
    ks = jax.random.split(key, 10)

    def uni(k, shape, fan_in):
        bound = 1.0 / jnp.sqrt(fan_in)
        return jax.random.uniform(k, shape, jnp.float32, -bound, bound)

    return {
        "conv1_w": uni(ks[0], (6, in_channels, 5, 5), in_channels * 25),
        "conv1_b": uni(ks[1], (6,), in_channels * 25),
        "conv2_w": uni(ks[2], (16, 6, 5, 5), 6 * 25),
        "conv2_b": uni(ks[3], (16,), 6 * 25),
        "fc1_w": uni(ks[4], (120, 400), 400),
        "fc1_b": uni(ks[5], (120,), 400),
        "fc2_w": uni(ks[6], (84, 120), 120),
        "fc2_b": uni(ks[7], (84,), 120),
        "fc3_w": uni(ks[8], (out_dim, 84), 84),
        "fc3_b": uni(ks[9], (out_dim,), 84),
    }


if __name__ == "__main__":
    # fc1 expects 16*5*5 = 400 features => 32x32 inputs
    # (32 -conv5-> 28 -pool-> 14 -conv5-> 10 -pool-> 5).
    key = jax.random.PRNGKey(0)
    pkey, xkey = jax.random.split(key)
    raw = init_params(pkey, in_channels=3, out_dim=10)
    prep = prepare_params(raw)              # one-time weight packing, not per-forward
    x = jax.random.normal(xkey, (2, 3, 32, 32), jnp.float32)

    fwd = jax.jit(functools.partial(lenet_forward, out_dim=10))
    out = jax.block_until_ready(fwd(x, prep))
    assert out.shape == (2, 10)
    assert bool(jnp.all(jnp.isfinite(out)))
    print("KERNEL_OK")
</pallas_src>

<mosaic_0001>
module attributes {stable_mosaic.version = 11 : i64} {
  func.func @conv_pool_kernel(%arg0: i32, %arg1: memref<4x400x128xbf16, #tpu.memory_space<vmem>>, %arg2: memref<128x128xbf16, #tpu.memory_space<vmem>>, %arg3: memref<1x128xf32, #tpu.memory_space<vmem>>, %arg4: memref<400x128xbf16, #tpu.memory_space<vmem>>) attributes {dimension_semantics = [#tpu.dimension_semantics<parallel>], iteration_bounds = array<i64: 1>, scalar_prefetch = 0 : i64, scratch_operands = 0 : i64, tpu.core_type = #tpu.core_type<tc>, window_params = [{transform_indices = @transform_0, window_bounds = array<i64: 4, 400, 128>}, {pipeline_mode = #tpu.pipeline_mode<synchronous>, transform_indices = @transform_1, window_bounds = array<i64: 128, 128>}, {pipeline_mode = #tpu.pipeline_mode<synchronous>, transform_indices = @transform_2, window_bounds = array<i64: 1, 128>}, {transform_indices = @transform_3, window_bounds = array<i64: 400, 128>}]} {
    %c0 = arith.constant 0 : index
    %c0_0 = arith.constant 0 : index
    %0 = vector.load %arg2[%c0, %c0_0] : memref<128x128xbf16, #tpu.memory_space<vmem>>, vector<128x128xbf16>
    %c0_1 = arith.constant 0 : index
    %c0_2 = arith.constant 0 : index
    %c0_3 = arith.constant 0 : index
    %1 = vector.load %arg1[%c0_1, %c0_2, %c0_3] : memref<4x400x128xbf16, #tpu.memory_space<vmem>>, vector<1x400x128xbf16>
    %2 = vector.shape_cast %1 : vector<1x400x128xbf16> to vector<400x128xbf16>
    %cst = arith.constant dense<0.000000e+00> : vector<400x128xf32>
    %3 = tpu.matmul %2, %0, %cst {dimension_numbers = #tpu.dot_dimension_numbers<[1], [0], [0], [1], [0, 0, 1, 1], [], []>} : vector<400x128xbf16>, vector<128x128xbf16>, vector<400x128xf32> -> vector<400x128xf32>
    %c1 = arith.constant 1 : index
    %c0_4 = arith.constant 0 : index
    %c0_5 = arith.constant 0 : index
    %4 = vector.load %arg1[%c1, %c0_4, %c0_5] : memref<4x400x128xbf16, #tpu.memory_space<vmem>>, vector<1x400x128xbf16>
    %5 = vector.shape_cast %4 : vector<1x400x128xbf16> to vector<400x128xbf16>
    %cst_6 = arith.constant dense<0.000000e+00> : vector<400x128xf32>
    %6 = tpu.matmul %5, %0, %cst_6 {dimension_numbers = #tpu.dot_dimension_numbers<[1], [0], [0], [1], [0, 0, 1, 1], [], []>} : vector<400x128xbf16>, vector<128x128xbf16>, vector<400x128xf32> -> vector<400x128xf32>
    %7 = arith.maximumf %3, %6 : vector<400x128xf32>
    %c2 = arith.constant 2 : index
    %c0_7 = arith.constant 0 : index
    %c0_8 = arith.constant 0 : index
    %8 = vector.load %arg1[%c2, %c0_7, %c0_8] : memref<4x400x128xbf16, #tpu.memory_space<vmem>>, vector<1x400x128xbf16>
    %9 = vector.shape_cast %8 : vector<1x400x128xbf16> to vector<400x128xbf16>
    %cst_9 = arith.constant dense<0.000000e+00> : vector<400x128xf32>
    %10 = tpu.matmul %9, %0, %cst_9 {dimension_numbers = #tpu.dot_dimension_numbers<[1], [0], [0], [1], [0, 0, 1, 1], [], []>} : vector<400x128xbf16>, vector<128x128xbf16>, vector<400x128xf32> -> vector<400x128xf32>
    %11 = arith.maximumf %7, %10 : vector<400x128xf32>
    %c3 = arith.constant 3 : index
    %c0_10 = arith.constant 0 : index
    %c0_11 = arith.constant 0 : index
    %12 = vector.load %arg1[%c3, %c0_10, %c0_11] : memref<4x400x128xbf16, #tpu.memory_space<vmem>>, vector<1x400x128xbf16>
    %13 = vector.shape_cast %12 : vector<1x400x128xbf16> to vector<400x128xbf16>
    %cst_12 = arith.constant dense<0.000000e+00> : vector<400x128xf32>
    %14 = tpu.matmul %13, %0, %cst_12 {dimension_numbers = #tpu.dot_dimension_numbers<[1], [0], [0], [1], [0, 0, 1, 1], [], []>} : vector<400x128xbf16>, vector<128x128xbf16>, vector<400x128xf32> -> vector<400x128xf32>
    %15 = arith.maximumf %11, %14 : vector<400x128xf32>
    %c0_13 = arith.constant 0 : index
    %c0_14 = arith.constant 0 : index
    %16 = vector.load %arg3[%c0_13, %c0_14] : memref<1x128xf32, #tpu.memory_space<vmem>>, vector<1x128xf32>
    %17 = vector.broadcast %16 : vector<1x128xf32> to vector<400x128xf32>
    %18 = arith.addf %15, %17 : vector<400x128xf32>
    %cst_15 = arith.constant 0.000000e+00 : f32
    %19 = vector.broadcast %cst_15 : f32 to vector<400x128xf32>
    %20 = arith.maximumf %18, %19 : vector<400x128xf32>
    %21 = arith.truncf %20 : vector<400x128xf32> to vector<400x128xbf16>
    %c0_16 = arith.constant 0 : index
    %c0_17 = arith.constant 0 : index
    %22 = vector.load %arg4[%c0_16, %c0_17] : memref<400x128xbf16, #tpu.memory_space<vmem>>, vector<400x128xbf16>
    tpu.vector_store %arg4[%c0_16, %c0_17], %21 {strides = array<i32>} : memref<400x128xbf16, #tpu.memory_space<vmem>>, vector<400x128xbf16>,
    return
  }
  func.func @transform_0(%arg0: i32) -> (i32, i32, i32) {
    %c0_i32 = arith.constant 0 : i32
    %c0_i32_0 = arith.constant 0 : i32
    %c0_i32_1 = arith.constant 0 : i32
    return %c0_i32, %arg0, %c0_i32_0 : i32, i32, i32
  }
  func.func @transform_1(%arg0: i32) -> (i32, i32) {
    %c0_i32 = arith.constant 0 : i32
    %c0_i32_0 = arith.constant 0 : i32
    %c0_i32_1 = arith.constant 0 : i32
    return %c0_i32, %c0_i32_0 : i32, i32
  }
  func.func @transform_2(%arg0: i32) -> (i32, i32) {
    %c0_i32 = arith.constant 0 : i32
    %c0_i32_0 = arith.constant 0 : i32
    %c0_i32_1 = arith.constant 0 : i32
    return %c0_i32, %c0_i32_0 : i32, i32
  }
  func.func @transform_3(%arg0: i32) -> (i32, i32) {
    %c0_i32 = arith.constant 0 : i32
    %c0_i32_0 = arith.constant 0 : i32
    return %arg0, %c0_i32 : i32, i32
  }
}

module attributes {stable_mosaic.version = 11 : i64} {
  func.func @conv2_fc_kernel(%arg0: i32, %arg1: memref<4x200x256xbf16, #tpu.memory_space<vmem>>, %arg2: memref<256x128xbf16, #tpu.memory_space<vmem>>, %arg3: memref<1x128xf32, #tpu.memory_space<vmem>>, %arg4: memref<25x128x128xbf16, #tpu.memory_space<vmem>>, %arg5: memref<1x128xf32, #tpu.memory_space<vmem>>, %arg6: memref<128x128xbf16, #tpu.memory_space<vmem>>, %arg7: memref<1x128xf32, #tpu.memory_space<vmem>>, %arg8: memref<128x128xbf16, #tpu.memory_space<vmem>>, %arg9: memref<1x128xf32, #tpu.memory_space<vmem>>, %arg10: memref<8x128xf32, #tpu.memory_space<vmem>>) attributes {dimension_semantics = [#tpu.dimension_semantics<parallel>], iteration_bounds = array<i64: 1>, scalar_prefetch = 0 : i64, scratch_operands = 0 : i64, tpu.core_type = #tpu.core_type<tc>, window_params = [{transform_indices = @transform_0, window_bounds = array<i64: 4, 200, 256>}, {pipeline_mode = #tpu.pipeline_mode<synchronous>, transform_indices = @transform_1, window_bounds = array<i64: 256, 128>}, {pipeline_mode = #tpu.pipeline_mode<synchronous>, transform_indices = @transform_2, window_bounds = array<i64: 1, 128>}, {pipeline_mode = #tpu.pipeline_mode<synchronous>, transform_indices = @transform_3, window_bounds = array<i64: 25, 128, 128>}, {pipeline_mode = #tpu.pipeline_mode<synchronous>, transform_indices = @transform_4, window_bounds = array<i64: 1, 128>}, {pipeline_mode = #tpu.pipeline_mode<synchronous>, transform_indices = @transform_5, window_bounds = array<i64: 128, 128>}, {pipeline_mode = #tpu.pipeline_mode<synchronous>, transform_indices = @transform_6, window_bounds = array<i64: 1, 128>}, {pipeline_mode = #tpu.pipeline_mode<synchronous>, transform_indices = @transform_7, window_bounds = array<i64: 128, 128>}, {pipeline_mode = #tpu.pipeline_mode<synchronous>, transform_indices = @transform_8, window_bounds = array<i64: 1, 128>}, {transform_indices = @transform_9, window_bounds = array<i64: 8, 128>}]} {
    %c0 = arith.constant 0 : index
    %c0_0 = arith.constant 0 : index
    %0 = vector.load %arg2[%c0, %c0_0] : memref<256x128xbf16, #tpu.memory_space<vmem>>, vector<256x128xbf16>
    %c0_1 = arith.constant 0 : index
    %c0_2 = arith.constant 0 : index
    %c0_3 = arith.constant 0 : index
    %1 = vector.load %arg1[%c0_1, %c0_2, %c0_3] : memref<4x200x256xbf16, #tpu.memory_space<vmem>>, vector<1x200x256xbf16>
    %2 = vector.shape_cast %1 : vector<1x200x256xbf16> to vector<200x256xbf16>
    %cst = arith.constant dense<0.000000e+00> : vector<200x128xf32>
    %3 = tpu.matmul %2, %0, %cst {dimension_numbers = #tpu.dot_dimension_numbers<[1], [0], [0], [1], [0, 0, 1, 1], [], []>} : vector<200x256xbf16>, vector<256x128xbf16>, vector<200x128xf32> -> vector<200x128xf32>
    %c1 = arith.constant 1 : index
    %c0_4 = arith.constant 0 : index
    %c0_5 = arith.constant 0 : index
    %4 = vector.load %arg1[%c1, %c0_4, %c0_5] : memref<4x200x256xbf16, #tpu.memory_space<vmem>>, vector<1x200x256xbf16>
    %5 = vector.shape_cast %4 : vector<1x200x256xbf16> to vector<200x256xbf16>
    %cst_6 = arith.constant dense<0.000000e+00> : vector<200x128xf32>
    %6 = tpu.matmul %5, %0, %cst_6 {dimension_numbers = #tpu.dot_dimension_numbers<[1], [0], [0], [1], [0, 0, 1, 1], [], []>} : vector<200x256xbf16>, vector<256x128xbf16>, vector<200x128xf32> -> vector<200x128xf32>
    %7 = arith.maximumf %3, %6 : vector<200x128xf32>
    %c2 = arith.constant 2 : index
    %c0_7 = arith.constant 0 : index
    %c0_8 = arith.constant 0 : index
    %8 = vector.load %arg1[%c2, %c0_7, %c0_8] : memref<4x200x256xbf16, #tpu.memory_space<vmem>>, vector<1x200x256xbf16>
    %9 = vector.shape_cast %8 : vector<1x200x256xbf16> to vector<200x256xbf16>
    %cst_9 = arith.constant dense<0.000000e+00> : vector<200x128xf32>
    %10 = tpu.matmul %9, %0, %cst_9 {dimension_numbers = #tpu.dot_dimension_numbers<[1], [0], [0], [1], [0, 0, 1, 1], [], []>} : vector<200x256xbf16>, vector<256x128xbf16>, vector<200x128xf32> -> vector<200x128xf32>
    %11 = arith.maximumf %7, %10 : vector<200x128xf32>
    %c3 = arith.constant 3 : index
    %c0_10 = arith.constant 0 : index
    %c0_11 = arith.constant 0 : index
    %12 = vector.load %arg1[%c3, %c0_10, %c0_11] : memref<4x200x256xbf16, #tpu.memory_space<vmem>>, vector<1x200x256xbf16>
    %13 = vector.shape_cast %12 : vector<1x200x256xbf16> to vector<200x256xbf16>
    %cst_12 = arith.constant dense<0.000000e+00> : vector<200x128xf32>
    %14 = tpu.matmul %13, %0, %cst_12 {dimension_numbers = #tpu.dot_dimension_numbers<[1], [0], [0], [1], [0, 0, 1, 1], [], []>} : vector<200x256xbf16>, vector<256x128xbf16>, vector<200x128xf32> -> vector<200x128xf32>
    %15 = arith.maximumf %11, %14 : vector<200x128xf32>
    %c0_13 = arith.constant 0 : index
    %c0_14 = arith.constant 0 : index
    %16 = vector.load %arg3[%c0_13, %c0_14] : memref<1x128xf32, #tpu.memory_space<vmem>>, vector<1x128xf32>
    %17 = vector.broadcast %16 : vector<1x128xf32> to vector<200x128xf32>
    %18 = arith.addf %15, %17 : vector<200x128xf32>
    %cst_15 = arith.constant 0.000000e+00 : f32
    %19 = vector.broadcast %cst_15 : f32 to vector<200x128xf32>
    %20 = arith.maximumf %18, %19 : vector<200x128xf32>
    %cst_16 = arith.constant 0.000000e+00 : f32
    %21 = vector.broadcast %cst_16 : f32 to vector<8x128xf32>
    %22 = vector.extract_strided_slice %20 {offsets = [0, 0], sizes = [8, 128], strides = [1, 1]} : vector<200x128xf32> to vector<8x128xf32>
    %23 = arith.truncf %22 : vector<8x128xf32> to vector<8x128xbf16>
    %c0_17 = arith.constant 0 : index
    %c0_18 = arith.constant 0 : index
    %c0_19 = arith.constant 0 : index
    %24 = vector.load %arg4[%c0_17, %c0_18, %c0_19] : memref<25x128x128xbf16, #tpu.memory_space<vmem>>, vector<1x128x128xbf16>
    %25 = vector.shape_cast %24 : vector<1x128x128xbf16> to vector<128x128xbf16>
    %cst_20 = arith.constant dense<0.000000e+00> : vector<8x128xf32>
    %26 = tpu.matmul %23, %25, %cst_20 {dimension_numbers = #tpu.dot_dimension_numbers<[1], [0], [0], [1], [0, 0, 1, 1], [], []>} : vector<8x128xbf16>, vector<128x128xbf16>, vector<8x128xf32> -> vector<8x128xf32>
    %27 = arith.addf %21, %26 : vector<8x128xf32>
    %28 = vector.extract_strided_slice %20 {offsets = [8, 0], sizes = [8, 128], strides = [1, 1]} : vector<200x128xf32> to vector<8x128xf32>
    %29 = arith.truncf %28 : vector<8x128xf32> to vector<8x128xbf16>
    %c1_21 = arith.constant 1 : index
    %c0_22 = arith.constant 0 : index
    %c0_23 = arith.constant 0 : index
    %30 = vector.load %arg4[%c1_21, %c0_22, %c0_23] : memref<25x128x128xbf16, #tpu.memory_space<vmem>>, vector<1x128x128xbf16>
    %31 = vector.shape_cast %30 : vector<1x128x128xbf16> to vector<128x128xbf16>
    %cst_24 = arith.constant dense<0.000000e+00> : vector<8x128xf32>
    %32 = tpu.matmul %29, %31, %cst_24 {dimension_numbers = #tpu.dot_dimension_numbers<[1], [0], [0], [1], [0, 0, 1, 1], [], []>} : vector<8x128xbf16>, vector<128x128xbf16>, vector<8x128xf32> -> vector<8x128xf32>
    %33 = arith.addf %27, %32 : vector<8x128xf32>
    %34 = vector.extract_strided_slice %20 {offsets = [16, 0], sizes = [8, 128], strides = [1, 1]} : vector<200x128xf32> to vector<8x128xf32>
    %35 = arith.truncf %34 : vector<8x128xf32> to vector<8x128xbf16>
    %c2_25 = arith.constant 2 : index
    %c0_26 = arith.constant 0 : index
    %c0_27 = arith.constant 0 : index
    %36 = vector.load %arg4[%c2_25, %c0_26, %c0_27] : memref<25x128x128xbf16, #tpu.memory_space<vmem>>, vector<1x128x128xbf16>
    %37 = vector.shape_cast %36 : vector<1x128x128xbf16> to vector<128x128xbf16>
    %cst_28 = arith.constant dense<0.000000e+00> : vector<8x128xf32>
    %38 = tpu.matmul %35, %37, %cst_28 {dimension_numbers = #tpu.dot_dimension_numbers<[1], [0], [0], [1], [0, 0, 1, 1], [], []>} : vector<8x128xbf16>, vector<128x128xbf16>, vector<8x128xf32> -> vector<8x128xf32>
    %39 = arith.addf %33, %38 : vector<8x128xf32>
    %40 = vector.extract_strided_slice %20 {offsets = [24, 0], sizes = [8, 128], strides = [1, 1]} : vector<200x128xf32> to vector<8x128xf32>
    %41 = arith.truncf %40 : vector<8x128xf32> to vector<8x128xbf16>
    %c3_29 = arith.constant 3 : index
    %c0_30 = arith.constant 0 : index
    %c0_31 = arith.constant 0 : index
    %42 = vector.load %arg4[%c3_29, %c0_30, %c0_31] : memref<25x128x128xbf16, #tpu.memory_space<vmem>>, vector<1x128x128xbf16>
    %43 = vector.shape_cast %42 : vector<1x128x128xbf16> to vector<128x128xbf16>
    %cst_32 = arith.constant dense<0.000000e+00> : vector<8x128xf32>
    %44 = tpu.matmul %41, %43, %cst_32 {dimension_numbers = #tpu.dot_dimension_numbers<[1], [0], [0], [1], [0, 0, 1, 1], [], []>} : vector<8x128xbf16>, vector<128x128xbf16>, vector<8x128xf32> -> vector<8x128xf32>
    %45 = arith.addf %39, %44 : vector<8x128xf32>
    %46 = vector.extract_strided_slice %20 {offsets = [32, 0], sizes = [8, 128], strides = [1, 1]} : vector<200x128xf32> to vector<8x128xf32>
    %47 = arith.truncf %46 : vector<8x128xf32> to vector<8x128xbf16>
    %c4 = arith.constant 4 : index
    %c0_33 = arith.constant 0 : index
    %c0_34 = arith.constant 0 : index
    %48 = vector.load %arg4[%c4, %c0_33, %c0_34] : memref<25x128x128xbf16, #tpu.memory_space<vmem>>, vector<1x128x128xbf16>
    %49 = vector.shape_cast %48 : vector<1x128x128xbf16> to vector<128x128xbf16>
    %cst_35 = arith.constant dense<0.000000e+00> : vector<8x128xf32>
    %50 = tpu.matmul %47, %49, %cst_35 {dimension_numbers = #tpu.dot_dimension_numbers<[1], [0], [0], [1], [0, 0, 1, 1], [], []>} : vector<8x128xbf16>, vector<128x128xbf16>, vector<8x128xf32> -> vector<8x128xf32>
    %51 = arith.addf %45, %50 : vector<8x128xf32>
    %52 = vector.extract_strided_slice %20 {offsets = [40, 0], sizes = [8, 128], strides = [1, 1]} : vector<200x128xf32> to vector<8x128xf32>
    %53 = arith.truncf %52 : vector<8x128xf32> to vector<8x128xbf16>
    %c5 = arith.constant 5 : index
    %c0_36 = arith.constant 0 : index
    %c0_37 = arith.constant 0 : index
    %54 = vector.load %arg4[%c5, %c0_36, %c0_37] : memref<25x128x128xbf16, #tpu.memory_space<vmem>>, vector<1x128x128xbf16>
    %55 = vector.shape_cast %54 : vector<1x128x128xbf16> to vector<128x128xbf16>
    %cst_38 = arith.constant dense<0.000000e+00> : vector<8x128xf32>
    %56 = tpu.matmul %53, %55, %cst_38 {dimension_numbers = #tpu.dot_dimension_numbers<[1], [0], [0], [1], [0, 0, 1, 1], [], []>} : vector<8x128xbf16>, vector<128x128xbf16>, vector<8x128xf32> -> vector<8x128xf32>
    %57 = arith.addf %51, %56 : vector<8x128xf32>
    %58 = vector.extract_strided_slice %20 {offsets = [48, 0], sizes = [8, 128], strides = [1, 1]} : vector<200x128xf32> to vector<8x128xf32>
    %59 = arith.truncf %58 : vector<8x128xf32> to vector<8x128xbf16>
    %c6 = arith.constant 6 : index
    %c0_39 = arith.constant 0 : index
    %c0_40 = arith.constant 0 : index
    %60 = vector.load %arg4[%c6, %c0_39, %c0_40] : memref<25x128x128xbf16, #tpu.memory_space<vmem>>, vector<1x128x128xbf16>
    %61 = vector.shape_cast %60 : vector<1x128x128xbf16> to vector<128x128xbf16>
    %cst_41 = arith.constant dense<0.000000e+00> : vector<8x128xf32>
    %62 = tpu.matmul %59, %61, %cst_41 {dimension_numbers = #tpu.dot_dimension_numbers<[1], [0], [0], [1], [0, 0, 1, 1], [], []>} : vector<8x128xbf16>, vector<128x128xbf16>, vector<8x128xf32> -> vector<8x128xf32>
    %63 = arith.addf %57, %62 : vector<8x128xf32>
    %64 = vector.extract_strided_slice %20 {offsets = [56, 0], sizes = [8, 128], strides = [1, 1]} : vector<200x128xf32> to vector<8x128xf32>
    %65 = arith.truncf %64 : vector<8x128xf32> to vector<8x128xbf16>
    %c7 = arith.constant 7 : index
    %c0_42 = arith.constant 0 : index
    %c0_43 = arith.constant 0 : index
    %66 = vector.load %arg4[%c7, %c0_42, %c0_43] : memref<25x128x128xbf16, #tpu.memory_space<vmem>>, vector<1x128x128xbf16>
    %67 = vector.shape_cast %66 : vector<1x128x128xbf16> to vector<128x128xbf16>
    %cst_44 = arith.constant dense<0.000000e+00> : vector<8x128xf32>
    %68 = tpu.matmul %65, %67, %cst_44 {dimension_numbers = #tpu.dot_dimension_numbers<[1], [0], [0], [1], [0, 0, 1, 1], [], []>} : vector<8x128xbf16>, vector<128x128xbf16>, vector<8x128xf32> -> vector<8x128xf32>
    %69 = arith.addf %63, %68 : vector<8x128xf32>
    %70 = vector.extract_strided_slice %20 {offsets = [64, 0], sizes = [8, 128], strides = [1, 1]} : vector<200x128xf32> to vector<8x128xf32>
    %71 = arith.truncf %70 : vector<8x128xf32> to vector<8x128xbf16>
    %c8 = arith.constant 8 : index
    %c0_45 = arith.constant 0 : index
    %c0_46 = arith.constant 0 : index
    %72 = vector.load %arg4[%c8, %c0_45, %c0_46] : memref<25x128x128xbf16, #tpu.memory_space<vmem>>, vector<1x128x128xbf16>
    %73 = vector.shape_cast %72 : vector<1x128x128xbf16> to vector<128x128xbf16>
    %cst_47 = arith.constant dense<0.000000e+00> : vector<8x128xf32>
    %74 = tpu.matmul %71, %73, %cst_47 {dimension_numbers = #tpu.dot_dimension_numbers<[1], [0], [0], [1], [0, 0, 1, 1], [], []>} : vector<8x128xbf16>, vector<128x128xbf16>, vector<8x128xf32> -> vector<8x128xf32>
    %75 = arith.addf %69, %74 : vector<8x128xf32>
    %76 = vector.extract_strided_slice %20 {offsets = [72, 0], sizes = [8, 128], strides = [1, 1]} : vector<200x128xf32> to vector<8x128xf32>
    %77 = arith.truncf %76 : vector<8x128xf32> to vector<8x128xbf16>
    %c9 = arith.constant 9 : index
    %c0_48 = arith.constant 0 : index
    %c0_49 = arith.constant 0 : index
    %78 = vector.load %arg4[%c9, %c0_48, %c0_49] : memref<25x128x128xbf16, #tpu.memory_space<vmem>>, vector<1x128x128xbf16>
    %79 = vector.shape_cast %78 : vector<1x128x128xbf16> to vector<128x128xbf16>
    %cst_50 = arith.constant dense<0.000000e+00> : vector<8x128xf32>
    %80 = tpu.matmul %77, %79, %cst_50 {dimension_numbers = #tpu.dot_dimension_numbers<[1], [0], [0], [1], [0, 0, 1, 1], [], []>} : vector<8x128xbf16>, vector<128x128xbf16>, vector<8x128xf32> -> vector<8x128xf32>
    %81 = arith.addf %75, %80 : vector<8x128xf32>
    %82 = vector.extract_strided_slice %20 {offsets = [80, 0], sizes = [8, 128], strides = [1, 1]} : vector<200x128xf32> to vector<8x128xf32>
    %83 = arith.truncf %82 : vector<8x128xf32> to vector<8x128xbf16>
    %c10 = arith.constant 10 : index
    %c0_51 = arith.constant 0 : index
    %c0_52 = arith.constant 0 : index
    %84 = vector.load %arg4[%c10, %c0_51, %c0_52] : memref<25x128x128xbf16, #tpu.memory_space<vmem>>, vector<1x128x128xbf16>
    %85 = vector.shape_cast %84 : vector<1x128x128xbf16> to vector<128x128xbf16>
    %cst_53 = arith.constant dense<0.000000e+00> : vector<8x128xf32>
    %86 = tpu.matmul %83, %85, %cst_53 {dimension_numbers = #tpu.dot_dimension_numbers<[1], [0], [0], [1], [0, 0, 1, 1], [], []>} : vector<8x128xbf16>, vector<128x128xbf16>, vector<8x128xf32> -> vector<8x128xf32>
    %87 = arith.addf %81, %86 : vector<8x128xf32>
    %88 = vector.extract_strided_slice %20 {offsets = [88, 0], sizes = [8, 128], strides = [1, 1]} : vector<200x128xf32> to vector<8x128xf32>
    %89 = arith.truncf %88 : vector<8x128xf32> to vector<8x128xbf16>
    %c11 = arith.constant 11 : index
    %c0_54 = arith.constant 0 : index
    %c0_55 = arith.constant 0 : index
    %90 = vector.load %arg4[%c11, %c0_54, %c0_55] : memref<25x128x128xbf16, #tpu.memory_space<vmem>>, vector<1x128x128xbf16>
    %91 = vector.shape_cast %90 : vector<1x128x128xbf16> to vector<128x128xbf16>
    %cst_56 = arith.constant dense<0.000000e+00> : vector<8x128xf32>
    %92 = tpu.matmul %89, %91, %cst_56 {dimension_numbers = #tpu.dot_dimension_numbers<[1], [0], [0], [1], [0, 0, 1, 1], [], []>} : vector<8x128xbf16>, vector<128x128xbf16>, vector<8x128xf32> -> vector<8x128xf32>
    %93 = arith.addf %87, %92 : vector<8x128xf32>
    %94 = vector.extract_strided_slice %20 {offsets = [96, 0], sizes = [8, 128], strides = [1, 1]} : vector<200x128xf32> to vector<8x128xf32>
    %95 = arith.truncf %94 : vector<8x128xf32> to vector<8x128xbf16>
    %c12 = arith.constant 12 : index
    %c0_57 = arith.constant 0 : index
    %c0_58 = arith.constant 0 : index
    %96 = vector.load %arg4[%c12, %c0_57, %c0_58] : memref<25x128x128xbf16, #tpu.memory_space<vmem>>, vector<1x128x128xbf16>
    %97 = vector.shape_cast %96 : vector<1x128x128xbf16> to vector<128x128xbf16>
    %cst_59 = arith.constant dense<0.000000e+00> : vector<8x128xf32>
    %98 = tpu.matmul %95, %97, %cst_59 {dimension_numbers = #tpu.dot_dimension_numbers<[1], [0], [0], [1], [0, 0, 1, 1], [], []>} : vector<8x128xbf16>, vector<128x128xbf16>, vector<8x128xf32> -> vector<8x128xf32>
    %99 = arith.addf %93, %98 : vector<8x128xf32>
    %100 = vector.extract_strided_slice %20 {offsets = [104, 0], sizes = [8, 128], strides = [1, 1]} : vector<200x128xf32> to vector<8x128xf32>
    %101 = arith.truncf %100 : vector<8x128xf32> to vector<8x128xbf16>
    %c13 = arith.constant 13 : index
    %c0_60 = arith.constant 0 : index
    %c0_61 = arith.constant 0 : index
    %102 = vector.load %arg4[%c13, %c0_60, %c0_61] : memref<25x128x128xbf16, #tpu.memory_space<vmem>>, vector<1x128x128xbf16>
    %103 = vector.shape_cast %102 : vector<1x128x128xbf16> to vector<128x128xbf16>
    %cst_62 = arith.constant dense<0.000000e+00> : vector<8x128xf32>
    %104 = tpu.matmul %101, %103, %cst_62 {dimension_numbers = #tpu.dot_dimension_numbers<[1], [0], [0], [1], [0, 0, 1, 1], [], []>} : vector<8x128xbf16>, vector<128x128xbf16>, vector<8x128xf32> -> vector<8x128xf32>
    %105 = arith.addf %99, %104 : vector<8x128xf32>
    %106 = vector.extract_strided_slice %20 {offsets = [112, 0], sizes = [8, 128], strides = [1, 1]} : vector<200x128xf32> to vector<8x128xf32>
    %107 = arith.truncf %106 : vector<8x128xf32> to vector<8x128xbf16>
    %c14 = arith.constant 14 : index
    %c0_63 = arith.constant 0 : index
    %c0_64 = arith.constant 0 : index
    %108 = vector.load %arg4[%c14, %c0_63, %c0_64] : memref<25x128x128xbf16, #tpu.memory_space<vmem>>, vector<1x128x128xbf16>
    %109 = vector.shape_cast %108 : vector<1x128x128xbf16> to vector<128x128xbf16>
    %cst_65 = arith.constant dense<0.000000e+00> : vector<8x128xf32>
    %110 = tpu.matmul %107, %109, %cst_65 {dimension_numbers = #tpu.dot_dimension_numbers<[1], [0], [0], [1], [0, 0, 1, 1], [], []>} : vector<8x128xbf16>, vector<128x128xbf16>, vector<8x128xf32> -> vector<8x128xf32>
    %111 = arith.addf %105, %110 : vector<8x128xf32>
    %112 = vector.extract_strided_slice %20 {offsets = [120, 0], sizes = [8, 128], strides = [1, 1]} : vector<200x128xf32> to vector<8x128xf32>
    %113 = arith.truncf %112 : vector<8x128xf32> to vector<8x128xbf16>
    %c15 = arith.constant 15 : index
    %c0_66 = arith.constant 0 : index
    %c0_67 = arith.constant 0 : index
    %114 = vector.load %arg4[%c15, %c0_66, %c0_67] : memref<25x128x128xbf16, #tpu.memory_space<vmem>>, vector<1x128x128xbf16>
    %115 = vector.shape_cast %114 : vector<1x128x128xbf16> to vector<128x128xbf16>
    %cst_68 = arith.constant dense<0.000000e+00> : vector<8x128xf32>
    %116 = tpu.matmul %113, %115, %cst_68 {dimension_numbers = #tpu.dot_dimension_numbers<[1], [0], [0], [1], [0, 0, 1, 1], [], []>} : vector<8x128xbf16>, vector<128x128xbf16>, vector<8x128xf32> -> vector<8x128xf32>
    %117 = arith.addf %111, %116 : vector<8x128xf32>
    %118 = vector.extract_strided_slice %20 {offsets = [128, 0], sizes = [8, 128], strides = [1, 1]} : vector<200x128xf32> to vector<8x128xf32>
    %119 = arith.truncf %118 : vector<8x128xf32> to vector<8x128xbf16>
    %c16 = arith.constant 16 : index
    %c0_69 = arith.constant 0 : index
    %c0_70 = arith.constant 0 : index
    %120 = vector.load %arg4[%c16, %c0_69, %c0_70] : memref<25x128x128xbf16, #tpu.memory_space<vmem>>, vector<1x128x128xbf16>
    %121 = vector.shape_cast %120 : vector<1x128x128xbf16> to vector<128x128xbf16>
    %cst_71 = arith.constant dense<0.000000e+00> : vector<8x128xf32>
    %122 = tpu.matmul %119, %121, %cst_71 {dimension_numbers = #tpu.dot_dimension_numbers<[1], [0], [0], [1], [0, 0, 1, 1], [], []>} : vector<8x128xbf16>, vector<128x128xbf16>, vector<8x128xf32> -> vector<8x128xf32>
    %123 = arith.addf %117, %122 : vector<8x128xf32>
    %124 = vector.extract_strided_slice %20 {offsets = [136, 0], sizes = [8, 128], strides = [1, 1]} : vector<200x128xf32> to vector<8x128xf32>
    %125 = arith.truncf %124 : vector<8x128xf32> to vector<8x128xbf16>
    %c17 = arith.constant 17 : index
    %c0_72 = arith.constant 0 : index
    %c0_73 = arith.constant 0 : index
    %126 = vector.load %arg4[%c17, %c0_72, %c0_73] : memref<25x128x128xbf16, #tpu.memory_space<vmem>>, vector<1x128x128xbf16>
    %127 = vector.shape_cast %126 : vector<1x128x128xbf16> to vector<128x128xbf16>
    %cst_74 = arith.constant dense<0.000000e+00> : vector<8x128xf32>
    %128 = tpu.matmul %125, %127, %cst_74 {dimension_numbers = #tpu.dot_dimension_numbers<[1], [0], [0], [1], [0, 0, 1, 1], [], []>} : vector<8x128xbf16>, vector<128x128xbf16>, vector<8x128xf32> -> vector<8x128xf32>
    %129 = arith.addf %123, %128 : vector<8x128xf32>
    %130 = vector.extract_strided_slice %20 {offsets = [144, 0], sizes = [8, 128], strides = [1, 1]} : vector<200x128xf32> to vector<8x128xf32>
    %131 = arith.truncf %130 : vector<8x128xf32> to vector<8x128xbf16>
    %c18 = arith.constant 18 : index
    %c0_75 = arith.constant 0 : index
    %c0_76 = arith.constant 0 : index
    %132 = vector.load %arg4[%c18, %c0_75, %c0_76] : memref<25x128x128xbf16, #tpu.memory_space<vmem>>, vector<1x128x128xbf16>
    %133 = vector.shape_cast %132 : vector<1x128x128xbf16> to vector<128x128xbf16>
    %cst_77 = arith.constant dense<0.000000e+00> : vector<8x128xf32>
    %134 = tpu.matmul %131, %133, %cst_77 {dimension_numbers = #tpu.dot_dimension_numbers<[1], [0], [0], [1], [0, 0, 1, 1], [], []>} : vector<8x128xbf16>, vector<128x128xbf16>, vector<8x128xf32> -> vector<8x128xf32>
    %135 = arith.addf %129, %134 : vector<8x128xf32>
    %136 = vector.extract_strided_slice %20 {offsets = [152, 0], sizes = [8, 128], strides = [1, 1]} : vector<200x128xf32> to vector<8x128xf32>
    %137 = arith.truncf %136 : vector<8x128xf32> to vector<8x128xbf16>
    %c19 = arith.constant 19 : index
    %c0_78 = arith.constant 0 : index
    %c0_79 = arith.constant 0 : index
    %138 = vector.load %arg4[%c19, %c0_78, %c0_79] : memref<25x128x128xbf16, #tpu.memory_space<vmem>>, vector<1x128x128xbf16>
    %139 = vector.shape_cast %138 : vector<1x128x128xbf16> to vector<128x128xbf16>
    %cst_80 = arith.constant dense<0.000000e+00> : vector<8x128xf32>
    %140 = tpu.matmul %137, %139, %cst_80 {dimension_numbers = #tpu.dot_dimension_numbers<[1], [0], [0], [1], [0, 0, 1, 1], [], []>} : vector<8x128xbf16>, vector<128x128xbf16>, vector<8x128xf32> -> vector<8x128xf32>
    %141 = arith.addf %135, %140 : vector<8x128xf32>
    %142 = vector.extract_strided_slice %20 {offsets = [160, 0], sizes = [8, 128], strides = [1, 1]} : vector<200x128xf32> to vector<8x128xf32>
    %143 = arith.truncf %142 : vector<8x128xf32> to vector<8x128xbf16>
    %c20 = arith.constant 20 : index
    %c0_81 = arith.constant 0 : index
    %c0_82 = arith.constant 0 : index
    %144 = vector.load %arg4[%c20, %c0_81, %c0_82] : memref<25x128x128xbf16, #tpu.memory_space<vmem>>, vector<1x128x128xbf16>
    %145 = vector.shape_cast %144 : vector<1x128x128xbf16> to vector<128x128xbf16>
    %cst_83 = arith.constant dense<0.000000e+00> : vector<8x128xf32>
    %146 = tpu.matmul %143, %145, %cst_83 {dimension_numbers = #tpu.dot_dimension_numbers<[1], [0], [0], [1], [0, 0, 1, 1], [], []>} : vector<8x128xbf16>, vector<128x128xbf16>, vector<8x128xf32> -> vector<8x128xf32>
    %147 = arith.addf %141, %146 : vector<8x128xf32>
    %148 = vector.extract_strided_slice %20 {offsets = [168, 0], sizes = [8, 128], strides = [1, 1]} : vector<200x128xf32> to vector<8x128xf32>
    %149 = arith.truncf %148 : vector<8x128xf32> to vector<8x128xbf16>
    %c21 = arith.constant 21 : index
    %c0_84 = arith.constant 0 : index
    %c0_85 = arith.constant 0 : index
    %150 = vector.load %arg4[%c21, %c0_84, %c0_85] : memref<25x128x128xbf16, #tpu.memory_space<vmem>>, vector<1x128x128xbf16>
    %151 = vector.shape_cast %150 : vector<1x128x128xbf16> to vector<128x128xbf16>
    %cst_86 = arith.constant dense<0.000000e+00> : vector<8x128xf32>
    %152 = tpu.matmul %149, %151, %cst_86 {dimension_numbers = #tpu.dot_dimension_numbers<[1], [0], [0], [1], [0, 0, 1, 1], [], []>} : vector<8x128xbf16>, vector<128x128xbf16>, vector<8x128xf32> -> vector<8x128xf32>
    %153 = arith.addf %147, %152 : vector<8x128xf32>
    %154 = vector.extract_strided_slice %20 {offsets = [176, 0], sizes = [8, 128], strides = [1, 1]} : vector<200x128xf32> to vector<8x128xf32>
    %155 = arith.truncf %154 : vector<8x128xf32> to vector<8x128xbf16>
    %c22 = arith.constant 22 : index
    %c0_87 = arith.constant 0 : index
    %c0_88 = arith.constant 0 : index
    %156 = vector.load %arg4[%c22, %c0_87, %c0_88] : memref<25x128x128xbf16, #tpu.memory_space<vmem>>, vector<1x128x128xbf16>
    %157 = vector.shape_cast %156 : vector<1x128x128xbf16> to vector<128x128xbf16>
    %cst_89 = arith.constant dense<0.000000e+00> : vector<8x128xf32>
    %158 = tpu.matmul %155, %157, %cst_89 {dimension_numbers = #tpu.dot_dimension_numbers<[1], [0], [0], [1], [0, 0, 1, 1], [], []>} : vector<8x128xbf16>, vector<128x128xbf16>, vector<8x128xf32> -> vector<8x128xf32>
    %159 = arith.addf %153, %158 : vector<8x128xf32>
    %160 = vector.extract_strided_slice %20 {offsets = [184, 0], sizes = [8, 128], strides = [1, 1]} : vector<200x128xf32> to vector<8x128xf32>
    %161 = arith.truncf %160 : vector<8x128xf32> to vector<8x128xbf16>
    %c23 = arith.constant 23 : index
    %c0_90 = arith.constant 0 : index
    %c0_91 = arith.constant 0 : index
    %162 = vector.load %arg4[%c23, %c0_90, %c0_91] : memref<25x128x128xbf16, #tpu.memory_space<vmem>>, vector<1x128x128xbf16>
    %163 = vector.shape_cast %162 : vector<1x128x128xbf16> to vector<128x128xbf16>
    %cst_92 = arith.constant dense<0.000000e+00> : vector<8x128xf32>
    %164 = tpu.matmul %161, %163, %cst_92 {dimension_numbers = #tpu.dot_dimension_numbers<[1], [0], [0], [1], [0, 0, 1, 1], [], []>} : vector<8x128xbf16>, vector<128x128xbf16>, vector<8x128xf32> -> vector<8x128xf32>
    %165 = arith.addf %159, %164 : vector<8x128xf32>
    %166 = vector.extract_strided_slice %20 {offsets = [192, 0], sizes = [8, 128], strides = [1, 1]} : vector<200x128xf32> to vector<8x128xf32>
    %167 = arith.truncf %166 : vector<8x128xf32> to vector<8x128xbf16>
    %c24 = arith.constant 24 : index
    %c0_93 = arith.constant 0 : index
    %c0_94 = arith.constant 0 : index
    %168 = vector.load %arg4[%c24, %c0_93, %c0_94] : memref<25x128x128xbf16, #tpu.memory_space<vmem>>, vector<1x128x128xbf16>
    %169 = vector.shape_cast %168 : vector<1x128x128xbf16> to vector<128x128xbf16>
    %cst_95 = arith.constant dense<0.000000e+00> : vector<8x128xf32>
    %170 = tpu.matmul %167, %169, %cst_95 {dimension_numbers = #tpu.dot_dimension_numbers<[1], [0], [0], [1], [0, 0, 1, 1], [], []>} : vector<8x128xbf16>, vector<128x128xbf16>, vector<8x128xf32> -> vector<8x128xf32>
    %171 = arith.addf %165, %170 : vector<8x128xf32>
    %c0_96 = arith.constant 0 : index
    %c0_97 = arith.constant 0 : index
    %172 = vector.load %arg5[%c0_96, %c0_97] : memref<1x128xf32, #tpu.memory_space<vmem>>, vector<1x128xf32>
    %173 = vector.broadcast %172 : vector<1x128xf32> to vector<8x128xf32>
    %174 = arith.addf %171, %173 : vector<8x128xf32>
    %cst_98 = arith.constant 0.000000e+00 : f32
    %175 = vector.broadcast %cst_98 : f32 to vector<8x128xf32>
    %176 = arith.maximumf %174, %175 : vector<8x128xf32>
    %177 = arith.truncf %176 : vector<8x128xf32> to vector<8x128xbf16>
    %c0_99 = arith.constant 0 : index
    %c0_100 = arith.constant 0 : index
    %178 = vector.load %arg6[%c0_99, %c0_100] : memref<128x128xbf16, #tpu.memory_space<vmem>>, vector<128x128xbf16>
    %cst_101 = arith.constant dense<0.000000e+00> : vector<8x128xf32>
    %179 = tpu.matmul %177, %178, %cst_101 {dimension_numbers = #tpu.dot_dimension_numbers<[1], [0], [0], [1], [0, 0, 1, 1], [], []>} : vector<8x128xbf16>, vector<128x128xbf16>, vector<8x128xf32> -> vector<8x128xf32>
    %c0_102 = arith.constant 0 : index
    %c0_103 = arith.constant 0 : index
    %180 = vector.load %arg7[%c0_102, %c0_103] : memref<1x128xf32, #tpu.memory_space<vmem>>, vector<1x128xf32>
    %181 = vector.broadcast %180 : vector<1x128xf32> to vector<8x128xf32>
    %182 = arith.addf %179, %181 : vector<8x128xf32>
    %cst_104 = arith.constant 0.000000e+00 : f32
    %183 = vector.broadcast %cst_104 : f32 to vector<8x128xf32>
    %184 = arith.maximumf %182, %183 : vector<8x128xf32>
    %185 = arith.truncf %184 : vector<8x128xf32> to vector<8x128xbf16>
    %c0_105 = arith.constant 0 : index
    %c0_106 = arith.constant 0 : index
    %186 = vector.load %arg8[%c0_105, %c0_106] : memref<128x128xbf16, #tpu.memory_space<vmem>>, vector<128x128xbf16>
    %cst_107 = arith.constant dense<0.000000e+00> : vector<8x128xf32>
    %187 = tpu.matmul %185, %186, %cst_107 {dimension_numbers = #tpu.dot_dimension_numbers<[1], [0], [0], [1], [0, 0, 1, 1], [], []>} : vector<8x128xbf16>, vector<128x128xbf16>, vector<8x128xf32> -> vector<8x128xf32>
    %c0_108 = arith.constant 0 : index
    %c0_109 = arith.constant 0 : index
    %188 = vector.load %arg9[%c0_108, %c0_109] : memref<1x128xf32, #tpu.memory_space<vmem>>, vector<1x128xf32>
    %189 = vector.broadcast %188 : vector<1x128xf32> to vector<8x128xf32>
    %190 = arith.addf %187, %189 : vector<8x128xf32>
    %c0_110 = arith.constant 0 : index
    %c0_111 = arith.constant 0 : index
    %191 = vector.load %arg10[%c0_110, %c0_111] : memref<8x128xf32, #tpu.memory_space<vmem>>, vector<8x128xf32>
    tpu.vector_store %arg10[%c0_110, %c0_111], %190 {strides = array<i32>} : memref<8x128xf32, #tpu.memory_space<vmem>>, vector<8x128xf32>,
    return
  }
  func.func @transform_0(%arg0: i32) -> (i32, i32, i32) {
    %c0_i32 = arith.constant 0 : i32
    %c0_i32_0 = arith.constant 0 : i32
    %c0_i32_1 = arith.constant 0 : i32
    return %c0_i32, %arg0, %c0_i32_0 : i32, i32, i32
  }
  func.func @transform_1(%arg0: i32) -> (i32, i32) {
    %c0_i32 = arith.constant 0 : i32
    %c0_i32_0 = arith.constant 0 : i32
    %c0_i32_1 = arith.constant 0 : i32
    return %c0_i32, %c0_i32_0 : i32, i32
  }
  func.func @transform_2(%arg0: i32) -> (i32, i32) {
    %c0_i32 = arith.constant 0 : i32
    %c0_i32_0 = arith.constant 0 : i32
    %c0_i32_1 = arith.constant 0 : i32
    return %c0_i32, %c0_i32_0 : i32, i32
  }
  func.func @transform_3(%arg0: i32) -> (i32, i32, i32) {
    %c0_i32 = arith.constant 0 : i32
    %c0_i32_0 = arith.constant 0 : i32
    %c0_i32_1 = arith.constant 0 : i32
    %c0_i32_2 = arith.constant 0 : i32
    return %c0_i32, %c0_i32_0, %c0_i32_1 : i32, i32, i32
  }
  func.func @transform_4(%arg0: i32) -> (i32, i32) {
    %c0_i32 = arith.constant 0 : i32
    %c0_i32_0 = arith.constant 0 : i32
    %c0_i32_1 = arith.constant 0 : i32
    return %c0_i32, %c0_i32_0 : i32, i32
  }
  func.func @transform_5(%arg0: i32) -> (i32, i32) {
    %c0_i32 = arith.constant 0 : i32
    %c0_i32_0 = arith.constant 0 : i32
    %c0_i32_1 = arith.constant 0 : i32
    return %c0_i32, %c0_i32_0 : i32, i32
  }
  func.func @transform_6(%arg0: i32) -> (i32, i32) {
    %c0_i32 = arith.constant 0 : i32
    %c0_i32_0 = arith.constant 0 : i32
    %c0_i32_1 = arith.constant 0 : i32
    return %c0_i32, %c0_i32_0 : i32, i32
  }
  func.func @transform_7(%arg0: i32) -> (i32, i32) {
    %c0_i32 = arith.constant 0 : i32
    %c0_i32_0 = arith.constant 0 : i32
    %c0_i32_1 = arith.constant 0 : i32
    return %c0_i32, %c0_i32_0 : i32, i32
  }
  func.func @transform_8(%arg0: i32) -> (i32, i32) {
    %c0_i32 = arith.constant 0 : i32
    %c0_i32_0 = arith.constant 0 : i32
    %c0_i32_1 = arith.constant 0 : i32
    return %c0_i32, %c0_i32_0 : i32, i32
  }
  func.func @transform_9(%arg0: i32) -> (i32, i32) {
    %c0_i32 = arith.constant 0 : i32
    %c0_i32_0 = arith.constant 0 : i32
    return %arg0, %c0_i32 : i32, i32
  }
}

</mosaic_0001>

<llo_original>
// kernel: lenet_forward.2
$region0: #{lenet_forward.2}
  #allocation0 [shape = 'u32[]', space=smem, size = 0x4, offset = 0x4, fixed_abs, tag = 'smem constant byte address 0x4 - core index']
  #allocation1 [shape = 'u32[144,128]{1,0:T(1,128)}', space=vmem, size = 0x12000, scoped, tag = 'internal scratch']
  %s0 = inlined_call_operand.vmem [shape: bf16[4,400,128], index: 0, kind: input, shape index: {}]
  %s1 = inlined_call_operand.vmem [shape: bf16[128,128], index: 1, kind: input, shape index: {}]
  %s2 = inlined_call_operand.vmem [shape: f32[1,128], index: 2, kind: input, shape index: {}]
  %s3 = inlined_call_operand.vmem [shape: bf16[400,128], index: 3, kind: output, shape index: {}]
  %s4 = sld [smem:[#allocation0]]
  $region22: #{lenet_forward.2} parent=0
    _
  %s6 = ssub.s32 1, %s4
  %s7 = scalar_select 0, %s6, %s4
  // Predicated region
  $region2: #{lenet_forward.2} parent=0 // pred_check
    _
  $region3: #{lenet_forward.2} parent=0 // pred_check_branch
    %9 = sbr.rel (0) target = $region5
  $region4: #{lenet_forward.2} parent=0 // pred_region
    _
  $region5: #{lenet_forward.2} parent=0 // pred_fallthru
    _
  // Predicated region
  $region6: #{lenet_forward.2} parent=0 // pred_check
    _
  $region7: #{lenet_forward.2} parent=0 // pred_check_branch
    %11 = sbr.rel (0) target = $region9
  $region8: #{lenet_forward.2} parent=0 // pred_region
    _
  $region9: #{lenet_forward.2} parent=0 // pred_fallthru
    _
  // Predicated region
  $region10: #{lenet_forward.2} parent=0 // pred_check
    _
  $region11: #{lenet_forward.2} parent=0 // pred_check_branch
    %13 = sbr.rel (0) target = $region13
  $region12: #{lenet_forward.2} parent=0 // pred_region
    _
  $region13: #{lenet_forward.2} parent=0 // pred_fallthru
    _
  %v15 = vld [vmem:[%s1] sm:$0xf]
  %v16 = vld [vmem:[%s1 + $0x4] sm:$0xf]
  %v17 = vld [vmem:[%s1 + $0x8] sm:$0xf]
  %v18 = vld [vmem:[%s1 + $0xc] sm:$0xf]
  %v19 = vld [vmem:[%s1 + $0x10] sm:$0xf]
  %v20 = vld [vmem:[%s1 + $0x14] sm:$0xf]
  %v21 = vld [vmem:[%s1 + $0x18] sm:$0xf]
  %v22 = vld [vmem:[%s1 + $0x1c] sm:$0xf]
  %v23 = vld [vmem:[%s1 + $0x20] sm:$0xf]
  %v24 = vld [vmem:[%s1 + $0x24] sm:$0xf]
  %v25 = vld [vmem:[%s1 + $0x28] sm:$0xf]
  %v26 = vld [vmem:[%s1 + $0x2c] sm:$0xf]
  %v27 = vld [vmem:[%s1 + $0x30] sm:$0xf]
  %v28 = vld [vmem:[%s1 + $0x34] sm:$0xf]
  %v29 = vld [vmem:[%s1 + $0x38] sm:$0xf]
  %v30 = vld [vmem:[%s1 + $0x3c] sm:$0xf]
  %v31 = vld [vmem:[%s0] sm:$0xf]
  %v32 = vld [vmem:[%s0 + $0x4] sm:$0xf]
  %v33 = vld [vmem:[%s0 + $0x8] sm:$0xf]
  %v34 = vld [vmem:[%s0 + $0xc] sm:$0xf]
  %v35 = vld [vmem:[%s0 + $0x10] sm:$0xf]
  %v36 = vld [vmem:[%s0 + $0x14] sm:$0xf]
  %v37 = vld [vmem:[%s0 + $0x18] sm:$0xf]
  %v38 = vld [vmem:[%s0 + $0x1c] sm:$0xf]
  %v39 = vld [vmem:[%s0 + $0x20] sm:$0xf]
  %v40 = vld [vmem:[%s0 + $0x24] sm:$0xf]
  %v41 = vld [vmem:[%s0 + $0x28] sm:$0xf]
  %v42 = vld [vmem:[%s0 + $0x2c] sm:$0xf]
  %v43 = vld [vmem:[%s0 + $0x30] sm:$0xf]
  %v44 = vld [vmem:[%s0 + $0x34] sm:$0xf]
  %v45 = vld [vmem:[%s0 + $0x38] sm:$0xf]
  %v46 = vld [vmem:[%s0 + $0x3c] sm:$0xf]
  %v47 = vld [vmem:[%s0 + $0x40] sm:$0xf]
  %v48 = vld [vmem:[%s0 + $0x44] sm:$0xf]
  %v49 = vld [vmem:[%s0 + $0x48] sm:$0xf]
  %v50 = vld [vmem:[%s0 + $0x4c] sm:$0xf]
  %v51 = vld [vmem:[%s0 + $0x50] sm:$0xf]
  %v52 = vld [vmem:[%s0 + $0x54] sm:$0xf]
  %v53 = vld [vmem:[%s0 + $0x58] sm:$0xf]
  %v54 = vld [vmem:[%s0 + $0x5c] sm:$0xf]
  %v55 = vld [vmem:[%s0 + $0x60] sm:$0xf]
  %v56 = vld [vmem:[%s0 + $0x64] sm:$0xf]
  %v57 = vld [vmem:[%s0 + $0x68] sm:$0xf]
  %v58 = vld [vmem:[%s0 + $0x6c] sm:$0xf]
  %v59 = vld [vmem:[%s0 + $0x70] sm:$0xf]
  %v60 = vld [vmem:[%s0 + $0x74] sm:$0xf]
  %v61 = vld [vmem:[%s0 + $0x78] sm:$0xf]
  %v62 = vld [vmem:[%s0 + $0x7c] sm:$0xf]
  %v63 = vld [vmem:[%s0 + $0x80] sm:$0xf]
  %v64 = vld [vmem:[%s0 + $0x84] sm:$0xf]
  %v65 = vld [vmem:[%s0 + $0x88] sm:$0xf]
  %v66 = vld [vmem:[%s0 + $0x8c] sm:$0xf]
  %v67 = vld [vmem:[%s0 + $0x90] sm:$0xf]
  %v68 = vld [vmem:[%s0 + $0x94] sm:$0xf]
  %v69 = vld [vmem:[%s0 + $0x98] sm:$0xf]
  %v70 = vld [vmem:[%s0 + $0x9c] sm:$0xf]
  %v71 = vld [vmem:[%s0 + $0xa0] sm:$0xf]
  %v72 = vld [vmem:[%s0 + $0xa4] sm:$0xf]
  %v73 = vld [vmem:[%s0 + $0xa8] sm:$0xf]
  %v74 = vld [vmem:[%s0 + $0xac] sm:$0xf]
  %v75 = vld [vmem:[%s0 + $0xb0] sm:$0xf]
  %v76 = vld [vmem:[%s0 + $0xb4] sm:$0xf]
  %v77 = vld [vmem:[%s0 + $0xb8] sm:$0xf]
  %v78 = vld [vmem:[%s0 + $0xbc] sm:$0xf]
  %v79 = vld [vmem:[%s0 + $0xc0] sm:$0xf]
  %v80 = vld [vmem:[%s0 + $0xc4] sm:$0xf]
  %v131 = vunpack.c.l.b16 %v31
  %v132 = vunpack.c.l.b16 %v32
  %v133 = vunpack.c.l.b16 %v33
  %v134 = vunpack.c.l.b16 %v34
  %v135 = vunpack.c.l.b16 %v35
  %v136 = vunpack.c.l.b16 %v36
  %v137 = vunpack.c.l.b16 %v37
  %v138 = vunpack.c.l.b16 %v38
  %v139 = vunpack.c.l.b16 %v39
  %v140 = vunpack.c.l.b16 %v40
  %v141 = vunpack.c.l.b16 %v41
  %v142 = vunpack.c.l.b16 %v42
  %v143 = vunpack.c.l.b16 %v43
  %v144 = vunpack.c.l.b16 %v44
  %v145 = vunpack.c.l.b16 %v45
  %v146 = vunpack.c.l.b16 %v46
  %v147 = vunpack.c.l.b16 %v47
  %v148 = vunpack.c.l.b16 %v48
  %v149 = vunpack.c.l.b16 %v49
  %v150 = vunpack.c.l.b16 %v50
  %v151 = vunpack.c.l.b16 %v51
  %v152 = vunpack.c.l.b16 %v52
  %v153 = vunpack.c.l.b16 %v53
  %v154 = vunpack.c.l.b16 %v54
  %v155 = vunpack.c.l.b16 %v55
  %v156 = vunpack.c.l.b16 %v56
  %v157 = vunpack.c.l.b16 %v57
  %v158 = vunpack.c.l.b16 %v58
  %v159 = vunpack.c.l.b16 %v59
  %v160 = vunpack.c.l.b16 %v60
  %v161 = vunpack.c.l.b16 %v61
  %v162 = vunpack.c.l.b16 %v62
  %v163 = vunpack.c.l.b16 %v63
  %v164 = vunpack.c.l.b16 %v64
  %v165 = vunpack.c.l.b16 %v65
  %v166 = vunpack.c.l.b16 %v66
  %v167 = vunpack.c.l.b16 %v67
  %v168 = vunpack.c.l.b16 %v68
  %v169 = vunpack.c.l.b16 %v69
  %v170 = vunpack.c.l.b16 %v70
  %v171 = vunpack.c.l.b16 %v71
  %v172 = vunpack.c.l.b16 %v72
  %v173 = vunpack.c.l.b16 %v73
  %v174 = vunpack.c.l.b16 %v74
  %v175 = vunpack.c.l.b16 %v75
  %v176 = vunpack.c.l.b16 %v76
  %v177 = vunpack.c.l.b16 %v77
  %v178 = vunpack.c.l.b16 %v78
  %v179 = vunpack.c.l.b16 %v79
  %v180 = vunpack.c.l.b16 %v80
  %v181 = vpack.c.b16 %v132, %v131
  %v182 = vpack.c.b16 %v134, %v133
  %v183 = vpack.c.b16 %v136, %v135
  %v184 = vpack.c.b16 %v138, %v137
  %v185 = vpack.c.b16 %v140, %v139
  %v186 = vpack.c.b16 %v142, %v141
  %v187 = vpack.c.b16 %v144, %v143
  %v188 = vpack.c.b16 %v146, %v145
  %v189 = vpack.c.b16 %v148, %v147
  %v190 = vpack.c.b16 %v150, %v149
  %v191 = vpack.c.b16 %v152, %v151
  %v192 = vpack.c.b16 %v154, %v153
  %v193 = vpack.c.b16 %v156, %v155
  %v194 = vpack.c.b16 %v158, %v157
  %v195 = vpack.c.b16 %v160, %v159
  %v196 = vpack.c.b16 %v162, %v161
  %v197 = vpack.c.b16 %v164, %v163
  %v198 = vpack.c.b16 %v166, %v165
  %v199 = vpack.c.b16 %v168, %v167
  %v200 = vpack.c.b16 %v170, %v169
  %v201 = vpack.c.b16 %v172, %v171
  %v202 = vpack.c.b16 %v174, %v173
  %v203 = vpack.c.b16 %v176, %v175
  %v204 = vpack.c.b16 %v178, %v177
  %v205 = vpack.c.b16 %v180, %v179
  %v247 = vunpack.c.l.b16 %v15
  %v248 = vunpack.c.l.b16 %v16
  %v249 = vunpack.c.l.b16 %v17
  %v250 = vunpack.c.l.b16 %v18
  %v251 = vunpack.c.l.b16 %v19
  %v252 = vunpack.c.l.b16 %v20
  %v253 = vunpack.c.l.b16 %v21
  %v254 = vunpack.c.l.b16 %v22
  %v255 = vunpack.c.l.b16 %v23
  %v256 = vunpack.c.l.b16 %v24
  %v257 = vunpack.c.l.b16 %v25
  %v258 = vunpack.c.l.b16 %v26
  %v259 = vunpack.c.l.b16 %v27
  %v260 = vunpack.c.l.b16 %v28
  %v261 = vunpack.c.l.b16 %v29
  %v262 = vunpack.c.l.b16 %v30
  %v263 = vpack.c.b16 %v248, %v247
  %v264 = vpack.c.b16 %v250, %v249
  %v265 = vpack.c.b16 %v252, %v251
  %v266 = vpack.c.b16 %v254, %v253
  %v267 = vpack.c.b16 %v256, %v255
  %v268 = vpack.c.b16 %v258, %v257
  %v269 = vpack.c.b16 %v260, %v259
  %v270 = vpack.c.b16 %v262, %v261
  %279 = vmatprep.subr.bf16.mxu0 0
  %280 = vmatpush1.bf16.msra.mxu0 %v263
  %281 = vmatprep.subr.bf16.mxu0 0
  %282 = vmatpush1.bf16.msra.mxu0 %v264
  %283 = vmatprep.subr.bf16.mxu0 0
  %284 = vmatpush1.bf16.msra.mxu0 %v265
  %285 = vmatprep.subr.bf16.mxu0 0
  %286 = vmatpush1.bf16.msra.mxu0 %v266
  %287 = vmatprep.subr.bf16.mxu0 0
  %288 = vmatpush1.bf16.msra.mxu0 %v267
  %289 = vmatprep.subr.bf16.mxu0 0
  %290 = vmatpush1.bf16.msra.mxu0 %v268
  %291 = vmatprep.subr.bf16.mxu0 0
  %292 = vmatpush1.bf16.msra.mxu0 %v269
  %293 = vmatprep.subr.bf16.mxu0 0
  %294 = vmatpush1.bf16.msra.mxu0 %v270
  %295 = vmatprep.subr.bf16.mxu0 0
  %296 = vmatpush1.bf16.msra.mxu0 0
  %297 = vmatprep.subr.bf16.mxu0 0
  %298 = vmatpush1.bf16.msra.mxu0 0
  %299 = vmatprep.subr.bf16.mxu0 0
  %300 = vmatpush1.bf16.msra.mxu0 0
  %301 = vmatprep.subr.bf16.mxu0 0
  %302 = vmatpush1.bf16.msra.mxu0 0
  %303 = vmatprep.subr.bf16.mxu0 0
  %304 = vmatpush1.bf16.msra.mxu0 0
  %305 = vmatprep.subr.bf16.mxu0 0
  %306 = vmatpush1.bf16.msra.mxu0 0
  %307 = vmatprep.subr.bf16.mxu0 0
  %308 = vmatpush1.bf16.msra.mxu0 0
  %309 = vmatprep.subr.bf16.mxu0 0
  %310 = vmatpush1.bf16.msra.mxu0 0
  %311 = vmatprep.mubr.bf16.mxu0 0
  %312 = vmatmul.mubr.bf16.gmra.mrb[0].mxu0 %v181
  %v313 = vpop.f32.mrb[0].mxu0
  %v314 = vadd.f32 0.0, %v313
  %v315 = vpop.f32.mrb[0].mxu0
  %v316 = vpop.f32.mrb[0].mxu0
  %v317 = vadd.f32 0.0, %v316
  %v318 = vpop.f32.mrb[0].mxu0
  %319 = vmatprep.mubr.bf16.mxu0 0
  %320 = vmatmul.mubr.bf16.gmra.mrb[0].mxu0 %v182
  %v321 = vpop.f32.mrb[0].mxu0
  %v322 = vadd.f32 0.0, %v321
  %v323 = vpop.f32.mrb[0].mxu0
  %v324 = vpop.f32.mrb[0].mxu0
  %v325 = vadd.f32 0.0, %v324
  %v326 = vpop.f32.mrb[0].mxu0
  %327 = vmatprep.mubr.bf16.mxu0 0
  %328 = vmatmul.mubr.bf16.gmra.mrb[0].mxu0 %v183
  %v329 = vpop.f32.mrb[0].mxu0
  %v330 = vadd.f32 0.0, %v329
  %v331 = vpop.f32.mrb[0].mxu0
  %v332 = vpop.f32.mrb[0].mxu0
  %v333 = vadd.f32 0.0, %v332
  %v334 = vpop.f32.mrb[0].mxu0
  %335 = vmatprep.mubr.bf16.mxu0 0
  %336 = vmatmul.mubr.bf16.gmra.mrb[0].mxu0 %v184
  %v337 = vpop.f32.mrb[0].mxu0
  %v338 = vadd.f32 0.0, %v337
  %v339 = vpop.f32.mrb[0].mxu0
  %v340 = vpop.f32.mrb[0].mxu0
  %v341 = vadd.f32 0.0, %v340
  %v342 = vpop.f32.mrb[0].mxu0
  %343 = vmatprep.mubr.bf16.mxu0 0
  %344 = vmatmul.mubr.bf16.gmra.mrb[0].mxu0 %v185
  %v345 = vpop.f32.mrb[0].mxu0
  %v346 = vadd.f32 0.0, %v345
  %v347 = vpop.f32.mrb[0].mxu0
  %v348 = vpop.f32.mrb[0].mxu0
  %v349 = vadd.f32 0.0, %v348
  %v350 = vpop.f32.mrb[0].mxu0
  %351 = vmatprep.mubr.bf16.mxu0 0
  %352 = vmatmul.mubr.bf16.gmra.mrb[0].mxu0 %v186
  %v353 = vpop.f32.mrb[0].mxu0
  %v354 = vadd.f32 0.0, %v353
  %v355 = vpop.f32.mrb[0].mxu0
  %v356 = vpop.f32.mrb[0].mxu0
  %v357 = vadd.f32 0.0, %v356
  %v358 = vpop.f32.mrb[0].mxu0
  %359 = vmatprep.mubr.bf16.mxu0 0
  %360 = vmatmul.mubr.bf16.gmra.mrb[0].mxu0 %v187
  %v361 = vpop.f32.mrb[0].mxu0
  %v362 = vadd.f32 0.0, %v361
  %v363 = vpop.f32.mrb[0].mxu0
  %v364 = vpop.f32.mrb[0].mxu0
  %v365 = vadd.f32 0.0, %v364
  %v366 = vpop.f32.mrb[0].mxu0
  %367 = vmatprep.mubr.bf16.mxu0 0
  %368 = vmatmul.mubr.bf16.gmra.mrb[0].mxu0 %v188
  %v369 = vpop.f32.mrb[0].mxu0
  %v370 = vadd.f32 0.0, %v369
  %v371 = vpop.f32.mrb[0].mxu0
  %v372 = vpop.f32.mrb[0].mxu0
  %v373 = vadd.f32 0.0, %v372
  %v374 = vpop.f32.mrb[0].mxu0
  %375 = vmatprep.mubr.bf16.mxu0 0
  %376 = vmatmul.mubr.bf16.gmra.mrb[0].mxu0 %v189
  %v377 = vpop.f32.mrb[0].mxu0
  %v378 = vadd.f32 0.0, %v377
  %v379 = vpop.f32.mrb[0].mxu0
  %v380 = vpop.f32.mrb[0].mxu0
  %v381 = vadd.f32 0.0, %v380
  %v382 = vpop.f32.mrb[0].mxu0
  %383 = vmatprep.mubr.bf16.mxu0 0
  %384 = vmatmul.mubr.bf16.gmra.mrb[0].mxu0 %v190
  %v385 = vpop.f32.mrb[0].mxu0
  %v386 = vadd.f32 0.0, %v385
  %v387 = vpop.f32.mrb[0].mxu0
  %v388 = vpop.f32.mrb[0].mxu0
  %v389 = vadd.f32 0.0, %v388
  %v390 = vpop.f32.mrb[0].mxu0
  %391 = vmatprep.mubr.bf16.mxu0 0
  %392 = vmatmul.mubr.bf16.gmra.mrb[0].mxu0 %v191
  %v393 = vpop.f32.mrb[0].mxu0
  %v394 = vadd.f32 0.0, %v393
  %v395 = vpop.f32.mrb[0].mxu0
  %v396 = vpop.f32.mrb[0].mxu0
  %v397 = vadd.f32 0.0, %v396
  %v398 = vpop.f32.mrb[0].mxu0
  %399 = vmatprep.mubr.bf16.mxu0 0
  %400 = vmatmul.mubr.bf16.gmra.mrb[0].mxu0 %v192
  %v401 = vpop.f32.mrb[0].mxu0
  %v402 = vadd.f32 0.0, %v401
  %v403 = vpop.f32.mrb[0].mxu0
  %v404 = vpop.f32.mrb[0].mxu0
  %v405 = vadd.f32 0.0, %v404
  %v406 = vpop.f32.mrb[0].mxu0
  %407 = vmatprep.mubr.bf16.mxu0 0
  %408 = vmatmul.mubr.bf16.gmra.mrb[0].mxu0 %v193
  %v409 = vpop.f32.mrb[0].mxu0
  %v410 = vadd.f32 0.0, %v409
  %v411 = vpop.f32.mrb[0].mxu0
  %v412 = vpop.f32.mrb[0].mxu0
  %v413 = vadd.f32 0.0, %v412
  %v414 = vpop.f32.mrb[0].mxu0
  %415 = vmatprep.mubr.bf16.mxu0 0
  %416 = vmatmul.mubr.bf16.gmra.mrb[0].mxu0 %v194
  %v417 = vpop.f32.mrb[0].mxu0
  %v418 = vadd.f32 0.0, %v417
  %v419 = vpop.f32.mrb[0].mxu0
  %v420 = vpop.f32.mrb[0].mxu0
  %v421 = vadd.f32 0.0, %v420
  %v422 = vpop.f32.mrb[0].mxu0
  %423 = vmatprep.mubr.bf16.mxu0 0
  %424 = vmatmul.mubr.bf16.gmra.mrb[0].mxu0 %v195
  %v425 = vpop.f32.mrb[0].mxu0
  %v426 = vadd.f32 0.0, %v425
  %v427 = vpop.f32.mrb[0].mxu0
  %v428 = vpop.f32.mrb[0].mxu0
  %v429 = vadd.f32 0.0, %v428
  %v430 = vpop.f32.mrb[0].mxu0
  %431 = vmatprep.mubr.bf16.mxu0 0
  %432 = vmatmul.mubr.bf16.gmra.mrb[0].mxu0 %v196
  %v433 = vpop.f32.mrb[0].mxu0
  %v434 = vadd.f32 0.0, %v433
  %v435 = vpop.f32.mrb[0].mxu0
  %v436 = vpop.f32.mrb[0].mxu0
  %v437 = vadd.f32 0.0, %v436
  %v438 = vpop.f32.mrb[0].mxu0
  %439 = vmatprep.mubr.bf16.mxu0 0
  %440 = vmatmul.mubr.bf16.gmra.mrb[0].mxu0 %v197
  %v441 = vpop.f32.mrb[0].mxu0
  %v442 = vadd.f32 0.0, %v441
  %v443 = vpop.f32.mrb[0].mxu0
  %v444 = vpop.f32.mrb[0].mxu0
  %v445 = vadd.f32 0.0, %v444
  %v446 = vpop.f32.mrb[0].mxu0
  %447 = vmatprep.mubr.bf16.mxu0 0
  %448 = vmatmul.mubr.bf16.gmra.mrb[0].mxu0 %v198
  %v449 = vpop.f32.mrb[0].mxu0
  %v450 = vadd.f32 0.0, %v449
  %v451 = vpop.f32.mrb[0].mxu0
  %v452 = vpop.f32.mrb[0].mxu0
  %v453 = vadd.f32 0.0, %v452
  %v454 = vpop.f32.mrb[0].mxu0
  %455 = vmatprep.mubr.bf16.mxu0 0
  %456 = vmatmul.mubr.bf16.gmra.mrb[0].mxu0 %v199
  %v457 = vpop.f32.mrb[0].mxu0
  %v458 = vadd.f32 0.0, %v457
  %v459 = vpop.f32.mrb[0].mxu0
  %v460 = vpop.f32.mrb[0].mxu0
  %v461 = vadd.f32 0.0, %v460
  %v462 = vpop.f32.mrb[0].mxu0
  %463 = vmatprep.mubr.bf16.mxu0 0
  %464 = vmatmul.mubr.bf16.gmra.mrb[0].mxu0 %v200
  %v465 = vpop.f32.mrb[0].mxu0
  %v466 = vadd.f32 0.0, %v465
  %v467 = vpop.f32.mrb[0].mxu0
  %v468 = vpop.f32.mrb[0].mxu0
  %v469 = vadd.f32 0.0, %v468
  %v470 = vpop.f32.mrb[0].mxu0
  %471 = vmatprep.mubr.bf16.mxu0 0
  %472 = vmatmul.mubr.bf16.gmra.mrb[0].mxu0 %v201
  %v473 = vpop.f32.mrb[0].mxu0
  %v474 = vadd.f32 0.0, %v473
  %v475 = vpop.f32.mrb[0].mxu0
  %v476 = vpop.f32.mrb[0].mxu0
  %v477 = vadd.f32 0.0, %v476
  %v478 = vpop.f32.mrb[0].mxu0
  %479 = vmatprep.mubr.bf16.mxu0 0
  %480 = vmatmul.mubr.bf16.gmra.mrb[0].mxu0 %v202
  %v481 = vpop.f32.mrb[0].mxu0
  %v482 = vadd.f32 0.0, %v481
  %v483 = vpop.f32.mrb[0].mxu0
  %v484 = vpop.f32.mrb[0].mxu0
  %v485 = vadd.f32 0.0, %v484
  %v486 = vpop.f32.mrb[0].mxu0
  %487 = vmatprep.mubr.bf16.mxu0 0
  %488 = vmatmul.mubr.bf16.gmra.mrb[0].mxu0 %v203
  %v489 = vpop.f32.mrb[0].mxu0
  %v490 = vadd.f32 0.0, %v489
  %v491 = vpop.f32.mrb[0].mxu0
  %v492 = vpop.f32.mrb[0].mxu0
  %v493 = vadd.f32 0.0, %v492
  %v494 = vpop.f32.mrb[0].mxu0
  %495 = vmatprep.mubr.bf16.mxu0 0
  %496 = vmatmul.mubr.bf16.gmra.mrb[0].mxu0 %v204
  %v497 = vpop.f32.mrb[0].mxu0
  %v498 = vadd.f32 0.0, %v497
  %v499 = vpop.f32.mrb[0].mxu0
  %v500 = vpop.f32.mrb[0].mxu0
  %v501 = vadd.f32 0.0, %v500
  %v502 = vpop.f32.mrb[0].mxu0
  %503 = vmatprep.mubr.bf16.mxu0 0
  %504 = vmatmul.mubr.bf16.gmra.mrb[0].mxu0 %v205
  %v505 = vpop.f32.mrb[0].mxu0
  %v506 = vadd.f32 0.0, %v505
  %v507 = vpop.f32.mrb[0].mxu0
  %v508 = vpop.f32.mrb[0].mxu0
  %v509 = vadd.f32 0.0, %v508
  %v510 = vpop.f32.mrb[0].mxu0
  %511 = vdwg.mxu0
  %s512 = scalar_lea.vmem %s0, 200
  %v513 = vld [vmem:[%s512] sm:$0xf]
  %v514 = vld [vmem:[%s512 + $0x4] sm:$0xf]
  %v515 = vld [vmem:[%s512 + $0x8] sm:$0xf]
  %v516 = vld [vmem:[%s512 + $0xc] sm:$0xf]
  %v517 = vld [vmem:[%s512 + $0x10] sm:$0xf]
  %v518 = vld [vmem:[%s512 + $0x14] sm:$0xf]
  %v519 = vld [vmem:[%s512 + $0x18] sm:$0xf]
  %v520 = vld [vmem:[%s512 + $0x1c] sm:$0xf]
  %v521 = vld [vmem:[%s512 + $0x20] sm:$0xf]
  %v522 = vld [vmem:[%s512 + $0x24] sm:$0xf]
  %v523 = vld [vmem:[%s512 + $0x28] sm:$0xf]
  %v524 = vld [vmem:[%s512 + $0x2c] sm:$0xf]
  %v525 = vld [vmem:[%s512 + $0x30] sm:$0xf]
  %v526 = vld [vmem:[%s512 + $0x34] sm:$0xf]
  %v527 = vld [vmem:[%s512 + $0x38] sm:$0xf]
  %v528 = vld [vmem:[%s512 + $0x3c] sm:$0xf]
  %v529 = vld [vmem:[%s512 + $0x40] sm:$0xf]
  %v530 = vld [vmem:[%s512 + $0x44] sm:$0xf]
  %v531 = vld [vmem:[%s512 + $0x48] sm:$0xf]
  %v532 = vld [vmem:[%s512 + $0x4c] sm:$0xf]
  %v533 = vld [vmem:[%s512 + $0x50] sm:$0xf]
  %v534 = vld [vmem:[%s512 + $0x54] sm:$0xf]
  %v535 = vld [vmem:[%s512 + $0x58] sm:$0xf]
  %v536 = vld [vmem:[%s512 + $0x5c] sm:$0xf]
  %v537 = vld [vmem:[%s512 + $0x60] sm:$0xf]
  %v538 = vld [vmem:[%s512 + $0x64] sm:$0xf]
  %v539 = vld [vmem:[%s512 + $0x68] sm:$0xf]
  %v540 = vld [vmem:[%s512 + $0x6c] sm:$0xf]
  %v541 = vld [vmem:[%s512 + $0x70] sm:$0xf]
  %v542 = vld [vmem:[%s512 + $0x74] sm:$0xf]
  %v543 = vld [vmem:[%s512 + $0x78] sm:$0xf]
  %v544 = vld [vmem:[%s512 + $0x7c] sm:$0xf]
  %v545 = vld [vmem:[%s512 + $0x80] sm:$0xf]
  %v546 = vld [vmem:[%s512 + $0x84] sm:$0xf]
  %v547 = vld [vmem:[%s512 + $0x88] sm:$0xf]
  %v548 = vld [vmem:[%s512 + $0x8c] sm:$0xf]
  %v549 = vld [vmem:[%s512 + $0x90] sm:$0xf]
  %v550 = vld [vmem:[%s512 + $0x94] sm:$0xf]
  %v551 = vld [vmem:[%s512 + $0x98] sm:$0xf]
  %v552 = vld [vmem:[%s512 + $0x9c] sm:$0xf]
  %v553 = vld [vmem:[%s512 + $0xa0] sm:$0xf]
  %v554 = vld [vmem:[%s512 + $0xa4] sm:$0xf]
  %v555 = vld [vmem:[%s512 + $0xa8] sm:$0xf]
  %v556 = vld [vmem:[%s512 + $0xac] sm:$0xf]
  %v557 = vld [vmem:[%s512 + $0xb0] sm:$0xf]
  %v558 = vld [vmem:[%s512 + $0xb4] sm:$0xf]
  %v559 = vld [vmem:[%s512 + $0xb8] sm:$0xf]
  %v560 = vld [vmem:[%s512 + $0xbc] sm:$0xf]
  %v561 = vld [vmem:[%s512 + $0xc0] sm:$0xf]
  %v562 = vld [vmem:[%s512 + $0xc4] sm:$0xf]
  %v613 = vunpack.c.l.b16 %v513
  %v614 = vunpack.c.l.b16 %v514
  %v615 = vunpack.c.l.b16 %v515
  %v616 = vunpack.c.l.b16 %v516
  %v617 = vunpack.c.l.b16 %v517
  %v618 = vunpack.c.l.b16 %v518
  %v619 = vunpack.c.l.b16 %v519
  %v620 = vunpack.c.l.b16 %v520
  %v621 = vunpack.c.l.b16 %v521
  %v622 = vunpack.c.l.b16 %v522
  %v623 = vunpack.c.l.b16 %v523
  %v624 = vunpack.c.l.b16 %v524
  %v625 = vunpack.c.l.b16 %v525
  %v626 = vunpack.c.l.b16 %v526
  %v627 = vunpack.c.l.b16 %v527
  %v628 = vunpack.c.l.b16 %v528
  %v629 = vunpack.c.l.b16 %v529
  %v630 = vunpack.c.l.b16 %v530
  %v631 = vunpack.c.l.b16 %v531
  %v632 = vunpack.c.l.b16 %v532
  %v633 = vunpack.c.l.b16 %v533
  %v634 = vunpack.c.l.b16 %v534
  %v635 = vunpack.c.l.b16 %v535
  %v636 = vunpack.c.l.b16 %v536
  %v637 = vunpack.c.l.b16 %v537
  %v638 = vunpack.c.l.b16 %v538
  %v639 = vunpack.c.l.b16 %v539
  %v640 = vunpack.c.l.b16 %v540
  %v641 = vunpack.c.l.b16 %v541
  %v642 = vunpack.c.l.b16 %v542
  %v643 = vunpack.c.l.b16 %v543
  %v644 = vunpack.c.l.b16 %v544
  %v645 = vunpack.c.l.b16 %v545
  %v646 = vunpack.c.l.b16 %v546
  %v647 = vunpack.c.l.b16 %v547
  %v648 = vunpack.c.l.b16 %v548
  %v649 = vunpack.c.l.b16 %v549
  %v650 = vunpack.c.l.b16 %v550
  %v651 = vunpack.c.l.b16 %v551
  %v652 = vunpack.c.l.b16 %v552
  %v653 = vunpack.c.l.b16 %v553
  %v654 = vunpack.c.l.b16 %v554
  %v655 = vunpack.c.l.b16 %v555
  %v656 = vunpack.c.l.b16 %v556
  %v657 = vunpack.c.l.b16 %v557
  %v658 = vunpack.c.l.b16 %v558
  %v659 = vunpack.c.l.b16 %v559
  %v660 = vunpack.c.l.b16 %v560
  %v661 = vunpack.c.l.b16 %v561
  %v662 = vunpack.c.l.b16 %v562
  %v663 = vpack.c.b16 %v614, %v613
  %v664 = vpack.c.b16 %v616, %v615
  %v665 = vpack.c.b16 %v618, %v617
  %v666 = vpack.c.b16 %v620, %v619
  %v667 = vpack.c.b16 %v622, %v621
  %v668 = vpack.c.b16 %v624, %v623
  %v669 = vpack.c.b16 %v626, %v625
  %v670 = vpack.c.b16 %v628, %v627
  %v671 = vpack.c.b16 %v630, %v629
  %v672 = vpack.c.b16 %v632, %v631
  %v673 = vpack.c.b16 %v634, %v633
  %v674 = vpack.c.b16 %v636, %v635
  %v675 = vpack.c.b16 %v638, %v637
  %v676 = vpack.c.b16 %v640, %v639
  %v677 = vpack.c.b16 %v642, %v641
  %v678 = vpack.c.b16 %v644, %v643
  %v679 = vpack.c.b16 %v646, %v645
  %v680 = vpack.c.b16 %v648, %v647
  %v681 = vpack.c.b16 %v650, %v649
  %v682 = vpack.c.b16 %v652, %v651
  %v683 = vpack.c.b16 %v654, %v653
  %v684 = vpack.c.b16 %v656, %v655
  %v685 = vpack.c.b16 %v658, %v657
  %v686 = vpack.c.b16 %v660, %v659
  %v687 = vpack.c.b16 %v662, %v661
  %713 = vmatprep.subr.bf16.mxu0 0
  %714 = vmatpush1.bf16.msra.mxu0 %v263
  %715 = vmatprep.subr.bf16.mxu0 0
  %716 = vmatpush1.bf16.msra.mxu0 %v264
  %717 = vmatprep.subr.bf16.mxu0 0
  %718 = vmatpush1.bf16.msra.mxu0 %v265
  %719 = vmatprep.subr.bf16.mxu0 0
  %720 = vmatpush1.bf16.msra.mxu0 %v266
  %721 = vmatprep.subr.bf16.mxu0 0
  %722 = vmatpush1.bf16.msra.mxu0 %v267
  %723 = vmatprep.subr.bf16.mxu0 0
  %724 = vmatpush1.bf16.msra.mxu0 %v268
  %725 = vmatprep.subr.bf16.mxu0 0
  %726 = vmatpush1.bf16.msra.mxu0 %v269
  %727 = vmatprep.subr.bf16.mxu0 0
  %728 = vmatpush1.bf16.msra.mxu0 %v270
  %729 = vmatprep.subr.bf16.mxu0 0
  %730 = vmatpush1.bf16.msra.mxu0 0
  %731 = vmatprep.subr.bf16.mxu0 0
  %732 = vmatpush1.bf16.msra.mxu0 0
  %733 = vmatprep.subr.bf16.mxu0 0
  %734 = vmatpush1.bf16.msra.mxu0 0
  %735 = vmatprep.subr.bf16.mxu0 0
  %736 = vmatpush1.bf16.msra.mxu0 0
  %737 = vmatprep.subr.bf16.mxu0 0
  %738 = vmatpush1.bf16.msra.mxu0 0
  %739 = vmatprep.subr.bf16.mxu0 0
  %740 = vmatpush1.bf16.msra.mxu0 0
  %741 = vmatprep.subr.bf16.mxu0 0
  %742 = vmatpush1.bf16.msra.mxu0 0
  %743 = vmatprep.subr.bf16.mxu0 0
  %744 = vmatpush1.bf16.msra.mxu0 0
  %745 = vmatprep.mubr.bf16.mxu0 0
  %746 = vmatmul.mubr.bf16.gmra.mrb[0].mxu0 %v663
  %v747 = vpop.f32.mrb[0].mxu0
  %v748 = vadd.f32 0.0, %v747
  %v749 = vpop.f32.mrb[0].mxu0
  %v750 = vpop.f32.mrb[0].mxu0
  %v751 = vadd.f32 0.0, %v750
  %v752 = vpop.f32.mrb[0].mxu0
  %753 = vmatprep.mubr.bf16.mxu0 0
  %754 = vmatmul.mubr.bf16.gmra.mrb[0].mxu0 %v664
  %v755 = vpop.f32.mrb[0].mxu0
  %v756 = vadd.f32 0.0, %v755
  %v757 = vpop.f32.mrb[0].mxu0
  %v758 = vpop.f32.mrb[0].mxu0
  %v759 = vadd.f32 0.0, %v758
  %v760 = vpop.f32.mrb[0].mxu0
  %761 = vmatprep.mubr.bf16.mxu0 0
  %762 = vmatmul.mubr.bf16.gmra.mrb[0].mxu0 %v665
  %v763 = vpop.f32.mrb[0].mxu0
  %v764 = vadd.f32 0.0, %v763
  %v765 = vpop.f32.mrb[0].mxu0
  %v766 = vpop.f32.mrb[0].mxu0
  %v767 = vadd.f32 0.0, %v766
  %v768 = vpop.f32.mrb[0].mxu0
  %769 = vmatprep.mubr.bf16.mxu0 0
  %770 = vmatmul.mubr.bf16.gmra.mrb[0].mxu0 %v666
  %v771 = vpop.f32.mrb[0].mxu0
  %v772 = vadd.f32 0.0, %v771
  %v773 = vpop.f32.mrb[0].mxu0
  %v774 = vpop.f32.mrb[0].mxu0
  %v775 = vadd.f32 0.0, %v774
  %v776 = vpop.f32.mrb[0].mxu0
  %777 = vmatprep.mubr.bf16.mxu0 0
  %778 = vmatmul.mubr.bf16.gmra.mrb[0].mxu0 %v667
  %v779 = vpop.f32.mrb[0].mxu0
  %v780 = vadd.f32 0.0, %v779
  %v781 = vpop.f32.mrb[0].mxu0
  %v782 = vpop.f32.mrb[0].mxu0
  %v783 = vadd.f32 0.0, %v782
  %v784 = vpop.f32.mrb[0].mxu0
  %785 = vmatprep.mubr.bf16.mxu0 0
  %786 = vmatmul.mubr.bf16.gmra.mrb[0].mxu0 %v668
  %v787 = vpop.f32.mrb[0].mxu0
  %v788 = vadd.f32 0.0, %v787
  %v789 = vpop.f32.mrb[0].mxu0
  %v790 = vpop.f32.mrb[0].mxu0
  %v791 = vadd.f32 0.0, %v790
  %v792 = vpop.f32.mrb[0].mxu0
  %793 = vmatprep.mubr.bf16.mxu0 0
  %794 = vmatmul.mubr.bf16.gmra.mrb[0].mxu0 %v669
  %v795 = vpop.f32.mrb[0].mxu0
  %v796 = vadd.f32 0.0, %v795
  %v797 = vpop.f32.mrb[0].mxu0
  %v798 = vpop.f32.mrb[0].mxu0
  %v799 = vadd.f32 0.0, %v798
  %v800 = vpop.f32.mrb[0].mxu0
  %801 = vmatprep.mubr.bf16.mxu0 0
  %802 = vmatmul.mubr.bf16.gmra.mrb[0].mxu0 %v670
  %v803 = vpop.f32.mrb[0].mxu0
  %v804 = vadd.f32 0.0, %v803
  %v805 = vpop.f32.mrb[0].mxu0
  %v806 = vpop.f32.mrb[0].mxu0
  %v807 = vadd.f32 0.0, %v806
  %v808 = vpop.f32.mrb[0].mxu0
  %809 = vmatprep.mubr.bf16.mxu0 0
  %810 = vmatmul.mubr.bf16.gmra.mrb[0].mxu0 %v671
  %v811 = vpop.f32.mrb[0].mxu0
  %v812 = vadd.f32 0.0, %v811
  %v813 = vpop.f32.mrb[0].mxu0
  %v814 = vpop.f32.mrb[0].mxu0
  %v815 = vadd.f32 0.0, %v814
  %v816 = vpop.f32.mrb[0].mxu0
  %817 = vmatprep.mubr.bf16.mxu0 0
  %818 = vmatmul.mubr.bf16.gmra.mrb[0].mxu0 %v672
  %v819 = vpop.f32.mrb[0].mxu0
  %v820 = vadd.f32 0.0, %v819
  %v821 = vpop.f32.mrb[0].mxu0
  %v822 = vpop.f32.mrb[0].mxu0
  %v823 = vadd.f32 0.0, %v822
  %v824 = vpop.f32.mrb[0].mxu0
  %825 = vmatprep.mubr.bf16.mxu0 0
  %826 = vmatmul.mubr.bf16.gmra.mrb[0].mxu0 %v673
  %v827 = vpop.f32.mrb[0].mxu0
  %v828 = vadd.f32 0.0, %v827
  %v829 = vpop.f32.mrb[0].mxu0
  %v830 = vpop.f32.mrb[0].mxu0
  %v831 = vadd.f32 0.0, %v830
  %v832 = vpop.f32.mrb[0].mxu0
  %833 = vmatprep.mubr.bf16.mxu0 0
  %834 = vmatmul.mubr.bf16.gmra.mrb[0].mxu0 %v674
  %v835 = vpop.f32.mrb[0].mxu0
  %v836 = vadd.f32 0.0, %v835
  %v837 = vpop.f32.mrb[0].mxu0
  %v838 = vpop.f32.mrb[0].mxu0
  %v839 = vadd.f32 0.0, %v838
  %v840 = vpop.f32.mrb[0].mxu0
  %841 = vmatprep.mubr.bf16.mxu0 0
  %842 = vmatmul.mubr.bf16.gmra.mrb[0].mxu0 %v675
  %v843 = vpop.f32.mrb[0].mxu0
  %v844 = vadd.f32 0.0, %v843
  %v845 = vpop.f32.mrb[0].mxu0
  %v846 = vpop.f32.mrb[0].mxu0
  %v847 = vadd.f32 0.0, %v846
  %v848 = vpop.f32.mrb[0].mxu0
  %849 = vmatprep.mubr.bf16.mxu0 0
  %850 = vmatmul.mubr.bf16.gmra.mrb[0].mxu0 %v676
  %v851 = vpop.f32.mrb[0].mxu0
  %v852 = vadd.f32 0.0, %v851
  %v853 = vpop.f32.mrb[0].mxu0
  %v854 = vpop.f32.mrb[0].mxu0
  %v855 = vadd.f32 0.0, %v854
  %v856 = vpop.f32.mrb[0].mxu0
  %857 = vmatprep.mubr.bf16.mxu0 0
  %858 = vmatmul.mubr.bf16.gmra.mrb[0].mxu0 %v677
  %v859 = vpop.f32.mrb[0].mxu0
  %v860 = vadd.f32 0.0, %v859
  %v861 = vpop.f32.mrb[0].mxu0
  %v862 = vpop.f32.mrb[0].mxu0
  %v863 = vadd.f32 0.0, %v862
  %v864 = vpop.f32.mrb[0].mxu0
  %865 = vmatprep.mubr.bf16.mxu0 0
  %866 = vmatmul.mubr.bf16.gmra.mrb[0].mxu0 %v678
  %v867 = vpop.f32.mrb[0].mxu0
  %v868 = vadd.f32 0.0, %v867
  %v869 = vpop.f32.mrb[0].mxu0
  %v870 = vpop.f32.mrb[0].mxu0
  %v871 = vadd.f32 0.0, %v870
  %v872 = vpop.f32.mrb[0].mxu0
  %873 = vmatprep.mubr.bf16.mxu0 0
  %874 = vmatmul.mubr.bf16.gmra.mrb[0].mxu0 %v679
  %v875 = vpop.f32.mrb[0].mxu0
  %v876 = vadd.f32 0.0, %v875
  %v877 = vpop.f32.mrb[0].mxu0
  %v878 = vpop.f32.mrb[0].mxu0
  %v879 = vadd.f32 0.0, %v878
  %v880 = vpop.f32.mrb[0].mxu0
  %881 = vmatprep.mubr.bf16.mxu0 0
  %882 = vmatmul.mubr.bf16.gmra.mrb[0].mxu0 %v680
  %v883 = vpop.f32.mrb[0].mxu0
  %v884 = vadd.f32 0.0, %v883
  %v885 = vpop.f32.mrb[0].mxu0
  %v886 = vpop.f32.mrb[0].mxu0
  %v887 = vadd.f32 0.0, %v886
  %v888 = vpop.f32.mrb[0].mxu0
  %889 = vmatprep.mubr.bf16.mxu0 0
  %890 = vmatmul.mubr.bf16.gmra.mrb[0].mxu0 %v681
  %v891 = vpop.f32.mrb[0].mxu0
  %v892 = vadd.f32 0.0, %v891
  %v893 = vpop.f32.mrb[0].mxu0
  %v894 = vpop.f32.mrb[0].mxu0
  %v895 = vadd.f32 0.0, %v894
  %v896 = vpop.f32.mrb[0].mxu0
  %897 = vmatprep.mubr.bf16.mxu0 0
  %898 = vmatmul.mubr.bf16.gmra.mrb[0].mxu0 %v682
  %v899 = vpop.f32.mrb[0].mxu0
  %v900 = vadd.f32 0.0, %v899
  %v901 = vpop.f32.mrb[0].mxu0
  %v902 = vpop.f32.mrb[0].mxu0
  %v903 = vadd.f32 0.0, %v902
  %v904 = vpop.f32.mrb[0].mxu0
  %905 = vmatprep.mubr.bf16.mxu0 0
  %906 = vmatmul.mubr.bf16.gmra.mrb[0].mxu0 %v683
  %v907 = vpop.f32.mrb[0].mxu0
  %v908 = vadd.f32 0.0, %v907
  %v909 = vpop.f32.mrb[0].mxu0
  %v910 = vpop.f32.mrb[0].mxu0
  %v911 = vadd.f32 0.0, %v910
  %v912 = vpop.f32.mrb[0].mxu0
  %913 = vmatprep.mubr.bf16.mxu0 0
  %914 = vmatmul.mubr.bf16.gmra.mrb[0].mxu0 %v684
  %v915 = vpop.f32.mrb[0].mxu0
  %v916 = vadd.f32 0.0, %v915
  %v917 = vpop.f32.mrb[0].mxu0
  %v918 = vpop.f32.mrb[0].mxu0
  %v919 = vadd.f32 0.0, %v918
  %v920 = vpop.f32.mrb[0].mxu0
  %921 = vmatprep.mubr.bf16.mxu0 0
  %922 = vmatmul.mubr.bf16.gmra.mrb[0].mxu0 %v685
  %v923 = vpop.f32.mrb[0].mxu0
  %v924 = vadd.f32 0.0, %v923
  %v925 = vpop.f32.mrb[0].mxu0
  %v926 = vpop.f32.mrb[0].mxu0
  %v927 = vadd.f32 0.0, %v926
  %v928 = vpop.f32.mrb[0].mxu0
  %929 = vmatprep.mubr.bf16.mxu0 0
  %930 = vmatmul.mubr.bf16.gmra.mrb[0].mxu0 %v686
  %v931 = vpop.f32.mrb[0].mxu0
  %v932 = vadd.f32 0.0, %v931
  %v933 = vpop.f32.mrb[0].mxu0
  %v934 = vpop.f32.mrb[0].mxu0
  %v935 = vadd.f32 0.0, %v934
  %v936 = vpop.f32.mrb[0].mxu0
  %937 = vmatprep.mubr.bf16.mxu0 0
  %938 = vmatmul.mubr.bf16.gmra.mrb[0].mxu0 %v687
  %v939 = vpop.f32.mrb[0].mxu0
  %v940 = vadd.f32 0.0, %v939
  %v941 = vpop.f32.mrb[0].mxu0
  %v942 = vpop.f32.mrb[0].mxu0
  %v943 = vadd.f32 0.0, %v942
  %v944 = vpop.f32.mrb[0].mxu0
  %945 = vdwg.mxu0
  %v946 = vmax.f32 %v314, %v748
  %v947 = vmax.f32 %v317, %v751
  %v948 = vmax.f32 %v322, %v756
  %v949 = vmax.f32 %v325, %v759
  %v950 = vmax.f32 %v330, %v764
  %v951 = vmax.f32 %v333, %v767
  %v952 = vmax.f32 %v338, %v772
  %v953 = vmax.f32 %v341, %v775
  %v954 = vmax.f32 %v346, %v780
  %v955 = vmax.f32 %v349, %v783
  %v956 = vmax.f32 %v354, %v788
  %v957 = vmax.f32 %v357, %v791
  %v958 = vmax.f32 %v362, %v796
  %v959 = vmax.f32 %v365, %v799
  %v960 = vmax.f32 %v370, %v804
  %v961 = vmax.f32 %v373, %v807
  %v962 = vmax.f32 %v378, %v812
  %v963 = vmax.f32 %v381, %v815
  %v964 = vmax.f32 %v386, %v820
  %v965 = vmax.f32 %v389, %v823
  %v966 = vmax.f32 %v394, %v828
  %v967 = vmax.f32 %v397, %v831
  %v968 = vmax.f32 %v402, %v836
  %v969 = vmax.f32 %v405, %v839
  %v970 = vmax.f32 %v410, %v844
  %v971 = vmax.f32 %v413, %v847
  %v972 = vmax.f32 %v418, %v852
  %v973 = vmax.f32 %v421, %v855
  %v974 = vmax.f32 %v426, %v860
  %v975 = vmax.f32 %v429, %v863
  %v976 = vmax.f32 %v434, %v868
  %v977 = vmax.f32 %v437, %v871
  %v978 = vmax.f32 %v442, %v876
  %v979 = vmax.f32 %v445, %v879
  %v980 = vmax.f32 %v450, %v884
  %v981 = vmax.f32 %v453, %v887
  %v982 = vmax.f32 %v458, %v892
  %v983 = vmax.f32 %v461, %v895
  %v984 = vmax.f32 %v466, %v900
  %v985 = vmax.f32 %v469, %v903
  %v986 = vmax.f32 %v474, %v908
  %v987 = vmax.f32 %v477, %v911
  %v988 = vmax.f32 %v482, %v916
  %v989 = vmax.f32 %v485, %v919
  %v990 = vmax.f32 %v490, %v924
  %v991 = vmax.f32 %v493, %v927
  %v992 = vmax.f32 %v498, %v932
  %v993 = vmax.f32 %v501, %v935
  %v994 = vmax.f32 %v506, %v940
  %v995 = vmax.f32 %v509, %v943
  %s996 = scalar_lea.vmem %s0, 400
  %v997 = vld [vmem:[%s996] sm:$0xf]
  %v998 = vld [vmem:[%s996 + $0x4] sm:$0xf]
  %v999 = vld [vmem:[%s996 + $0x8] sm:$0xf]
  %v1000 = vld [vmem:[%s996 + $0xc] sm:$0xf]
  %v1001 = vld [vmem:[%s996 + $0x10] sm:$0xf]
  %v1002 = vld [vmem:[%s996 + $0x14] sm:$0xf]
  %v1003 = vld [vmem:[%s996 + $0x18] sm:$0xf]
  %v1004 = vld [vmem:[%s996 + $0x1c] sm:$0xf]
  %v1005 = vld [vmem:[%s996 + $0x20] sm:$0xf]
  %v1006 = vld [vmem:[%s996 + $0x24] sm:$0xf]
  %v1007 = vld [vmem:[%s996 + $0x28] sm:$0xf]
  %v1008 = vld [vmem:[%s996 + $0x2c] sm:$0xf]
  %v1009 = vld [vmem:[%s996 + $0x30] sm:$0xf]
  %v1010 = vld [vmem:[%s996 + $0x34] sm:$0xf]
  %v1011 = vld [vmem:[%s996 + $0x38] sm:$0xf]
  %v1012 = vld [vmem:[%s996 + $0x3c] sm:$0xf]
  %v1013 = vld [vmem:[%s996 + $0x40] sm:$0xf]
  %v1014 = vld [vmem:[%s996 + $0x44] sm:$0xf]
  %v1015 = vld [vmem:[%s996 + $0x48] sm:$0xf]
  %v1016 = vld [vmem:[%s996 + $0x4c] sm:$0xf]
  %v1017 = vld [vmem:[%s996 + $0x50] sm:$0xf]
  %v1018 = vld [vmem:[%s996 + $0x54] sm:$0xf]
  %v1019 = vld [vmem:[%s996 + $0x58] sm:$0xf]
  %v1020 = vld [vmem:[%s996 + $0x5c] sm:$0xf]
  %v1021 = vld [vmem:[%s996 + $0x60] sm:$0xf]
  %v1022 = vld [vmem:[%s996 + $0x64] sm:$0xf]
  %v1023 = vld [vmem:[%s996 + $0x68] sm:$0xf]
  %v1024 = vld [vmem:[%s996 + $0x6c] sm:$0xf]
  %v1025 = vld [vmem:[%s996 + $0x70] sm:$0xf]
  %v1026 = vld [vmem:[%s996 + $0x74] sm:$0xf]
  %v1027 = vld [vmem:[%s996 + $0x78] sm:$0xf]
  %v1028 = vld [vmem:[%s996 + $0x7c] sm:$0xf]
  %v1029 = vld [vmem:[%s996 + $0x80] sm:$0xf]
  %v1030 = vld [vmem:[%s996 + $0x84] sm:$0xf]
  %v1031 = vld [vmem:[%s996 + $0x88] sm:$0xf]
  %v1032 = vld [vmem:[%s996 + $0x8c] sm:$0xf]
  %v1033 = vld [vmem:[%s996 + $0x90] sm:$0xf]
  %v1034 = vld [vmem:[%s996 + $0x94] sm:$0xf]
  %v1035 = vld [vmem:[%s996 + $0x98] sm:$0xf]
  %v1036 = vld [vmem:[%s996 + $0x9c] sm:$0xf]
  %v1037 = vld [vmem:[%s996 + $0xa0] sm:$0xf]
  %v1038 = vld [vmem:[%s996 + $0xa4] sm:$0xf]
  %v1039 = vld [vmem:[%s996 + $0xa8] sm:$0xf]
  %v1040 = vld [vmem:[%s996 + $0xac] sm:$0xf]
  %v1041 = vld [vmem:[%s996 + $0xb0] sm:$0xf]
  %v1042 = vld [vmem:[%s996 + $0xb4] sm:$0xf]
  %v1043 = vld [vmem:[%s996 + $0xb8] sm:$0xf]
  %v1044 = vld [vmem:[%s996 + $0xbc] sm:$0xf]
  %v1045 = vld [vmem:[%s996 + $0xc0] sm:$0xf]
  %v1046 = vld [vmem:[%s996 + $0xc4] sm:$0xf]
  %v1097 = vunpack.c.l.b16 %v997
  %v1098 = vunpack.c.l.b16 %v998
  %v1099 = vunpack.c.l.b16 %v999
  %v1100 = vunpack.c.l.b16 %v1000
  %v1101 = vunpack.c.l.b16 %v1001
  %v1102 = vunpack.c.l.b16 %v1002
  %v1103 = vunpack.c.l.b16 %v1003
  %v1104 = vunpack.c.l.b16 %v1004
  %v1105 = vunpack.c.l.b16 %v1005
  %v1106 = vunpack.c.l.b16 %v1006
  %v1107 = vunpack.c.l.b16 %v1007
  %v1108 = vunpack.c.l.b16 %v1008
  %v1109 = vunpack.c.l.b16 %v1009
  %v1110 = vunpack.c.l.b16 %v1010
  %v1111 = vunpack.c.l.b16 %v1011
  %v1112 = vunpack.c.l.b16 %v1012
  %v1113 = vunpack.c.l.b16 %v1013
  %v1114 = vunpack.c.l.b16 %v1014
  %v1115 = vunpack.c.l.b16 %v1015
  %v1116 = vunpack.c.l.b16 %v1016
  %v1117 = vunpack.c.l.b16 %v1017
  %v1118 = vunpack.c.l.b16 %v1018
  %v1119 = vunpack.c.l.b16 %v1019
  %v1120 = vunpack.c.l.b16 %v1020
  %v1121 = vunpack.c.l.b16 %v1021
  %v1122 = vunpack.c.l.b16 %v1022
  %v1123 = vunpack.c.l.b16 %v1023
  %v1124 = vunpack.c.l.b16 %v1024
  %v1125 = vunpack.c.l.b16 %v1025
  %v1126 = vunpack.c.l.b16 %v1026
  %v1127 = vunpack.c.l.b16 %v1027
  %v1128 = vunpack.c.l.b16 %v1028
  %v1129 = vunpack.c.l.b16 %v1029
  %v1130 = vunpack.c.l.b16 %v1030
  %v1131 = vunpack.c.l.b16 %v1031
  %v1132 = vunpack.c.l.b16 %v1032
  %v1133 = vunpack.c.l.b16 %v1033
  %v1134 = vunpack.c.l.b16 %v1034
  %v1135 = vunpack.c.l.b16 %v1035
  %v1136 = vunpack.c.l.b16 %v1036
  %v1137 = vunpack.c.l.b16 %v1037
  %v1138 = vunpack.c.l.b16 %v1038
  %v1139 = vunpack.c.l.b16 %v1039
  %v1140 = vunpack.c.l.b16 %v1040
  %v1141 = vunpack.c.l.b16 %v1041
  %v1142 = vunpack.c.l.b16 %v1042
  %v1143 = vunpack.c.l.b16 %v1043
  %v1144 = vunpack.c.l.b16 %v1044
  %v1145 = vunpack.c.l.b16 %v1045
  %v1146 = vunpack.c.l.b16 %v1046
  %v1147 = vpack.c.b16 %v1098, %v1097
  %v1148 = vpack.c.b16 %v1100, %v1099
  %v1149 = vpack.c.b16 %v1102, %v1101
  %v1150 = vpack.c.b16 %v1104, %v1103
  %v1151 = vpack.c.b16 %v1106, %v1105
  %v1152 = vpack.c.b16 %v1108, %v1107
  %v1153 = vpack.c.b16 %v1110, %v1109
  %v1154 = vpack.c.b16 %v1112, %v1111
  %v1155 = vpack.c.b16 %v1114, %v1113
  %v1156 = vpack.c.b16 %v1116, %v1115
  %v1157 = vpack.c.b16 %v1118, %v1117
  %v1158 = vpack.c.b16 %v1120, %v1119
  %v1159 = vpack.c.b16 %v1122, %v1121
  %v1160 = vpack.c.b16 %v1124, %v1123
  %v1161 = vpack.c.b16 %v1126, %v1125
  %v1162 = vpack.c.b16 %v1128, %v1127
  %v1163 = vpack.c.b16 %v1130, %v1129
  %v1164 = vpack.c.b16 %v1132, %v1131
  %v1165 = vpack.c.b16 %v1134, %v1133
  %v1166 = vpack.c.b16 %v1136, %v1135
  %v1167 = vpack.c.b16 %v1138, %v1137
  %v1168 = vpack.c.b16 %v1140, %v1139
  %v1169 = vpack.c.b16 %v1142, %v1141
  %v1170 = vpack.c.b16 %v1144, %v1143
  %v1171 = vpack.c.b16 %v1146, %v1145
  %1197 = vmatprep.subr.bf16.mxu0 0
  %1198 = vmatpush1.bf16.msra.mxu0 %v263
  %1199 = vmatprep.subr.bf16.mxu0 0
  %1200 = vmatpush1.bf16.msra.mxu0 %v264
  %1201 = vmatprep.subr.bf16.mxu0 0
  %1202 = vmatpush1.bf16.msra.mxu0 %v265
  %1203 = vmatprep.subr.bf16.mxu0 0
  %1204 = vmatpush1.bf16.msra.mxu0 %v266
  %1205 = vmatprep.subr.bf16.mxu0 0
  %1206 = vmatpush1.bf16.msra.mxu0 %v267
  %1207 = vmatprep.subr.bf16.mxu0 0
  %1208 = vmatpush1.bf16.msra.mxu0 %v268
  %1209 = vmatprep.subr.bf16.mxu0 0
  %1210 = vmatpush1.bf16.msra.mxu0 %v269
  %1211 = vmatprep.subr.bf16.mxu0 0
  %1212 = vmatpush1.bf16.msra.mxu0 %v270
  %1213 = vmatprep.subr.bf16.mxu0 0
  %1214 = vmatpush1.bf16.msra.mxu0 0
  %1215 = vmatprep.subr.bf16.mxu0 0
  %1216 = vmatpush1.bf16.msra.mxu0 0
  %1217 = vmatprep.subr.bf16.mxu0 0
  %1218 = vmatpush1.bf16.msra.mxu0 0
  %1219 = vmatprep.subr.bf16.mxu0 0
  %1220 = vmatpush1.bf16.msra.mxu0 0
  %1221 = vmatprep.subr.bf16.mxu0 0
  %1222 = vmatpush1.bf16.msra.mxu0 0
  %1223 = vmatprep.subr.bf16.mxu0 0
  %1224 = vmatpush1.bf16.msra.mxu0 0
  %1225 = vmatprep.subr.bf16.mxu0 0
  %1226 = vmatpush1.bf16.msra.mxu0 0
  %1227 = vmatprep.subr.bf16.mxu0 0
  %1228 = vmatpush1.bf16.msra.mxu0 0
  %1229 = vmatprep.mubr.bf16.mxu0 0
  %1230 = vmatmul.mubr.bf16.gmra.mrb[0].mxu0 %v1147
  %v1231 = vpop.f32.mrb[0].mxu0
  %v1232 = vadd.f32 0.0, %v1231
  %v1233 = vpop.f32.mrb[0].mxu0
  %v1234 = vpop.f32.mrb[0].mxu0
  %v1235 = vadd.f32 0.0, %v1234
  %v1236 = vpop.f32.mrb[0].mxu0
  %1237 = vmatprep.mubr.bf16.mxu0 0
  %1238 = vmatmul.mubr.bf16.gmra.mrb[0].mxu0 %v1148
  %v1239 = vpop.f32.mrb[0].mxu0
  %v1240 = vadd.f32 0.0, %v1239
  %v1241 = vpop.f32.mrb[0].mxu0
  %v1242 = vpop.f32.mrb[0].mxu0
  %v1243 = vadd.f32 0.0, %v1242
  %v1244 = vpop.f32.mrb[0].mxu0
  %1245 = vmatprep.mubr.bf16.mxu0 0
  %1246 = vmatmul.mubr.bf16.gmra.mrb[0].mxu0 %v1149
  %v1247 = vpop.f32.mrb[0].mxu0
  %v1248 = vadd.f32 0.0, %v1247
  %v1249 = vpop.f32.mrb[0].mxu0
  %v1250 = vpop.f32.mrb[0].mxu0
  %v1251 = vadd.f32 0.0, %v1250
  %v1252 = vpop.f32.mrb[0].mxu0
  %1253 = vmatprep.mubr.bf16.mxu0 0
  %1254 = vmatmul.mubr.bf16.gmra.mrb[0].mxu0 %v1150
  %v1255 = vpop.f32.mrb[0].mxu0
  %v1256 = vadd.f32 0.0, %v1255
  %v1257 = vpop.f32.mrb[0].mxu0
  %v1258 = vpop.f32.mrb[0].mxu0
  %v1259 = vadd.f32 0.0, %v1258
  %v1260 = vpop.f32.mrb[0].mxu0
  %1261 = vmatprep.mubr.bf16.mxu0 0
  %1262 = vmatmul.mubr.bf16.gmra.mrb[0].mxu0 %v1151
  %v1263 = vpop.f32.mrb[0].mxu0
  %v1264 = vadd.f32 0.0, %v1263
  %v1265 = vpop.f32.mrb[0].mxu0
  %v1266 = vpop.f32.mrb[0].mxu0
  %v1267 = vadd.f32 0.0, %v1266
  %v1268 = vpop.f32.mrb[0].mxu0
  %1269 = vmatprep.mubr.bf16.mxu0 0
  %1270 = vmatmul.mubr.bf16.gmra.mrb[0].mxu0 %v1152
  %v1271 = vpop.f32.mrb[0].mxu0
  %v1272 = vadd.f32 0.0, %v1271
  %v1273 = vpop.f32.mrb[0].mxu0
  %v1274 = vpop.f32.mrb[0].mxu0
  %v1275 = vadd.f32 0.0, %v1274
  %v1276 = vpop.f32.mrb[0].mxu0
  %1277 = vmatprep.mubr.bf16.mxu0 0
  %1278 = vmatmul.mubr.bf16.gmra.mrb[0].mxu0 %v1153
  %v1279 = vpop.f32.mrb[0].mxu0
  %v1280 = vadd.f32 0.0, %v1279
  %v1281 = vpop.f32.mrb[0].mxu0
  %v1282 = vpop.f32.mrb[0].mxu0
  %v1283 = vadd.f32 0.0, %v1282
  %v1284 = vpop.f32.mrb[0].mxu0
  %1285 = vmatprep.mubr.bf16.mxu0 0
  %1286 = vmatmul.mubr.bf16.gmra.mrb[0].mxu0 %v1154
  %v1287 = vpop.f32.mrb[0].mxu0
  %v1288 = vadd.f32 0.0, %v1287
  %v1289 = vpop.f32.mrb[0].mxu0
  %v1290 = vpop.f32.mrb[0].mxu0
  %v1291 = vadd.f32 0.0, %v1290
  %v1292 = vpop.f32.mrb[0].mxu0
  %1293 = vmatprep.mubr.bf16.mxu0 0
  %1294 = vmatmul.mubr.bf16.gmra.mrb[0].mxu0 %v1155
  %v1295 = vpop.f32.mrb[0].mxu0
  %v1296 = vadd.f32 0.0, %v1295
  %v1297 = vpop.f32.mrb[0].mxu0
  %v1298 = vpop.f32.mrb[0].mxu0
  %v1299 = vadd.f32 0.0, %v1298
  %v1300 = vpop.f32.mrb[0].mxu0
  %1301 = vmatprep.mubr.bf16.mxu0 0
  %1302 = vmatmul.mubr.bf16.gmra.mrb[0].mxu0 %v1156
  %v1303 = vpop.f32.mrb[0].mxu0
  %v1304 = vadd.f32 0.0, %v1303
  %v1305 = vpop.f32.mrb[0].mxu0
  %v1306 = vpop.f32.mrb[0].mxu0
  %v1307 = vadd.f32 0.0, %v1306
  %v1308 = vpop.f32.mrb[0].mxu0
  %1309 = vmatprep.mubr.bf16.mxu0 0
  %1310 = vmatmul.mubr.bf16.gmra.mrb[0].mxu0 %v1157
  %v1311 = vpop.f32.mrb[0].mxu0
  %v1312 = vadd.f32 0.0, %v1311
  %v1313 = vpop.f32.mrb[0].mxu0
  %v1314 = vpop.f32.mrb[0].mxu0
  %v1315 = vadd.f32 0.0, %v1314
  %v1316 = vpop.f32.mrb[0].mxu0
  %1317 = vmatprep.mubr.bf16.mxu0 0
  %1318 = vmatmul.mubr.bf16.gmra.mrb[0].mxu0 %v1158
  %v1319 = vpop.f32.mrb[0].mxu0
  %v1320 = vadd.f32 0.0, %v1319
  %v1321 = vpop.f32.mrb[0].mxu0
  %v1322 = vpop.f32.mrb[0].mxu0
  %v1323 = vadd.f32 0.0, %v1322
  %v1324 = vpop.f32.mrb[0].mxu0
  %1325 = vmatprep.mubr.bf16.mxu0 0
  %1326 = vmatmul.mubr.bf16.gmra.mrb[0].mxu0 %v1159
  %v1327 = vpop.f32.mrb[0].mxu0
  %v1328 = vadd.f32 0.0, %v1327
  %v1329 = vpop.f32.mrb[0].mxu0
  %v1330 = vpop.f32.mrb[0].mxu0
  %v1331 = vadd.f32 0.0, %v1330
  %v1332 = vpop.f32.mrb[0].mxu0
  %1333 = vmatprep.mubr.bf16.mxu0 0
  %1334 = vmatmul.mubr.bf16.gmra.mrb[0].mxu0 %v1160
  %v1335 = vpop.f32.mrb[0].mxu0
  %v1336 = vadd.f32 0.0, %v1335
  %v1337 = vpop.f32.mrb[0].mxu0
  %v1338 = vpop.f32.mrb[0].mxu0
  %v1339 = vadd.f32 0.0, %v1338
  %v1340 = vpop.f32.mrb[0].mxu0
  %1341 = vmatprep.mubr.bf16.mxu0 0
  %1342 = vmatmul.mubr.bf16.gmra.mrb[0].mxu0 %v1161
  %v1343 = vpop.f32.mrb[0].mxu0
  %v1344 = vadd.f32 0.0, %v1343
  %v1345 = vpop.f32.mrb[0].mxu0
  %v1346 = vpop.f32.mrb[0].mxu0
  %v1347 = vadd.f32 0.0, %v1346
  %v1348 = vpop.f32.mrb[0].mxu0
  %1349 = vmatprep.mubr.bf16.mxu0 0
  %1350 = vmatmul.mubr.bf16.gmra.mrb[0].mxu0 %v1162
  %v1351 = vpop.f32.mrb[0].mxu0
  %v1352 = vadd.f32 0.0, %v1351
  %v1353 = vpop.f32.mrb[0].mxu0
  %v1354 = vpop.f32.mrb[0].mxu0
  %v1355 = vadd.f32 0.0, %v1354
  %v1356 = vpop.f32.mrb[0].mxu0
  %1357 = vmatprep.mubr.bf16.mxu0 0
  %1358 = vmatmul.mubr.bf16.gmra.mrb[0].mxu0 %v1163
  %v1359 = vpop.f32.mrb[0].mxu0
  %v1360 = vadd.f32 0.0, %v1359
  %v1361 = vpop.f32.mrb[0].mxu0
  %v1362 = vpop.f32.mrb[0].mxu0
  %v1363 = vadd.f32 0.0, %v1362
  %v1364 = vpop.f32.mrb[0].mxu0
  %1365 = vmatprep.mubr.bf16.mxu0 0
  %1366 = vmatmul.mubr.bf16.gmra.mrb[0].mxu0 %v1164
  %v1367 = vpop.f32.mrb[0].mxu0
  %v1368 = vadd.f32 0.0, %v1367
  %v1369 = vpop.f32.mrb[0].mxu0
  %v1370 = vpop.f32.mrb[0].mxu0
  %v1371 = vadd.f32 0.0, %v1370
  %v1372 = vpop.f32.mrb[0].mxu0
  %1373 = vmatprep.mubr.bf16.mxu0 0
  %1374 = vmatmul.mubr.bf16.gmra.mrb[0].mxu0 %v1165
  %v1375 = vpop.f32.mrb[0].mxu0
  %v1376 = vadd.f32 0.0, %v1375
  %v1377 = vpop.f32.mrb[0].mxu0
  %v1378 = vpop.f32.mrb[0].mxu0
  %v1379 = vadd.f32 0.0, %v1378
  %v1380 = vpop.f32.mrb[0].mxu0
  %1381 = vmatprep.mubr.bf16.mxu0 0
  %1382 = vmatmul.mubr.bf16.gmra.mrb[0].mxu0 %v1166
  %v1383 = vpop.f32.mrb[0].mxu0
  %v1384 = vadd.f32 0.0, %v1383
  %v1385 = vpop.f32.mrb[0].mxu0
  %v1386 = vpop.f32.mrb[0].mxu0
  %v1387 = vadd.f32 0.0, %v1386
  %v1388 = vpop.f32.mrb[0].mxu0
  %1389 = vmatprep.mubr.bf16.mxu0 0
  %1390 = vmatmul.mubr.bf16.gmra.mrb[0].mxu0 %v1167
  %v1391 = vpop.f32.mrb[0].mxu0
  %v1392 = vadd.f32 0.0, %v1391
  %v1393 = vpop.f32.mrb[0].mxu0
  %v1394 = vpop.f32.mrb[0].mxu0
  %v1395 = vadd.f32 0.0, %v1394
  %v1396 = vpop.f32.mrb[0].mxu0
  %1397 = vmatprep.mubr.bf16.mxu0 0
  %1398 = vmatmul.mubr.bf16.gmra.mrb[0].mxu0 %v1168
  %v1399 = vpop.f32.mrb[0].mxu0
  %v1400 = vadd.f32 0.0, %v1399
  %v1401 = vpop.f32.mrb[0].mxu0
  %v1402 = vpop.f32.mrb[0].mxu0
  %v1403 = vadd.f32 0.0, %v1402
  %v1404 = vpop.f32.mrb[0].mxu0
  %1405 = vmatprep.mubr.bf16.mxu0 0
  %1406 = vmatmul.mubr.bf16.gmra.mrb[0].mxu0 %v1169
  %v1407 = vpop.f32.mrb[0].mxu0
  %v1408 = vadd.f32 0.0, %v1407
  %v1409 = vpop.f32.mrb[0].mxu0
  %v1410 = vpop.f32.mrb[0].mxu0
  %v1411 = vadd.f32 0.0, %v1410
  %v1412 = vpop.f32.mrb[0].mxu0
  %1413 = vmatprep.mubr.bf16.mxu0 0
  %1414 = vmatmul.mubr.bf16.gmra.mrb[0].mxu0 %v1170
  %v1415 = vpop.f32.mrb[0].mxu0
  %v1416 = vadd.f32 0.0, %v1415
  %v1417 = vpop.f32.mrb[0].mxu0
  %v1418 = vpop.f32.mrb[0].mxu0
  %v1419 = vadd.f32 0.0, %v1418
  %v1420 = vpop.f32.mrb[0].mxu0
  %1421 = vmatprep.mubr.bf16.mxu0 0
  %1422 = vmatmul.mubr.bf16.gmra.mrb[0].mxu0 %v1171
  %v1423 = vpop.f32.mrb[0].mxu0
  %v1424 = vadd.f32 0.0, %v1423
  %v1425 = vpop.f32.mrb[0].mxu0
  %v1426 = vpop.f32.mrb[0].mxu0
  %v1427 = vadd.f32 0.0, %v1426
  %v1428 = vpop.f32.mrb[0].mxu0
  %1429 = vdwg.mxu0
  %v1430 = vmax.f32 %v946, %v1232
  %v1431 = vmax.f32 %v947, %v1235
  %v1432 = vmax.f32 %v948, %v1240
  %v1433 = vmax.f32 %v949, %v1243
  %v1434 = vmax.f32 %v950, %v1248
  %v1435 = vmax.f32 %v951, %v1251
  %v1436 = vmax.f32 %v952, %v1256
  %v1437 = vmax.f32 %v953, %v1259
  %v1438 = vmax.f32 %v954, %v1264
  %v1439 = vmax.f32 %v955, %v1267
  %v1440 = vmax.f32 %v956, %v1272
  %v1441 = vmax.f32 %v957, %v1275
  %v1442 = vmax.f32 %v958, %v1280
  %v1443 = vmax.f32 %v959, %v1283
  %v1444 = vmax.f32 %v960, %v1288
  %v1445 = vmax.f32 %v961, %v1291
  %v1446 = vmax.f32 %v962, %v1296
  %v1447 = vmax.f32 %v963, %v1299
  %v1448 = vmax.f32 %v964, %v1304
  %v1449 = vmax.f32 %v965, %v1307
  %v1450 = vmax.f32 %v966, %v1312
  %v1451 = vmax.f32 %v967, %v1315
  %v1452 = vmax.f32 %v968, %v1320
  %v1453 = vmax.f32 %v969, %v1323
  %v1454 = vmax.f32 %v970, %v1328
  %v1455 = vmax.f32 %v971, %v1331
  %v1456 = vmax.f32 %v972, %v1336
  %v1457 = vmax.f32 %v973, %v1339
  %v1458 = vmax.f32 %v974, %v1344
  %v1459 = vmax.f32 %v975, %v1347
  %v1460 = vmax.f32 %v976, %v1352
  %v1461 = vmax.f32 %v977, %v1355
  %v1462 = vmax.f32 %v978, %v1360
  %v1463 = vmax.f32 %v979, %v1363
  %v1464 = vmax.f32 %v980, %v1368
  %v1465 = vmax.f32 %v981, %v1371
  %v1466 = vmax.f32 %v982, %v1376
  %v1467 = vmax.f32 %v983, %v1379
  %v1468 = vmax.f32 %v984, %v1384
  %v1469 = vmax.f32 %v985, %v1387
  %v1470 = vmax.f32 %v986, %v1392
  %v1471 = vmax.f32 %v987, %v1395
  %v1472 = vmax.f32 %v988, %v1400
  %v1473 = vmax.f32 %v989, %v1403
  %v1474 = vmax.f32 %v990, %v1408
  %v1475 = vmax.f32 %v991, %v1411
  %v1476 = vmax.f32 %v992, %v1416
  %v1477 = vmax.f32 %v993, %v1419
  %v1478 = vmax.f32 %v994, %v1424
  %v1479 = vmax.f32 %v995, %v1427
  %s1480 = scalar_lea.vmem %s0, 600
  %v1481 = vld [vmem:[%s1480] sm:$0xf]
  %v1482 = vld [vmem:[%s1480 + $0x4] sm:$0xf]
  %v1483 = vld [vmem:[%s1480 + $0x8] sm:$0xf]
  %v1484 = vld [vmem:[%s1480 + $0xc] sm:$0xf]
  %v1485 = vld [vmem:[%s1480 + $0x10] sm:$0xf]
  %v1486 = vld [vmem:[%s1480 + $0x14] sm:$0xf]
  %v1487 = vld [vmem:[%s1480 + $0x18] sm:$0xf]
  %v1488 = vld [vmem:[%s1480 + $0x1c] sm:$0xf]
  %v1489 = vld [vmem:[%s1480 + $0x20] sm:$0xf]
  %v1490 = vld [vmem:[%s1480 + $0x24] sm:$0xf]
  %v1491 = vld [vmem:[%s1480 + $0x28] sm:$0xf]
  %v1492 = vld [vmem:[%s1480 + $0x2c] sm:$0xf]
  %v1493 = vld [vmem:[%s1480 + $0x30] sm:$0xf]
  %v1494 = vld [vmem:[%s1480 + $0x34] sm:$0xf]
  %v1495 = vld [vmem:[%s1480 + $0x38] sm:$0xf]
  %v1496 = vld [vmem:[%s1480 + $0x3c] sm:$0xf]
  %v1497 = vld [vmem:[%s1480 + $0x40] sm:$0xf]
  %v1498 = vld [vmem:[%s1480 + $0x44] sm:$0xf]
  %v1499 = vld [vmem:[%s1480 + $0x48] sm:$0xf]
  %v1500 = vld [vmem:[%s1480 + $0x4c] sm:$0xf]
  %v1501 = vld [vmem:[%s1480 + $0x50] sm:$0xf]
  %v1502 = vld [vmem:[%s1480 + $0x54] sm:$0xf]
  %v1503 = vld [vmem:[%s1480 + $0x58] sm:$0xf]
  %v1504 = vld [vmem:[%s1480 + $0x5c] sm:$0xf]
  %v1505 = vld [vmem:[%s1480 + $0x60] sm:$0xf]
  %v1506 = vld [vmem:[%s1480 + $0x64] sm:$0xf]
  %v1507 = vld [vmem:[%s1480 + $0x68] sm:$0xf]
  %v1508 = vld [vmem:[%s1480 + $0x6c] sm:$0xf]
  %v1509 = vld [vmem:[%s1480 + $0x70] sm:$0xf]
  %v1510 = vld [vmem:[%s1480 + $0x74] sm:$0xf]
  %v1511 = vld [vmem:[%s1480 + $0x78] sm:$0xf]
  %v1512 = vld [vmem:[%s1480 + $0x7c] sm:$0xf]
  %v1513 = vld [vmem:[%s1480 + $0x80] sm:$0xf]
  %v1514 = vld [vmem:[%s1480 + $0x84] sm:$0xf]
  %v1515 = vld [vmem:[%s1480 + $0x88] sm:$0xf]
  %v1516 = vld [vmem:[%s1480 + $0x8c] sm:$0xf]
  %v1517 = vld [vmem:[%s1480 + $0x90] sm:$0xf]
  %v1518 = vld [vmem:[%s1480 + $0x94] sm:$0xf]
  %v1519 = vld [vmem:[%s1480 + $0x98] sm:$0xf]
  %v1520 = vld [vmem:[%s1480 + $0x9c] sm:$0xf]
  %v1521 = vld [vmem:[%s1480 + $0xa0] sm:$0xf]
  %v1522 = vld [vmem:[%s1480 + $0xa4] sm:$0xf]
  %v1523 = vld [vmem:[%s1480 + $0xa8] sm:$0xf]
  %v1524 = vld [vmem:[%s1480 + $0xac] sm:$0xf]
  %v1525 = vld [vmem:[%s1480 + $0xb0] sm:$0xf]
  %v1526 = vld [vmem:[%s1480 + $0xb4] sm:$0xf]
  %v1527 = vld [vmem:[%s1480 + $0xb8] sm:$0xf]
  %v1528 = vld [vmem:[%s1480 + $0xbc] sm:$0xf]
  %v1529 = vld [vmem:[%s1480 + $0xc0] sm:$0xf]
  %v1530 = vld [vmem:[%s1480 + $0xc4] sm:$0xf]
  %v1581 = vunpack.c.l.b16 %v1481
  %v1582 = vunpack.c.l.b16 %v1482
  %v1583 = vunpack.c.l.b16 %v1483
  %v1584 = vunpack.c.l.b16 %v1484
  %v1585 = vunpack.c.l.b16 %v1485
  %v1586 = vunpack.c.l.b16 %v1486
  %v1587 = vunpack.c.l.b16 %v1487
  %v1588 = vunpack.c.l.b16 %v1488
  %v1589 = vunpack.c.l.b16 %v1489
  %v1590 = vunpack.c.l.b16 %v1490
  %v1591 = vunpack.c.l.b16 %v1491
  %v1592 = vunpack.c.l.b16 %v1492
  %v1593 = vunpack.c.l.b16 %v1493
  %v1594 = vunpack.c.l.b16 %v1494
  %v1595 = vunpack.c.l.b16 %v1495
  %v1596 = vunpack.c.l.b16 %v1496
  %v1597 = vunpack.c.l.b16 %v1497
  %v1598 = vunpack.c.l.b16 %v1498
  %v1599 = vunpack.c.l.b16 %v1499
  %v1600 = vunpack.c.l.b16 %v1500
  %v1601 = vunpack.c.l.b16 %v1501
  %v1602 = vunpack.c.l.b16 %v1502
  %v1603 = vunpack.c.l.b16 %v1503
  %v1604 = vunpack.c.l.b16 %v1504
  %v1605 = vunpack.c.l.b16 %v1505
  %v1606 = vunpack.c.l.b16 %v1506
  %v1607 = vunpack.c.l.b16 %v1507
  %v1608 = vunpack.c.l.b16 %v1508
  %v1609 = vunpack.c.l.b16 %v1509
  %v1610 = vunpack.c.l.b16 %v1510
  %v1611 = vunpack.c.l.b16 %v1511
  %v1612 = vunpack.c.l.b16 %v1512
  %v1613 = vunpack.c.l.b16 %v1513
  %v1614 = vunpack.c.l.b16 %v1514
  %v1615 = vunpack.c.l.b16 %v1515
  %v1616 = vunpack.c.l.b16 %v1516
  %v1617 = vunpack.c.l.b16 %v1517
  %v1618 = vunpack.c.l.b16 %v1518
  %v1619 = vunpack.c.l.b16 %v1519
  %v1620 = vunpack.c.l.b16 %v1520
  %v1621 = vunpack.c.l.b16 %v1521
  %v1622 = vunpack.c.l.b16 %v1522
  %v1623 = vunpack.c.l.b16 %v1523
  %v1624 = vunpack.c.l.b16 %v1524
  %v1625 = vunpack.c.l.b16 %v1525
  %v1626 = vunpack.c.l.b16 %v1526
  %v1627 = vunpack.c.l.b16 %v1527
  %v1628 = vunpack.c.l.b16 %v1528
  %v1629 = vunpack.c.l.b16 %v1529
  %v1630 = vunpack.c.l.b16 %v1530
  %v1631 = vpack.c.b16 %v1582, %v1581
  %v1632 = vpack.c.b16 %v1584, %v1583
  %v1633 = vpack.c.b16 %v1586, %v1585
  %v1634 = vpack.c.b16 %v1588, %v1587
  %v1635 = vpack.c.b16 %v1590, %v1589
  %v1636 = vpack.c.b16 %v1592, %v1591
  %v1637 = vpack.c.b16 %v1594, %v1593
  %v1638 = vpack.c.b16 %v1596, %v1595
  %v1639 = vpack.c.b16 %v1598, %v1597
  %v1640 = vpack.c.b16 %v1600, %v1599
  %v1641 = vpack.c.b16 %v1602, %v1601
  %v1642 = vpack.c.b16 %v1604, %v1603
  %v1643 = vpack.c.b16 %v1606, %v1605
  %v1644 = vpack.c.b16 %v1608, %v1607
  %v1645 = vpack.c.b16 %v1610, %v1609
  %v1646 = vpack.c.b16 %v1612, %v1611
  %v1647 = vpack.c.b16 %v1614, %v1613
  %v1648 = vpack.c.b16 %v1616, %v1615
  %v1649 = vpack.c.b16 %v1618, %v1617
  %v1650 = vpack.c.b16 %v1620, %v1619
  %v1651 = vpack.c.b16 %v1622, %v1621
  %v1652 = vpack.c.b16 %v1624, %v1623
  %v1653 = vpack.c.b16 %v1626, %v1625
  %v1654 = vpack.c.b16 %v1628, %v1627
  %v1655 = vpack.c.b16 %v1630, %v1629
  %1681 = vmatprep.subr.bf16.mxu0 0
  %1682 = vmatpush1.bf16.msra.mxu0 %v263
  %1683 = vmatprep.subr.bf16.mxu0 0
  %1684 = vmatpush1.bf16.msra.mxu0 %v264
  %1685 = vmatprep.subr.bf16.mxu0 0
  %1686 = vmatpush1.bf16.msra.mxu0 %v265
  %1687 = vmatprep.subr.bf16.mxu0 0
  %1688 = vmatpush1.bf16.msra.mxu0 %v266
  %1689 = vmatprep.subr.bf16.mxu0 0
  %1690 = vmatpush1.bf16.msra.mxu0 %v267
  %1691 = vmatprep.subr.bf16.mxu0 0
  %1692 = vmatpush1.bf16.msra.mxu0 %v268
  %1693 = vmatprep.subr.bf16.mxu0 0
  %1694 = vmatpush1.bf16.msra.mxu0 %v269
  %1695 = vmatprep.subr.bf16.mxu0 0
  %1696 = vmatpush1.bf16.msra.mxu0 %v270
  %1697 = vmatprep.subr.bf16.mxu0 0
  %1698 = vmatpush1.bf16.msra.mxu0 0
  %1699 = vmatprep.subr.bf16.mxu0 0
  %1700 = vmatpush1.bf16.msra.mxu0 0
  %1701 = vmatprep.subr.bf16.mxu0 0
  %1702 = vmatpush1.bf16.msra.mxu0 0
  %1703 = vmatprep.subr.bf16.mxu0 0
  %1704 = vmatpush1.bf16.msra.mxu0 0
  %1705 = vmatprep.subr.bf16.mxu0 0
  %1706 = vmatpush1.bf16.msra.mxu0 0
  %1707 = vmatprep.subr.bf16.mxu0 0
  %1708 = vmatpush1.bf16.msra.mxu0 0
  %1709 = vmatprep.subr.bf16.mxu0 0
  %1710 = vmatpush1.bf16.msra.mxu0 0
  %1711 = vmatprep.subr.bf16.mxu0 0
  %1712 = vmatpush1.bf16.msra.mxu0 0
  %1713 = vmatprep.mubr.bf16.mxu0 0
  %1714 = vmatmul.mubr.bf16.gmra.mrb[0].mxu0 %v1631
  %v1715 = vpop.f32.mrb[0].mxu0
  %v1716 = vadd.f32 0.0, %v1715
  %v1717 = vpop.f32.mrb[0].mxu0
  %v1718 = vpop.f32.mrb[0].mxu0
  %v1719 = vadd.f32 0.0, %v1718
  %v1720 = vpop.f32.mrb[0].mxu0
  %1721 = vmatprep.mubr.bf16.mxu0 0
  %1722 = vmatmul.mubr.bf16.gmra.mrb[0].mxu0 %v1632
  %v1723 = vpop.f32.mrb[0].mxu0
  %v1724 = vadd.f32 0.0, %v1723
  %v1725 = vpop.f32.mrb[0].mxu0
  %v1726 = vpop.f32.mrb[0].mxu0
  %v1727 = vadd.f32 0.0, %v1726
  %v1728 = vpop.f32.mrb[0].mxu0
  %1729 = vmatprep.mubr.bf16.mxu0 0
  %1730 = vmatmul.mubr.bf16.gmra.mrb[0].mxu0 %v1633
  %v1731 = vpop.f32.mrb[0].mxu0
  %v1732 = vadd.f32 0.0, %v1731
  %v1733 = vpop.f32.mrb[0].mxu0
  %v1734 = vpop.f32.mrb[0].mxu0
  %v1735 = vadd.f32 0.0, %v1734
  %v1736 = vpop.f32.mrb[0].mxu0
  %1737 = vmatprep.mubr.bf16.mxu0 0
  %1738 = vmatmul.mubr.bf16.gmra.mrb[0].mxu0 %v1634
  %v1739 = vpop.f32.mrb[0].mxu0
  %v1740 = vadd.f32 0.0, %v1739
  %v1741 = vpop.f32.mrb[0].mxu0
  %v1742 = vpop.f32.mrb[0].mxu0
  %v1743 = vadd.f32 0.0, %v1742
  %v1744 = vpop.f32.mrb[0].mxu0
  %1745 = vmatprep.mubr.bf16.mxu0 0
  %1746 = vmatmul.mubr.bf16.gmra.mrb[0].mxu0 %v1635
  %v1747 = vpop.f32.mrb[0].mxu0
  %v1748 = vadd.f32 0.0, %v1747
  %v1749 = vpop.f32.mrb[0].mxu0
  %v1750 = vpop.f32.mrb[0].mxu0
  %v1751 = vadd.f32 0.0, %v1750
  %v1752 = vpop.f32.mrb[0].mxu0
  %1753 = vmatprep.mubr.bf16.mxu0 0
  %1754 = vmatmul.mubr.bf16.gmra.mrb[0].mxu0 %v1636
  %v1755 = vpop.f32.mrb[0].mxu0
  %v1756 = vadd.f32 0.0, %v1755
  %v1757 = vpop.f32.mrb[0].mxu0
  %v1758 = vpop.f32.mrb[0].mxu0
  %v1759 = vadd.f32 0.0, %v1758
  %v1760 = vpop.f32.mrb[0].mxu0
  %1761 = vmatprep.mubr.bf16.mxu0 0
  %1762 = vmatmul.mubr.bf16.gmra.mrb[0].mxu0 %v1637
  %v1763 = vpop.f32.mrb[0].mxu0
  %v1764 = vadd.f32 0.0, %v1763
  %v1765 = vpop.f32.mrb[0].mxu0
  %v1766 = vpop.f32.mrb[0].mxu0
  %v1767 = vadd.f32 0.0, %v1766
  %v1768 = vpop.f32.mrb[0].mxu0
  %1769 = vmatprep.mubr.bf16.mxu0 0
  %1770 = vmatmul.mubr.bf16.gmra.mrb[0].mxu0 %v1638
  %v1771 = vpop.f32.mrb[0].mxu0
  %v1772 = vadd.f32 0.0, %v1771
  %v1773 = vpop.f32.mrb[0].mxu0
  %v1774 = vpop.f32.mrb[0].mxu0
  %v1775 = vadd.f32 0.0, %v1774
  %v1776 = vpop.f32.mrb[0].mxu0
  %1777 = vmatprep.mubr.bf16.mxu0 0
  %1778 = vmatmul.mubr.bf16.gmra.mrb[0].mxu0 %v1639
  %v1779 = vpop.f32.mrb[0].mxu0
  %v1780 = vadd.f32 0.0, %v1779
  %v1781 = vpop.f32.mrb[0].mxu0
  %v1782 = vpop.f32.mrb[0].mxu0
  %v1783 = vadd.f32 0.0, %v1782
  %v1784 = vpop.f32.mrb[0].mxu0
  %1785 = vmatprep.mubr.bf16.mxu0 0
  %1786 = vmatmul.mubr.bf16.gmra.mrb[0].mxu0 %v1640
  %v1787 = vpop.f32.mrb[0].mxu0
  %v1788 = vadd.f32 0.0, %v1787
  %v1789 = vpop.f32.mrb[0].mxu0
  %v1790 = vpop.f32.mrb[0].mxu0
  %v1791 = vadd.f32 0.0, %v1790
  %v1792 = vpop.f32.mrb[0].mxu0
  %1793 = vmatprep.mubr.bf16.mxu0 0
  %1794 = vmatmul.mubr.bf16.gmra.mrb[0].mxu0 %v1641
  %v1795 = vpop.f32.mrb[0].mxu0
  %v1796 = vadd.f32 0.0, %v1795
  %v1797 = vpop.f32.mrb[0].mxu0
  %v1798 = vpop.f32.mrb[0].mxu0
  %v1799 = vadd.f32 0.0, %v1798
  %v1800 = vpop.f32.mrb[0].mxu0
  %1801 = vmatprep.mubr.bf16.mxu0 0
  %1802 = vmatmul.mubr.bf16.gmra.mrb[0].mxu0 %v1642
  %v1803 = vpop.f32.mrb[0].mxu0
  %v1804 = vadd.f32 0.0, %v1803
  %v1805 = vpop.f32.mrb[0].mxu0
  %v1806 = vpop.f32.mrb[0].mxu0
  %v1807 = vadd.f32 0.0, %v1806
  %v1808 = vpop.f32.mrb[0].mxu0
  %1809 = vmatprep.mubr.bf16.mxu0 0
  %1810 = vmatmul.mubr.bf16.gmra.mrb[0].mxu0 %v1643
  %v1811 = vpop.f32.mrb[0].mxu0
  %v1812 = vadd.f32 0.0, %v1811
  %v1813 = vpop.f32.mrb[0].mxu0
  %v1814 = vpop.f32.mrb[0].mxu0
  %v1815 = vadd.f32 0.0, %v1814
  %v1816 = vpop.f32.mrb[0].mxu0
  %1817 = vmatprep.mubr.bf16.mxu0 0
  %1818 = vmatmul.mubr.bf16.gmra.mrb[0].mxu0 %v1644
  %v1819 = vpop.f32.mrb[0].mxu0
  %v1820 = vadd.f32 0.0, %v1819
  %v1821 = vpop.f32.mrb[0].mxu0
  %v1822 = vpop.f32.mrb[0].mxu0
  %v1823 = vadd.f32 0.0, %v1822
  %v1824 = vpop.f32.mrb[0].mxu0
  %1825 = vmatprep.mubr.bf16.mxu0 0
  %1826 = vmatmul.mubr.bf16.gmra.mrb[0].mxu0 %v1645
  %v1827 = vpop.f32.mrb[0].mxu0
  %v1828 = vadd.f32 0.0, %v1827
  %v1829 = vpop.f32.mrb[0].mxu0
  %v1830 = vpop.f32.mrb[0].mxu0
  %v1831 = vadd.f32 0.0, %v1830
  %v1832 = vpop.f32.mrb[0].mxu0
  %1833 = vmatprep.mubr.bf16.mxu0 0
  %1834 = vmatmul.mubr.bf16.gmra.mrb[0].mxu0 %v1646
  %v1835 = vpop.f32.mrb[0].mxu0
  %v1836 = vadd.f32 0.0, %v1835
  %v1837 = vpop.f32.mrb[0].mxu0
  %v1838 = vpop.f32.mrb[0].mxu0
  %v1839 = vadd.f32 0.0, %v1838
  %v1840 = vpop.f32.mrb[0].mxu0
  %1841 = vmatprep.mubr.bf16.mxu0 0
  %1842 = vmatmul.mubr.bf16.gmra.mrb[0].mxu0 %v1647
  %v1843 = vpop.f32.mrb[0].mxu0
  %v1844 = vadd.f32 0.0, %v1843
  %v1845 = vpop.f32.mrb[0].mxu0
  %v1846 = vpop.f32.mrb[0].mxu0
  %v1847 = vadd.f32 0.0, %v1846
  %v1848 = vpop.f32.mrb[0].mxu0
  %1849 = vmatprep.mubr.bf16.mxu0 0
  %1850 = vmatmul.mubr.bf16.gmra.mrb[0].mxu0 %v1648
  %v1851 = vpop.f32.mrb[0].mxu0
  %v1852 = vadd.f32 0.0, %v1851
  %v1853 = vpop.f32.mrb[0].mxu0
  %v1854 = vpop.f32.mrb[0].mxu0
  %v1855 = vadd.f32 0.0, %v1854
  %v1856 = vpop.f32.mrb[0].mxu0
  %1857 = vmatprep.mubr.bf16.mxu0 0
  %1858 = vmatmul.mubr.bf16.gmra.mrb[0].mxu0 %v1649
  %v1859 = vpop.f32.mrb[0].mxu0
  %v1860 = vadd.f32 0.0, %v1859
  %v1861 = vpop.f32.mrb[0].mxu0
  %v1862 = vpop.f32.mrb[0].mxu0
  %v1863 = vadd.f32 0.0, %v1862
  %v1864 = vpop.f32.mrb[0].mxu0
  %1865 = vmatprep.mubr.bf16.mxu0 0
  %1866 = vmatmul.mubr.bf16.gmra.mrb[0].mxu0 %v1650
  %v1867 = vpop.f32.mrb[0].mxu0
  %v1868 = vadd.f32 0.0, %v1867
  %v1869 = vpop.f32.mrb[0].mxu0
  %v1870 = vpop.f32.mrb[0].mxu0
  %v1871 = vadd.f32 0.0, %v1870
  %v1872 = vpop.f32.mrb[0].mxu0
  %1873 = vmatprep.mubr.bf16.mxu0 0
  %1874 = vmatmul.mubr.bf16.gmra.mrb[0].mxu0 %v1651
  %v1875 = vpop.f32.mrb[0].mxu0
  %v1876 = vadd.f32 0.0, %v1875
  %v1877 = vpop.f32.mrb[0].mxu0
  %v1878 = vpop.f32.mrb[0].mxu0
  %v1879 = vadd.f32 0.0, %v1878
  %v1880 = vpop.f32.mrb[0].mxu0
  %1881 = vmatprep.mubr.bf16.mxu0 0
  %1882 = vmatmul.mubr.bf16.gmra.mrb[0].mxu0 %v1652
  %v1883 = vpop.f32.mrb[0].mxu0
  %v1884 = vadd.f32 0.0, %v1883
  %v1885 = vpop.f32.mrb[0].mxu0
  %v1886 = vpop.f32.mrb[0].mxu0
  %v1887 = vadd.f32 0.0, %v1886
  %v1888 = vpop.f32.mrb[0].mxu0
  %1889 = vmatprep.mubr.bf16.mxu0 0
  %1890 = vmatmul.mubr.bf16.gmra.mrb[0].mxu0 %v1653
  %v1891 = vpop.f32.mrb[0].mxu0
  %v1892 = vadd.f32 0.0, %v1891
  %v1893 = vpop.f32.mrb[0].mxu0
  %v1894 = vpop.f32.mrb[0].mxu0
  %v1895 = vadd.f32 0.0, %v1894
  %v1896 = vpop.f32.mrb[0].mxu0
  %1897 = vmatprep.mubr.bf16.mxu0 0
  %1898 = vmatmul.mubr.bf16.gmra.mrb[0].mxu0 %v1654
  %v1899 = vpop.f32.mrb[0].mxu0
  %v1900 = vadd.f32 0.0, %v1899
  %v1901 = vpop.f32.mrb[0].mxu0
  %v1902 = vpop.f32.mrb[0].mxu0
  %v1903 = vadd.f32 0.0, %v1902
  %v1904 = vpop.f32.mrb[0].mxu0
  %1905 = vmatprep.mubr.bf16.mxu0 0
  %1906 = vmatmul.mubr.bf16.gmra.mrb[0].mxu0 %v1655
  %v1907 = vpop.f32.mrb[0].mxu0
  %v1908 = vadd.f32 0.0, %v1907
  %v1909 = vpop.f32.mrb[0].mxu0
  %v1910 = vpop.f32.mrb[0].mxu0
  %v1911 = vadd.f32 0.0, %v1910
  %v1912 = vpop.f32.mrb[0].mxu0
  %1913 = vdwg.mxu0
  %v1914 = vmax.f32 %v1430, %v1716
  %v1915 = vmax.f32 %v1431, %v1719
  %v1916 = vmax.f32 %v1432, %v1724
  %v1917 = vmax.f32 %v1433, %v1727
  %v1918 = vmax.f32 %v1434, %v1732
  %v1919 = vmax.f32 %v1435, %v1735
  %v1920 = vmax.f32 %v1436, %v1740
  %v1921 = vmax.f32 %v1437, %v1743
  %v1922 = vmax.f32 %v1438, %v1748
  %v1923 = vmax.f32 %v1439, %v1751
  %v1924 = vmax.f32 %v1440, %v1756
  %v1925 = vmax.f32 %v1441, %v1759
  %v1926 = vmax.f32 %v1442, %v1764
  %v1927 = vmax.f32 %v1443, %v1767
  %v1928 = vmax.f32 %v1444, %v1772
  %v1929 = vmax.f32 %v1445, %v1775
  %v1930 = vmax.f32 %v1446, %v1780
  %v1931 = vmax.f32 %v1447, %v1783
  %v1932 = vmax.f32 %v1448, %v1788
  %v1933 = vmax.f32 %v1449, %v1791
  %v1934 = vmax.f32 %v1450, %v1796
  %v1935 = vmax.f32 %v1451, %v1799
  %v1936 = vmax.f32 %v1452, %v1804
  %v1937 = vmax.f32 %v1453, %v1807
  %v1938 = vmax.f32 %v1454, %v1812
  %v1939 = vmax.f32 %v1455, %v1815
  %v1940 = vmax.f32 %v1456, %v1820
  %v1941 = vmax.f32 %v1457, %v1823
  %v1942 = vmax.f32 %v1458, %v1828
  %v1943 = vmax.f32 %v1459, %v1831
  %v1944 = vmax.f32 %v1460, %v1836
  %v1945 = vmax.f32 %v1461, %v1839
  %v1946 = vmax.f32 %v1462, %v1844
  %v1947 = vmax.f32 %v1463, %v1847
  %v1948 = vmax.f32 %v1464, %v1852
  %v1949 = vmax.f32 %v1465, %v1855
  %v1950 = vmax.f32 %v1466, %v1860
  %v1951 = vmax.f32 %v1467, %v1863
  %v1952 = vmax.f32 %v1468, %v1868
  %v1953 = vmax.f32 %v1469, %v1871
  %v1954 = vmax.f32 %v1470, %v1876
  %v1955 = vmax.f32 %v1471, %v1879
  %v1956 = vmax.f32 %v1472, %v1884
  %v1957 = vmax.f32 %v1473, %v1887
  %v1958 = vmax.f32 %v1474, %v1892
  %v1959 = vmax.f32 %v1475, %v1895
  %v1960 = vmax.f32 %v1476, %v1900
  %v1961 = vmax.f32 %v1477, %v1903
  %v1962 = vmax.f32 %v1478, %v1908
  %v1963 = vmax.f32 %v1479, %v1911
  %v1964 = vld [vmem:[%s2] sm:$0x1]
  %v1966 = vlaneseq
  %v1967 = vshrl.u32 %v1966, 7
  %v1968 = vsub.s32 0, %v1967
  %v1969 = vrot.slane %v1964, %v1968
  %v1971 = vadd.f32 %v1914, %v1969
  %v1972 = vadd.f32 %v1915, %v1969
  %v1973 = vadd.f32 %v1916, %v1969
  %v1974 = vadd.f32 %v1917, %v1969
  %v1975 = vadd.f32 %v1918, %v1969
  %v1976 = vadd.f32 %v1919, %v1969
  %v1977 = vadd.f32 %v1920, %v1969
  %v1978 = vadd.f32 %v1921, %v1969
  %v1979 = vadd.f32 %v1922, %v1969
  %v1980 = vadd.f32 %v1923, %v1969
  %v1981 = vadd.f32 %v1924, %v1969
  %v1982 = vadd.f32 %v1925, %v1969
  %v1983 = vadd.f32 %v1926, %v1969
  %v1984 = vadd.f32 %v1927, %v1969
  %v1985 = vadd.f32 %v1928, %v1969
  %v1986 = vadd.f32 %v1929, %v1969
  %v1987 = vadd.f32 %v1930, %v1969
  %v1988 = vadd.f32 %v1931, %v1969
  %v1989 = vadd.f32 %v1932, %v1969
  %v1990 = vadd.f32 %v1933, %v1969
  %v1991 = vadd.f32 %v1934, %v1969
  %v1992 = vadd.f32 %v1935, %v1969
  %v1993 = vadd.f32 %v1936, %v1969
  %v1994 = vadd.f32 %v1937, %v1969
  %v1995 = vadd.f32 %v1938, %v1969
  %v1996 = vadd.f32 %v1939, %v1969
  %v1997 = vadd.f32 %v1940, %v1969
  %v1998 = vadd.f32 %v1941, %v1969
  %v1999 = vadd.f32 %v1942, %v1969
  %v2000 = vadd.f32 %v1943, %v1969
  %v2001 = vadd.f32 %v1944, %v1969
  %v2002 = vadd.f32 %v1945, %v1969
  %v2003 = vadd.f32 %v1946, %v1969
  %v2004 = vadd.f32 %v1947, %v1969
  %v2005 = vadd.f32 %v1948, %v1969
  %v2006 = vadd.f32 %v1949, %v1969
  %v2007 = vadd.f32 %v1950, %v1969
  %v2008 = vadd.f32 %v1951, %v1969
  %v2009 = vadd.f32 %v1952, %v1969
  %v2010 = vadd.f32 %v1953, %v1969
  %v2011 = vadd.f32 %v1954, %v1969
  %v2012 = vadd.f32 %v1955, %v1969
  %v2013 = vadd.f32 %v1956, %v1969
  %v2014 = vadd.f32 %v1957, %v1969
  %v2015 = vadd.f32 %v1958, %v1969
  %v2016 = vadd.f32 %v1959, %v1969
  %v2017 = vadd.f32 %v1960, %v1969
  %v2018 = vadd.f32 %v1961, %v1969
  %v2019 = vadd.f32 %v1962, %v1969
  %v2020 = vadd.f32 %v1963, %v1969
  %v2021 = vmax.f32 %v1971, 0.0
  %v2022 = vmax.f32 %v1972, 0.0
  %v2023 = vmax.f32 %v1973, 0.0
  %v2024 = vmax.f32 %v1974, 0.0
  %v2025 = vmax.f32 %v1975, 0.0
  %v2026 = vmax.f32 %v1976, 0.0
  %v2027 = vmax.f32 %v1977, 0.0
  %v2028 = vmax.f32 %v1978, 0.0
  %v2029 = vmax.f32 %v1979, 0.0
  %v2030 = vmax.f32 %v1980, 0.0
  %v2031 = vmax.f32 %v1981, 0.0
  %v2032 = vmax.f32 %v1982, 0.0
  %v2033 = vmax.f32 %v1983, 0.0
  %v2034 = vmax.f32 %v1984, 0.0
  %v2035 = vmax.f32 %v1985, 0.0
  %v2036 = vmax.f32 %v1986, 0.0
  %v2037 = vmax.f32 %v1987, 0.0
  %v2038 = vmax.f32 %v1988, 0.0
  %v2039 = vmax.f32 %v1989, 0.0
  %v2040 = vmax.f32 %v1990, 0.0
  %v2041 = vmax.f32 %v1991, 0.0
  %v2042 = vmax.f32 %v1992, 0.0
  %v2043 = vmax.f32 %v1993, 0.0
  %v2044 = vmax.f32 %v1994, 0.0
  %v2045 = vmax.f32 %v1995, 0.0
  %v2046 = vmax.f32 %v1996, 0.0
  %v2047 = vmax.f32 %v1997, 0.0
  %v2048 = vmax.f32 %v1998, 0.0
  %v2049 = vmax.f32 %v1999, 0.0
  %v2050 = vmax.f32 %v2000, 0.0
  %v2051 = vmax.f32 %v2001, 0.0
  %v2052 = vmax.f32 %v2002, 0.0
  %v2053 = vmax.f32 %v2003, 0.0
  %v2054 = vmax.f32 %v2004, 0.0
  %v2055 = vmax.f32 %v2005, 0.0
  %v2056 = vmax.f32 %v2006, 0.0
  %v2057 = vmax.f32 %v2007, 0.0
  %v2058 = vmax.f32 %v2008, 0.0
  %v2059 = vmax.f32 %v2009, 0.0
  %v2060 = vmax.f32 %v2010, 0.0
  %v2061 = vmax.f32 %v2011, 0.0
  %v2062 = vmax.f32 %v2012, 0.0
  %v2063 = vmax.f32 %v2013, 0.0
  %v2064 = vmax.f32 %v2014, 0.0
  %v2065 = vmax.f32 %v2015, 0.0
  %v2066 = vmax.f32 %v2016, 0.0
  %v2067 = vmax.f32 %v2017, 0.0
  %v2068 = vmax.f32 %v2018, 0.0
  %v2069 = vmax.f32 %v2019, 0.0
  %v2070 = vmax.f32 %v2020, 0.0
  %v2071 = vpack.c.bf16 %v2022, %v2021
  %v2072 = vpack.c.bf16 %v2024, %v2023
  %v2073 = vpack.c.bf16 %v2026, %v2025
  %v2074 = vpack.c.bf16 %v2028, %v2027
  %v2075 = vpack.c.bf16 %v2030, %v2029
  %v2076 = vpack.c.bf16 %v2032, %v2031
  %v2077 = vpack.c.bf16 %v2034, %v2033
  %v2078 = vpack.c.bf16 %v2036, %v2035
  %v2079 = vpack.c.bf16 %v2038, %v2037
  %v2080 = vpack.c.bf16 %v2040, %v2039
  %v2081 = vpack.c.bf16 %v2042, %v2041
  %v2082 = vpack.c.bf16 %v2044, %v2043
  %v2083 = vpack.c.bf16 %v2046, %v2045
  %v2084 = vpack.c.bf16 %v2048, %v2047
  %v2085 = vpack.c.bf16 %v2050, %v2049
  %v2086 = vpack.c.bf16 %v2052, %v2051
  %v2087 = vpack.c.bf16 %v2054, %v2053
  %v2088 = vpack.c.bf16 %v2056, %v2055
  %v2089 = vpack.c.bf16 %v2058, %v2057
  %v2090 = vpack.c.bf16 %v2060, %v2059
  %v2091 = vpack.c.bf16 %v2062, %v2061
  %v2092 = vpack.c.bf16 %v2064, %v2063
  %v2093 = vpack.c.bf16 %v2066, %v2065
  %v2094 = vpack.c.bf16 %v2068, %v2067
  %v2095 = vpack.c.bf16 %v2070, %v2069
  %v2121 = vunpack.c.l.b16 %v2071
  %v2122 = vunpack.c.h.b16 %v2071
  %v2123 = vunpack.c.l.b16 %v2072
  %v2124 = vunpack.c.h.b16 %v2072
  %v2125 = vunpack.c.l.b16 %v2073
  %v2126 = vunpack.c.h.b16 %v2073
  %v2127 = vunpack.c.l.b16 %v2074
  %v2128 = vunpack.c.h.b16 %v2074
  %v2129 = vunpack.c.l.b16 %v2075
  %v2130 = vunpack.c.h.b16 %v2075
  %v2131 = vunpack.c.l.b16 %v2076
  %v2132 = vunpack.c.h.b16 %v2076
  %v2133 = vunpack.c.l.b16 %v2077
  %v2134 = vunpack.c.h.b16 %v2077
  %v2135 = vunpack.c.l.b16 %v2078
  %v2136 = vunpack.c.h.b16 %v2078
  %v2137 = vunpack.c.l.b16 %v2079
  %v2138 = vunpack.c.h.b16 %v2079
  %v2139 = vunpack.c.l.b16 %v2080
  %v2140 = vunpack.c.h.b16 %v2080
  %v2141 = vunpack.c.l.b16 %v2081
  %v2142 = vunpack.c.h.b16 %v2081
  %v2143 = vunpack.c.l.b16 %v2082
  %v2144 = vunpack.c.h.b16 %v2082
  %v2145 = vunpack.c.l.b16 %v2083
  %v2146 = vunpack.c.h.b16 %v2083
  %v2147 = vunpack.c.l.b16 %v2084
  %v2148 = vunpack.c.h.b16 %v2084
  %v2149 = vunpack.c.l.b16 %v2085
  %v2150 = vunpack.c.h.b16 %v2085
  %v2151 = vunpack.c.l.b16 %v2086
  %v2152 = vunpack.c.h.b16 %v2086
  %v2153 = vunpack.c.l.b16 %v2087
  %v2154 = vunpack.c.h.b16 %v2087
  %v2155 = vunpack.c.l.b16 %v2088
  %v2156 = vunpack.c.h.b16 %v2088
  %v2157 = vunpack.c.l.b16 %v2089
  %v2158 = vunpack.c.h.b16 %v2089
  %v2159 = vunpack.c.l.b16 %v2090
  %v2160 = vunpack.c.h.b16 %v2090
  %v2161 = vunpack.c.l.b16 %v2091
  %v2162 = vunpack.c.h.b16 %v2091
  %v2163 = vunpack.c.l.b16 %v2092
  %v2164 = vunpack.c.h.b16 %v2092
  %v2165 = vunpack.c.l.b16 %v2093
  %v2166 = vunpack.c.h.b16 %v2093
  %v2167 = vunpack.c.l.b16 %v2094
  %v2168 = vunpack.c.h.b16 %v2094
  %v2169 = vunpack.c.l.b16 %v2095
  %v2170 = vunpack.c.h.b16 %v2095
  %v2171 = vpack.c.b16 %v2121, %v2121
  %v2172 = vpack.c.b16 %v2122, %v2122
  %v2173 = vpack.c.b16 %v2123, %v2123
  %v2174 = vpack.c.b16 %v2124, %v2124
  %v2175 = vpack.c.b16 %v2125, %v2125
  %v2176 = vpack.c.b16 %v2126, %v2126
  %v2177 = vpack.c.b16 %v2127, %v2127
  %v2178 = vpack.c.b16 %v2128, %v2128
  %v2179 = vpack.c.b16 %v2129, %v2129
  %v2180 = vpack.c.b16 %v2130, %v2130
  %v2181 = vpack.c.b16 %v2131, %v2131
  %v2182 = vpack.c.b16 %v2132, %v2132
  %v2183 = vpack.c.b16 %v2133, %v2133
  %v2184 = vpack.c.b16 %v2134, %v2134
  %v2185 = vpack.c.b16 %v2135, %v2135
  %v2186 = vpack.c.b16 %v2136, %v2136
  %v2187 = vpack.c.b16 %v2137, %v2137
  %v2188 = vpack.c.b16 %v2138, %v2138
  %v2189 = vpack.c.b16 %v2139, %v2139
  %v2190 = vpack.c.b16 %v2140, %v2140
  %v2191 = vpack.c.b16 %v2141, %v2141
  %v2192 = vpack.c.b16 %v2142, %v2142
  %v2193 = vpack.c.b16 %v2143, %v2143
  %v2194 = vpack.c.b16 %v2144, %v2144
  %v2195 = vpack.c.b16 %v2145, %v2145
  %v2196 = vpack.c.b16 %v2146, %v2146
  %v2197 = vpack.c.b16 %v2147, %v2147
  %v2198 = vpack.c.b16 %v2148, %v2148
  %v2199 = vpack.c.b16 %v2149, %v2149
  %v2200 = vpack.c.b16 %v2150, %v2150
  %v2201 = vpack.c.b16 %v2151, %v2151
  %v2202 = vpack.c.b16 %v2152, %v2152
  %v2203 = vpack.c.b16 %v2153, %v2153
  %v2204 = vpack.c.b16 %v2154, %v2154
  %v2205 = vpack.c.b16 %v2155, %v2155
  %v2206 = vpack.c.b16 %v2156, %v2156
  %v2207 = vpack.c.b16 %v2157, %v2157
  %v2208 = vpack.c.b16 %v2158, %v2158
  %v2209 = vpack.c.b16 %v2159, %v2159
  %v2210 = vpack.c.b16 %v2160, %v2160
  %v2211 = vpack.c.b16 %v2161, %v2161
  %v2212 = vpack.c.b16 %v2162, %v2162
  %v2213 = vpack.c.b16 %v2163, %v2163
  %v2214 = vpack.c.b16 %v2164, %v2164
  %v2215 = vpack.c.b16 %v2165, %v2165
  %v2216 = vpack.c.b16 %v2166, %v2166
  %v2217 = vpack.c.b16 %v2167, %v2167
  %v2218 = vpack.c.b16 %v2168, %v2168
  %v2219 = vpack.c.b16 %v2169, %v2169
  %v2220 = vpack.c.b16 %v2170, %v2170
  %2271 = vst [vmem:[%s3] sm:$0xf] %v2171
  %2272 = vst [vmem:[%s3 + $0x4] sm:$0xf] %v2172
  %2273 = vst [vmem:[%s3 + $0x8] sm:$0xf] %v2173
  %2274 = vst [vmem:[%s3 + $0xc] sm:$0xf] %v2174
  %2275 = vst [vmem:[%s3 + $0x10] sm:$0xf] %v2175
  %2276 = vst [vmem:[%s3 + $0x14] sm:$0xf] %v2176
  %2277 = vst [vmem:[%s3 + $0x18] sm:$0xf] %v2177
  %2278 = vst [vmem:[%s3 + $0x1c] sm:$0xf] %v2178
  %2279 = vst [vmem:[%s3 + $0x20] sm:$0xf] %v2179
  %2280 = vst [vmem:[%s3 + $0x24] sm:$0xf] %v2180
  %2281 = vst [vmem:[%s3 + $0x28] sm:$0xf] %v2181
  %2282 = vst [vmem:[%s3 + $0x2c] sm:$0xf] %v2182
  %2283 = vst [vmem:[%s3 + $0x30] sm:$0xf] %v2183
  %2284 = vst [vmem:[%s3 + $0x34] sm:$0xf] %v2184
  %2285 = vst [vmem:[%s3 + $0x38] sm:$0xf] %v2185
  %2286 = vst [vmem:[%s3 + $0x3c] sm:$0xf] %v2186
  %2287 = vst [vmem:[%s3 + $0x40] sm:$0xf] %v2187
  %2288 = vst [vmem:[%s3 + $0x44] sm:$0xf] %v2188
  %2289 = vst [vmem:[%s3 + $0x48] sm:$0xf] %v2189
  %2290 = vst [vmem:[%s3 + $0x4c] sm:$0xf] %v2190
  %2291 = vst [vmem:[%s3 + $0x50] sm:$0xf] %v2191
  %2292 = vst [vmem:[%s3 + $0x54] sm:$0xf] %v2192
  %2293 = vst [vmem:[%s3 + $0x58] sm:$0xf] %v2193
  %2294 = vst [vmem:[%s3 + $0x5c] sm:$0xf] %v2194
  %2295 = vst [vmem:[%s3 + $0x60] sm:$0xf] %v2195
  %2296 = vst [vmem:[%s3 + $0x64] sm:$0xf] %v2196
  %2297 = vst [vmem:[%s3 + $0x68] sm:$0xf] %v2197
  %2298 = vst [vmem:[%s3 + $0x6c] sm:$0xf] %v2198
  %2299 = vst [vmem:[%s3 + $0x70] sm:$0xf] %v2199
  %2300 = vst [vmem:[%s3 + $0x74] sm:$0xf] %v2200
  %2301 = vst [vmem:[%s3 + $0x78] sm:$0xf] %v2201
  %2302 = vst [vmem:[%s3 + $0x7c] sm:$0xf] %v2202
  %2303 = vst [vmem:[%s3 + $0x80] sm:$0xf] %v2203
  %2304 = vst [vmem:[%s3 + $0x84] sm:$0xf] %v2204
  %2305 = vst [vmem:[%s3 + $0x88] sm:$0xf] %v2205
  %2306 = vst [vmem:[%s3 + $0x8c] sm:$0xf] %v2206
  %2307 = vst [vmem:[%s3 + $0x90] sm:$0xf] %v2207
  %2308 = vst [vmem:[%s3 + $0x94] sm:$0xf] %v2208
  %2309 = vst [vmem:[%s3 + $0x98] sm:$0xf] %v2209
  %2310 = vst [vmem:[%s3 + $0x9c] sm:$0xf] %v2210
  %2311 = vst [vmem:[%s3 + $0xa0] sm:$0xf] %v2211
  %2312 = vst [vmem:[%s3 + $0xa4] sm:$0xf] %v2212
  %2313 = vst [vmem:[%s3 + $0xa8] sm:$0xf] %v2213
  %2314 = vst [vmem:[%s3 + $0xac] sm:$0xf] %v2214
  %2315 = vst [vmem:[%s3 + $0xb0] sm:$0xf] %v2215
  %2316 = vst [vmem:[%s3 + $0xb4] sm:$0xf] %v2216
  %2317 = vst [vmem:[%s3 + $0xb8] sm:$0xf] %v2217
  %2318 = vst [vmem:[%s3 + $0xbc] sm:$0xf] %v2218
  %2319 = vst [vmem:[%s3 + $0xc0] sm:$0xf] %v2219
  %2320 = vst [vmem:[%s3 + $0xc4] sm:$0xf] %v2220
  // Predicated region
  $region14: #{lenet_forward.2} parent=0 // pred_check
    _
  $region15: #{lenet_forward.2} parent=0 // pred_check_branch
    %2322 = sbr.rel (0) target = $region17
  $region16: #{lenet_forward.2} parent=0 // pred_region
    _
  $region17: #{lenet_forward.2} parent=0 // pred_fallthru
    _
  // Predicated region
  $region18: #{lenet_forward.2} parent=0 // pred_check
    _
  $region19: #{lenet_forward.2} parent=0 // pred_check_branch
    %2324 = sbr.rel (0) target = $region21
  $region20: #{lenet_forward.2} parent=0 // pred_region
    _
  $region21: #{lenet_forward.2} parent=0 // pred_fallthru
    _

// kernel: lenet_forward.3
$region0: #{lenet_forward.3}
  #allocation0 [shape = 'u32[]', space=smem, size = 0x4, offset = 0x4, fixed_abs, tag = 'smem constant byte address 0x4 - core index']
  #allocation1 [shape = 'u32[144,128]{1,0:T(1,128)}', space=vmem, size = 0x12000, scoped, tag = 'internal scratch']
  %s0 = inlined_call_operand.vmem [shape: bf16[4,200,256], index: 0, kind: input, shape index: {}]
  %s1 = inlined_call_operand.vmem [shape: bf16[256,128], index: 1, kind: input, shape index: {}]
  %s2 = inlined_call_operand.vmem [shape: f32[1,128], index: 2, kind: input, shape index: {}]
  %s3 = inlined_call_operand.vmem [shape: bf16[25,128,128], index: 3, kind: input, shape index: {}]
  %s4 = inlined_call_operand.vmem [shape: f32[1,128], index: 4, kind: input, shape index: {}]
  %s5 = inlined_call_operand.vmem [shape: bf16[128,128], index: 5, kind: input, shape index: {}]
  %s6 = inlined_call_operand.vmem [shape: f32[1,128], index: 6, kind: input, shape index: {}]
  %s7 = inlined_call_operand.vmem [shape: bf16[128,128], index: 7, kind: input, shape index: {}]
  %s8 = inlined_call_operand.vmem [shape: f32[1,128], index: 8, kind: input, shape index: {}]
  %s9 = inlined_call_operand.vmem [shape: f32[8,128], index: 9, kind: output, shape index: {}]
  %s10 = sld [smem:[#allocation0]]
  $region46: #{lenet_forward.3} parent=0
    _
  %s12 = ssub.s32 1, %s10
  %s13 = scalar_select 0, %s12, %s10
  // Predicated region
  $region2: #{lenet_forward.3} parent=0 // pred_check
    _
  $region3: #{lenet_forward.3} parent=0 // pred_check_branch
    %15 = sbr.rel (0) target = $region5
  $region4: #{lenet_forward.3} parent=0 // pred_region
    _
  $region5: #{lenet_forward.3} parent=0 // pred_fallthru
    _
  // Predicated region
  $region6: #{lenet_forward.3} parent=0 // pred_check
    _
  $region7: #{lenet_forward.3} parent=0 // pred_check_branch
    %17 = sbr.rel (0) target = $region9
  $region8: #{lenet_forward.3} parent=0 // pred_region
    _
  $region9: #{lenet_forward.3} parent=0 // pred_fallthru
    _
  // Predicated region
  $region10: #{lenet_forward.3} parent=0 // pred_check
    _
  $region11: #{lenet_forward.3} parent=0 // pred_check_branch
    %19 = sbr.rel (0) target = $region13
  $region12: #{lenet_forward.3} parent=0 // pred_region
    _
  $region13: #{lenet_forward.3} parent=0 // pred_fallthru
    _
  // Predicated region
  $region14: #{lenet_forward.3} parent=0 // pred_check
    _
  $region15: #{lenet_forward.3} parent=0 // pred_check_branch
    %21 = sbr.rel (0) target = $region17
  $region16: #{lenet_forward.3} parent=0 // pred_region
    _
  $region17: #{lenet_forward.3} parent=0 // pred_fallthru
    _
  // Predicated region
  $region18: #{lenet_forward.3} parent=0 // pred_check
    _
  $region19: #{lenet_forward.3} parent=0 // pred_check_branch
    %23 = sbr.rel (0) target = $region21
  $region20: #{lenet_forward.3} parent=0 // pred_region
    _
  $region21: #{lenet_forward.3} parent=0 // pred_fallthru
    _
  // Predicated region
  $region22: #{lenet_forward.3} parent=0 // pred_check
    _
  $region23: #{lenet_forward.3} parent=0 // pred_check_branch
    %25 = sbr.rel (0) target = $region25
  $region24: #{lenet_forward.3} parent=0 // pred_region
    _
  $region25: #{lenet_forward.3} parent=0 // pred_fallthru
    _
  // Predicated region
  $region26: #{lenet_forward.3} parent=0 // pred_check
    _
  $region27: #{lenet_forward.3} parent=0 // pred_check_branch
    %27 = sbr.rel (0) target = $region29
  $region28: #{lenet_forward.3} parent=0 // pred_region
    _
  $region29: #{lenet_forward.3} parent=0 // pred_fallthru
    _
  // Predicated region
  $region30: #{lenet_forward.3} parent=0 // pred_check
    _
  $region31: #{lenet_forward.3} parent=0 // pred_check_branch
    %29 = sbr.rel (0) target = $region33
  $region32: #{lenet_forward.3} parent=0 // pred_region
    _
  $region33: #{lenet_forward.3} parent=0 // pred_fallthru
    _
  // Predicated region
  $region34: #{lenet_forward.3} parent=0 // pred_check
    _
  $region35: #{lenet_forward.3} parent=0 // pred_check_branch
    %31 = sbr.rel (0) target = $region37
  $region36: #{lenet_forward.3} parent=0 // pred_region
    _
  $region37: #{lenet_forward.3} parent=0 // pred_fallthru
    _
  %v33 = vld [vmem:[%s1] sm:$0xf]
  %v34 = vld [vmem:[%s1 + $0x4] sm:$0xf]
  %v35 = vld [vmem:[%s1 + $0x8] sm:$0xf]
  %v36 = vld [vmem:[%s1 + $0xc] sm:$0xf]
  %v37 = vld [vmem:[%s1 + $0x10] sm:$0xf]
  %v38 = vld [vmem:[%s1 + $0x14] sm:$0xf]
  %v39 = vld [vmem:[%s1 + $0x18] sm:$0xf]
  %v40 = vld [vmem:[%s1 + $0x1c] sm:$0xf]
  %v41 = vld [vmem:[%s1 + $0x20] sm:$0xf]
  %v42 = vld [vmem:[%s1 + $0x24] sm:$0xf]
  %v43 = vld [vmem:[%s1 + $0x28] sm:$0xf]
  %v44 = vld [vmem:[%s1 + $0x2c] sm:$0xf]
  %v45 = vld [vmem:[%s1 + $0x30] sm:$0xf]
  %v46 = vld [vmem:[%s1 + $0x34] sm:$0xf]
  %v47 = vld [vmem:[%s1 + $0x38] sm:$0xf]
  %v48 = vld [vmem:[%s1 + $0x3c] sm:$0xf]
  %v49 = vld [vmem:[%s1 + $0x40] sm:$0xf]
  %v50 = vld [vmem:[%s1 + $0x44] sm:$0xf]
  %v51 = vld [vmem:[%s1 + $0x48] sm:$0xf]
  %v52 = vld [vmem:[%s1 + $0x4c] sm:$0xf]
  %v53 = vld [vmem:[%s1 + $0x50] sm:$0xf]
  %v54 = vld [vmem:[%s1 + $0x54] sm:$0xf]
  %v55 = vld [vmem:[%s1 + $0x58] sm:$0xf]
  %v56 = vld [vmem:[%s1 + $0x5c] sm:$0xf]
  %v57 = vld [vmem:[%s1 + $0x60] sm:$0xf]
  %v58 = vld [vmem:[%s1 + $0x64] sm:$0xf]
  %v59 = vld [vmem:[%s1 + $0x68] sm:$0xf]
  %v60 = vld [vmem:[%s1 + $0x6c] sm:$0xf]
  %v61 = vld [vmem:[%s1 + $0x70] sm:$0xf]
  %v62 = vld [vmem:[%s1 + $0x74] sm:$0xf]
  %v63 = vld [vmem:[%s1 + $0x78] sm:$0xf]
  %v64 = vld [vmem:[%s1 + $0x7c] sm:$0xf]
  %v65 = vld [vmem:[%s0] sm:$0xff]
  %v66 = vld [vmem:[%s0 + $0x8] sm:$0xff]
  %v67 = vld [vmem:[%s0 + $0x10] sm:$0xff]
  %v68 = vld [vmem:[%s0 + $0x18] sm:$0xff]
  %v69 = vld [vmem:[%s0 + $0x20] sm:$0xff]
  %v70 = vld [vmem:[%s0 + $0x28] sm:$0xff]
  %v71 = vld [vmem:[%s0 + $0x30] sm:$0xff]
  %v72 = vld [vmem:[%s0 + $0x38] sm:$0xff]
  %v73 = vld [vmem:[%s0 + $0x40] sm:$0xff]
  %v74 = vld [vmem:[%s0 + $0x48] sm:$0xff]
  %v75 = vld [vmem:[%s0 + $0x50] sm:$0xff]
  %v76 = vld [vmem:[%s0 + $0x58] sm:$0xff]
  %v77 = vld [vmem:[%s0 + $0x60] sm:$0xff]
  %v78 = vld [vmem:[%s0 + $0x68] sm:$0xff]
  %v79 = vld [vmem:[%s0 + $0x70] sm:$0xff]
  %v80 = vld [vmem:[%s0 + $0x78] sm:$0xff]
  %v81 = vld [vmem:[%s0 + $0x80] sm:$0xff]
  %v82 = vld [vmem:[%s0 + $0x88] sm:$0xff]
  %v83 = vld [vmem:[%s0 + $0x90] sm:$0xff]
  %v84 = vld [vmem:[%s0 + $0x98] sm:$0xff]
  %v85 = vld [vmem:[%s0 + $0xa0] sm:$0xff]
  %v86 = vld [vmem:[%s0 + $0xa8] sm:$0xff]
  %v87 = vld [vmem:[%s0 + $0xb0] sm:$0xff]
  %v88 = vld [vmem:[%s0 + $0xb8] sm:$0xff]
  %v89 = vld [vmem:[%s0 + $0xc0] sm:$0xff]
  %v115 = vunpack.c.l.b16 %v65
  %v116 = vunpack.c.h.b16 %v65
  %v117 = vunpack.c.l.b16 %v66
  %v118 = vunpack.c.h.b16 %v66
  %v119 = vunpack.c.l.b16 %v67
  %v120 = vunpack.c.h.b16 %v67
  %v121 = vunpack.c.l.b16 %v68
  %v122 = vunpack.c.h.b16 %v68
  %v123 = vunpack.c.l.b16 %v69
  %v124 = vunpack.c.h.b16 %v69
  %v125 = vunpack.c.l.b16 %v70
  %v126 = vunpack.c.h.b16 %v70
  %v127 = vunpack.c.l.b16 %v71
  %v128 = vunpack.c.h.b16 %v71
  %v129 = vunpack.c.l.b16 %v72
  %v130 = vunpack.c.h.b16 %v72
  %v131 = vunpack.c.l.b16 %v73
  %v132 = vunpack.c.h.b16 %v73
  %v133 = vunpack.c.l.b16 %v74
  %v134 = vunpack.c.h.b16 %v74
  %v135 = vunpack.c.l.b16 %v75
  %v136 = vunpack.c.h.b16 %v75
  %v137 = vunpack.c.l.b16 %v76
  %v138 = vunpack.c.h.b16 %v76
  %v139 = vunpack.c.l.b16 %v77
  %v140 = vunpack.c.h.b16 %v77
  %v141 = vunpack.c.l.b16 %v78
  %v142 = vunpack.c.h.b16 %v78
  %v143 = vunpack.c.l.b16 %v79
  %v144 = vunpack.c.h.b16 %v79
  %v145 = vunpack.c.l.b16 %v80
  %v146 = vunpack.c.h.b16 %v80
  %v147 = vunpack.c.l.b16 %v81
  %v148 = vunpack.c.h.b16 %v81
  %v149 = vunpack.c.l.b16 %v82
  %v150 = vunpack.c.h.b16 %v82
  %v151 = vunpack.c.l.b16 %v83
  %v152 = vunpack.c.h.b16 %v83
  %v153 = vunpack.c.l.b16 %v84
  %v154 = vunpack.c.h.b16 %v84
  %v155 = vunpack.c.l.b16 %v85
  %v156 = vunpack.c.h.b16 %v85
  %v157 = vunpack.c.l.b16 %v86
  %v158 = vunpack.c.h.b16 %v86
  %v159 = vunpack.c.l.b16 %v87
  %v160 = vunpack.c.h.b16 %v87
  %v161 = vunpack.c.l.b16 %v88
  %v162 = vunpack.c.h.b16 %v88
  %v163 = vunpack.c.l.b16 %v89
  %v164 = vunpack.c.h.b16 %v89
  %v165 = vpack.c.b16 %v117, %v115
  %v166 = vpack.c.b16 %v118, %v116
  %v167 = vpack.c.b16 %v121, %v119
  %v168 = vpack.c.b16 %v122, %v120
  %v169 = vpack.c.b16 %v125, %v123
  %v170 = vpack.c.b16 %v126, %v124
  %v171 = vpack.c.b16 %v129, %v127
  %v172 = vpack.c.b16 %v130, %v128
  %v173 = vpack.c.b16 %v133, %v131
  %v174 = vpack.c.b16 %v134, %v132
  %v175 = vpack.c.b16 %v137, %v135
  %v176 = vpack.c.b16 %v138, %v136
  %v177 = vpack.c.b16 %v141, %v139
  %v178 = vpack.c.b16 %v142, %v140
  %v179 = vpack.c.b16 %v145, %v143
  %v180 = vpack.c.b16 %v146, %v144
  %v181 = vpack.c.b16 %v149, %v147
  %v182 = vpack.c.b16 %v150, %v148
  %v183 = vpack.c.b16 %v153, %v151
  %v184 = vpack.c.b16 %v154, %v152
  %v185 = vpack.c.b16 %v157, %v155
  %v186 = vpack.c.b16 %v158, %v156
  %v187 = vpack.c.b16 %v161, %v159
  %v188 = vpack.c.b16 %v162, %v160
  %v189 = vpack.c.b16 %v163, %v163
  %v190 = vpack.c.b16 %v164, %v164
  %v249 = vunpack.c.l.b16 %v33
  %v250 = vunpack.c.l.b16 %v34
  %v251 = vunpack.c.l.b16 %v35
  %v252 = vunpack.c.l.b16 %v36
  %v253 = vunpack.c.l.b16 %v37
  %v254 = vunpack.c.l.b16 %v38
  %v255 = vunpack.c.l.b16 %v39
  %v256 = vunpack.c.l.b16 %v40
  %v257 = vunpack.c.l.b16 %v41
  %v258 = vunpack.c.l.b16 %v42
  %v259 = vunpack.c.l.b16 %v43
  %v260 = vunpack.c.l.b16 %v44
  %v261 = vunpack.c.l.b16 %v45
  %v262 = vunpack.c.l.b16 %v46
  %v263 = vunpack.c.l.b16 %v47
  %v264 = vunpack.c.l.b16 %v48
  %v265 = vunpack.c.l.b16 %v49
  %v266 = vunpack.c.l.b16 %v50
  %v267 = vunpack.c.l.b16 %v51
  %v268 = vunpack.c.l.b16 %v52
  %v269 = vunpack.c.l.b16 %v53
  %v270 = vunpack.c.l.b16 %v54
  %v271 = vunpack.c.l.b16 %v55
  %v272 = vunpack.c.l.b16 %v56
  %v273 = vunpack.c.l.b16 %v57
  %v274 = vunpack.c.l.b16 %v58
  %v275 = vunpack.c.l.b16 %v59
  %v276 = vunpack.c.l.b16 %v60
  %v277 = vunpack.c.l.b16 %v61
  %v278 = vunpack.c.l.b16 %v62
  %v279 = vunpack.c.l.b16 %v63
  %v280 = vunpack.c.l.b16 %v64
  %v281 = vpack.c.b16 %v250, %v249
  %v282 = vpack.c.b16 %v252, %v251
  %v283 = vpack.c.b16 %v254, %v253
  %v284 = vpack.c.b16 %v256, %v255
  %v285 = vpack.c.b16 %v258, %v257
  %v286 = vpack.c.b16 %v260, %v259
  %v287 = vpack.c.b16 %v262, %v261
  %v288 = vpack.c.b16 %v264, %v263
  %v289 = vpack.c.b16 %v266, %v265
  %v290 = vpack.c.b16 %v268, %v267
  %v291 = vpack.c.b16 %v270, %v269
  %v292 = vpack.c.b16 %v272, %v271
  %v293 = vpack.c.b16 %v274, %v273
  %v294 = vpack.c.b16 %v276, %v275
  %v295 = vpack.c.b16 %v278, %v277
  %v296 = vpack.c.b16 %v280, %v279
  %313 = vmatprep.subr.bf16.mxu0 0
  %314 = vmatpush1.bf16.msra.mxu0 %v281
  %315 = vmatprep.subr.bf16.mxu0 0
  %316 = vmatpush1.bf16.msra.mxu0 %v282
  %317 = vmatprep.subr.bf16.mxu0 0
  %318 = vmatpush1.bf16.msra.mxu0 %v283
  %319 = vmatprep.subr.bf16.mxu0 0
  %320 = vmatpush1.bf16.msra.mxu0 %v284
  %321 = vmatprep.subr.bf16.mxu0 0
  %322 = vmatpush1.bf16.msra.mxu0 %v285
  %323 = vmatprep.subr.bf16.mxu0 0
  %324 = vmatpush1.bf16.msra.mxu0 %v286
  %325 = vmatprep.subr.bf16.mxu0 0
  %326 = vmatpush1.bf16.msra.mxu0 %v287
  %327 = vmatprep.subr.bf16.mxu0 0
  %328 = vmatpush1.bf16.msra.mxu0 %v288
  %329 = vmatprep.subr.bf16.mxu0 0
  %330 = vmatpush1.bf16.msra.mxu0 %v289
  %331 = vmatprep.subr.bf16.mxu0 0
  %332 = vmatpush1.bf16.msra.mxu0 %v290
  %333 = vmatprep.subr.bf16.mxu0 0
  %334 = vmatpush1.bf16.msra.mxu0 %v291
  %335 = vmatprep.subr.bf16.mxu0 0
  %336 = vmatpush1.bf16.msra.mxu0 %v292
  %337 = vmatprep.subr.bf16.mxu0 0
  %338 = vmatpush1.bf16.msra.mxu0 %v293
  %339 = vmatprep.subr.bf16.mxu0 0
  %340 = vmatpush1.bf16.msra.mxu0 %v294
  %341 = vmatprep.subr.bf16.mxu0 0
  %342 = vmatpush1.bf16.msra.mxu0 %v295
  %343 = vmatprep.subr.bf16.mxu0 0
  %344 = vmatpush1.bf16.msra.mxu0 %v296
  %345 = vmatprep.mubr.bf16.mxu0 %v166
  %346 = vmatmul.mubr.bf16.gmra.mrb[0].mxu0 %v165
  %v347 = vpop.f32.mrb[0].mxu0
  %v348 = vadd.f32 0.0, %v347
  %v349 = vpop.f32.mrb[0].mxu0
  %v350 = vpop.f32.mrb[0].mxu0
  %v351 = vadd.f32 0.0, %v350
  %v352 = vpop.f32.mrb[0].mxu0
  %353 = vmatprep.mubr.bf16.mxu0 %v168
  %354 = vmatmul.mubr.bf16.gmra.mrb[0].mxu0 %v167
  %v355 = vpop.f32.mrb[0].mxu0
  %v356 = vadd.f32 0.0, %v355
  %v357 = vpop.f32.mrb[0].mxu0
  %v358 = vpop.f32.mrb[0].mxu0
  %v359 = vadd.f32 0.0, %v358
  %v360 = vpop.f32.mrb[0].mxu0
  %361 = vmatprep.mubr.bf16.mxu0 %v170
  %362 = vmatmul.mubr.bf16.gmra.mrb[0].mxu0 %v169
  %v363 = vpop.f32.mrb[0].mxu0
  %v364 = vadd.f32 0.0, %v363
  %v365 = vpop.f32.mrb[0].mxu0
  %v366 = vpop.f32.mrb[0].mxu0
  %v367 = vadd.f32 0.0, %v366
  %v368 = vpop.f32.mrb[0].mxu0
  %369 = vmatprep.mubr.bf16.mxu0 %v172
  %370 = vmatmul.mubr.bf16.gmra.mrb[0].mxu0 %v171
  %v371 = vpop.f32.mrb[0].mxu0
  %v372 = vadd.f32 0.0, %v371
  %v373 = vpop.f32.mrb[0].mxu0
  %v374 = vpop.f32.mrb[0].mxu0
  %v375 = vadd.f32 0.0, %v374
  %v376 = vpop.f32.mrb[0].mxu0
  %377 = vmatprep.mubr.bf16.mxu0 %v174
  %378 = vmatmul.mubr.bf16.gmra.mrb[0].mxu0 %v173
  %v379 = vpop.f32.mrb[0].mxu0
  %v380 = vadd.f32 0.0, %v379
  %v381 = vpop.f32.mrb[0].mxu0
  %v382 = vpop.f32.mrb[0].mxu0
  %v383 = vadd.f32 0.0, %v382
  %v384 = vpop.f32.mrb[0].mxu0
  %385 = vmatprep.mubr.bf16.mxu0 %v176
  %386 = vmatmul.mubr.bf16.gmra.mrb[0].mxu0 %v175
  %v387 = vpop.f32.mrb[0].mxu0
  %v388 = vadd.f32 0.0, %v387
  %v389 = vpop.f32.mrb[0].mxu0
  %v390 = vpop.f32.mrb[0].mxu0
  %v391 = vadd.f32 0.0, %v390
  %v392 = vpop.f32.mrb[0].mxu0
  %393 = vmatprep.mubr.bf16.mxu0 %v178
  %394 = vmatmul.mubr.bf16.gmra.mrb[0].mxu0 %v177
  %v395 = vpop.f32.mrb[0].mxu0
  %v396 = vadd.f32 0.0, %v395
  %v397 = vpop.f32.mrb[0].mxu0
  %v398 = vpop.f32.mrb[0].mxu0
  %v399 = vadd.f32 0.0, %v398
  %v400 = vpop.f32.mrb[0].mxu0
  %401 = vmatprep.mubr.bf16.mxu0 %v180
  %402 = vmatmul.mubr.bf16.gmra.mrb[0].mxu0 %v179
  %v403 = vpop.f32.mrb[0].mxu0
  %v404 = vadd.f32 0.0, %v403
  %v405 = vpop.f32.mrb[0].mxu0
  %v406 = vpop.f32.mrb[0].mxu0
  %v407 = vadd.f32 0.0, %v406
  %v408 = vpop.f32.mrb[0].mxu0
  %409 = vmatprep.mubr.bf16.mxu0 %v182
  %410 = vmatmul.mubr.bf16.gmra.mrb[0].mxu0 %v181
  %v411 = vpop.f32.mrb[0].mxu0
  %v412 = vadd.f32 0.0, %v411
  %v413 = vpop.f32.mrb[0].mxu0
  %v414 = vpop.f32.mrb[0].mxu0
  %v415 = vadd.f32 0.0, %v414
  %v416 = vpop.f32.mrb[0].mxu0
  %417 = vmatprep.mubr.bf16.mxu0 %v184
  %418 = vmatmul.mubr.bf16.gmra.mrb[0].mxu0 %v183
  %v419 = vpop.f32.mrb[0].mxu0
  %v420 = vadd.f32 0.0, %v419
  %v421 = vpop.f32.mrb[0].mxu0
  %v422 = vpop.f32.mrb[0].mxu0
  %v423 = vadd.f32 0.0, %v422
  %v424 = vpop.f32.mrb[0].mxu0
  %425 = vmatprep.mubr.bf16.mxu0 %v186
  %426 = vmatmul.mubr.bf16.gmra.mrb[0].mxu0 %v185
  %v427 = vpop.f32.mrb[0].mxu0
  %v428 = vadd.f32 0.0, %v427
  %v429 = vpop.f32.mrb[0].mxu0
  %v430 = vpop.f32.mrb[0].mxu0
  %v431 = vadd.f32 0.0, %v430
  %v432 = vpop.f32.mrb[0].mxu0
  %433 = vmatprep.mubr.bf16.mxu0 %v188
  %434 = vmatmul.mubr.bf16.gmra.mrb[0].mxu0 %v187
  %v435 = vpop.f32.mrb[0].mxu0
  %v436 = vadd.f32 0.0, %v435
  %v437 = vpop.f32.mrb[0].mxu0
  %v438 = vpop.f32.mrb[0].mxu0
  %v439 = vadd.f32 0.0, %v438
  %v440 = vpop.f32.mrb[0].mxu0
  %441 = vmatprep.mubr.bf16.mxu0 %v190
  %442 = vmatmul.mubr.bf16.gmra.mrb[0].mxu0 %v189
  %v443 = vpop.f32.mrb[0].mxu0
  %v444 = vadd.f32 0.0, %v443
  %v445 = vpop.f32.mrb[0].mxu0
  %v446 = vpop.f32.mrb[0].mxu0
  %v447 = vpop.f32.mrb[0].mxu0
  %448 = vdwg.mxu0
  %s449 = scalar_lea.vmem %s0, 200
  %v450 = vld [vmem:[%s449] sm:$0xff]
  %v451 = vld [vmem:[%s449 + $0x8] sm:$0xff]
  %v452 = vld [vmem:[%s449 + $0x10] sm:$0xff]
  %v453 = vld [vmem:[%s449 + $0x18] sm:$0xff]
  %v454 = vld [vmem:[%s449 + $0x20] sm:$0xff]
  %v455 = vld [vmem:[%s449 + $0x28] sm:$0xff]
  %v456 = vld [vmem:[%s449 + $0x30] sm:$0xff]
  %v457 = vld [vmem:[%s449 + $0x38] sm:$0xff]
  %v458 = vld [vmem:[%s449 + $0x40] sm:$0xff]
  %v459 = vld [vmem:[%s449 + $0x48] sm:$0xff]
  %v460 = vld [vmem:[%s449 + $0x50] sm:$0xff]
  %v461 = vld [vmem:[%s449 + $0x58] sm:$0xff]
  %v462 = vld [vmem:[%s449 + $0x60] sm:$0xff]
  %v463 = vld [vmem:[%s449 + $0x68] sm:$0xff]
  %v464 = vld [vmem:[%s449 + $0x70] sm:$0xff]
  %v465 = vld [vmem:[%s449 + $0x78] sm:$0xff]
  %v466 = vld [vmem:[%s449 + $0x80] sm:$0xff]
  %v467 = vld [vmem:[%s449 + $0x88] sm:$0xff]
  %v468 = vld [vmem:[%s449 + $0x90] sm:$0xff]
  %v469 = vld [vmem:[%s449 + $0x98] sm:$0xff]
  %v470 = vld [vmem:[%s449 + $0xa0] sm:$0xff]
  %v471 = vld [vmem:[%s449 + $0xa8] sm:$0xff]
  %v472 = vld [vmem:[%s449 + $0xb0] sm:$0xff]
  %v473 = vld [vmem:[%s449 + $0xb8] sm:$0xff]
  %v474 = vld [vmem:[%s449 + $0xc0] sm:$0xff]
  %v500 = vunpack.c.l.b16 %v450
  %v501 = vunpack.c.h.b16 %v450
  %v502 = vunpack.c.l.b16 %v451
  %v503 = vunpack.c.h.b16 %v451
  %v504 = vunpack.c.l.b16 %v452
  %v505 = vunpack.c.h.b16 %v452
  %v506 = vunpack.c.l.b16 %v453
  %v507 = vunpack.c.h.b16 %v453
  %v508 = vunpack.c.l.b16 %v454
  %v509 = vunpack.c.h.b16 %v454
  %v510 = vunpack.c.l.b16 %v455
  %v511 = vunpack.c.h.b16 %v455
  %v512 = vunpack.c.l.b16 %v456
  %v513 = vunpack.c.h.b16 %v456
  %v514 = vunpack.c.l.b16 %v457
  %v515 = vunpack.c.h.b16 %v457
  %v516 = vunpack.c.l.b16 %v458
  %v517 = vunpack.c.h.b16 %v458
  %v518 = vunpack.c.l.b16 %v459
  %v519 = vunpack.c.h.b16 %v459
  %v520 = vunpack.c.l.b16 %v460
  %v521 = vunpack.c.h.b16 %v460
  %v522 = vunpack.c.l.b16 %v461
  %v523 = vunpack.c.h.b16 %v461
  %v524 = vunpack.c.l.b16 %v462
  %v525 = vunpack.c.h.b16 %v462
  %v526 = vunpack.c.l.b16 %v463
  %v527 = vunpack.c.h.b16 %v463
  %v528 = vunpack.c.l.b16 %v464
  %v529 = vunpack.c.h.b16 %v464
  %v530 = vunpack.c.l.b16 %v465
  %v531 = vunpack.c.h.b16 %v465
  %v532 = vunpack.c.l.b16 %v466
  %v533 = vunpack.c.h.b16 %v466
  %v534 = vunpack.c.l.b16 %v467
  %v535 = vunpack.c.h.b16 %v467
  %v536 = vunpack.c.l.b16 %v468
  %v537 = vunpack.c.h.b16 %v468
  %v538 = vunpack.c.l.b16 %v469
  %v539 = vunpack.c.h.b16 %v469
  %v540 = vunpack.c.l.b16 %v470
  %v541 = vunpack.c.h.b16 %v470
  %v542 = vunpack.c.l.b16 %v471
  %v543 = vunpack.c.h.b16 %v471
  %v544 = vunpack.c.l.b16 %v472
  %v545 = vunpack.c.h.b16 %v472
  %v546 = vunpack.c.l.b16 %v473
  %v547 = vunpack.c.h.b16 %v473
  %v548 = vunpack.c.l.b16 %v474
  %v549 = vunpack.c.h.b16 %v474
  %v550 = vpack.c.b16 %v502, %v500
  %v551 = vpack.c.b16 %v503, %v501
  %v552 = vpack.c.b16 %v506, %v504
  %v553 = vpack.c.b16 %v507, %v505
  %v554 = vpack.c.b16 %v510, %v508
  %v555 = vpack.c.b16 %v511, %v509
  %v556 = vpack.c.b16 %v514, %v512
  %v557 = vpack.c.b16 %v515, %v513
  %v558 = vpack.c.b16 %v518, %v516
  %v559 = vpack.c.b16 %v519, %v517
  %v560 = vpack.c.b16 %v522, %v520
  %v561 = vpack.c.b16 %v523, %v521
  %v562 = vpack.c.b16 %v526, %v524
  %v563 = vpack.c.b16 %v527, %v525
  %v564 = vpack.c.b16 %v530, %v528
  %v565 = vpack.c.b16 %v531, %v529
  %v566 = vpack.c.b16 %v534, %v532
  %v567 = vpack.c.b16 %v535, %v533
  %v568 = vpack.c.b16 %v538, %v536
  %v569 = vpack.c.b16 %v539, %v537
  %v570 = vpack.c.b16 %v542, %v540
  %v571 = vpack.c.b16 %v543, %v541
  %v572 = vpack.c.b16 %v546, %v544
  %v573 = vpack.c.b16 %v547, %v545
  %v574 = vpack.c.b16 %v548, %v548
  %v575 = vpack.c.b16 %v549, %v549
  %602 = vmatprep.subr.bf16.mxu0 0
  %603 = vmatpush1.bf16.msra.mxu0 %v281
  %604 = vmatprep.subr.bf16.mxu0 0
  %605 = vmatpush1.bf16.msra.mxu0 %v282
  %606 = vmatprep.subr.bf16.mxu0 0
  %607 = vmatpush1.bf16.msra.mxu0 %v283
  %608 = vmatprep.subr.bf16.mxu0 0
  %609 = vmatpush1.bf16.msra.mxu0 %v284
  %610 = vmatprep.subr.bf16.mxu0 0
  %611 = vmatpush1.bf16.msra.mxu0 %v285
  %612 = vmatprep.subr.bf16.mxu0 0
  %613 = vmatpush1.bf16.msra.mxu0 %v286
  %614 = vmatprep.subr.bf16.mxu0 0
  %615 = vmatpush1.bf16.msra.mxu0 %v287
  %616 = vmatprep.subr.bf16.mxu0 0
  %617 = vmatpush1.bf16.msra.mxu0 %v288
  %618 = vmatprep.subr.bf16.mxu0 0
  %619 = vmatpush1.bf16.msra.mxu0 %v289
  %620 = vmatprep.subr.bf16.mxu0 0
  %621 = vmatpush1.bf16.msra.mxu0 %v290
  %622 = vmatprep.subr.bf16.mxu0 0
  %623 = vmatpush1.bf16.msra.mxu0 %v291
  %624 = vmatprep.subr.bf16.mxu0 0
  %625 = vmatpush1.bf16.msra.mxu0 %v292
  %626 = vmatprep.subr.bf16.mxu0 0
  %627 = vmatpush1.bf16.msra.mxu0 %v293
  %628 = vmatprep.subr.bf16.mxu0 0
  %629 = vmatpush1.bf16.msra.mxu0 %v294
  %630 = vmatprep.subr.bf16.mxu0 0
  %631 = vmatpush1.bf16.msra.mxu0 %v295
  %632 = vmatprep.subr.bf16.mxu0 0
  %633 = vmatpush1.bf16.msra.mxu0 %v296
  %634 = vmatprep.mubr.bf16.mxu0 %v551
  %635 = vmatmul.mubr.bf16.gmra.mrb[0].mxu0 %v550
  %v636 = vpop.f32.mrb[0].mxu0
  %v637 = vadd.f32 0.0, %v636
  %v638 = vpop.f32.mrb[0].mxu0
  %v639 = vpop.f32.mrb[0].mxu0
  %v640 = vadd.f32 0.0, %v639
  %v641 = vpop.f32.mrb[0].mxu0
  %642 = vmatprep.mubr.bf16.mxu0 %v553
  %643 = vmatmul.mubr.bf16.gmra.mrb[0].mxu0 %v552
  %v644 = vpop.f32.mrb[0].mxu0
  %v645 = vadd.f32 0.0, %v644
  %v646 = vpop.f32.mrb[0].mxu0
  %v647 = vpop.f32.mrb[0].mxu0
  %v648 = vadd.f32 0.0, %v647
  %v649 = vpop.f32.mrb[0].mxu0
  %650 = vmatprep.mubr.bf16.mxu0 %v555
  %651 = vmatmul.mubr.bf16.gmra.mrb[0].mxu0 %v554
  %v652 = vpop.f32.mrb[0].mxu0
  %v653 = vadd.f32 0.0, %v652
  %v654 = vpop.f32.mrb[0].mxu0
  %v655 = vpop.f32.mrb[0].mxu0
  %v656 = vadd.f32 0.0, %v655
  %v657 = vpop.f32.mrb[0].mxu0
  %658 = vmatprep.mubr.bf16.mxu0 %v557
  %659 = vmatmul.mubr.bf16.gmra.mrb[0].mxu0 %v556
  %v660 = vpop.f32.mrb[0].mxu0
  %v661 = vadd.f32 0.0, %v660
  %v662 = vpop.f32.mrb[0].mxu0
  %v663 = vpop.f32.mrb[0].mxu0
  %v664 = vadd.f32 0.0, %v663
  %v665 = vpop.f32.mrb[0].mxu0
  %666 = vmatprep.mubr.bf16.mxu0 %v559
  %667 = vmatmul.mubr.bf16.gmra.mrb[0].mxu0 %v558
  %v668 = vpop.f32.mrb[0].mxu0
  %v669 = vadd.f32 0.0, %v668
  %v670 = vpop.f32.mrb[0].mxu0
  %v671 = vpop.f32.mrb[0].mxu0
  %v672 = vadd.f32 0.0, %v671
  %v673 = vpop.f32.mrb[0].mxu0
  %674 = vmatprep.mubr.bf16.mxu0 %v561
  %675 = vmatmul.mubr.bf16.gmra.mrb[0].mxu0 %v560
  %v676 = vpop.f32.mrb[0].mxu0
  %v677 = vadd.f32 0.0, %v676
  %v678 = vpop.f32.mrb[0].mxu0
  %v679 = vpop.f32.mrb[0].mxu0
  %v680 = vadd.f32 0.0, %v679
  %v681 = vpop.f32.mrb[0].mxu0
  %682 = vmatprep.mubr.bf16.mxu0 %v563
  %683 = vmatmul.mubr.bf16.gmra.mrb[0].mxu0 %v562
  %v684 = vpop.f32.mrb[0].mxu0
  %v685 = vadd.f32 0.0, %v684
  %v686 = vpop.f32.mrb[0].mxu0
  %v687 = vpop.f32.mrb[0].mxu0
  %v688 = vadd.f32 0.0, %v687
  %v689 = vpop.f32.mrb[0].mxu0
  %690 = vmatprep.mubr.bf16.mxu0 %v565
  %691 = vmatmul.mubr.bf16.gmra.mrb[0].mxu0 %v564
  %v692 = vpop.f32.mrb[0].mxu0
  %v693 = vadd.f32 0.0, %v692
  %v694 = vpop.f32.mrb[0].mxu0
  %v695 = vpop.f32.mrb[0].mxu0
  %v696 = vadd.f32 0.0, %v695
  %v697 = vpop.f32.mrb[0].mxu0
  %698 = vmatprep.mubr.bf16.mxu0 %v567
  %699 = vmatmul.mubr.bf16.gmra.mrb[0].mxu0 %v566
  %v700 = vpop.f32.mrb[0].mxu0
  %v701 = vadd.f32 0.0, %v700
  %v702 = vpop.f32.mrb[0].mxu0
  %v703 = vpop.f32.mrb[0].mxu0
  %v704 = vadd.f32 0.0, %v703
  %v705 = vpop.f32.mrb[0].mxu0
  %706 = vmatprep.mubr.bf16.mxu0 %v569
  %707 = vmatmul.mubr.bf16.gmra.mrb[0].mxu0 %v568
  %v708 = vpop.f32.mrb[0].mxu0
  %v709 = vadd.f32 0.0, %v708
  %v710 = vpop.f32.mrb[0].mxu0
  %v711 = vpop.f32.mrb[0].mxu0
  %v712 = vadd.f32 0.0, %v711
  %v713 = vpop.f32.mrb[0].mxu0
  %714 = vmatprep.mubr.bf16.mxu0 %v571
  %715 = vmatmul.mubr.bf16.gmra.mrb[0].mxu0 %v570
  %v716 = vpop.f32.mrb[0].mxu0
  %v717 = vadd.f32 0.0, %v716
  %v718 = vpop.f32.mrb[0].mxu0
  %v719 = vpop.f32.mrb[0].mxu0
  %v720 = vadd.f32 0.0, %v719
  %v721 = vpop.f32.mrb[0].mxu0
  %722 = vmatprep.mubr.bf16.mxu0 %v573
  %723 = vmatmul.mubr.bf16.gmra.mrb[0].mxu0 %v572
  %v724 = vpop.f32.mrb[0].mxu0
  %v725 = vadd.f32 0.0, %v724
  %v726 = vpop.f32.mrb[0].mxu0
  %v727 = vpop.f32.mrb[0].mxu0
  %v728 = vadd.f32 0.0, %v727
  %v729 = vpop.f32.mrb[0].mxu0
  %730 = vmatprep.mubr.bf16.mxu0 %v575
  %731 = vmatmul.mubr.bf16.gmra.mrb[0].mxu0 %v574
  %v732 = vpop.f32.mrb[0].mxu0
  %v733 = vadd.f32 0.0, %v732
  %v734 = vpop.f32.mrb[0].mxu0
  %v735 = vpop.f32.mrb[0].mxu0
  %v736 = vpop.f32.mrb[0].mxu0
  %737 = vdwg.mxu0
  %v738 = vmax.f32 %v348, %v637
  %v739 = vmax.f32 %v351, %v640
  %v740 = vmax.f32 %v356, %v645
  %v741 = vmax.f32 %v359, %v648
  %v742 = vmax.f32 %v364, %v653
  %v743 = vmax.f32 %v367, %v656
  %v744 = vmax.f32 %v372, %v661
  %v745 = vmax.f32 %v375, %v664
  %v746 = vmax.f32 %v380, %v669
  %v747 = vmax.f32 %v383, %v672
  %v748 = vmax.f32 %v388, %v677
  %v749 = vmax.f32 %v391, %v680
  %v750 = vmax.f32 %v396, %v685
  %v751 = vmax.f32 %v399, %v688
  %v752 = vmax.f32 %v404, %v693
  %v753 = vmax.f32 %v407, %v696
  %v754 = vmax.f32 %v412, %v701
  %v755 = vmax.f32 %v415, %v704
  %v756 = vmax.f32 %v420, %v709
  %v757 = vmax.f32 %v423, %v712
  %v758 = vmax.f32 %v428, %v717
  %v759 = vmax.f32 %v431, %v720
  %v760 = vmax.f32 %v436, %v725
  %v761 = vmax.f32 %v439, %v728
  %v762 = vmax.f32 %v444, %v733
  %s763 = scalar_lea.vmem %s0, 400
  %v764 = vld [vmem:[%s763] sm:$0xff]
  %v765 = vld [vmem:[%s763 + $0x8] sm:$0xff]
  %v766 = vld [vmem:[%s763 + $0x10] sm:$0xff]
  %v767 = vld [vmem:[%s763 + $0x18] sm:$0xff]
  %v768 = vld [vmem:[%s763 + $0x20] sm:$0xff]
  %v769 = vld [vmem:[%s763 + $0x28] sm:$0xff]
  %v770 = vld [vmem:[%s763 + $0x30] sm:$0xff]
  %v771 = vld [vmem:[%s763 + $0x38] sm:$0xff]
  %v772 = vld [vmem:[%s763 + $0x40] sm:$0xff]
  %v773 = vld [vmem:[%s763 + $0x48] sm:$0xff]
  %v774 = vld [vmem:[%s763 + $0x50] sm:$0xff]
  %v775 = vld [vmem:[%s763 + $0x58] sm:$0xff]
  %v776 = vld [vmem:[%s763 + $0x60] sm:$0xff]
  %v777 = vld [vmem:[%s763 + $0x68] sm:$0xff]
  %v778 = vld [vmem:[%s763 + $0x70] sm:$0xff]
  %v779 = vld [vmem:[%s763 + $0x78] sm:$0xff]
  %v780 = vld [vmem:[%s763 + $0x80] sm:$0xff]
  %v781 = vld [vmem:[%s763 + $0x88] sm:$0xff]
  %v782 = vld [vmem:[%s763 + $0x90] sm:$0xff]
  %v783 = vld [vmem:[%s763 + $0x98] sm:$0xff]
  %v784 = vld [vmem:[%s763 + $0xa0] sm:$0xff]
  %v785 = vld [vmem:[%s763 + $0xa8] sm:$0xff]
  %v786 = vld [vmem:[%s763 + $0xb0] sm:$0xff]
  %v787 = vld [vmem:[%s763 + $0xb8] sm:$0xff]
  %v788 = vld [vmem:[%s763 + $0xc0] sm:$0xff]
  %v814 = vunpack.c.l.b16 %v764
  %v815 = vunpack.c.h.b16 %v764
  %v816 = vunpack.c.l.b16 %v765
  %v817 = vunpack.c.h.b16 %v765
  %v818 = vunpack.c.l.b16 %v766
  %v819 = vunpack.c.h.b16 %v766
  %v820 = vunpack.c.l.b16 %v767
  %v821 = vunpack.c.h.b16 %v767
  %v822 = vunpack.c.l.b16 %v768
  %v823 = vunpack.c.h.b16 %v768
  %v824 = vunpack.c.l.b16 %v769
  %v825 = vunpack.c.h.b16 %v769
  %v826 = vunpack.c.l.b16 %v770
  %v827 = vunpack.c.h.b16 %v770
  %v828 = vunpack.c.l.b16 %v771
  %v829 = vunpack.c.h.b16 %v771
  %v830 = vunpack.c.l.b16 %v772
  %v831 = vunpack.c.h.b16 %v772
  %v832 = vunpack.c.l.b16 %v773
  %v833 = vunpack.c.h.b16 %v773
  %v834 = vunpack.c.l.b16 %v774
  %v835 = vunpack.c.h.b16 %v774
  %v836 = vunpack.c.l.b16 %v775
  %v837 = vunpack.c.h.b16 %v775
  %v838 = vunpack.c.l.b16 %v776
  %v839 = vunpack.c.h.b16 %v776
  %v840 = vunpack.c.l.b16 %v777
  %v841 = vunpack.c.h.b16 %v777
  %v842 = vunpack.c.l.b16 %v778
  %v843 = vunpack.c.h.b16 %v778
  %v844 = vunpack.c.l.b16 %v779
  %v845 = vunpack.c.h.b16 %v779
  %v846 = vunpack.c.l.b16 %v780
  %v847 = vunpack.c.h.b16 %v780
  %v848 = vunpack.c.l.b16 %v781
  %v849 = vunpack.c.h.b16 %v781
  %v850 = vunpack.c.l.b16 %v782
  %v851 = vunpack.c.h.b16 %v782
  %v852 = vunpack.c.l.b16 %v783
  %v853 = vunpack.c.h.b16 %v783
  %v854 = vunpack.c.l.b16 %v784
  %v855 = vunpack.c.h.b16 %v784
  %v856 = vunpack.c.l.b16 %v785
  %v857 = vunpack.c.h.b16 %v785
  %v858 = vunpack.c.l.b16 %v786
  %v859 = vunpack.c.h.b16 %v786
  %v860 = vunpack.c.l.b16 %v787
  %v861 = vunpack.c.h.b16 %v787
  %v862 = vunpack.c.l.b16 %v788
  %v863 = vunpack.c.h.b16 %v788
  %v864 = vpack.c.b16 %v816, %v814
  %v865 = vpack.c.b16 %v817, %v815
  %v866 = vpack.c.b16 %v820, %v818
  %v867 = vpack.c.b16 %v821, %v819
  %v868 = vpack.c.b16 %v824, %v822
  %v869 = vpack.c.b16 %v825, %v823
  %v870 = vpack.c.b16 %v828, %v826
  %v871 = vpack.c.b16 %v829, %v827
  %v872 = vpack.c.b16 %v832, %v830
  %v873 = vpack.c.b16 %v833, %v831
  %v874 = vpack.c.b16 %v836, %v834
  %v875 = vpack.c.b16 %v837, %v835
  %v876 = vpack.c.b16 %v840, %v838
  %v877 = vpack.c.b16 %v841, %v839
  %v878 = vpack.c.b16 %v844, %v842
  %v879 = vpack.c.b16 %v845, %v843
  %v880 = vpack.c.b16 %v848, %v846
  %v881 = vpack.c.b16 %v849, %v847
  %v882 = vpack.c.b16 %v852, %v850
  %v883 = vpack.c.b16 %v853, %v851
  %v884 = vpack.c.b16 %v856, %v854
  %v885 = vpack.c.b16 %v857, %v855
  %v886 = vpack.c.b16 %v860, %v858
  %v887 = vpack.c.b16 %v861, %v859
  %v888 = vpack.c.b16 %v862, %v862
  %v889 = vpack.c.b16 %v863, %v863
  %916 = vmatprep.subr.bf16.mxu0 0
  %917 = vmatpush1.bf16.msra.mxu0 %v281
  %918 = vmatprep.subr.bf16.mxu0 0
  %919 = vmatpush1.bf16.msra.mxu0 %v282
  %920 = vmatprep.subr.bf16.mxu0 0
  %921 = vmatpush1.bf16.msra.mxu0 %v283
  %922 = vmatprep.subr.bf16.mxu0 0
  %923 = vmatpush1.bf16.msra.mxu0 %v284
  %924 = vmatprep.subr.bf16.mxu0 0
  %925 = vmatpush1.bf16.msra.mxu0 %v285
  %926 = vmatprep.subr.bf16.mxu0 0
  %927 = vmatpush1.bf16.msra.mxu0 %v286
  %928 = vmatprep.subr.bf16.mxu0 0
  %929 = vmatpush1.bf16.msra.mxu0 %v287
  %930 = vmatprep.subr.bf16.mxu0 0
  %931 = vmatpush1.bf16.msra.mxu0 %v288
  %932 = vmatprep.subr.bf16.mxu0 0
  %933 = vmatpush1.bf16.msra.mxu0 %v289
  %934 = vmatprep.subr.bf16.mxu0 0
  %935 = vmatpush1.bf16.msra.mxu0 %v290
  %936 = vmatprep.subr.bf16.mxu0 0
  %937 = vmatpush1.bf16.msra.mxu0 %v291
  %938 = vmatprep.subr.bf16.mxu0 0
  %939 = vmatpush1.bf16.msra.mxu0 %v292
  %940 = vmatprep.subr.bf16.mxu0 0
  %941 = vmatpush1.bf16.msra.mxu0 %v293
  %942 = vmatprep.subr.bf16.mxu0 0
  %943 = vmatpush1.bf16.msra.mxu0 %v294
  %944 = vmatprep.subr.bf16.mxu0 0
  %945 = vmatpush1.bf16.msra.mxu0 %v295
  %946 = vmatprep.subr.bf16.mxu0 0
  %947 = vmatpush1.bf16.msra.mxu0 %v296
  %948 = vmatprep.mubr.bf16.mxu0 %v865
  %949 = vmatmul.mubr.bf16.gmra.mrb[0].mxu0 %v864
  %v950 = vpop.f32.mrb[0].mxu0
  %v951 = vadd.f32 0.0, %v950
  %v952 = vpop.f32.mrb[0].mxu0
  %v953 = vpop.f32.mrb[0].mxu0
  %v954 = vadd.f32 0.0, %v953
  %v955 = vpop.f32.mrb[0].mxu0
  %956 = vmatprep.mubr.bf16.mxu0 %v867
  %957 = vmatmul.mubr.bf16.gmra.mrb[0].mxu0 %v866
  %v958 = vpop.f32.mrb[0].mxu0
  %v959 = vadd.f32 0.0, %v958
  %v960 = vpop.f32.mrb[0].mxu0
  %v961 = vpop.f32.mrb[0].mxu0
  %v962 = vadd.f32 0.0, %v961
  %v963 = vpop.f32.mrb[0].mxu0
  %964 = vmatprep.mubr.bf16.mxu0 %v869
  %965 = vmatmul.mubr.bf16.gmra.mrb[0].mxu0 %v868
  %v966 = vpop.f32.mrb[0].mxu0
  %v967 = vadd.f32 0.0, %v966
  %v968 = vpop.f32.mrb[0].mxu0
  %v969 = vpop.f32.mrb[0].mxu0
  %v970 = vadd.f32 0.0, %v969
  %v971 = vpop.f32.mrb[0].mxu0
  %972 = vmatprep.mubr.bf16.mxu0 %v871
  %973 = vmatmul.mubr.bf16.gmra.mrb[0].mxu0 %v870
  %v974 = vpop.f32.mrb[0].mxu0
  %v975 = vadd.f32 0.0, %v974
  %v976 = vpop.f32.mrb[0].mxu0
  %v977 = vpop.f32.mrb[0].mxu0
  %v978 = vadd.f32 0.0, %v977
  %v979 = vpop.f32.mrb[0].mxu0
  %980 = vmatprep.mubr.bf16.mxu0 %v873
  %981 = vmatmul.mubr.bf16.gmra.mrb[0].mxu0 %v872
  %v982 = vpop.f32.mrb[0].mxu0
  %v983 = vadd.f32 0.0, %v982
  %v984 = vpop.f32.mrb[0].mxu0
  %v985 = vpop.f32.mrb[0].mxu0
  %v986 = vadd.f32 0.0, %v985
  %v987 = vpop.f32.mrb[0].mxu0
  %988 = vmatprep.mubr.bf16.mxu0 %v875
  %989 = vmatmul.mubr.bf16.gmra.mrb[0].mxu0 %v874
  %v990 = vpop.f32.mrb[0].mxu0
  %v991 = vadd.f32 0.0, %v990
  %v992 = vpop.f32.mrb[0].mxu0
  %v993 = vpop.f32.mrb[0].mxu0
  %v994 = vadd.f32 0.0, %v993
  %v995 = vpop.f32.mrb[0].mxu0
  %996 = vmatprep.mubr.bf16.mxu0 %v877
  %997 = vmatmul.mubr.bf16.gmra.mrb[0].mxu0 %v876
  %v998 = vpop.f32.mrb[0].mxu0
  %v999 = vadd.f32 0.0, %v998
  %v1000 = vpop.f32.mrb[0].mxu0
  %v1001 = vpop.f32.mrb[0].mxu0
  %v1002 = vadd.f32 0.0, %v1001
  %v1003 = vpop.f32.mrb[0].mxu0
  %1004 = vmatprep.mubr.bf16.mxu0 %v879
  %1005 = vmatmul.mubr.bf16.gmra.mrb[0].mxu0 %v878
  %v1006 = vpop.f32.mrb[0].mxu0
  %v1007 = vadd.f32 0.0, %v1006
  %v1008 = vpop.f32.mrb[0].mxu0
  %v1009 = vpop.f32.mrb[0].mxu0
  %v1010 = vadd.f32 0.0, %v1009
  %v1011 = vpop.f32.mrb[0].mxu0
  %1012 = vmatprep.mubr.bf16.mxu0 %v881
  %1013 = vmatmul.mubr.bf16.gmra.mrb[0].mxu0 %v880
  %v1014 = vpop.f32.mrb[0].mxu0
  %v1015 = vadd.f32 0.0, %v1014
  %v1016 = vpop.f32.mrb[0].mxu0
  %v1017 = vpop.f32.mrb[0].mxu0
  %v1018 = vadd.f32 0.0, %v1017
  %v1019 = vpop.f32.mrb[0].mxu0
  %1020 = vmatprep.mubr.bf16.mxu0 %v883
  %1021 = vmatmul.mubr.bf16.gmra.mrb[0].mxu0 %v882
  %v1022 = vpop.f32.mrb[0].mxu0
  %v1023 = vadd.f32 0.0, %v1022
  %v1024 = vpop.f32.mrb[0].mxu0
  %v1025 = vpop.f32.mrb[0].mxu0
  %v1026 = vadd.f32 0.0, %v1025
  %v1027 = vpop.f32.mrb[0].mxu0
  %1028 = vmatprep.mubr.bf16.mxu0 %v885
  %1029 = vmatmul.mubr.bf16.gmra.mrb[0].mxu0 %v884
  %v1030 = vpop.f32.mrb[0].mxu0
  %v1031 = vadd.f32 0.0, %v1030
  %v1032 = vpop.f32.mrb[0].mxu0
  %v1033 = vpop.f32.mrb[0].mxu0
  %v1034 = vadd.f32 0.0, %v1033
  %v1035 = vpop.f32.mrb[0].mxu0
  %1036 = vmatprep.mubr.bf16.mxu0 %v887
  %1037 = vmatmul.mubr.bf16.gmra.mrb[0].mxu0 %v886
  %v1038 = vpop.f32.mrb[0].mxu0
  %v1039 = vadd.f32 0.0, %v1038
  %v1040 = vpop.f32.mrb[0].mxu0
  %v1041 = vpop.f32.mrb[0].mxu0
  %v1042 = vadd.f32 0.0, %v1041
  %v1043 = vpop.f32.mrb[0].mxu0
  %1044 = vmatprep.mubr.bf16.mxu0 %v889
  %1045 = vmatmul.mubr.bf16.gmra.mrb[0].mxu0 %v888
  %v1046 = vpop.f32.mrb[0].mxu0
  %v1047 = vadd.f32 0.0, %v1046
  %v1048 = vpop.f32.mrb[0].mxu0
  %v1049 = vpop.f32.mrb[0].mxu0
  %v1050 = vpop.f32.mrb[0].mxu0
  %1051 = vdwg.mxu0
  %v1052 = vmax.f32 %v738, %v951
  %v1053 = vmax.f32 %v739, %v954
  %v1054 = vmax.f32 %v740, %v959
  %v1055 = vmax.f32 %v741, %v962
  %v1056 = vmax.f32 %v742, %v967
  %v1057 = vmax.f32 %v743, %v970
  %v1058 = vmax.f32 %v744, %v975
  %v1059 = vmax.f32 %v745, %v978
  %v1060 = vmax.f32 %v746, %v983
  %v1061 = vmax.f32 %v747, %v986
  %v1062 = vmax.f32 %v748, %v991
  %v1063 = vmax.f32 %v749, %v994
  %v1064 = vmax.f32 %v750, %v999
  %v1065 = vmax.f32 %v751, %v1002
  %v1066 = vmax.f32 %v752, %v1007
  %v1067 = vmax.f32 %v753, %v1010
  %v1068 = vmax.f32 %v754, %v1015
  %v1069 = vmax.f32 %v755, %v1018
  %v1070 = vmax.f32 %v756, %v1023
  %v1071 = vmax.f32 %v757, %v1026
  %v1072 = vmax.f32 %v758, %v1031
  %v1073 = vmax.f32 %v759, %v1034
  %v1074 = vmax.f32 %v760, %v1039
  %v1075 = vmax.f32 %v761, %v1042
  %v1076 = vmax.f32 %v762, %v1047
  %s1077 = scalar_lea.vmem %s0, 600
  %v1078 = vld [vmem:[%s1077] sm:$0xff]
  %v1079 = vld [vmem:[%s1077 + $0x8] sm:$0xff]
  %v1080 = vld [vmem:[%s1077 + $0x10] sm:$0xff]
  %v1081 = vld [vmem:[%s1077 + $0x18] sm:$0xff]
  %v1082 = vld [vmem:[%s1077 + $0x20] sm:$0xff]
  %v1083 = vld [vmem:[%s1077 + $0x28] sm:$0xff]
  %v1084 = vld [vmem:[%s1077 + $0x30] sm:$0xff]
  %v1085 = vld [vmem:[%s1077 + $0x38] sm:$0xff]
  %v1086 = vld [vmem:[%s1077 + $0x40] sm:$0xff]
  %v1087 = vld [vmem:[%s1077 + $0x48] sm:$0xff]
  %v1088 = vld [vmem:[%s1077 + $0x50] sm:$0xff]
  %v1089 = vld [vmem:[%s1077 + $0x58] sm:$0xff]
  %v1090 = vld [vmem:[%s1077 + $0x60] sm:$0xff]
  %v1091 = vld [vmem:[%s1077 + $0x68] sm:$0xff]
  %v1092 = vld [vmem:[%s1077 + $0x70] sm:$0xff]
  %v1093 = vld [vmem:[%s1077 + $0x78] sm:$0xff]
  %v1094 = vld [vmem:[%s1077 + $0x80] sm:$0xff]
  %v1095 = vld [vmem:[%s1077 + $0x88] sm:$0xff]
  %v1096 = vld [vmem:[%s1077 + $0x90] sm:$0xff]
  %v1097 = vld [vmem:[%s1077 + $0x98] sm:$0xff]
  %v1098 = vld [vmem:[%s1077 + $0xa0] sm:$0xff]
  %v1099 = vld [vmem:[%s1077 + $0xa8] sm:$0xff]
  %v1100 = vld [vmem:[%s1077 + $0xb0] sm:$0xff]
  %v1101 = vld [vmem:[%s1077 + $0xb8] sm:$0xff]
  %v1102 = vld [vmem:[%s1077 + $0xc0] sm:$0xff]
  %v1128 = vunpack.c.l.b16 %v1078
  %v1129 = vunpack.c.h.b16 %v1078
  %v1130 = vunpack.c.l.b16 %v1079
  %v1131 = vunpack.c.h.b16 %v1079
  %v1132 = vunpack.c.l.b16 %v1080
  %v1133 = vunpack.c.h.b16 %v1080
  %v1134 = vunpack.c.l.b16 %v1081
  %v1135 = vunpack.c.h.b16 %v1081
  %v1136 = vunpack.c.l.b16 %v1082
  %v1137 = vunpack.c.h.b16 %v1082
  %v1138 = vunpack.c.l.b16 %v1083
  %v1139 = vunpack.c.h.b16 %v1083
  %v1140 = vunpack.c.l.b16 %v1084
  %v1141 = vunpack.c.h.b16 %v1084
  %v1142 = vunpack.c.l.b16 %v1085
  %v1143 = vunpack.c.h.b16 %v1085
  %v1144 = vunpack.c.l.b16 %v1086
  %v1145 = vunpack.c.h.b16 %v1086
  %v1146 = vunpack.c.l.b16 %v1087
  %v1147 = vunpack.c.h.b16 %v1087
  %v1148 = vunpack.c.l.b16 %v1088
  %v1149 = vunpack.c.h.b16 %v1088
  %v1150 = vunpack.c.l.b16 %v1089
  %v1151 = vunpack.c.h.b16 %v1089
  %v1152 = vunpack.c.l.b16 %v1090
  %v1153 = vunpack.c.h.b16 %v1090
  %v1154 = vunpack.c.l.b16 %v1091
  %v1155 = vunpack.c.h.b16 %v1091
  %v1156 = vunpack.c.l.b16 %v1092
  %v1157 = vunpack.c.h.b16 %v1092
  %v1158 = vunpack.c.l.b16 %v1093
  %v1159 = vunpack.c.h.b16 %v1093
  %v1160 = vunpack.c.l.b16 %v1094
  %v1161 = vunpack.c.h.b16 %v1094
  %v1162 = vunpack.c.l.b16 %v1095
  %v1163 = vunpack.c.h.b16 %v1095
  %v1164 = vunpack.c.l.b16 %v1096
  %v1165 = vunpack.c.h.b16 %v1096
  %v1166 = vunpack.c.l.b16 %v1097
  %v1167 = vunpack.c.h.b16 %v1097
  %v1168 = vunpack.c.l.b16 %v1098
  %v1169 = vunpack.c.h.b16 %v1098
  %v1170 = vunpack.c.l.b16 %v1099
  %v1171 = vunpack.c.h.b16 %v1099
  %v1172 = vunpack.c.l.b16 %v1100
  %v1173 = vunpack.c.h.b16 %v1100
  %v1174 = vunpack.c.l.b16 %v1101
  %v1175 = vunpack.c.h.b16 %v1101
  %v1176 = vunpack.c.l.b16 %v1102
  %v1177 = vunpack.c.h.b16 %v1102
  %v1178 = vpack.c.b16 %v1130, %v1128
  %v1179 = vpack.c.b16 %v1131, %v1129
  %v1180 = vpack.c.b16 %v1134, %v1132
  %v1181 = vpack.c.b16 %v1135, %v1133
  %v1182 = vpack.c.b16 %v1138, %v1136
  %v1183 = vpack.c.b16 %v1139, %v1137
  %v1184 = vpack.c.b16 %v1142, %v1140
  %v1185 = vpack.c.b16 %v1143, %v1141
  %v1186 = vpack.c.b16 %v1146, %v1144
  %v1187 = vpack.c.b16 %v1147, %v1145
  %v1188 = vpack.c.b16 %v1150, %v1148
  %v1189 = vpack.c.b16 %v1151, %v1149
  %v1190 = vpack.c.b16 %v1154, %v1152
  %v1191 = vpack.c.b16 %v1155, %v1153
  %v1192 = vpack.c.b16 %v1158, %v1156
  %v1193 = vpack.c.b16 %v1159, %v1157
  %v1194 = vpack.c.b16 %v1162, %v1160
  %v1195 = vpack.c.b16 %v1163, %v1161
  %v1196 = vpack.c.b16 %v1166, %v1164
  %v1197 = vpack.c.b16 %v1167, %v1165
  %v1198 = vpack.c.b16 %v1170, %v1168
  %v1199 = vpack.c.b16 %v1171, %v1169
  %v1200 = vpack.c.b16 %v1174, %v1172
  %v1201 = vpack.c.b16 %v1175, %v1173
  %v1202 = vpack.c.b16 %v1176, %v1176
  %v1203 = vpack.c.b16 %v1177, %v1177
  %1230 = vmatprep.subr.bf16.mxu0 0
  %1231 = vmatpush1.bf16.msra.mxu0 %v281
  %1232 = vmatprep.subr.bf16.mxu0 0
  %1233 = vmatpush1.bf16.msra.mxu0 %v282
  %1234 = vmatprep.subr.bf16.mxu0 0
  %1235 = vmatpush1.bf16.msra.mxu0 %v283
  %1236 = vmatprep.subr.bf16.mxu0 0
  %1237 = vmatpush1.bf16.msra.mxu0 %v284
  %1238 = vmatprep.subr.bf16.mxu0 0
  %1239 = vmatpush1.bf16.msra.mxu0 %v285
  %1240 = vmatprep.subr.bf16.mxu0 0
  %1241 = vmatpush1.bf16.msra.mxu0 %v286
  %1242 = vmatprep.subr.bf16.mxu0 0
  %1243 = vmatpush1.bf16.msra.mxu0 %v287
  %1244 = vmatprep.subr.bf16.mxu0 0
  %1245 = vmatpush1.bf16.msra.mxu0 %v288
  %1246 = vmatprep.subr.bf16.mxu0 0
  %1247 = vmatpush1.bf16.msra.mxu0 %v289
  %1248 = vmatprep.subr.bf16.mxu0 0
  %1249 = vmatpush1.bf16.msra.mxu0 %v290
  %1250 = vmatprep.subr.bf16.mxu0 0
  %1251 = vmatpush1.bf16.msra.mxu0 %v291
  %1252 = vmatprep.subr.bf16.mxu0 0
  %1253 = vmatpush1.bf16.msra.mxu0 %v292
  %1254 = vmatprep.subr.bf16.mxu0 0
  %1255 = vmatpush1.bf16.msra.mxu0 %v293
  %1256 = vmatprep.subr.bf16.mxu0 0
  %1257 = vmatpush1.bf16.msra.mxu0 %v294
  %1258 = vmatprep.subr.bf16.mxu0 0
  %1259 = vmatpush1.bf16.msra.mxu0 %v295
  %1260 = vmatprep.subr.bf16.mxu0 0
  %1261 = vmatpush1.bf16.msra.mxu0 %v296
  %1262 = vmatprep.mubr.bf16.mxu0 %v1179
  %1263 = vmatmul.mubr.bf16.gmra.mrb[0].mxu0 %v1178
  %v1264 = vpop.f32.mrb[0].mxu0
  %v1265 = vadd.f32 0.0, %v1264
  %v1266 = vpop.f32.mrb[0].mxu0
  %v1267 = vpop.f32.mrb[0].mxu0
  %v1268 = vadd.f32 0.0, %v1267
  %v1269 = vpop.f32.mrb[0].mxu0
  %1270 = vmatprep.mubr.bf16.mxu0 %v1181
  %1271 = vmatmul.mubr.bf16.gmra.mrb[0].mxu0 %v1180
  %v1272 = vpop.f32.mrb[0].mxu0
  %v1273 = vadd.f32 0.0, %v1272
  %v1274 = vpop.f32.mrb[0].mxu0
  %v1275 = vpop.f32.mrb[0].mxu0
  %v1276 = vadd.f32 0.0, %v1275
  %v1277 = vpop.f32.mrb[0].mxu0
  %1278 = vmatprep.mubr.bf16.mxu0 %v1183
  %1279 = vmatmul.mubr.bf16.gmra.mrb[0].mxu0 %v1182
  %v1280 = vpop.f32.mrb[0].mxu0
  %v1281 = vadd.f32 0.0, %v1280
  %v1282 = vpop.f32.mrb[0].mxu0
  %v1283 = vpop.f32.mrb[0].mxu0
  %v1284 = vadd.f32 0.0, %v1283
  %v1285 = vpop.f32.mrb[0].mxu0
  %1286 = vmatprep.mubr.bf16.mxu0 %v1185
  %1287 = vmatmul.mubr.bf16.gmra.mrb[0].mxu0 %v1184
  %v1288 = vpop.f32.mrb[0].mxu0
  %v1289 = vadd.f32 0.0, %v1288
  %v1290 = vpop.f32.mrb[0].mxu0
  %v1291 = vpop.f32.mrb[0].mxu0
  %v1292 = vadd.f32 0.0, %v1291
  %v1293 = vpop.f32.mrb[0].mxu0
  %1294 = vmatprep.mubr.bf16.mxu0 %v1187
  %1295 = vmatmul.mubr.bf16.gmra.mrb[0].mxu0 %v1186
  %v1296 = vpop.f32.mrb[0].mxu0
  %v1297 = vadd.f32 0.0, %v1296
  %v1298 = vpop.f32.mrb[0].mxu0
  %v1299 = vpop.f32.mrb[0].mxu0
  %v1300 = vadd.f32 0.0, %v1299
  %v1301 = vpop.f32.mrb[0].mxu0
  %1302 = vmatprep.mubr.bf16.mxu0 %v1189
  %1303 = vmatmul.mubr.bf16.gmra.mrb[0].mxu0 %v1188
  %v1304 = vpop.f32.mrb[0].mxu0
  %v1305 = vadd.f32 0.0, %v1304
  %v1306 = vpop.f32.mrb[0].mxu0
  %v1307 = vpop.f32.mrb[0].mxu0
  %v1308 = vadd.f32 0.0, %v1307
  %v1309 = vpop.f32.mrb[0].mxu0
  %1310 = vmatprep.mubr.bf16.mxu0 %v1191
  %1311 = vmatmul.mubr.bf16.gmra.mrb[0].mxu0 %v1190
  %v1312 = vpop.f32.mrb[0].mxu0
  %v1313 = vadd.f32 0.0, %v1312
  %v1314 = vpop.f32.mrb[0].mxu0
  %v1315 = vpop.f32.mrb[0].mxu0
  %v1316 = vadd.f32 0.0, %v1315
  %v1317 = vpop.f32.mrb[0].mxu0
  %1318 = vmatprep.mubr.bf16.mxu0 %v1193
  %1319 = vmatmul.mubr.bf16.gmra.mrb[0].mxu0 %v1192
  %v1320 = vpop.f32.mrb[0].mxu0
  %v1321 = vadd.f32 0.0, %v1320
  %v1322 = vpop.f32.mrb[0].mxu0
  %v1323 = vpop.f32.mrb[0].mxu0
  %v1324 = vadd.f32 0.0, %v1323
  %v1325 = vpop.f32.mrb[0].mxu0
  %1326 = vmatprep.mubr.bf16.mxu0 %v1195
  %1327 = vmatmul.mubr.bf16.gmra.mrb[0].mxu0 %v1194
  %v1328 = vpop.f32.mrb[0].mxu0
  %v1329 = vadd.f32 0.0, %v1328
  %v1330 = vpop.f32.mrb[0].mxu0
  %v1331 = vpop.f32.mrb[0].mxu0
  %v1332 = vadd.f32 0.0, %v1331
  %v1333 = vpop.f32.mrb[0].mxu0
  %1334 = vmatprep.mubr.bf16.mxu0 %v1197
  %1335 = vmatmul.mubr.bf16.gmra.mrb[0].mxu0 %v1196
  %v1336 = vpop.f32.mrb[0].mxu0
  %v1337 = vadd.f32 0.0, %v1336
  %v1338 = vpop.f32.mrb[0].mxu0
  %v1339 = vpop.f32.mrb[0].mxu0
  %v1340 = vadd.f32 0.0, %v1339
  %v1341 = vpop.f32.mrb[0].mxu0
  %1342 = vmatprep.mubr.bf16.mxu0 %v1199
  %1343 = vmatmul.mubr.bf16.gmra.mrb[0].mxu0 %v1198
  %v1344 = vpop.f32.mrb[0].mxu0
  %v1345 = vadd.f32 0.0, %v1344
  %v1346 = vpop.f32.mrb[0].mxu0
  %v1347 = vpop.f32.mrb[0].mxu0
  %v1348 = vadd.f32 0.0, %v1347
  %v1349 = vpop.f32.mrb[0].mxu0
  %1350 = vmatprep.mubr.bf16.mxu0 %v1201
  %1351 = vmatmul.mubr.bf16.gmra.mrb[0].mxu0 %v1200
  %v1352 = vpop.f32.mrb[0].mxu0
  %v1353 = vadd.f32 0.0, %v1352
  %v1354 = vpop.f32.mrb[0].mxu0
  %v1355 = vpop.f32.mrb[0].mxu0
  %v1356 = vadd.f32 0.0, %v1355
  %v1357 = vpop.f32.mrb[0].mxu0
  %1358 = vmatprep.mubr.bf16.mxu0 %v1203
  %1359 = vmatmul.mubr.bf16.gmra.mrb[0].mxu0 %v1202
  %v1360 = vpop.f32.mrb[0].mxu0
  %v1361 = vadd.f32 0.0, %v1360
  %v1362 = vpop.f32.mrb[0].mxu0
  %v1363 = vpop.f32.mrb[0].mxu0
  %v1364 = vpop.f32.mrb[0].mxu0
  %1365 = vdwg.mxu0
  %v1366 = vmax.f32 %v1052, %v1265
  %v1367 = vmax.f32 %v1053, %v1268
  %v1368 = vmax.f32 %v1054, %v1273
  %v1369 = vmax.f32 %v1055, %v1276
  %v1370 = vmax.f32 %v1056, %v1281
  %v1371 = vmax.f32 %v1057, %v1284
  %v1372 = vmax.f32 %v1058, %v1289
  %v1373 = vmax.f32 %v1059, %v1292
  %v1374 = vmax.f32 %v1060, %v1297
  %v1375 = vmax.f32 %v1061, %v1300
  %v1376 = vmax.f32 %v1062, %v1305
  %v1377 = vmax.f32 %v1063, %v1308
  %v1378 = vmax.f32 %v1064, %v1313
  %v1379 = vmax.f32 %v1065, %v1316
  %v1380 = vmax.f32 %v1066, %v1321
  %v1381 = vmax.f32 %v1067, %v1324
  %v1382 = vmax.f32 %v1068, %v1329
  %v1383 = vmax.f32 %v1069, %v1332
  %v1384 = vmax.f32 %v1070, %v1337
  %v1385 = vmax.f32 %v1071, %v1340
  %v1386 = vmax.f32 %v1072, %v1345
  %v1387 = vmax.f32 %v1073, %v1348
  %v1388 = vmax.f32 %v1074, %v1353
  %v1389 = vmax.f32 %v1075, %v1356
  %v1390 = vmax.f32 %v1076, %v1361
  %v1391 = vld [vmem:[%s2] sm:$0x1]
  %v1393 = vlaneseq
  %v1394 = vshrl.u32 %v1393, 7
  %v1395 = vsub.s32 0, %v1394
  %v1396 = vrot.slane %v1391, %v1395
  %v1398 = vadd.f32 %v1366, %v1396
  %v1399 = vadd.f32 %v1367, %v1396
  %v1400 = vadd.f32 %v1368, %v1396
  %v1401 = vadd.f32 %v1369, %v1396
  %v1402 = vadd.f32 %v1370, %v1396
  %v1403 = vadd.f32 %v1371, %v1396
  %v1404 = vadd.f32 %v1372, %v1396
  %v1405 = vadd.f32 %v1373, %v1396
  %v1406 = vadd.f32 %v1374, %v1396
  %v1407 = vadd.f32 %v1375, %v1396
  %v1408 = vadd.f32 %v1376, %v1396
  %v1409 = vadd.f32 %v1377, %v1396
  %v1410 = vadd.f32 %v1378, %v1396
  %v1411 = vadd.f32 %v1379, %v1396
  %v1412 = vadd.f32 %v1380, %v1396
  %v1413 = vadd.f32 %v1381, %v1396
  %v1414 = vadd.f32 %v1382, %v1396
  %v1415 = vadd.f32 %v1383, %v1396
  %v1416 = vadd.f32 %v1384, %v1396
  %v1417 = vadd.f32 %v1385, %v1396
  %v1418 = vadd.f32 %v1386, %v1396
  %v1419 = vadd.f32 %v1387, %v1396
  %v1420 = vadd.f32 %v1388, %v1396
  %v1421 = vadd.f32 %v1389, %v1396
  %v1422 = vadd.f32 %v1390, %v1396
  %v1423 = vmax.f32 %v1398, 0.0
  %v1424 = vmax.f32 %v1399, 0.0
  %v1425 = vmax.f32 %v1400, 0.0
  %v1426 = vmax.f32 %v1401, 0.0
  %v1427 = vmax.f32 %v1402, 0.0
  %v1428 = vmax.f32 %v1403, 0.0
  %v1429 = vmax.f32 %v1404, 0.0
  %v1430 = vmax.f32 %v1405, 0.0
  %v1431 = vmax.f32 %v1406, 0.0
  %v1432 = vmax.f32 %v1407, 0.0
  %v1433 = vmax.f32 %v1408, 0.0
  %v1434 = vmax.f32 %v1409, 0.0
  %v1435 = vmax.f32 %v1410, 0.0
  %v1436 = vmax.f32 %v1411, 0.0
  %v1437 = vmax.f32 %v1412, 0.0
  %v1438 = vmax.f32 %v1413, 0.0
  %v1439 = vmax.f32 %v1414, 0.0
  %v1440 = vmax.f32 %v1415, 0.0
  %v1441 = vmax.f32 %v1416, 0.0
  %v1442 = vmax.f32 %v1417, 0.0
  %v1443 = vmax.f32 %v1418, 0.0
  %v1444 = vmax.f32 %v1419, 0.0
  %v1445 = vmax.f32 %v1420, 0.0
  %v1446 = vmax.f32 %v1421, 0.0
  %v1447 = vmax.f32 %v1422, 0.0
  %v1448 = vpack.c.bf16 %v1423, %v1423
  %v1449 = vld [vmem:[%s3] sm:$0xf]
  %v1450 = vld [vmem:[%s3 + $0x4] sm:$0xf]
  %v1451 = vld [vmem:[%s3 + $0x8] sm:$0xf]
  %v1452 = vld [vmem:[%s3 + $0xc] sm:$0xf]
  %v1453 = vld [vmem:[%s3 + $0x10] sm:$0xf]
  %v1454 = vld [vmem:[%s3 + $0x14] sm:$0xf]
  %v1455 = vld [vmem:[%s3 + $0x18] sm:$0xf]
  %v1456 = vld [vmem:[%s3 + $0x1c] sm:$0xf]
  %v1457 = vld [vmem:[%s3 + $0x20] sm:$0xf]
  %v1458 = vld [vmem:[%s3 + $0x24] sm:$0xf]
  %v1459 = vld [vmem:[%s3 + $0x28] sm:$0xf]
  %v1460 = vld [vmem:[%s3 + $0x2c] sm:$0xf]
  %v1461 = vld [vmem:[%s3 + $0x30] sm:$0xf]
  %v1462 = vld [vmem:[%s3 + $0x34] sm:$0xf]
  %v1463 = vld [vmem:[%s3 + $0x38] sm:$0xf]
  %v1464 = vld [vmem:[%s3 + $0x3c] sm:$0xf]
  %v1465 = vpack.c.bf16 %v1424, %v1424
  %s1466 = scalar_lea.vmem %s3, 64
  %v1467 = vld [vmem:[%s1466] sm:$0xf]
  %v1468 = vld [vmem:[%s1466 + $0x4] sm:$0xf]
  %v1469 = vld [vmem:[%s1466 + $0x8] sm:$0xf]
  %v1470 = vld [vmem:[%s1466 + $0xc] sm:$0xf]
  %v1471 = vld [vmem:[%s1466 + $0x10] sm:$0xf]
  %v1472 = vld [vmem:[%s1466 + $0x14] sm:$0xf]
  %v1473 = vld [vmem:[%s1466 + $0x18] sm:$0xf]
  %v1474 = vld [vmem:[%s1466 + $0x1c] sm:$0xf]
  %v1475 = vld [vmem:[%s1466 + $0x20] sm:$0xf]
  %v1476 = vld [vmem:[%s1466 + $0x24] sm:$0xf]
  %v1477 = vld [vmem:[%s1466 + $0x28] sm:$0xf]
  %v1478 = vld [vmem:[%s1466 + $0x2c] sm:$0xf]
  %v1479 = vld [vmem:[%s1466 + $0x30] sm:$0xf]
  %v1480 = vld [vmem:[%s1466 + $0x34] sm:$0xf]
  %v1481 = vld [vmem:[%s1466 + $0x38] sm:$0xf]
  %v1482 = vld [vmem:[%s1466 + $0x3c] sm:$0xf]
  %v1499 = vunpack.c.l.b16 %v1467
  %v1500 = vunpack.c.l.b16 %v1468
  %v1501 = vunpack.c.l.b16 %v1469
  %v1502 = vunpack.c.l.b16 %v1470
  %v1503 = vunpack.c.l.b16 %v1471
  %v1504 = vunpack.c.l.b16 %v1472
  %v1505 = vunpack.c.l.b16 %v1473
  %v1506 = vunpack.c.l.b16 %v1474
  %v1507 = vunpack.c.l.b16 %v1475
  %v1508 = vunpack.c.l.b16 %v1476
  %v1509 = vunpack.c.l.b16 %v1477
  %v1510 = vunpack.c.l.b16 %v1478
  %v1511 = vunpack.c.l.b16 %v1479
  %v1512 = vunpack.c.l.b16 %v1480
  %v1513 = vunpack.c.l.b16 %v1481
  %v1514 = vunpack.c.l.b16 %v1482
  %v1515 = vpack.c.b16 %v1500, %v1499
  %v1516 = vpack.c.b16 %v1502, %v1501
  %v1517 = vpack.c.b16 %v1504, %v1503
  %v1518 = vpack.c.b16 %v1506, %v1505
  %v1519 = vpack.c.b16 %v1508, %v1507
  %v1520 = vpack.c.b16 %v1510, %v1509
  %v1521 = vpack.c.b16 %v1512, %v1511
  %v1522 = vpack.c.b16 %v1514, %v1513
  %1531 = vmatprep.subr.bf16.mxu0 0
  %1532 = vmatpush1.bf16.msra.mxu0 %v1515
  %1533 = vmatprep.subr.bf16.mxu0 0
  %1534 = vmatpush1.bf16.msra.mxu0 %v1516
  %1535 = vmatprep.subr.bf16.mxu0 0
  %1536 = vmatpush1.bf16.msra.mxu0 %v1517
  %1537 = vmatprep.subr.bf16.mxu0 0
  %1538 = vmatpush1.bf16.msra.mxu0 %v1518
  %1539 = vmatprep.subr.bf16.mxu0 0
  %1540 = vmatpush1.bf16.msra.mxu0 %v1519
  %1541 = vmatprep.subr.bf16.mxu0 0
  %1542 = vmatpush1.bf16.msra.mxu0 %v1520
  %1543 = vmatprep.subr.bf16.mxu0 0
  %1544 = vmatpush1.bf16.msra.mxu0 %v1521
  %1545 = vmatprep.subr.bf16.mxu0 0
  %1546 = vmatpush1.bf16.msra.mxu0 %v1522
  %1547 = vmatprep.subr.bf16.mxu0 0
  %1548 = vmatpush1.bf16.msra.mxu0 0
  %1549 = vmatprep.subr.bf16.mxu0 0
  %1550 = vmatpush1.bf16.msra.mxu0 0
  %1551 = vmatprep.subr.bf16.mxu0 0
  %1552 = vmatpush1.bf16.msra.mxu0 0
  %1553 = vmatprep.subr.bf16.mxu0 0
  %1554 = vmatpush1.bf16.msra.mxu0 0
  %1555 = vmatprep.subr.bf16.mxu0 0
  %1556 = vmatpush1.bf16.msra.mxu0 0
  %1557 = vmatprep.subr.bf16.mxu0 0
  %1558 = vmatpush1.bf16.msra.mxu0 0
  %1559 = vmatprep.subr.bf16.mxu0 0
  %1560 = vmatpush1.bf16.msra.mxu0 0
  %1561 = vmatprep.subr.bf16.mxu0 0
  %1562 = vmatpush1.bf16.msra.mxu0 0
  %1563 = vmatprep.mubr.bf16.mxu0 0
  %1564 = vmatmul.mubr.bf16.gmra.mrb[0].mxu0 %v1465
  %v1565 = vpop.f32.mrb[0].mxu0
  %v1566 = vadd.f32 0.0, %v1565
  %v1567 = vpop.f32.mrb[0].mxu0
  %v1568 = vpop.f32.mrb[0].mxu0
  %v1569 = vpop.f32.mrb[0].mxu0
  %1570 = vdwg.mxu0
  %v1587 = vunpack.c.l.b16 %v1449
  %v1588 = vunpack.c.l.b16 %v1450
  %v1589 = vunpack.c.l.b16 %v1451
  %v1590 = vunpack.c.l.b16 %v1452
  %v1591 = vunpack.c.l.b16 %v1453
  %v1592 = vunpack.c.l.b16 %v1454
  %v1593 = vunpack.c.l.b16 %v1455
  %v1594 = vunpack.c.l.b16 %v1456
  %v1595 = vunpack.c.l.b16 %v1457
  %v1596 = vunpack.c.l.b16 %v1458
  %v1597 = vunpack.c.l.b16 %v1459
  %v1598 = vunpack.c.l.b16 %v1460
  %v1599 = vunpack.c.l.b16 %v1461
  %v1600 = vunpack.c.l.b16 %v1462
  %v1601 = vunpack.c.l.b16 %v1463
  %v1602 = vunpack.c.l.b16 %v1464
  %v1603 = vpack.c.b16 %v1588, %v1587
  %v1604 = vpack.c.b16 %v1590, %v1589
  %v1605 = vpack.c.b16 %v1592, %v1591
  %v1606 = vpack.c.b16 %v1594, %v1593
  %v1607 = vpack.c.b16 %v1596, %v1595
  %v1608 = vpack.c.b16 %v1598, %v1597
  %v1609 = vpack.c.b16 %v1600, %v1599
  %v1610 = vpack.c.b16 %v1602, %v1601
  %1619 = vmatprep.subr.bf16.mxu0 0
  %1620 = vmatpush1.bf16.msra.mxu0 %v1603
  %1621 = vmatprep.subr.bf16.mxu0 0
  %1622 = vmatpush1.bf16.msra.mxu0 %v1604
  %1623 = vmatprep.subr.bf16.mxu0 0
  %1624 = vmatpush1.bf16.msra.mxu0 %v1605
  %1625 = vmatprep.subr.bf16.mxu0 0
  %1626 = vmatpush1.bf16.msra.mxu0 %v1606
  %1627 = vmatprep.subr.bf16.mxu0 0
  %1628 = vmatpush1.bf16.msra.mxu0 %v1607
  %1629 = vmatprep.subr.bf16.mxu0 0
  %1630 = vmatpush1.bf16.msra.mxu0 %v1608
  %1631 = vmatprep.subr.bf16.mxu0 0
  %1632 = vmatpush1.bf16.msra.mxu0 %v1609
  %1633 = vmatprep.subr.bf16.mxu0 0
  %1634 = vmatpush1.bf16.msra.mxu0 %v1610
  %1635 = vmatprep.subr.bf16.mxu0 0
  %1636 = vmatpush1.bf16.msra.mxu0 0
  %1637 = vmatprep.subr.bf16.mxu0 0
  %1638 = vmatpush1.bf16.msra.mxu0 0
  %1639 = vmatprep.subr.bf16.mxu0 0
  %1640 = vmatpush1.bf16.msra.mxu0 0
  %1641 = vmatprep.subr.bf16.mxu0 0
  %1642 = vmatpush1.bf16.msra.mxu0 0
  %1643 = vmatprep.subr.bf16.mxu0 0
  %1644 = vmatpush1.bf16.msra.mxu0 0
  %1645 = vmatprep.subr.bf16.mxu0 0
  %1646 = vmatpush1.bf16.msra.mxu0 0
  %1647 = vmatprep.subr.bf16.mxu0 0
  %1648 = vmatpush1.bf16.msra.mxu0 0
  %1649 = vmatprep.subr.bf16.mxu0 0
  %1650 = vmatpush1.bf16.msra.mxu0 0
  %1651 = vmatprep.mubr.bf16.mxu0 0
  %1652 = vmatmul.mubr.bf16.gmra.mrb[0].mxu0 %v1448
  %v1653 = vpop.f32.mrb[0].mxu0
  %v1654 = vadd.f32 %v1566, %v1653
  %v1655 = vpop.f32.mrb[0].mxu0
  %v1656 = vpop.f32.mrb[0].mxu0
  %v1657 = vpop.f32.mrb[0].mxu0
  %1658 = vdwg.mxu0
  %v1659 = vpack.c.bf16 %v1425, %v1425
  %s1660 = scalar_lea.vmem %s3, 128
  %v1661 = vld [vmem:[%s1660] sm:$0xf]
  %v1662 = vld [vmem:[%s1660 + $0x4] sm:$0xf]
  %v1663 = vld [vmem:[%s1660 + $0x8] sm:$0xf]
  %v1664 = vld [vmem:[%s1660 + $0xc] sm:$0xf]
  %v1665 = vld [vmem:[%s1660 + $0x10] sm:$0xf]
  %v1666 = vld [vmem:[%s1660 + $0x14] sm:$0xf]
  %v1667 = vld [vmem:[%s1660 + $0x18] sm:$0xf]
  %v1668 = vld [vmem:[%s1660 + $0x1c] sm:$0xf]
  %v1669 = vld [vmem:[%s1660 + $0x20] sm:$0xf]
  %v1670 = vld [vmem:[%s1660 + $0x24] sm:$0xf]
  %v1671 = vld [vmem:[%s1660 + $0x28] sm:$0xf]
  %v1672 = vld [vmem:[%s1660 + $0x2c] sm:$0xf]
  %v1673 = vld [vmem:[%s1660 + $0x30] sm:$0xf]
  %v1674 = vld [vmem:[%s1660 + $0x34] sm:$0xf]
  %v1675 = vld [vmem:[%s1660 + $0x38] sm:$0xf]
  %v1676 = vld [vmem:[%s1660 + $0x3c] sm:$0xf]
  %v1693 = vunpack.c.l.b16 %v1661
  %v1694 = vunpack.c.l.b16 %v1662
  %v1695 = vunpack.c.l.b16 %v1663
  %v1696 = vunpack.c.l.b16 %v1664
  %v1697 = vunpack.c.l.b16 %v1665
  %v1698 = vunpack.c.l.b16 %v1666
  %v1699 = vunpack.c.l.b16 %v1667
  %v1700 = vunpack.c.l.b16 %v1668
  %v1701 = vunpack.c.l.b16 %v1669
  %v1702 = vunpack.c.l.b16 %v1670
  %v1703 = vunpack.c.l.b16 %v1671
  %v1704 = vunpack.c.l.b16 %v1672
  %v1705 = vunpack.c.l.b16 %v1673
  %v1706 = vunpack.c.l.b16 %v1674
  %v1707 = vunpack.c.l.b16 %v1675
  %v1708 = vunpack.c.l.b16 %v1676
  %v1709 = vpack.c.b16 %v1694, %v1693
  %v1710 = vpack.c.b16 %v1696, %v1695
  %v1711 = vpack.c.b16 %v1698, %v1697
  %v1712 = vpack.c.b16 %v1700, %v1699
  %v1713 = vpack.c.b16 %v1702, %v1701
  %v1714 = vpack.c.b16 %v1704, %v1703
  %v1715 = vpack.c.b16 %v1706, %v1705
  %v1716 = vpack.c.b16 %v1708, %v1707
  %1725 = vmatprep.subr.bf16.mxu0 0
  %1726 = vmatpush1.bf16.msra.mxu0 %v1709
  %1727 = vmatprep.subr.bf16.mxu0 0
  %1728 = vmatpush1.bf16.msra.mxu0 %v1710
  %1729 = vmatprep.subr.bf16.mxu0 0
  %1730 = vmatpush1.bf16.msra.mxu0 %v1711
  %1731 = vmatprep.subr.bf16.mxu0 0
  %1732 = vmatpush1.bf16.msra.mxu0 %v1712
  %1733 = vmatprep.subr.bf16.mxu0 0
  %1734 = vmatpush1.bf16.msra.mxu0 %v1713
  %1735 = vmatprep.subr.bf16.mxu0 0
  %1736 = vmatpush1.bf16.msra.mxu0 %v1714
  %1737 = vmatprep.subr.bf16.mxu0 0
  %1738 = vmatpush1.bf16.msra.mxu0 %v1715
  %1739 = vmatprep.subr.bf16.mxu0 0
  %1740 = vmatpush1.bf16.msra.mxu0 %v1716
  %1741 = vmatprep.subr.bf16.mxu0 0
  %1742 = vmatpush1.bf16.msra.mxu0 0
  %1743 = vmatprep.subr.bf16.mxu0 0
  %1744 = vmatpush1.bf16.msra.mxu0 0
  %1745 = vmatprep.subr.bf16.mxu0 0
  %1746 = vmatpush1.bf16.msra.mxu0 0
  %1747 = vmatprep.subr.bf16.mxu0 0
  %1748 = vmatpush1.bf16.msra.mxu0 0
  %1749 = vmatprep.subr.bf16.mxu0 0
  %1750 = vmatpush1.bf16.msra.mxu0 0
  %1751 = vmatprep.subr.bf16.mxu0 0
  %1752 = vmatpush1.bf16.msra.mxu0 0
  %1753 = vmatprep.subr.bf16.mxu0 0
  %1754 = vmatpush1.bf16.msra.mxu0 0
  %1755 = vmatprep.subr.bf16.mxu0 0
  %1756 = vmatpush1.bf16.msra.mxu0 0
  %1757 = vmatprep.mubr.bf16.mxu0 0
  %1758 = vmatmul.mubr.bf16.gmra.mrb[0].mxu0 %v1659
  %v1759 = vpop.f32.mrb[0].mxu0
  %v1760 = vadd.f32 0.0, %v1759
  %v1761 = vpop.f32.mrb[0].mxu0
  %v1762 = vpop.f32.mrb[0].mxu0
  %v1763 = vpop.f32.mrb[0].mxu0
  %1764 = vdwg.mxu0
  %v1765 = vadd.f32 %v1654, %v1760
  %v1766 = vpack.c.bf16 %v1426, %v1426
  %s1767 = scalar_lea.vmem %s3, 192
  %v1768 = vld [vmem:[%s1767] sm:$0xf]
  %v1769 = vld [vmem:[%s1767 + $0x4] sm:$0xf]
  %v1770 = vld [vmem:[%s1767 + $0x8] sm:$0xf]
  %v1771 = vld [vmem:[%s1767 + $0xc] sm:$0xf]
  %v1772 = vld [vmem:[%s1767 + $0x10] sm:$0xf]
  %v1773 = vld [vmem:[%s1767 + $0x14] sm:$0xf]
  %v1774 = vld [vmem:[%s1767 + $0x18] sm:$0xf]
  %v1775 = vld [vmem:[%s1767 + $0x1c] sm:$0xf]
  %v1776 = vld [vmem:[%s1767 + $0x20] sm:$0xf]
  %v1777 = vld [vmem:[%s1767 + $0x24] sm:$0xf]
  %v1778 = vld [vmem:[%s1767 + $0x28] sm:$0xf]
  %v1779 = vld [vmem:[%s1767 + $0x2c] sm:$0xf]
  %v1780 = vld [vmem:[%s1767 + $0x30] sm:$0xf]
  %v1781 = vld [vmem:[%s1767 + $0x34] sm:$0xf]
  %v1782 = vld [vmem:[%s1767 + $0x38] sm:$0xf]
  %v1783 = vld [vmem:[%s1767 + $0x3c] sm:$0xf]
  %v1800 = vunpack.c.l.b16 %v1768
  %v1801 = vunpack.c.l.b16 %v1769
  %v1802 = vunpack.c.l.b16 %v1770
  %v1803 = vunpack.c.l.b16 %v1771
  %v1804 = vunpack.c.l.b16 %v1772
  %v1805 = vunpack.c.l.b16 %v1773
  %v1806 = vunpack.c.l.b16 %v1774
  %v1807 = vunpack.c.l.b16 %v1775
  %v1808 = vunpack.c.l.b16 %v1776
  %v1809 = vunpack.c.l.b16 %v1777
  %v1810 = vunpack.c.l.b16 %v1778
  %v1811 = vunpack.c.l.b16 %v1779
  %v1812 = vunpack.c.l.b16 %v1780
  %v1813 = vunpack.c.l.b16 %v1781
  %v1814 = vunpack.c.l.b16 %v1782
  %v1815 = vunpack.c.l.b16 %v1783
  %v1816 = vpack.c.b16 %v1801, %v1800
  %v1817 = vpack.c.b16 %v1803, %v1802
  %v1818 = vpack.c.b16 %v1805, %v1804
  %v1819 = vpack.c.b16 %v1807, %v1806
  %v1820 = vpack.c.b16 %v1809, %v1808
  %v1821 = vpack.c.b16 %v1811, %v1810
  %v1822 = vpack.c.b16 %v1813, %v1812
  %v1823 = vpack.c.b16 %v1815, %v1814
  %1832 = vmatprep.subr.bf16.mxu0 0
  %1833 = vmatpush1.bf16.msra.mxu0 %v1816
  %1834 = vmatprep.subr.bf16.mxu0 0
  %1835 = vmatpush1.bf16.msra.mxu0 %v1817
  %1836 = vmatprep.subr.bf16.mxu0 0
  %1837 = vmatpush1.bf16.msra.mxu0 %v1818
  %1838 = vmatprep.subr.bf16.mxu0 0
  %1839 = vmatpush1.bf16.msra.mxu0 %v1819
  %1840 = vmatprep.subr.bf16.mxu0 0
  %1841 = vmatpush1.bf16.msra.mxu0 %v1820
  %1842 = vmatprep.subr.bf16.mxu0 0
  %1843 = vmatpush1.bf16.msra.mxu0 %v1821
  %1844 = vmatprep.subr.bf16.mxu0 0
  %1845 = vmatpush1.bf16.msra.mxu0 %v1822
  %1846 = vmatprep.subr.bf16.mxu0 0
  %1847 = vmatpush1.bf16.msra.mxu0 %v1823
  %1848 = vmatprep.subr.bf16.mxu0 0
  %1849 = vmatpush1.bf16.msra.mxu0 0
  %1850 = vmatprep.subr.bf16.mxu0 0
  %1851 = vmatpush1.bf16.msra.mxu0 0
  %1852 = vmatprep.subr.bf16.mxu0 0
  %1853 = vmatpush1.bf16.msra.mxu0 0
  %1854 = vmatprep.subr.bf16.mxu0 0
  %1855 = vmatpush1.bf16.msra.mxu0 0
  %1856 = vmatprep.subr.bf16.mxu0 0
  %1857 = vmatpush1.bf16.msra.mxu0 0
  %1858 = vmatprep.subr.bf16.mxu0 0
  %1859 = vmatpush1.bf16.msra.mxu0 0
  %1860 = vmatprep.subr.bf16.mxu0 0
  %1861 = vmatpush1.bf16.msra.mxu0 0
  %1862 = vmatprep.subr.bf16.mxu0 0
  %1863 = vmatpush1.bf16.msra.mxu0 0
  %1864 = vmatprep.mubr.bf16.mxu0 0
  %1865 = vmatmul.mubr.bf16.gmra.mrb[0].mxu0 %v1766
  %v1866 = vpop.f32.mrb[0].mxu0
  %v1867 = vadd.f32 0.0, %v1866
  %v1868 = vpop.f32.mrb[0].mxu0
  %v1869 = vpop.f32.mrb[0].mxu0
  %v1870 = vpop.f32.mrb[0].mxu0
  %1871 = vdwg.mxu0
  %v1872 = vadd.f32 %v1765, %v1867
  %v1873 = vpack.c.bf16 %v1427, %v1427
  %s1874 = scalar_lea.vmem %s3, 256
  %v1875 = vld [vmem:[%s1874] sm:$0xf]
  %v1876 = vld [vmem:[%s1874 + $0x4] sm:$0xf]
  %v1877 = vld [vmem:[%s1874 + $0x8] sm:$0xf]
  %v1878 = vld [vmem:[%s1874 + $0xc] sm:$0xf]
  %v1879 = vld [vmem:[%s1874 + $0x10] sm:$0xf]
  %v1880 = vld [vmem:[%s1874 + $0x14] sm:$0xf]
  %v1881 = vld [vmem:[%s1874 + $0x18] sm:$0xf]
  %v1882 = vld [vmem:[%s1874 + $0x1c] sm:$0xf]
  %v1883 = vld [vmem:[%s1874 + $0x20] sm:$0xf]
  %v1884 = vld [vmem:[%s1874 + $0x24] sm:$0xf]
  %v1885 = vld [vmem:[%s1874 + $0x28] sm:$0xf]
  %v1886 = vld [vmem:[%s1874 + $0x2c] sm:$0xf]
  %v1887 = vld [vmem:[%s1874 + $0x30] sm:$0xf]
  %v1888 = vld [vmem:[%s1874 + $0x34] sm:$0xf]
  %v1889 = vld [vmem:[%s1874 + $0x38] sm:$0xf]
  %v1890 = vld [vmem:[%s1874 + $0x3c] sm:$0xf]
  %v1907 = vunpack.c.l.b16 %v1875
  %v1908 = vunpack.c.l.b16 %v1876
  %v1909 = vunpack.c.l.b16 %v1877
  %v1910 = vunpack.c.l.b16 %v1878
  %v1911 = vunpack.c.l.b16 %v1879
  %v1912 = vunpack.c.l.b16 %v1880
  %v1913 = vunpack.c.l.b16 %v1881
  %v1914 = vunpack.c.l.b16 %v1882
  %v1915 = vunpack.c.l.b16 %v1883
  %v1916 = vunpack.c.l.b16 %v1884
  %v1917 = vunpack.c.l.b16 %v1885
  %v1918 = vunpack.c.l.b16 %v1886
  %v1919 = vunpack.c.l.b16 %v1887
  %v1920 = vunpack.c.l.b16 %v1888
  %v1921 = vunpack.c.l.b16 %v1889
  %v1922 = vunpack.c.l.b16 %v1890
  %v1923 = vpack.c.b16 %v1908, %v1907
  %v1924 = vpack.c.b16 %v1910, %v1909
  %v1925 = vpack.c.b16 %v1912, %v1911
  %v1926 = vpack.c.b16 %v1914, %v1913
  %v1927 = vpack.c.b16 %v1916, %v1915
  %v1928 = vpack.c.b16 %v1918, %v1917
  %v1929 = vpack.c.b16 %v1920, %v1919
  %v1930 = vpack.c.b16 %v1922, %v1921
  %1939 = vmatprep.subr.bf16.mxu0 0
  %1940 = vmatpush1.bf16.msra.mxu0 %v1923
  %1941 = vmatprep.subr.bf16.mxu0 0
  %1942 = vmatpush1.bf16.msra.mxu0 %v1924
  %1943 = vmatprep.subr.bf16.mxu0 0
  %1944 = vmatpush1.bf16.msra.mxu0 %v1925
  %1945 = vmatprep.subr.bf16.mxu0 0
  %1946 = vmatpush1.bf16.msra.mxu0 %v1926
  %1947 = vmatprep.subr.bf16.mxu0 0
  %1948 = vmatpush1.bf16.msra.mxu0 %v1927
  %1949 = vmatprep.subr.bf16.mxu0 0
  %1950 = vmatpush1.bf16.msra.mxu0 %v1928
  %1951 = vmatprep.subr.bf16.mxu0 0
  %1952 = vmatpush1.bf16.msra.mxu0 %v1929
  %1953 = vmatprep.subr.bf16.mxu0 0
  %1954 = vmatpush1.bf16.msra.mxu0 %v1930
  %1955 = vmatprep.subr.bf16.mxu0 0
  %1956 = vmatpush1.bf16.msra.mxu0 0
  %1957 = vmatprep.subr.bf16.mxu0 0
  %1958 = vmatpush1.bf16.msra.mxu0 0
  %1959 = vmatprep.subr.bf16.mxu0 0
  %1960 = vmatpush1.bf16.msra.mxu0 0
  %1961 = vmatprep.subr.bf16.mxu0 0
  %1962 = vmatpush1.bf16.msra.mxu0 0
  %1963 = vmatprep.subr.bf16.mxu0 0
  %1964 = vmatpush1.bf16.msra.mxu0 0
  %1965 = vmatprep.subr.bf16.mxu0 0
  %1966 = vmatpush1.bf16.msra.mxu0 0
  %1967 = vmatprep.subr.bf16.mxu0 0
  %1968 = vmatpush1.bf16.msra.mxu0 0
  %1969 = vmatprep.subr.bf16.mxu0 0
  %1970 = vmatpush1.bf16.msra.mxu0 0
  %1971 = vmatprep.mubr.bf16.mxu0 0
  %1972 = vmatmul.mubr.bf16.gmra.mrb[0].mxu0 %v1873
  %v1973 = vpop.f32.mrb[0].mxu0
  %v1974 = vadd.f32 0.0, %v1973
  %v1975 = vpop.f32.mrb[0].mxu0
  %v1976 = vpop.f32.mrb[0].mxu0
  %v1977 = vpop.f32.mrb[0].mxu0
  %1978 = vdwg.mxu0
  %v1979 = vadd.f32 %v1872, %v1974
  %v1980 = vpack.c.bf16 %v1428, %v1428
  %s1981 = scalar_lea.vmem %s3, 320
  %v1982 = vld [vmem:[%s1981] sm:$0xf]
  %v1983 = vld [vmem:[%s1981 + $0x4] sm:$0xf]
  %v1984 = vld [vmem:[%s1981 + $0x8] sm:$0xf]
  %v1985 = vld [vmem:[%s1981 + $0xc] sm:$0xf]
  %v1986 = vld [vmem:[%s1981 + $0x10] sm:$0xf]
  %v1987 = vld [vmem:[%s1981 + $0x14] sm:$0xf]
  %v1988 = vld [vmem:[%s1981 + $0x18] sm:$0xf]
  %v1989 = vld [vmem:[%s1981 + $0x1c] sm:$0xf]
  %v1990 = vld [vmem:[%s1981 + $0x20] sm:$0xf]
  %v1991 = vld [vmem:[%s1981 + $0x24] sm:$0xf]
  %v1992 = vld [vmem:[%s1981 + $0x28] sm:$0xf]
  %v1993 = vld [vmem:[%s1981 + $0x2c] sm:$0xf]
  %v1994 = vld [vmem:[%s1981 + $0x30] sm:$0xf]
  %v1995 = vld [vmem:[%s1981 + $0x34] sm:$0xf]
  %v1996 = vld [vmem:[%s1981 + $0x38] sm:$0xf]
  %v1997 = vld [vmem:[%s1981 + $0x3c] sm:$0xf]
  %v2014 = vunpack.c.l.b16 %v1982
  %v2015 = vunpack.c.l.b16 %v1983
  %v2016 = vunpack.c.l.b16 %v1984
  %v2017 = vunpack.c.l.b16 %v1985
  %v2018 = vunpack.c.l.b16 %v1986
  %v2019 = vunpack.c.l.b16 %v1987
  %v2020 = vunpack.c.l.b16 %v1988
  %v2021 = vunpack.c.l.b16 %v1989
  %v2022 = vunpack.c.l.b16 %v1990
  %v2023 = vunpack.c.l.b16 %v1991
  %v2024 = vunpack.c.l.b16 %v1992
  %v2025 = vunpack.c.l.b16 %v1993
  %v2026 = vunpack.c.l.b16 %v1994
  %v2027 = vunpack.c.l.b16 %v1995
  %v2028 = vunpack.c.l.b16 %v1996
  %v2029 = vunpack.c.l.b16 %v1997
  %v2030 = vpack.c.b16 %v2015, %v2014
  %v2031 = vpack.c.b16 %v2017, %v2016
  %v2032 = vpack.c.b16 %v2019, %v2018
  %v2033 = vpack.c.b16 %v2021, %v2020
  %v2034 = vpack.c.b16 %v2023, %v2022
  %v2035 = vpack.c.b16 %v2025, %v2024
  %v2036 = vpack.c.b16 %v2027, %v2026
  %v2037 = vpack.c.b16 %v2029, %v2028
  %2046 = vmatprep.subr.bf16.mxu0 0
  %2047 = vmatpush1.bf16.msra.mxu0 %v2030
  %2048 = vmatprep.subr.bf16.mxu0 0
  %2049 = vmatpush1.bf16.msra.mxu0 %v2031
  %2050 = vmatprep.subr.bf16.mxu0 0
  %2051 = vmatpush1.bf16.msra.mxu0 %v2032
  %2052 = vmatprep.subr.bf16.mxu0 0
  %2053 = vmatpush1.bf16.msra.mxu0 %v2033
  %2054 = vmatprep.subr.bf16.mxu0 0
  %2055 = vmatpush1.bf16.msra.mxu0 %v2034
  %2056 = vmatprep.subr.bf16.mxu0 0
  %2057 = vmatpush1.bf16.msra.mxu0 %v2035
  %2058 = vmatprep.subr.bf16.mxu0 0
  %2059 = vmatpush1.bf16.msra.mxu0 %v2036
  %2060 = vmatprep.subr.bf16.mxu0 0
  %2061 = vmatpush1.bf16.msra.mxu0 %v2037
  %2062 = vmatprep.subr.bf16.mxu0 0
  %2063 = vmatpush1.bf16.msra.mxu0 0
  %2064 = vmatprep.subr.bf16.mxu0 0
  %2065 = vmatpush1.bf16.msra.mxu0 0
  %2066 = vmatprep.subr.bf16.mxu0 0
  %2067 = vmatpush1.bf16.msra.mxu0 0
  %2068 = vmatprep.subr.bf16.mxu0 0
  %2069 = vmatpush1.bf16.msra.mxu0 0
  %2070 = vmatprep.subr.bf16.mxu0 0
  %2071 = vmatpush1.bf16.msra.mxu0 0
  %2072 = vmatprep.subr.bf16.mxu0 0
  %2073 = vmatpush1.bf16.msra.mxu0 0
  %2074 = vmatprep.subr.bf16.mxu0 0
  %2075 = vmatpush1.bf16.msra.mxu0 0
  %2076 = vmatprep.subr.bf16.mxu0 0
  %2077 = vmatpush1.bf16.msra.mxu0 0
  %2078 = vmatprep.mubr.bf16.mxu0 0
  %2079 = vmatmul.mubr.bf16.gmra.mrb[0].mxu0 %v1980
  %v2080 = vpop.f32.mrb[0].mxu0
  %v2081 = vadd.f32 0.0, %v2080
  %v2082 = vpop.f32.mrb[0].mxu0
  %v2083 = vpop.f32.mrb[0].mxu0
  %v2084 = vpop.f32.mrb[0].mxu0
  %2085 = vdwg.mxu0
  %v2086 = vadd.f32 %v1979, %v2081
  %v2087 = vpack.c.bf16 %v1429, %v1429
  %s2088 = scalar_lea.vmem %s3, 384
  %v2089 = vld [vmem:[%s2088] sm:$0xf]
  %v2090 = vld [vmem:[%s2088 + $0x4] sm:$0xf]
  %v2091 = vld [vmem:[%s2088 + $0x8] sm:$0xf]
  %v2092 = vld [vmem:[%s2088 + $0xc] sm:$0xf]
  %v2093 = vld [vmem:[%s2088 + $0x10] sm:$0xf]
  %v2094 = vld [vmem:[%s2088 + $0x14] sm:$0xf]
  %v2095 = vld [vmem:[%s2088 + $0x18] sm:$0xf]
  %v2096 = vld [vmem:[%s2088 + $0x1c] sm:$0xf]
  %v2097 = vld [vmem:[%s2088 + $0x20] sm:$0xf]
  %v2098 = vld [vmem:[%s2088 + $0x24] sm:$0xf]
  %v2099 = vld [vmem:[%s2088 + $0x28] sm:$0xf]
  %v2100 = vld [vmem:[%s2088 + $0x2c] sm:$0xf]
  %v2101 = vld [vmem:[%s2088 + $0x30] sm:$0xf]
  %v2102 = vld [vmem:[%s2088 + $0x34] sm:$0xf]
  %v2103 = vld [vmem:[%s2088 + $0x38] sm:$0xf]
  %v2104 = vld [vmem:[%s2088 + $0x3c] sm:$0xf]
  %v2121 = vunpack.c.l.b16 %v2089
  %v2122 = vunpack.c.l.b16 %v2090
  %v2123 = vunpack.c.l.b16 %v2091
  %v2124 = vunpack.c.l.b16 %v2092
  %v2125 = vunpack.c.l.b16 %v2093
  %v2126 = vunpack.c.l.b16 %v2094
  %v2127 = vunpack.c.l.b16 %v2095
  %v2128 = vunpack.c.l.b16 %v2096
  %v2129 = vunpack.c.l.b16 %v2097
  %v2130 = vunpack.c.l.b16 %v2098
  %v2131 = vunpack.c.l.b16 %v2099
  %v2132 = vunpack.c.l.b16 %v2100
  %v2133 = vunpack.c.l.b16 %v2101
  %v2134 = vunpack.c.l.b16 %v2102
  %v2135 = vunpack.c.l.b16 %v2103
  %v2136 = vunpack.c.l.b16 %v2104
  %v2137 = vpack.c.b16 %v2122, %v2121
  %v2138 = vpack.c.b16 %v2124, %v2123
  %v2139 = vpack.c.b16 %v2126, %v2125
  %v2140 = vpack.c.b16 %v2128, %v2127
  %v2141 = vpack.c.b16 %v2130, %v2129
  %v2142 = vpack.c.b16 %v2132, %v2131
  %v2143 = vpack.c.b16 %v2134, %v2133
  %v2144 = vpack.c.b16 %v2136, %v2135
  %2153 = vmatprep.subr.bf16.mxu0 0
  %2154 = vmatpush1.bf16.msra.mxu0 %v2137
  %2155 = vmatprep.subr.bf16.mxu0 0
  %2156 = vmatpush1.bf16.msra.mxu0 %v2138
  %2157 = vmatprep.subr.bf16.mxu0 0
  %2158 = vmatpush1.bf16.msra.mxu0 %v2139
  %2159 = vmatprep.subr.bf16.mxu0 0
  %2160 = vmatpush1.bf16.msra.mxu0 %v2140
  %2161 = vmatprep.subr.bf16.mxu0 0
  %2162 = vmatpush1.bf16.msra.mxu0 %v2141
  %2163 = vmatprep.subr.bf16.mxu0 0
  %2164 = vmatpush1.bf16.msra.mxu0 %v2142
  %2165 = vmatprep.subr.bf16.mxu0 0
  %2166 = vmatpush1.bf16.msra.mxu0 %v2143
  %2167 = vmatprep.subr.bf16.mxu0 0
  %2168 = vmatpush1.bf16.msra.mxu0 %v2144
  %2169 = vmatprep.subr.bf16.mxu0 0
  %2170 = vmatpush1.bf16.msra.mxu0 0
  %2171 = vmatprep.subr.bf16.mxu0 0
  %2172 = vmatpush1.bf16.msra.mxu0 0
  %2173 = vmatprep.subr.bf16.mxu0 0
  %2174 = vmatpush1.bf16.msra.mxu0 0
  %2175 = vmatprep.subr.bf16.mxu0 0
  %2176 = vmatpush1.bf16.msra.mxu0 0
  %2177 = vmatprep.subr.bf16.mxu0 0
  %2178 = vmatpush1.bf16.msra.mxu0 0
  %2179 = vmatprep.subr.bf16.mxu0 0
  %2180 = vmatpush1.bf16.msra.mxu0 0
  %2181 = vmatprep.subr.bf16.mxu0 0
  %2182 = vmatpush1.bf16.msra.mxu0 0
  %2183 = vmatprep.subr.bf16.mxu0 0
  %2184 = vmatpush1.bf16.msra.mxu0 0
  %2185 = vmatprep.mubr.bf16.mxu0 0
  %2186 = vmatmul.mubr.bf16.gmra.mrb[0].mxu0 %v2087
  %v2187 = vpop.f32.mrb[0].mxu0
  %v2188 = vadd.f32 0.0, %v2187
  %v2189 = vpop.f32.mrb[0].mxu0
  %v2190 = vpop.f32.mrb[0].mxu0
  %v2191 = vpop.f32.mrb[0].mxu0
  %2192 = vdwg.mxu0
  %v2193 = vadd.f32 %v2086, %v2188
  %v2194 = vpack.c.bf16 %v1430, %v1430
  %s2195 = scalar_lea.vmem %s3, 448
  %v2196 = vld [vmem:[%s2195] sm:$0xf]
  %v2197 = vld [vmem:[%s2195 + $0x4] sm:$0xf]
  %v2198 = vld [vmem:[%s2195 + $0x8] sm:$0xf]
  %v2199 = vld [vmem:[%s2195 + $0xc] sm:$0xf]
  %v2200 = vld [vmem:[%s2195 + $0x10] sm:$0xf]
  %v2201 = vld [vmem:[%s2195 + $0x14] sm:$0xf]
  %v2202 = vld [vmem:[%s2195 + $0x18] sm:$0xf]
  %v2203 = vld [vmem:[%s2195 + $0x1c] sm:$0xf]
  %v2204 = vld [vmem:[%s2195 + $0x20] sm:$0xf]
  %v2205 = vld [vmem:[%s2195 + $0x24] sm:$0xf]
  %v2206 = vld [vmem:[%s2195 + $0x28] sm:$0xf]
  %v2207 = vld [vmem:[%s2195 + $0x2c] sm:$0xf]
  %v2208 = vld [vmem:[%s2195 + $0x30] sm:$0xf]
  %v2209 = vld [vmem:[%s2195 + $0x34] sm:$0xf]
  %v2210 = vld [vmem:[%s2195 + $0x38] sm:$0xf]
  %v2211 = vld [vmem:[%s2195 + $0x3c] sm:$0xf]
  %v2228 = vunpack.c.l.b16 %v2196
  %v2229 = vunpack.c.l.b16 %v2197
  %v2230 = vunpack.c.l.b16 %v2198
  %v2231 = vunpack.c.l.b16 %v2199
  %v2232 = vunpack.c.l.b16 %v2200
  %v2233 = vunpack.c.l.b16 %v2201
  %v2234 = vunpack.c.l.b16 %v2202
  %v2235 = vunpack.c.l.b16 %v2203
  %v2236 = vunpack.c.l.b16 %v2204
  %v2237 = vunpack.c.l.b16 %v2205
  %v2238 = vunpack.c.l.b16 %v2206
  %v2239 = vunpack.c.l.b16 %v2207
  %v2240 = vunpack.c.l.b16 %v2208
  %v2241 = vunpack.c.l.b16 %v2209
  %v2242 = vunpack.c.l.b16 %v2210
  %v2243 = vunpack.c.l.b16 %v2211
  %v2244 = vpack.c.b16 %v2229, %v2228
  %v2245 = vpack.c.b16 %v2231, %v2230
  %v2246 = vpack.c.b16 %v2233, %v2232
  %v2247 = vpack.c.b16 %v2235, %v2234
  %v2248 = vpack.c.b16 %v2237, %v2236
  %v2249 = vpack.c.b16 %v2239, %v2238
  %v2250 = vpack.c.b16 %v2241, %v2240
  %v2251 = vpack.c.b16 %v2243, %v2242
  %2260 = vmatprep.subr.bf16.mxu0 0
  %2261 = vmatpush1.bf16.msra.mxu0 %v2244
  %2262 = vmatprep.subr.bf16.mxu0 0
  %2263 = vmatpush1.bf16.msra.mxu0 %v2245
  %2264 = vmatprep.subr.bf16.mxu0 0
  %2265 = vmatpush1.bf16.msra.mxu0 %v2246
  %2266 = vmatprep.subr.bf16.mxu0 0
  %2267 = vmatpush1.bf16.msra.mxu0 %v2247
  %2268 = vmatprep.subr.bf16.mxu0 0
  %2269 = vmatpush1.bf16.msra.mxu0 %v2248
  %2270 = vmatprep.subr.bf16.mxu0 0
  %2271 = vmatpush1.bf16.msra.mxu0 %v2249
  %2272 = vmatprep.subr.bf16.mxu0 0
  %2273 = vmatpush1.bf16.msra.mxu0 %v2250
  %2274 = vmatprep.subr.bf16.mxu0 0
  %2275 = vmatpush1.bf16.msra.mxu0 %v2251
  %2276 = vmatprep.subr.bf16.mxu0 0
  %2277 = vmatpush1.bf16.msra.mxu0 0
  %2278 = vmatprep.subr.bf16.mxu0 0
  %2279 = vmatpush1.bf16.msra.mxu0 0
  %2280 = vmatprep.subr.bf16.mxu0 0
  %2281 = vmatpush1.bf16.msra.mxu0 0
  %2282 = vmatprep.subr.bf16.mxu0 0
  %2283 = vmatpush1.bf16.msra.mxu0 0
  %2284 = vmatprep.subr.bf16.mxu0 0
  %2285 = vmatpush1.bf16.msra.mxu0 0
  %2286 = vmatprep.subr.bf16.mxu0 0
  %2287 = vmatpush1.bf16.msra.mxu0 0
  %2288 = vmatprep.subr.bf16.mxu0 0
  %2289 = vmatpush1.bf16.msra.mxu0 0
  %2290 = vmatprep.subr.bf16.mxu0 0
  %2291 = vmatpush1.bf16.msra.mxu0 0
  %2292 = vmatprep.mubr.bf16.mxu0 0
  %2293 = vmatmul.mubr.bf16.gmra.mrb[0].mxu0 %v2194
  %v2294 = vpop.f32.mrb[0].mxu0
  %v2295 = vadd.f32 0.0, %v2294
  %v2296 = vpop.f32.mrb[0].mxu0
  %v2297 = vpop.f32.mrb[0].mxu0
  %v2298 = vpop.f32.mrb[0].mxu0
  %2299 = vdwg.mxu0
  %v2300 = vadd.f32 %v2193, %v2295
  %v2301 = vpack.c.bf16 %v1431, %v1431
  %s2302 = scalar_lea.vmem %s3, 512
  %v2303 = vld [vmem:[%s2302] sm:$0xf]
  %v2304 = vld [vmem:[%s2302 + $0x4] sm:$0xf]
  %v2305 = vld [vmem:[%s2302 + $0x8] sm:$0xf]
  %v2306 = vld [vmem:[%s2302 + $0xc] sm:$0xf]
  %v2307 = vld [vmem:[%s2302 + $0x10] sm:$0xf]
  %v2308 = vld [vmem:[%s2302 + $0x14] sm:$0xf]
  %v2309 = vld [vmem:[%s2302 + $0x18] sm:$0xf]
  %v2310 = vld [vmem:[%s2302 + $0x1c] sm:$0xf]
  %v2311 = vld [vmem:[%s2302 + $0x20] sm:$0xf]
  %v2312 = vld [vmem:[%s2302 + $0x24] sm:$0xf]
  %v2313 = vld [vmem:[%s2302 + $0x28] sm:$0xf]
  %v2314 = vld [vmem:[%s2302 + $0x2c] sm:$0xf]
  %v2315 = vld [vmem:[%s2302 + $0x30] sm:$0xf]
  %v2316 = vld [vmem:[%s2302 + $0x34] sm:$0xf]
  %v2317 = vld [vmem:[%s2302 + $0x38] sm:$0xf]
  %v2318 = vld [vmem:[%s2302 + $0x3c] sm:$0xf]
  %v2335 = vunpack.c.l.b16 %v2303
  %v2336 = vunpack.c.l.b16 %v2304
  %v2337 = vunpack.c.l.b16 %v2305
  %v2338 = vunpack.c.l.b16 %v2306
  %v2339 = vunpack.c.l.b16 %v2307
  %v2340 = vunpack.c.l.b16 %v2308
  %v2341 = vunpack.c.l.b16 %v2309
  %v2342 = vunpack.c.l.b16 %v2310
  %v2343 = vunpack.c.l.b16 %v2311
  %v2344 = vunpack.c.l.b16 %v2312
  %v2345 = vunpack.c.l.b16 %v2313
  %v2346 = vunpack.c.l.b16 %v2314
  %v2347 = vunpack.c.l.b16 %v2315
  %v2348 = vunpack.c.l.b16 %v2316
  %v2349 = vunpack.c.l.b16 %v2317
  %v2350 = vunpack.c.l.b16 %v2318
  %v2351 = vpack.c.b16 %v2336, %v2335
  %v2352 = vpack.c.b16 %v2338, %v2337
  %v2353 = vpack.c.b16 %v2340, %v2339
  %v2354 = vpack.c.b16 %v2342, %v2341
  %v2355 = vpack.c.b16 %v2344, %v2343
  %v2356 = vpack.c.b16 %v2346, %v2345
  %v2357 = vpack.c.b16 %v2348, %v2347
  %v2358 = vpack.c.b16 %v2350, %v2349
  %2367 = vmatprep.subr.bf16.mxu0 0
  %2368 = vmatpush1.bf16.msra.mxu0 %v2351
  %2369 = vmatprep.subr.bf16.mxu0 0
  %2370 = vmatpush1.bf16.msra.mxu0 %v2352
  %2371 = vmatprep.subr.bf16.mxu0 0
  %2372 = vmatpush1.bf16.msra.mxu0 %v2353
  %2373 = vmatprep.subr.bf16.mxu0 0
  %2374 = vmatpush1.bf16.msra.mxu0 %v2354
  %2375 = vmatprep.subr.bf16.mxu0 0
  %2376 = vmatpush1.bf16.msra.mxu0 %v2355
  %2377 = vmatprep.subr.bf16.mxu0 0
  %2378 = vmatpush1.bf16.msra.mxu0 %v2356
  %2379 = vmatprep.subr.bf16.mxu0 0
  %2380 = vmatpush1.bf16.msra.mxu0 %v2357
  %2381 = vmatprep.subr.bf16.mxu0 0
  %2382 = vmatpush1.bf16.msra.mxu0 %v2358
  %2383 = vmatprep.subr.bf16.mxu0 0
  %2384 = vmatpush1.bf16.msra.mxu0 0
  %2385 = vmatprep.subr.bf16.mxu0 0
  %2386 = vmatpush1.bf16.msra.mxu0 0
  %2387 = vmatprep.subr.bf16.mxu0 0
  %2388 = vmatpush1.bf16.msra.mxu0 0
  %2389 = vmatprep.subr.bf16.mxu0 0
  %2390 = vmatpush1.bf16.msra.mxu0 0
  %2391 = vmatprep.subr.bf16.mxu0 0
  %2392 = vmatpush1.bf16.msra.mxu0 0
  %2393 = vmatprep.subr.bf16.mxu0 0
  %2394 = vmatpush1.bf16.msra.mxu0 0
  %2395 = vmatprep.subr.bf16.mxu0 0
  %2396 = vmatpush1.bf16.msra.mxu0 0
  %2397 = vmatprep.subr.bf16.mxu0 0
  %2398 = vmatpush1.bf16.msra.mxu0 0
  %2399 = vmatprep.mubr.bf16.mxu0 0
  %2400 = vmatmul.mubr.bf16.gmra.mrb[0].mxu0 %v2301
  %v2401 = vpop.f32.mrb[0].mxu0
  %v2402 = vadd.f32 0.0, %v2401
  %v2403 = vpop.f32.mrb[0].mxu0
  %v2404 = vpop.f32.mrb[0].mxu0
  %v2405 = vpop.f32.mrb[0].mxu0
  %2406 = vdwg.mxu0
  %v2407 = vadd.f32 %v2300, %v2402
  %v2408 = vpack.c.bf16 %v1432, %v1432
  %s2409 = scalar_lea.vmem %s3, 576
  %v2410 = vld [vmem:[%s2409] sm:$0xf]
  %v2411 = vld [vmem:[%s2409 + $0x4] sm:$0xf]
  %v2412 = vld [vmem:[%s2409 + $0x8] sm:$0xf]
  %v2413 = vld [vmem:[%s2409 + $0xc] sm:$0xf]
  %v2414 = vld [vmem:[%s2409 + $0x10] sm:$0xf]
  %v2415 = vld [vmem:[%s2409 + $0x14] sm:$0xf]
  %v2416 = vld [vmem:[%s2409 + $0x18] sm:$0xf]
  %v2417 = vld [vmem:[%s2409 + $0x1c] sm:$0xf]
  %v2418 = vld [vmem:[%s2409 + $0x20] sm:$0xf]
  %v2419 = vld [vmem:[%s2409 + $0x24] sm:$0xf]
  %v2420 = vld [vmem:[%s2409 + $0x28] sm:$0xf]
  %v2421 = vld [vmem:[%s2409 + $0x2c] sm:$0xf]
  %v2422 = vld [vmem:[%s2409 + $0x30] sm:$0xf]
  %v2423 = vld [vmem:[%s2409 + $0x34] sm:$0xf]
  %v2424 = vld [vmem:[%s2409 + $0x38] sm:$0xf]
  %v2425 = vld [vmem:[%s2409 + $0x3c] sm:$0xf]
  %v2442 = vunpack.c.l.b16 %v2410
  %v2443 = vunpack.c.l.b16 %v2411
  %v2444 = vunpack.c.l.b16 %v2412
  %v2445 = vunpack.c.l.b16 %v2413
  %v2446 = vunpack.c.l.b16 %v2414
  %v2447 = vunpack.c.l.b16 %v2415
  %v2448 = vunpack.c.l.b16 %v2416
  %v2449 = vunpack.c.l.b16 %v2417
  %v2450 = vunpack.c.l.b16 %v2418
  %v2451 = vunpack.c.l.b16 %v2419
  %v2452 = vunpack.c.l.b16 %v2420
  %v2453 = vunpack.c.l.b16 %v2421
  %v2454 = vunpack.c.l.b16 %v2422
  %v2455 = vunpack.c.l.b16 %v2423
  %v2456 = vunpack.c.l.b16 %v2424
  %v2457 = vunpack.c.l.b16 %v2425
  %v2458 = vpack.c.b16 %v2443, %v2442
  %v2459 = vpack.c.b16 %v2445, %v2444
  %v2460 = vpack.c.b16 %v2447, %v2446
  %v2461 = vpack.c.b16 %v2449, %v2448
  %v2462 = vpack.c.b16 %v2451, %v2450
  %v2463 = vpack.c.b16 %v2453, %v2452
  %v2464 = vpack.c.b16 %v2455, %v2454
  %v2465 = vpack.c.b16 %v2457, %v2456
  %2474 = vmatprep.subr.bf16.mxu0 0
  %2475 = vmatpush1.bf16.msra.mxu0 %v2458
  %2476 = vmatprep.subr.bf16.mxu0 0
  %2477 = vmatpush1.bf16.msra.mxu0 %v2459
  %2478 = vmatprep.subr.bf16.mxu0 0
  %2479 = vmatpush1.bf16.msra.mxu0 %v2460
  %2480 = vmatprep.subr.bf16.mxu0 0
  %2481 = vmatpush1.bf16.msra.mxu0 %v2461
  %2482 = vmatprep.subr.bf16.mxu0 0
  %2483 = vmatpush1.bf16.msra.mxu0 %v2462
  %2484 = vmatprep.subr.bf16.mxu0 0
  %2485 = vmatpush1.bf16.msra.mxu0 %v2463
  %2486 = vmatprep.subr.bf16.mxu0 0
  %2487 = vmatpush1.bf16.msra.mxu0 %v2464
  %2488 = vmatprep.subr.bf16.mxu0 0
  %2489 = vmatpush1.bf16.msra.mxu0 %v2465
  %2490 = vmatprep.subr.bf16.mxu0 0
  %2491 = vmatpush1.bf16.msra.mxu0 0
  %2492 = vmatprep.subr.bf16.mxu0 0
  %2493 = vmatpush1.bf16.msra.mxu0 0
  %2494 = vmatprep.subr.bf16.mxu0 0
  %2495 = vmatpush1.bf16.msra.mxu0 0
  %2496 = vmatprep.subr.bf16.mxu0 0
  %2497 = vmatpush1.bf16.msra.mxu0 0
  %2498 = vmatprep.subr.bf16.mxu0 0
  %2499 = vmatpush1.bf16.msra.mxu0 0
  %2500 = vmatprep.subr.bf16.mxu0 0
  %2501 = vmatpush1.bf16.msra.mxu0 0
  %2502 = vmatprep.subr.bf16.mxu0 0
  %2503 = vmatpush1.bf16.msra.mxu0 0
  %2504 = vmatprep.subr.bf16.mxu0 0
  %2505 = vmatpush1.bf16.msra.mxu0 0
  %2506 = vmatprep.mubr.bf16.mxu0 0
  %2507 = vmatmul.mubr.bf16.gmra.mrb[0].mxu0 %v2408
  %v2508 = vpop.f32.mrb[0].mxu0
  %v2509 = vadd.f32 0.0, %v2508
  %v2510 = vpop.f32.mrb[0].mxu0
  %v2511 = vpop.f32.mrb[0].mxu0
  %v2512 = vpop.f32.mrb[0].mxu0
  %2513 = vdwg.mxu0
  %v2514 = vadd.f32 %v2407, %v2509
  %v2515 = vpack.c.bf16 %v1433, %v1433
  %s2516 = scalar_lea.vmem %s3, 640
  %v2517 = vld [vmem:[%s2516] sm:$0xf]
  %v2518 = vld [vmem:[%s2516 + $0x4] sm:$0xf]
  %v2519 = vld [vmem:[%s2516 + $0x8] sm:$0xf]
  %v2520 = vld [vmem:[%s2516 + $0xc] sm:$0xf]
  %v2521 = vld [vmem:[%s2516 + $0x10] sm:$0xf]
  %v2522 = vld [vmem:[%s2516 + $0x14] sm:$0xf]
  %v2523 = vld [vmem:[%s2516 + $0x18] sm:$0xf]
  %v2524 = vld [vmem:[%s2516 + $0x1c] sm:$0xf]
  %v2525 = vld [vmem:[%s2516 + $0x20] sm:$0xf]
  %v2526 = vld [vmem:[%s2516 + $0x24] sm:$0xf]
  %v2527 = vld [vmem:[%s2516 + $0x28] sm:$0xf]
  %v2528 = vld [vmem:[%s2516 + $0x2c] sm:$0xf]
  %v2529 = vld [vmem:[%s2516 + $0x30] sm:$0xf]
  %v2530 = vld [vmem:[%s2516 + $0x34] sm:$0xf]
  %v2531 = vld [vmem:[%s2516 + $0x38] sm:$0xf]
  %v2532 = vld [vmem:[%s2516 + $0x3c] sm:$0xf]
  %v2549 = vunpack.c.l.b16 %v2517
  %v2550 = vunpack.c.l.b16 %v2518
  %v2551 = vunpack.c.l.b16 %v2519
  %v2552 = vunpack.c.l.b16 %v2520
  %v2553 = vunpack.c.l.b16 %v2521
  %v2554 = vunpack.c.l.b16 %v2522
  %v2555 = vunpack.c.l.b16 %v2523
  %v2556 = vunpack.c.l.b16 %v2524
  %v2557 = vunpack.c.l.b16 %v2525
  %v2558 = vunpack.c.l.b16 %v2526
  %v2559 = vunpack.c.l.b16 %v2527
  %v2560 = vunpack.c.l.b16 %v2528
  %v2561 = vunpack.c.l.b16 %v2529
  %v2562 = vunpack.c.l.b16 %v2530
  %v2563 = vunpack.c.l.b16 %v2531
  %v2564 = vunpack.c.l.b16 %v2532
  %v2565 = vpack.c.b16 %v2550, %v2549
  %v2566 = vpack.c.b16 %v2552, %v2551
  %v2567 = vpack.c.b16 %v2554, %v2553
  %v2568 = vpack.c.b16 %v2556, %v2555
  %v2569 = vpack.c.b16 %v2558, %v2557
  %v2570 = vpack.c.b16 %v2560, %v2559
  %v2571 = vpack.c.b16 %v2562, %v2561
  %v2572 = vpack.c.b16 %v2564, %v2563
  %2581 = vmatprep.subr.bf16.mxu0 0
  %2582 = vmatpush1.bf16.msra.mxu0 %v2565
  %2583 = vmatprep.subr.bf16.mxu0 0
  %2584 = vmatpush1.bf16.msra.mxu0 %v2566
  %2585 = vmatprep.subr.bf16.mxu0 0
  %2586 = vmatpush1.bf16.msra.mxu0 %v2567
  %2587 = vmatprep.subr.bf16.mxu0 0
  %2588 = vmatpush1.bf16.msra.mxu0 %v2568
  %2589 = vmatprep.subr.bf16.mxu0 0
  %2590 = vmatpush1.bf16.msra.mxu0 %v2569
  %2591 = vmatprep.subr.bf16.mxu0 0
  %2592 = vmatpush1.bf16.msra.mxu0 %v2570
  %2593 = vmatprep.subr.bf16.mxu0 0
  %2594 = vmatpush1.bf16.msra.mxu0 %v2571
  %2595 = vmatprep.subr.bf16.mxu0 0
  %2596 = vmatpush1.bf16.msra.mxu0 %v2572
  %2597 = vmatprep.subr.bf16.mxu0 0
  %2598 = vmatpush1.bf16.msra.mxu0 0
  %2599 = vmatprep.subr.bf16.mxu0 0
  %2600 = vmatpush1.bf16.msra.mxu0 0
  %2601 = vmatprep.subr.bf16.mxu0 0
  %2602 = vmatpush1.bf16.msra.mxu0 0
  %2603 = vmatprep.subr.bf16.mxu0 0
  %2604 = vmatpush1.bf16.msra.mxu0 0
  %2605 = vmatprep.subr.bf16.mxu0 0
  %2606 = vmatpush1.bf16.msra.mxu0 0
  %2607 = vmatprep.subr.bf16.mxu0 0
  %2608 = vmatpush1.bf16.msra.mxu0 0
  %2609 = vmatprep.subr.bf16.mxu0 0
  %2610 = vmatpush1.bf16.msra.mxu0 0
  %2611 = vmatprep.subr.bf16.mxu0 0
  %2612 = vmatpush1.bf16.msra.mxu0 0
  %2613 = vmatprep.mubr.bf16.mxu0 0
  %2614 = vmatmul.mubr.bf16.gmra.mrb[0].mxu0 %v2515
  %v2615 = vpop.f32.mrb[0].mxu0
  %v2616 = vadd.f32 0.0, %v2615
  %v2617 = vpop.f32.mrb[0].mxu0
  %v2618 = vpop.f32.mrb[0].mxu0
  %v2619 = vpop.f32.mrb[0].mxu0
  %2620 = vdwg.mxu0
  %v2621 = vadd.f32 %v2514, %v2616
  %v2622 = vpack.c.bf16 %v1434, %v1434
  %s2623 = scalar_lea.vmem %s3, 704
  %v2624 = vld [vmem:[%s2623] sm:$0xf]
  %v2625 = vld [vmem:[%s2623 + $0x4] sm:$0xf]
  %v2626 = vld [vmem:[%s2623 + $0x8] sm:$0xf]
  %v2627 = vld [vmem:[%s2623 + $0xc] sm:$0xf]
  %v2628 = vld [vmem:[%s2623 + $0x10] sm:$0xf]
  %v2629 = vld [vmem:[%s2623 + $0x14] sm:$0xf]
  %v2630 = vld [vmem:[%s2623 + $0x18] sm:$0xf]
  %v2631 = vld [vmem:[%s2623 + $0x1c] sm:$0xf]
  %v2632 = vld [vmem:[%s2623 + $0x20] sm:$0xf]
  %v2633 = vld [vmem:[%s2623 + $0x24] sm:$0xf]
  %v2634 = vld [vmem:[%s2623 + $0x28] sm:$0xf]
  %v2635 = vld [vmem:[%s2623 + $0x2c] sm:$0xf]
  %v2636 = vld [vmem:[%s2623 + $0x30] sm:$0xf]
  %v2637 = vld [vmem:[%s2623 + $0x34] sm:$0xf]
  %v2638 = vld [vmem:[%s2623 + $0x38] sm:$0xf]
  %v2639 = vld [vmem:[%s2623 + $0x3c] sm:$0xf]
  %v2656 = vunpack.c.l.b16 %v2624
  %v2657 = vunpack.c.l.b16 %v2625
  %v2658 = vunpack.c.l.b16 %v2626
  %v2659 = vunpack.c.l.b16 %v2627
  %v2660 = vunpack.c.l.b16 %v2628
  %v2661 = vunpack.c.l.b16 %v2629
  %v2662 = vunpack.c.l.b16 %v2630
  %v2663 = vunpack.c.l.b16 %v2631
  %v2664 = vunpack.c.l.b16 %v2632
  %v2665 = vunpack.c.l.b16 %v2633
  %v2666 = vunpack.c.l.b16 %v2634
  %v2667 = vunpack.c.l.b16 %v2635
  %v2668 = vunpack.c.l.b16 %v2636
  %v2669 = vunpack.c.l.b16 %v2637
  %v2670 = vunpack.c.l.b16 %v2638
  %v2671 = vunpack.c.l.b16 %v2639
  %v2672 = vpack.c.b16 %v2657, %v2656
  %v2673 = vpack.c.b16 %v2659, %v2658
  %v2674 = vpack.c.b16 %v2661, %v2660
  %v2675 = vpack.c.b16 %v2663, %v2662
  %v2676 = vpack.c.b16 %v2665, %v2664
  %v2677 = vpack.c.b16 %v2667, %v2666
  %v2678 = vpack.c.b16 %v2669, %v2668
  %v2679 = vpack.c.b16 %v2671, %v2670
  %2688 = vmatprep.subr.bf16.mxu0 0
  %2689 = vmatpush1.bf16.msra.mxu0 %v2672
  %2690 = vmatprep.subr.bf16.mxu0 0
  %2691 = vmatpush1.bf16.msra.mxu0 %v2673
  %2692 = vmatprep.subr.bf16.mxu0 0
  %2693 = vmatpush1.bf16.msra.mxu0 %v2674
  %2694 = vmatprep.subr.bf16.mxu0 0
  %2695 = vmatpush1.bf16.msra.mxu0 %v2675
  %2696 = vmatprep.subr.bf16.mxu0 0
  %2697 = vmatpush1.bf16.msra.mxu0 %v2676
  %2698 = vmatprep.subr.bf16.mxu0 0
  %2699 = vmatpush1.bf16.msra.mxu0 %v2677
  %2700 = vmatprep.subr.bf16.mxu0 0
  %2701 = vmatpush1.bf16.msra.mxu0 %v2678
  %2702 = vmatprep.subr.bf16.mxu0 0
  %2703 = vmatpush1.bf16.msra.mxu0 %v2679
  %2704 = vmatprep.subr.bf16.mxu0 0
  %2705 = vmatpush1.bf16.msra.mxu0 0
  %2706 = vmatprep.subr.bf16.mxu0 0
  %2707 = vmatpush1.bf16.msra.mxu0 0
  %2708 = vmatprep.subr.bf16.mxu0 0
  %2709 = vmatpush1.bf16.msra.mxu0 0
  %2710 = vmatprep.subr.bf16.mxu0 0
  %2711 = vmatpush1.bf16.msra.mxu0 0
  %2712 = vmatprep.subr.bf16.mxu0 0
  %2713 = vmatpush1.bf16.msra.mxu0 0
  %2714 = vmatprep.subr.bf16.mxu0 0
  %2715 = vmatpush1.bf16.msra.mxu0 0
  %2716 = vmatprep.subr.bf16.mxu0 0
  %2717 = vmatpush1.bf16.msra.mxu0 0
  %2718 = vmatprep.subr.bf16.mxu0 0
  %2719 = vmatpush1.bf16.msra.mxu0 0
  %2720 = vmatprep.mubr.bf16.mxu0 0
  %2721 = vmatmul.mubr.bf16.gmra.mrb[0].mxu0 %v2622
  %v2722 = vpop.f32.mrb[0].mxu0
  %v2723 = vadd.f32 0.0, %v2722
  %v2724 = vpop.f32.mrb[0].mxu0
  %v2725 = vpop.f32.mrb[0].mxu0
  %v2726 = vpop.f32.mrb[0].mxu0
  %2727 = vdwg.mxu0
  %v2728 = vadd.f32 %v2621, %v2723
  %v2729 = vpack.c.bf16 %v1435, %v1435
  %s2730 = scalar_lea.vmem %s3, 768
  %v2731 = vld [vmem:[%s2730] sm:$0xf]
  %v2732 = vld [vmem:[%s2730 + $0x4] sm:$0xf]
  %v2733 = vld [vmem:[%s2730 + $0x8] sm:$0xf]
  %v2734 = vld [vmem:[%s2730 + $0xc] sm:$0xf]
  %v2735 = vld [vmem:[%s2730 + $0x10] sm:$0xf]
  %v2736 = vld [vmem:[%s2730 + $0x14] sm:$0xf]
  %v2737 = vld [vmem:[%s2730 + $0x18] sm:$0xf]
  %v2738 = vld [vmem:[%s2730 + $0x1c] sm:$0xf]
  %v2739 = vld [vmem:[%s2730 + $0x20] sm:$0xf]
  %v2740 = vld [vmem:[%s2730 + $0x24] sm:$0xf]
  %v2741 = vld [vmem:[%s2730 + $0x28] sm:$0xf]
  %v2742 = vld [vmem:[%s2730 + $0x2c] sm:$0xf]
  %v2743 = vld [vmem:[%s2730 + $0x30] sm:$0xf]
  %v2744 = vld [vmem:[%s2730 + $0x34] sm:$0xf]
  %v2745 = vld [vmem:[%s2730 + $0x38] sm:$0xf]
  %v2746 = vld [vmem:[%s2730 + $0x3c] sm:$0xf]
  %v2763 = vunpack.c.l.b16 %v2731
  %v2764 = vunpack.c.l.b16 %v2732
  %v2765 = vunpack.c.l.b16 %v2733
  %v2766 = vunpack.c.l.b16 %v2734
  %v2767 = vunpack.c.l.b16 %v2735
  %v2768 = vunpack.c.l.b16 %v2736
  %v2769 = vunpack.c.l.b16 %v2737
  %v2770 = vunpack.c.l.b16 %v2738
  %v2771 = vunpack.c.l.b16 %v2739
  %v2772 = vunpack.c.l.b16 %v2740
  %v2773 = vunpack.c.l.b16 %v2741
  %v2774 = vunpack.c.l.b16 %v2742
  %v2775 = vunpack.c.l.b16 %v2743
  %v2776 = vunpack.c.l.b16 %v2744
  %v2777 = vunpack.c.l.b16 %v2745
  %v2778 = vunpack.c.l.b16 %v2746
  %v2779 = vpack.c.b16 %v2764, %v2763
  %v2780 = vpack.c.b16 %v2766, %v2765
  %v2781 = vpack.c.b16 %v2768, %v2767
  %v2782 = vpack.c.b16 %v2770, %v2769
  %v2783 = vpack.c.b16 %v2772, %v2771
  %v2784 = vpack.c.b16 %v2774, %v2773
  %v2785 = vpack.c.b16 %v2776, %v2775
  %v2786 = vpack.c.b16 %v2778, %v2777
  %2795 = vmatprep.subr.bf16.mxu0 0
  %2796 = vmatpush1.bf16.msra.mxu0 %v2779
  %2797 = vmatprep.subr.bf16.mxu0 0
  %2798 = vmatpush1.bf16.msra.mxu0 %v2780
  %2799 = vmatprep.subr.bf16.mxu0 0
  %2800 = vmatpush1.bf16.msra.mxu0 %v2781
  %2801 = vmatprep.subr.bf16.mxu0 0
  %2802 = vmatpush1.bf16.msra.mxu0 %v2782
  %2803 = vmatprep.subr.bf16.mxu0 0
  %2804 = vmatpush1.bf16.msra.mxu0 %v2783
  %2805 = vmatprep.subr.bf16.mxu0 0
  %2806 = vmatpush1.bf16.msra.mxu0 %v2784
  %2807 = vmatprep.subr.bf16.mxu0 0
  %2808 = vmatpush1.bf16.msra.mxu0 %v2785
  %2809 = vmatprep.subr.bf16.mxu0 0
  %2810 = vmatpush1.bf16.msra.mxu0 %v2786
  %2811 = vmatprep.subr.bf16.mxu0 0
  %2812 = vmatpush1.bf16.msra.mxu0 0
  %2813 = vmatprep.subr.bf16.mxu0 0
  %2814 = vmatpush1.bf16.msra.mxu0 0
  %2815 = vmatprep.subr.bf16.mxu0 0
  %2816 = vmatpush1.bf16.msra.mxu0 0
  %2817 = vmatprep.subr.bf16.mxu0 0
  %2818 = vmatpush1.bf16.msra.mxu0 0
  %2819 = vmatprep.subr.bf16.mxu0 0
  %2820 = vmatpush1.bf16.msra.mxu0 0
  %2821 = vmatprep.subr.bf16.mxu0 0
  %2822 = vmatpush1.bf16.msra.mxu0 0
  %2823 = vmatprep.subr.bf16.mxu0 0
  %2824 = vmatpush1.bf16.msra.mxu0 0
  %2825 = vmatprep.subr.bf16.mxu0 0
  %2826 = vmatpush1.bf16.msra.mxu0 0
  %2827 = vmatprep.mubr.bf16.mxu0 0
  %2828 = vmatmul.mubr.bf16.gmra.mrb[0].mxu0 %v2729
  %v2829 = vpop.f32.mrb[0].mxu0
  %v2830 = vadd.f32 0.0, %v2829
  %v2831 = vpop.f32.mrb[0].mxu0
  %v2832 = vpop.f32.mrb[0].mxu0
  %v2833 = vpop.f32.mrb[0].mxu0
  %2834 = vdwg.mxu0
  %v2835 = vadd.f32 %v2728, %v2830
  %v2836 = vpack.c.bf16 %v1436, %v1436
  %s2837 = scalar_lea.vmem %s3, 832
  %v2838 = vld [vmem:[%s2837] sm:$0xf]
  %v2839 = vld [vmem:[%s2837 + $0x4] sm:$0xf]
  %v2840 = vld [vmem:[%s2837 + $0x8] sm:$0xf]
  %v2841 = vld [vmem:[%s2837 + $0xc] sm:$0xf]
  %v2842 = vld [vmem:[%s2837 + $0x10] sm:$0xf]
  %v2843 = vld [vmem:[%s2837 + $0x14] sm:$0xf]
  %v2844 = vld [vmem:[%s2837 + $0x18] sm:$0xf]
  %v2845 = vld [vmem:[%s2837 + $0x1c] sm:$0xf]
  %v2846 = vld [vmem:[%s2837 + $0x20] sm:$0xf]
  %v2847 = vld [vmem:[%s2837 + $0x24] sm:$0xf]
  %v2848 = vld [vmem:[%s2837 + $0x28] sm:$0xf]
  %v2849 = vld [vmem:[%s2837 + $0x2c] sm:$0xf]
  %v2850 = vld [vmem:[%s2837 + $0x30] sm:$0xf]
  %v2851 = vld [vmem:[%s2837 + $0x34] sm:$0xf]
  %v2852 = vld [vmem:[%s2837 + $0x38] sm:$0xf]
  %v2853 = vld [vmem:[%s2837 + $0x3c] sm:$0xf]
  %v2870 = vunpack.c.l.b16 %v2838
  %v2871 = vunpack.c.l.b16 %v2839
  %v2872 = vunpack.c.l.b16 %v2840
  %v2873 = vunpack.c.l.b16 %v2841
  %v2874 = vunpack.c.l.b16 %v2842
  %v2875 = vunpack.c.l.b16 %v2843
  %v2876 = vunpack.c.l.b16 %v2844
  %v2877 = vunpack.c.l.b16 %v2845
  %v2878 = vunpack.c.l.b16 %v2846
  %v2879 = vunpack.c.l.b16 %v2847
  %v2880 = vunpack.c.l.b16 %v2848
  %v2881 = vunpack.c.l.b16 %v2849
  %v2882 = vunpack.c.l.b16 %v2850
  %v2883 = vunpack.c.l.b16 %v2851
  %v2884 = vunpack.c.l.b16 %v2852
  %v2885 = vunpack.c.l.b16 %v2853
  %v2886 = vpack.c.b16 %v2871, %v2870
  %v2887 = vpack.c.b16 %v2873, %v2872
  %v2888 = vpack.c.b16 %v2875, %v2874
  %v2889 = vpack.c.b16 %v2877, %v2876
  %v2890 = vpack.c.b16 %v2879, %v2878
  %v2891 = vpack.c.b16 %v2881, %v2880
  %v2892 = vpack.c.b16 %v2883, %v2882
  %v2893 = vpack.c.b16 %v2885, %v2884
  %2902 = vmatprep.subr.bf16.mxu0 0
  %2903 = vmatpush1.bf16.msra.mxu0 %v2886
  %2904 = vmatprep.subr.bf16.mxu0 0
  %2905 = vmatpush1.bf16.msra.mxu0 %v2887
  %2906 = vmatprep.subr.bf16.mxu0 0
  %2907 = vmatpush1.bf16.msra.mxu0 %v2888
  %2908 = vmatprep.subr.bf16.mxu0 0
  %2909 = vmatpush1.bf16.msra.mxu0 %v2889
  %2910 = vmatprep.subr.bf16.mxu0 0
  %2911 = vmatpush1.bf16.msra.mxu0 %v2890
  %2912 = vmatprep.subr.bf16.mxu0 0
  %2913 = vmatpush1.bf16.msra.mxu0 %v2891
  %2914 = vmatprep.subr.bf16.mxu0 0
  %2915 = vmatpush1.bf16.msra.mxu0 %v2892
  %2916 = vmatprep.subr.bf16.mxu0 0
  %2917 = vmatpush1.bf16.msra.mxu0 %v2893
  %2918 = vmatprep.subr.bf16.mxu0 0
  %2919 = vmatpush1.bf16.msra.mxu0 0
  %2920 = vmatprep.subr.bf16.mxu0 0
  %2921 = vmatpush1.bf16.msra.mxu0 0
  %2922 = vmatprep.subr.bf16.mxu0 0
  %2923 = vmatpush1.bf16.msra.mxu0 0
  %2924 = vmatprep.subr.bf16.mxu0 0
  %2925 = vmatpush1.bf16.msra.mxu0 0
  %2926 = vmatprep.subr.bf16.mxu0 0
  %2927 = vmatpush1.bf16.msra.mxu0 0
  %2928 = vmatprep.subr.bf16.mxu0 0
  %2929 = vmatpush1.bf16.msra.mxu0 0
  %2930 = vmatprep.subr.bf16.mxu0 0
  %2931 = vmatpush1.bf16.msra.mxu0 0
  %2932 = vmatprep.subr.bf16.mxu0 0
  %2933 = vmatpush1.bf16.msra.mxu0 0
  %2934 = vmatprep.mubr.bf16.mxu0 0
  %2935 = vmatmul.mubr.bf16.gmra.mrb[0].mxu0 %v2836
  %v2936 = vpop.f32.mrb[0].mxu0
  %v2937 = vadd.f32 0.0, %v2936
  %v2938 = vpop.f32.mrb[0].mxu0
  %v2939 = vpop.f32.mrb[0].mxu0
  %v2940 = vpop.f32.mrb[0].mxu0
  %2941 = vdwg.mxu0
  %v2942 = vadd.f32 %v2835, %v2937
  %v2943 = vpack.c.bf16 %v1437, %v1437
  %s2944 = scalar_lea.vmem %s3, 896
  %v2945 = vld [vmem:[%s2944] sm:$0xf]
  %v2946 = vld [vmem:[%s2944 + $0x4] sm:$0xf]
  %v2947 = vld [vmem:[%s2944 + $0x8] sm:$0xf]
  %v2948 = vld [vmem:[%s2944 + $0xc] sm:$0xf]
  %v2949 = vld [vmem:[%s2944 + $0x10] sm:$0xf]
  %v2950 = vld [vmem:[%s2944 + $0x14] sm:$0xf]
  %v2951 = vld [vmem:[%s2944 + $0x18] sm:$0xf]
  %v2952 = vld [vmem:[%s2944 + $0x1c] sm:$0xf]
  %v2953 = vld [vmem:[%s2944 + $0x20] sm:$0xf]
  %v2954 = vld [vmem:[%s2944 + $0x24] sm:$0xf]
  %v2955 = vld [vmem:[%s2944 + $0x28] sm:$0xf]
  %v2956 = vld [vmem:[%s2944 + $0x2c] sm:$0xf]
  %v2957 = vld [vmem:[%s2944 + $0x30] sm:$0xf]
  %v2958 = vld [vmem:[%s2944 + $0x34] sm:$0xf]
  %v2959 = vld [vmem:[%s2944 + $0x38] sm:$0xf]
  %v2960 = vld [vmem:[%s2944 + $0x3c] sm:$0xf]
  %v2977 = vunpack.c.l.b16 %v2945
  %v2978 = vunpack.c.l.b16 %v2946
  %v2979 = vunpack.c.l.b16 %v2947
  %v2980 = vunpack.c.l.b16 %v2948
  %v2981 = vunpack.c.l.b16 %v2949
  %v2982 = vunpack.c.l.b16 %v2950
  %v2983 = vunpack.c.l.b16 %v2951
  %v2984 = vunpack.c.l.b16 %v2952
  %v2985 = vunpack.c.l.b16 %v2953
  %v2986 = vunpack.c.l.b16 %v2954
  %v2987 = vunpack.c.l.b16 %v2955
  %v2988 = vunpack.c.l.b16 %v2956
  %v2989 = vunpack.c.l.b16 %v2957
  %v2990 = vunpack.c.l.b16 %v2958
  %v2991 = vunpack.c.l.b16 %v2959
  %v2992 = vunpack.c.l.b16 %v2960
  %v2993 = vpack.c.b16 %v2978, %v2977
  %v2994 = vpack.c.b16 %v2980, %v2979
  %v2995 = vpack.c.b16 %v2982, %v2981
  %v2996 = vpack.c.b16 %v2984, %v2983
  %v2997 = vpack.c.b16 %v2986, %v2985
  %v2998 = vpack.c.b16 %v2988, %v2987
  %v2999 = vpack.c.b16 %v2990, %v2989
  %v3000 = vpack.c.b16 %v2992, %v2991
  %3009 = vmatprep.subr.bf16.mxu0 0
  %3010 = vmatpush1.bf16.msra.mxu0 %v2993
  %3011 = vmatprep.subr.bf16.mxu0 0
  %3012 = vmatpush1.bf16.msra.mxu0 %v2994
  %3013 = vmatprep.subr.bf16.mxu0 0
  %3014 = vmatpush1.bf16.msra.mxu0 %v2995
  %3015 = vmatprep.subr.bf16.mxu0 0
  %3016 = vmatpush1.bf16.msra.mxu0 %v2996
  %3017 = vmatprep.subr.bf16.mxu0 0
  %3018 = vmatpush1.bf16.msra.mxu0 %v2997
  %3019 = vmatprep.subr.bf16.mxu0 0
  %3020 = vmatpush1.bf16.msra.mxu0 %v2998
  %3021 = vmatprep.subr.bf16.mxu0 0
  %3022 = vmatpush1.bf16.msra.mxu0 %v2999
  %3023 = vmatprep.subr.bf16.mxu0 0
  %3024 = vmatpush1.bf16.msra.mxu0 %v3000
  %3025 = vmatprep.subr.bf16.mxu0 0
  %3026 = vmatpush1.bf16.msra.mxu0 0
  %3027 = vmatprep.subr.bf16.mxu0 0
  %3028 = vmatpush1.bf16.msra.mxu0 0
  %3029 = vmatprep.subr.bf16.mxu0 0
  %3030 = vmatpush1.bf16.msra.mxu0 0
  %3031 = vmatprep.subr.bf16.mxu0 0
  %3032 = vmatpush1.bf16.msra.mxu0 0
  %3033 = vmatprep.subr.bf16.mxu0 0
  %3034 = vmatpush1.bf16.msra.mxu0 0
  %3035 = vmatprep.subr.bf16.mxu0 0
  %3036 = vmatpush1.bf16.msra.mxu0 0
  %3037 = vmatprep.subr.bf16.mxu0 0
  %3038 = vmatpush1.bf16.msra.mxu0 0
  %3039 = vmatprep.subr.bf16.mxu0 0
  %3040 = vmatpush1.bf16.msra.mxu0 0
  %3041 = vmatprep.mubr.bf16.mxu0 0
  %3042 = vmatmul.mubr.bf16.gmra.mrb[0].mxu0 %v2943
  %v3043 = vpop.f32.mrb[0].mxu0
  %v3044 = vadd.f32 0.0, %v3043
  %v3045 = vpop.f32.mrb[0].mxu0
  %v3046 = vpop.f32.mrb[0].mxu0
  %v3047 = vpop.f32.mrb[0].mxu0
  %3048 = vdwg.mxu0
  %v3049 = vadd.f32 %v2942, %v3044
  %v3050 = vpack.c.bf16 %v1438, %v1438
  %s3051 = scalar_lea.vmem %s3, 960
  %v3052 = vld [vmem:[%s3051] sm:$0xf]
  %v3053 = vld [vmem:[%s3051 + $0x4] sm:$0xf]
  %v3054 = vld [vmem:[%s3051 + $0x8] sm:$0xf]
  %v3055 = vld [vmem:[%s3051 + $0xc] sm:$0xf]
  %v3056 = vld [vmem:[%s3051 + $0x10] sm:$0xf]
  %v3057 = vld [vmem:[%s3051 + $0x14] sm:$0xf]
  %v3058 = vld [vmem:[%s3051 + $0x18] sm:$0xf]
  %v3059 = vld [vmem:[%s3051 + $0x1c] sm:$0xf]
  %v3060 = vld [vmem:[%s3051 + $0x20] sm:$0xf]
  %v3061 = vld [vmem:[%s3051 + $0x24] sm:$0xf]
  %v3062 = vld [vmem:[%s3051 + $0x28] sm:$0xf]
  %v3063 = vld [vmem:[%s3051 + $0x2c] sm:$0xf]
  %v3064 = vld [vmem:[%s3051 + $0x30] sm:$0xf]
  %v3065 = vld [vmem:[%s3051 + $0x34] sm:$0xf]
  %v3066 = vld [vmem:[%s3051 + $0x38] sm:$0xf]
  %v3067 = vld [vmem:[%s3051 + $0x3c] sm:$0xf]
  %v3084 = vunpack.c.l.b16 %v3052
  %v3085 = vunpack.c.l.b16 %v3053
  %v3086 = vunpack.c.l.b16 %v3054
  %v3087 = vunpack.c.l.b16 %v3055
  %v3088 = vunpack.c.l.b16 %v3056
  %v3089 = vunpack.c.l.b16 %v3057
  %v3090 = vunpack.c.l.b16 %v3058
  %v3091 = vunpack.c.l.b16 %v3059
  %v3092 = vunpack.c.l.b16 %v3060
  %v3093 = vunpack.c.l.b16 %v3061
  %v3094 = vunpack.c.l.b16 %v3062
  %v3095 = vunpack.c.l.b16 %v3063
  %v3096 = vunpack.c.l.b16 %v3064
  %v3097 = vunpack.c.l.b16 %v3065
  %v3098 = vunpack.c.l.b16 %v3066
  %v3099 = vunpack.c.l.b16 %v3067
  %v3100 = vpack.c.b16 %v3085, %v3084
  %v3101 = vpack.c.b16 %v3087, %v3086
  %v3102 = vpack.c.b16 %v3089, %v3088
  %v3103 = vpack.c.b16 %v3091, %v3090
  %v3104 = vpack.c.b16 %v3093, %v3092
  %v3105 = vpack.c.b16 %v3095, %v3094
  %v3106 = vpack.c.b16 %v3097, %v3096
  %v3107 = vpack.c.b16 %v3099, %v3098
  %3116 = vmatprep.subr.bf16.mxu0 0
  %3117 = vmatpush1.bf16.msra.mxu0 %v3100
  %3118 = vmatprep.subr.bf16.mxu0 0
  %3119 = vmatpush1.bf16.msra.mxu0 %v3101
  %3120 = vmatprep.subr.bf16.mxu0 0
  %3121 = vmatpush1.bf16.msra.mxu0 %v3102
  %3122 = vmatprep.subr.bf16.mxu0 0
  %3123 = vmatpush1.bf16.msra.mxu0 %v3103
  %3124 = vmatprep.subr.bf16.mxu0 0
  %3125 = vmatpush1.bf16.msra.mxu0 %v3104
  %3126 = vmatprep.subr.bf16.mxu0 0
  %3127 = vmatpush1.bf16.msra.mxu0 %v3105
  %3128 = vmatprep.subr.bf16.mxu0 0
  %3129 = vmatpush1.bf16.msra.mxu0 %v3106
  %3130 = vmatprep.subr.bf16.mxu0 0
  %3131 = vmatpush1.bf16.msra.mxu0 %v3107
  %3132 = vmatprep.subr.bf16.mxu0 0
  %3133 = vmatpush1.bf16.msra.mxu0 0
  %3134 = vmatprep.subr.bf16.mxu0 0
  %3135 = vmatpush1.bf16.msra.mxu0 0
  %3136 = vmatprep.subr.bf16.mxu0 0
  %3137 = vmatpush1.bf16.msra.mxu0 0
  %3138 = vmatprep.subr.bf16.mxu0 0
  %3139 = vmatpush1.bf16.msra.mxu0 0
  %3140 = vmatprep.subr.bf16.mxu0 0
  %3141 = vmatpush1.bf16.msra.mxu0 0
  %3142 = vmatprep.subr.bf16.mxu0 0
  %3143 = vmatpush1.bf16.msra.mxu0 0
  %3144 = vmatprep.subr.bf16.mxu0 0
  %3145 = vmatpush1.bf16.msra.mxu0 0
  %3146 = vmatprep.subr.bf16.mxu0 0
  %3147 = vmatpush1.bf16.msra.mxu0 0
  %3148 = vmatprep.mubr.bf16.mxu0 0
  %3149 = vmatmul.mubr.bf16.gmra.mrb[0].mxu0 %v3050
  %v3150 = vpop.f32.mrb[0].mxu0
  %v3151 = vadd.f32 0.0, %v3150
  %v3152 = vpop.f32.mrb[0].mxu0
  %v3153 = vpop.f32.mrb[0].mxu0
  %v3154 = vpop.f32.mrb[0].mxu0
  %3155 = vdwg.mxu0
  %v3156 = vadd.f32 %v3049, %v3151
  %v3157 = vpack.c.bf16 %v1439, %v1439
  %s3158 = scalar_lea.vmem %s3, 1024
  %v3159 = vld [vmem:[%s3158] sm:$0xf]
  %v3160 = vld [vmem:[%s3158 + $0x4] sm:$0xf]
  %v3161 = vld [vmem:[%s3158 + $0x8] sm:$0xf]
  %v3162 = vld [vmem:[%s3158 + $0xc] sm:$0xf]
  %v3163 = vld [vmem:[%s3158 + $0x10] sm:$0xf]
  %v3164 = vld [vmem:[%s3158 + $0x14] sm:$0xf]
  %v3165 = vld [vmem:[%s3158 + $0x18] sm:$0xf]
  %v3166 = vld [vmem:[%s3158 + $0x1c] sm:$0xf]
  %v3167 = vld [vmem:[%s3158 + $0x20] sm:$0xf]
  %v3168 = vld [vmem:[%s3158 + $0x24] sm:$0xf]
  %v3169 = vld [vmem:[%s3158 + $0x28] sm:$0xf]
  %v3170 = vld [vmem:[%s3158 + $0x2c] sm:$0xf]
  %v3171 = vld [vmem:[%s3158 + $0x30] sm:$0xf]
  %v3172 = vld [vmem:[%s3158 + $0x34] sm:$0xf]
  %v3173 = vld [vmem:[%s3158 + $0x38] sm:$0xf]
  %v3174 = vld [vmem:[%s3158 + $0x3c] sm:$0xf]
  %v3191 = vunpack.c.l.b16 %v3159
  %v3192 = vunpack.c.l.b16 %v3160
  %v3193 = vunpack.c.l.b16 %v3161
  %v3194 = vunpack.c.l.b16 %v3162
  %v3195 = vunpack.c.l.b16 %v3163
  %v3196 = vunpack.c.l.b16 %v3164
  %v3197 = vunpack.c.l.b16 %v3165
  %v3198 = vunpack.c.l.b16 %v3166
  %v3199 = vunpack.c.l.b16 %v3167
  %v3200 = vunpack.c.l.b16 %v3168
  %v3201 = vunpack.c.l.b16 %v3169
  %v3202 = vunpack.c.l.b16 %v3170
  %v3203 = vunpack.c.l.b16 %v3171
  %v3204 = vunpack.c.l.b16 %v3172
  %v3205 = vunpack.c.l.b16 %v3173
  %v3206 = vunpack.c.l.b16 %v3174
  %v3207 = vpack.c.b16 %v3192, %v3191
  %v3208 = vpack.c.b16 %v3194, %v3193
  %v3209 = vpack.c.b16 %v3196, %v3195
  %v3210 = vpack.c.b16 %v3198, %v3197
  %v3211 = vpack.c.b16 %v3200, %v3199
  %v3212 = vpack.c.b16 %v3202, %v3201
  %v3213 = vpack.c.b16 %v3204, %v3203
  %v3214 = vpack.c.b16 %v3206, %v3205
  %3223 = vmatprep.subr.bf16.mxu0 0
  %3224 = vmatpush1.bf16.msra.mxu0 %v3207
  %3225 = vmatprep.subr.bf16.mxu0 0
  %3226 = vmatpush1.bf16.msra.mxu0 %v3208
  %3227 = vmatprep.subr.bf16.mxu0 0
  %3228 = vmatpush1.bf16.msra.mxu0 %v3209
  %3229 = vmatprep.subr.bf16.mxu0 0
  %3230 = vmatpush1.bf16.msra.mxu0 %v3210
  %3231 = vmatprep.subr.bf16.mxu0 0
  %3232 = vmatpush1.bf16.msra.mxu0 %v3211
  %3233 = vmatprep.subr.bf16.mxu0 0
  %3234 = vmatpush1.bf16.msra.mxu0 %v3212
  %3235 = vmatprep.subr.bf16.mxu0 0
  %3236 = vmatpush1.bf16.msra.mxu0 %v3213
  %3237 = vmatprep.subr.bf16.mxu0 0
  %3238 = vmatpush1.bf16.msra.mxu0 %v3214
  %3239 = vmatprep.subr.bf16.mxu0 0
  %3240 = vmatpush1.bf16.msra.mxu0 0
  %3241 = vmatprep.subr.bf16.mxu0 0
  %3242 = vmatpush1.bf16.msra.mxu0 0
  %3243 = vmatprep.subr.bf16.mxu0 0
  %3244 = vmatpush1.bf16.msra.mxu0 0
  %3245 = vmatprep.subr.bf16.mxu0 0
  %3246 = vmatpush1.bf16.msra.mxu0 0
  %3247 = vmatprep.subr.bf16.mxu0 0
  %3248 = vmatpush1.bf16.msra.mxu0 0
  %3249 = vmatprep.subr.bf16.mxu0 0
  %3250 = vmatpush1.bf16.msra.mxu0 0
  %3251 = vmatprep.subr.bf16.mxu0 0
  %3252 = vmatpush1.bf16.msra.mxu0 0
  %3253 = vmatprep.subr.bf16.mxu0 0
  %3254 = vmatpush1.bf16.msra.mxu0 0
  %3255 = vmatprep.mubr.bf16.mxu0 0
  %3256 = vmatmul.mubr.bf16.gmra.mrb[0].mxu0 %v3157
  %v3257 = vpop.f32.mrb[0].mxu0
  %v3258 = vadd.f32 0.0, %v3257
  %v3259 = vpop.f32.mrb[0].mxu0
  %v3260 = vpop.f32.mrb[0].mxu0
  %v3261 = vpop.f32.mrb[0].mxu0
  %3262 = vdwg.mxu0
  %v3263 = vadd.f32 %v3156, %v3258
  %v3264 = vpack.c.bf16 %v1440, %v1440
  %s3265 = scalar_lea.vmem %s3, 1088
  %v3266 = vld [vmem:[%s3265] sm:$0xf]
  %v3267 = vld [vmem:[%s3265 + $0x4] sm:$0xf]
  %v3268 = vld [vmem:[%s3265 + $0x8] sm:$0xf]
  %v3269 = vld [vmem:[%s3265 + $0xc] sm:$0xf]
  %v3270 = vld [vmem:[%s3265 + $0x10] sm:$0xf]
  %v3271 = vld [vmem:[%s3265 + $0x14] sm:$0xf]
  %v3272 = vld [vmem:[%s3265 + $0x18] sm:$0xf]
  %v3273 = vld [vmem:[%s3265 + $0x1c] sm:$0xf]
  %v3274 = vld [vmem:[%s3265 + $0x20] sm:$0xf]
  %v3275 = vld [vmem:[%s3265 + $0x24] sm:$0xf]
  %v3276 = vld [vmem:[%s3265 + $0x28] sm:$0xf]
  %v3277 = vld [vmem:[%s3265 + $0x2c] sm:$0xf]
  %v3278 = vld [vmem:[%s3265 + $0x30] sm:$0xf]
  %v3279 = vld [vmem:[%s3265 + $0x34] sm:$0xf]
  %v3280 = vld [vmem:[%s3265 + $0x38] sm:$0xf]
  %v3281 = vld [vmem:[%s3265 + $0x3c] sm:$0xf]
  %v3298 = vunpack.c.l.b16 %v3266
  %v3299 = vunpack.c.l.b16 %v3267
  %v3300 = vunpack.c.l.b16 %v3268
  %v3301 = vunpack.c.l.b16 %v3269
  %v3302 = vunpack.c.l.b16 %v3270
  %v3303 = vunpack.c.l.b16 %v3271
  %v3304 = vunpack.c.l.b16 %v3272
  %v3305 = vunpack.c.l.b16 %v3273
  %v3306 = vunpack.c.l.b16 %v3274
  %v3307 = vunpack.c.l.b16 %v3275
  %v3308 = vunpack.c.l.b16 %v3276
  %v3309 = vunpack.c.l.b16 %v3277
  %v3310 = vunpack.c.l.b16 %v3278
  %v3311 = vunpack.c.l.b16 %v3279
  %v3312 = vunpack.c.l.b16 %v3280
  %v3313 = vunpack.c.l.b16 %v3281
  %v3314 = vpack.c.b16 %v3299, %v3298
  %v3315 = vpack.c.b16 %v3301, %v3300
  %v3316 = vpack.c.b16 %v3303, %v3302
  %v3317 = vpack.c.b16 %v3305, %v3304
  %v3318 = vpack.c.b16 %v3307, %v3306
  %v3319 = vpack.c.b16 %v3309, %v3308
  %v3320 = vpack.c.b16 %v3311, %v3310
  %v3321 = vpack.c.b16 %v3313, %v3312
  %3330 = vmatprep.subr.bf16.mxu0 0
  %3331 = vmatpush1.bf16.msra.mxu0 %v3314
  %3332 = vmatprep.subr.bf16.mxu0 0
  %3333 = vmatpush1.bf16.msra.mxu0 %v3315
  %3334 = vmatprep.subr.bf16.mxu0 0
  %3335 = vmatpush1.bf16.msra.mxu0 %v3316
  %3336 = vmatprep.subr.bf16.mxu0 0
  %3337 = vmatpush1.bf16.msra.mxu0 %v3317
  %3338 = vmatprep.subr.bf16.mxu0 0
  %3339 = vmatpush1.bf16.msra.mxu0 %v3318
  %3340 = vmatprep.subr.bf16.mxu0 0
  %3341 = vmatpush1.bf16.msra.mxu0 %v3319
  %3342 = vmatprep.subr.bf16.mxu0 0
  %3343 = vmatpush1.bf16.msra.mxu0 %v3320
  %3344 = vmatprep.subr.bf16.mxu0 0
  %3345 = vmatpush1.bf16.msra.mxu0 %v3321
  %3346 = vmatprep.subr.bf16.mxu0 0
  %3347 = vmatpush1.bf16.msra.mxu0 0
  %3348 = vmatprep.subr.bf16.mxu0 0
  %3349 = vmatpush1.bf16.msra.mxu0 0
  %3350 = vmatprep.subr.bf16.mxu0 0
  %3351 = vmatpush1.bf16.msra.mxu0 0
  %3352 = vmatprep.subr.bf16.mxu0 0
  %3353 = vmatpush1.bf16.msra.mxu0 0
  %3354 = vmatprep.subr.bf16.mxu0 0
  %3355 = vmatpush1.bf16.msra.mxu0 0
  %3356 = vmatprep.subr.bf16.mxu0 0
  %3357 = vmatpush1.bf16.msra.mxu0 0
  %3358 = vmatprep.subr.bf16.mxu0 0
  %3359 = vmatpush1.bf16.msra.mxu0 0
  %3360 = vmatprep.subr.bf16.mxu0 0
  %3361 = vmatpush1.bf16.msra.mxu0 0
  %3362 = vmatprep.mubr.bf16.mxu0 0
  %3363 = vmatmul.mubr.bf16.gmra.mrb[0].mxu0 %v3264
  %v3364 = vpop.f32.mrb[0].mxu0
  %v3365 = vadd.f32 0.0, %v3364
  %v3366 = vpop.f32.mrb[0].mxu0
  %v3367 = vpop.f32.mrb[0].mxu0
  %v3368 = vpop.f32.mrb[0].mxu0
  %3369 = vdwg.mxu0
  %v3370 = vadd.f32 %v3263, %v3365
  %v3371 = vpack.c.bf16 %v1441, %v1441
  %s3372 = scalar_lea.vmem %s3, 1152
  %v3373 = vld [vmem:[%s3372] sm:$0xf]
  %v3374 = vld [vmem:[%s3372 + $0x4] sm:$0xf]
  %v3375 = vld [vmem:[%s3372 + $0x8] sm:$0xf]
  %v3376 = vld [vmem:[%s3372 + $0xc] sm:$0xf]
  %v3377 = vld [vmem:[%s3372 + $0x10] sm:$0xf]
  %v3378 = vld [vmem:[%s3372 + $0x14] sm:$0xf]
  %v3379 = vld [vmem:[%s3372 + $0x18] sm:$0xf]
  %v3380 = vld [vmem:[%s3372 + $0x1c] sm:$0xf]
  %v3381 = vld [vmem:[%s3372 + $0x20] sm:$0xf]
  %v3382 = vld [vmem:[%s3372 + $0x24] sm:$0xf]
  %v3383 = vld [vmem:[%s3372 + $0x28] sm:$0xf]
  %v3384 = vld [vmem:[%s3372 + $0x2c] sm:$0xf]
  %v3385 = vld [vmem:[%s3372 + $0x30] sm:$0xf]
  %v3386 = vld [vmem:[%s3372 + $0x34] sm:$0xf]
  %v3387 = vld [vmem:[%s3372 + $0x38] sm:$0xf]
  %v3388 = vld [vmem:[%s3372 + $0x3c] sm:$0xf]
  %v3405 = vunpack.c.l.b16 %v3373
  %v3406 = vunpack.c.l.b16 %v3374
  %v3407 = vunpack.c.l.b16 %v3375
  %v3408 = vunpack.c.l.b16 %v3376
  %v3409 = vunpack.c.l.b16 %v3377
  %v3410 = vunpack.c.l.b16 %v3378
  %v3411 = vunpack.c.l.b16 %v3379
  %v3412 = vunpack.c.l.b16 %v3380
  %v3413 = vunpack.c.l.b16 %v3381
  %v3414 = vunpack.c.l.b16 %v3382
  %v3415 = vunpack.c.l.b16 %v3383
  %v3416 = vunpack.c.l.b16 %v3384
  %v3417 = vunpack.c.l.b16 %v3385
  %v3418 = vunpack.c.l.b16 %v3386
  %v3419 = vunpack.c.l.b16 %v3387
  %v3420 = vunpack.c.l.b16 %v3388
  %v3421 = vpack.c.b16 %v3406, %v3405
  %v3422 = vpack.c.b16 %v3408, %v3407
  %v3423 = vpack.c.b16 %v3410, %v3409
  %v3424 = vpack.c.b16 %v3412, %v3411
  %v3425 = vpack.c.b16 %v3414, %v3413
  %v3426 = vpack.c.b16 %v3416, %v3415
  %v3427 = vpack.c.b16 %v3418, %v3417
  %v3428 = vpack.c.b16 %v3420, %v3419
  %3437 = vmatprep.subr.bf16.mxu0 0
  %3438 = vmatpush1.bf16.msra.mxu0 %v3421
  %3439 = vmatprep.subr.bf16.mxu0 0
  %3440 = vmatpush1.bf16.msra.mxu0 %v3422
  %3441 = vmatprep.subr.bf16.mxu0 0
  %3442 = vmatpush1.bf16.msra.mxu0 %v3423
  %3443 = vmatprep.subr.bf16.mxu0 0
  %3444 = vmatpush1.bf16.msra.mxu0 %v3424
  %3445 = vmatprep.subr.bf16.mxu0 0
  %3446 = vmatpush1.bf16.msra.mxu0 %v3425
  %3447 = vmatprep.subr.bf16.mxu0 0
  %3448 = vmatpush1.bf16.msra.mxu0 %v3426
  %3449 = vmatprep.subr.bf16.mxu0 0
  %3450 = vmatpush1.bf16.msra.mxu0 %v3427
  %3451 = vmatprep.subr.bf16.mxu0 0
  %3452 = vmatpush1.bf16.msra.mxu0 %v3428
  %3453 = vmatprep.subr.bf16.mxu0 0
  %3454 = vmatpush1.bf16.msra.mxu0 0
  %3455 = vmatprep.subr.bf16.mxu0 0
  %3456 = vmatpush1.bf16.msra.mxu0 0
  %3457 = vmatprep.subr.bf16.mxu0 0
  %3458 = vmatpush1.bf16.msra.mxu0 0
  %3459 = vmatprep.subr.bf16.mxu0 0
  %3460 = vmatpush1.bf16.msra.mxu0 0
  %3461 = vmatprep.subr.bf16.mxu0 0
  %3462 = vmatpush1.bf16.msra.mxu0 0
  %3463 = vmatprep.subr.bf16.mxu0 0
  %3464 = vmatpush1.bf16.msra.mxu0 0
  %3465 = vmatprep.subr.bf16.mxu0 0
  %3466 = vmatpush1.bf16.msra.mxu0 0
  %3467 = vmatprep.subr.bf16.mxu0 0
  %3468 = vmatpush1.bf16.msra.mxu0 0
  %3469 = vmatprep.mubr.bf16.mxu0 0
  %3470 = vmatmul.mubr.bf16.gmra.mrb[0].mxu0 %v3371
  %v3471 = vpop.f32.mrb[0].mxu0
  %v3472 = vadd.f32 0.0, %v3471
  %v3473 = vpop.f32.mrb[0].mxu0
  %v3474 = vpop.f32.mrb[0].mxu0
  %v3475 = vpop.f32.mrb[0].mxu0
  %3476 = vdwg.mxu0
  %v3477 = vadd.f32 %v3370, %v3472
  %v3478 = vpack.c.bf16 %v1442, %v1442
  %s3479 = scalar_lea.vmem %s3, 1216
  %v3480 = vld [vmem:[%s3479] sm:$0xf]
  %v3481 = vld [vmem:[%s3479 + $0x4] sm:$0xf]
  %v3482 = vld [vmem:[%s3479 + $0x8] sm:$0xf]
  %v3483 = vld [vmem:[%s3479 + $0xc] sm:$0xf]
  %v3484 = vld [vmem:[%s3479 + $0x10] sm:$0xf]
  %v3485 = vld [vmem:[%s3479 + $0x14] sm:$0xf]
  %v3486 = vld [vmem:[%s3479 + $0x18] sm:$0xf]
  %v3487 = vld [vmem:[%s3479 + $0x1c] sm:$0xf]
  %v3488 = vld [vmem:[%s3479 + $0x20] sm:$0xf]
  %v3489 = vld [vmem:[%s3479 + $0x24] sm:$0xf]
  %v3490 = vld [vmem:[%s3479 + $0x28] sm:$0xf]
  %v3491 = vld [vmem:[%s3479 + $0x2c] sm:$0xf]
  %v3492 = vld [vmem:[%s3479 + $0x30] sm:$0xf]
  %v3493 = vld [vmem:[%s3479 + $0x34] sm:$0xf]
  %v3494 = vld [vmem:[%s3479 + $0x38] sm:$0xf]
  %v3495 = vld [vmem:[%s3479 + $0x3c] sm:$0xf]
  %v3512 = vunpack.c.l.b16 %v3480
  %v3513 = vunpack.c.l.b16 %v3481
  %v3514 = vunpack.c.l.b16 %v3482
  %v3515 = vunpack.c.l.b16 %v3483
  %v3516 = vunpack.c.l.b16 %v3484
  %v3517 = vunpack.c.l.b16 %v3485
  %v3518 = vunpack.c.l.b16 %v3486
  %v3519 = vunpack.c.l.b16 %v3487
  %v3520 = vunpack.c.l.b16 %v3488
  %v3521 = vunpack.c.l.b16 %v3489
  %v3522 = vunpack.c.l.b16 %v3490
  %v3523 = vunpack.c.l.b16 %v3491
  %v3524 = vunpack.c.l.b16 %v3492
  %v3525 = vunpack.c.l.b16 %v3493
  %v3526 = vunpack.c.l.b16 %v3494
  %v3527 = vunpack.c.l.b16 %v3495
  %v3528 = vpack.c.b16 %v3513, %v3512
  %v3529 = vpack.c.b16 %v3515, %v3514
  %v3530 = vpack.c.b16 %v3517, %v3516
  %v3531 = vpack.c.b16 %v3519, %v3518
  %v3532 = vpack.c.b16 %v3521, %v3520
  %v3533 = vpack.c.b16 %v3523, %v3522
  %v3534 = vpack.c.b16 %v3525, %v3524
  %v3535 = vpack.c.b16 %v3527, %v3526
  %3544 = vmatprep.subr.bf16.mxu0 0
  %3545 = vmatpush1.bf16.msra.mxu0 %v3528
  %3546 = vmatprep.subr.bf16.mxu0 0
  %3547 = vmatpush1.bf16.msra.mxu0 %v3529
  %3548 = vmatprep.subr.bf16.mxu0 0
  %3549 = vmatpush1.bf16.msra.mxu0 %v3530
  %3550 = vmatprep.subr.bf16.mxu0 0
  %3551 = vmatpush1.bf16.msra.mxu0 %v3531
  %3552 = vmatprep.subr.bf16.mxu0 0
  %3553 = vmatpush1.bf16.msra.mxu0 %v3532
  %3554 = vmatprep.subr.bf16.mxu0 0
  %3555 = vmatpush1.bf16.msra.mxu0 %v3533
  %3556 = vmatprep.subr.bf16.mxu0 0
  %3557 = vmatpush1.bf16.msra.mxu0 %v3534
  %3558 = vmatprep.subr.bf16.mxu0 0
  %3559 = vmatpush1.bf16.msra.mxu0 %v3535
  %3560 = vmatprep.subr.bf16.mxu0 0
  %3561 = vmatpush1.bf16.msra.mxu0 0
  %3562 = vmatprep.subr.bf16.mxu0 0
  %3563 = vmatpush1.bf16.msra.mxu0 0
  %3564 = vmatprep.subr.bf16.mxu0 0
  %3565 = vmatpush1.bf16.msra.mxu0 0
  %3566 = vmatprep.subr.bf16.mxu0 0
  %3567 = vmatpush1.bf16.msra.mxu0 0
  %3568 = vmatprep.subr.bf16.mxu0 0
  %3569 = vmatpush1.bf16.msra.mxu0 0
  %3570 = vmatprep.subr.bf16.mxu0 0
  %3571 = vmatpush1.bf16.msra.mxu0 0
  %3572 = vmatprep.subr.bf16.mxu0 0
  %3573 = vmatpush1.bf16.msra.mxu0 0
  %3574 = vmatprep.subr.bf16.mxu0 0
  %3575 = vmatpush1.bf16.msra.mxu0 0
  %3576 = vmatprep.mubr.bf16.mxu0 0
  %3577 = vmatmul.mubr.bf16.gmra.mrb[0].mxu0 %v3478
  %v3578 = vpop.f32.mrb[0].mxu0
  %v3579 = vadd.f32 0.0, %v3578
  %v3580 = vpop.f32.mrb[0].mxu0
  %v3581 = vpop.f32.mrb[0].mxu0
  %v3582 = vpop.f32.mrb[0].mxu0
  %3583 = vdwg.mxu0
  %v3584 = vadd.f32 %v3477, %v3579
  %v3585 = vpack.c.bf16 %v1443, %v1443
  %s3586 = scalar_lea.vmem %s3, 1280
  %v3587 = vld [vmem:[%s3586] sm:$0xf]
  %v3588 = vld [vmem:[%s3586 + $0x4] sm:$0xf]
  %v3589 = vld [vmem:[%s3586 + $0x8] sm:$0xf]
  %v3590 = vld [vmem:[%s3586 + $0xc] sm:$0xf]
  %v3591 = vld [vmem:[%s3586 + $0x10] sm:$0xf]
  %v3592 = vld [vmem:[%s3586 + $0x14] sm:$0xf]
  %v3593 = vld [vmem:[%s3586 + $0x18] sm:$0xf]
  %v3594 = vld [vmem:[%s3586 + $0x1c] sm:$0xf]
  %v3595 = vld [vmem:[%s3586 + $0x20] sm:$0xf]
  %v3596 = vld [vmem:[%s3586 + $0x24] sm:$0xf]
  %v3597 = vld [vmem:[%s3586 + $0x28] sm:$0xf]
  %v3598 = vld [vmem:[%s3586 + $0x2c] sm:$0xf]
  %v3599 = vld [vmem:[%s3586 + $0x30] sm:$0xf]
  %v3600 = vld [vmem:[%s3586 + $0x34] sm:$0xf]
  %v3601 = vld [vmem:[%s3586 + $0x38] sm:$0xf]
  %v3602 = vld [vmem:[%s3586 + $0x3c] sm:$0xf]
  %v3619 = vunpack.c.l.b16 %v3587
  %v3620 = vunpack.c.l.b16 %v3588
  %v3621 = vunpack.c.l.b16 %v3589
  %v3622 = vunpack.c.l.b16 %v3590
  %v3623 = vunpack.c.l.b16 %v3591
  %v3624 = vunpack.c.l.b16 %v3592
  %v3625 = vunpack.c.l.b16 %v3593
  %v3626 = vunpack.c.l.b16 %v3594
  %v3627 = vunpack.c.l.b16 %v3595
  %v3628 = vunpack.c.l.b16 %v3596
  %v3629 = vunpack.c.l.b16 %v3597
  %v3630 = vunpack.c.l.b16 %v3598
  %v3631 = vunpack.c.l.b16 %v3599
  %v3632 = vunpack.c.l.b16 %v3600
  %v3633 = vunpack.c.l.b16 %v3601
  %v3634 = vunpack.c.l.b16 %v3602
  %v3635 = vpack.c.b16 %v3620, %v3619
  %v3636 = vpack.c.b16 %v3622, %v3621
  %v3637 = vpack.c.b16 %v3624, %v3623
  %v3638 = vpack.c.b16 %v3626, %v3625
  %v3639 = vpack.c.b16 %v3628, %v3627
  %v3640 = vpack.c.b16 %v3630, %v3629
  %v3641 = vpack.c.b16 %v3632, %v3631
  %v3642 = vpack.c.b16 %v3634, %v3633
  %3651 = vmatprep.subr.bf16.mxu0 0
  %3652 = vmatpush1.bf16.msra.mxu0 %v3635
  %3653 = vmatprep.subr.bf16.mxu0 0
  %3654 = vmatpush1.bf16.msra.mxu0 %v3636
  %3655 = vmatprep.subr.bf16.mxu0 0
  %3656 = vmatpush1.bf16.msra.mxu0 %v3637
  %3657 = vmatprep.subr.bf16.mxu0 0
  %3658 = vmatpush1.bf16.msra.mxu0 %v3638
  %3659 = vmatprep.subr.bf16.mxu0 0
  %3660 = vmatpush1.bf16.msra.mxu0 %v3639
  %3661 = vmatprep.subr.bf16.mxu0 0
  %3662 = vmatpush1.bf16.msra.mxu0 %v3640
  %3663 = vmatprep.subr.bf16.mxu0 0
  %3664 = vmatpush1.bf16.msra.mxu0 %v3641
  %3665 = vmatprep.subr.bf16.mxu0 0
  %3666 = vmatpush1.bf16.msra.mxu0 %v3642
  %3667 = vmatprep.subr.bf16.mxu0 0
  %3668 = vmatpush1.bf16.msra.mxu0 0
  %3669 = vmatprep.subr.bf16.mxu0 0
  %3670 = vmatpush1.bf16.msra.mxu0 0
  %3671 = vmatprep.subr.bf16.mxu0 0
  %3672 = vmatpush1.bf16.msra.mxu0 0
  %3673 = vmatprep.subr.bf16.mxu0 0
  %3674 = vmatpush1.bf16.msra.mxu0 0
  %3675 = vmatprep.subr.bf16.mxu0 0
  %3676 = vmatpush1.bf16.msra.mxu0 0
  %3677 = vmatprep.subr.bf16.mxu0 0
  %3678 = vmatpush1.bf16.msra.mxu0 0
  %3679 = vmatprep.subr.bf16.mxu0 0
  %3680 = vmatpush1.bf16.msra.mxu0 0
  %3681 = vmatprep.subr.bf16.mxu0 0
  %3682 = vmatpush1.bf16.msra.mxu0 0
  %3683 = vmatprep.mubr.bf16.mxu0 0
  %3684 = vmatmul.mubr.bf16.gmra.mrb[0].mxu0 %v3585
  %v3685 = vpop.f32.mrb[0].mxu0
  %v3686 = vadd.f32 0.0, %v3685
  %v3687 = vpop.f32.mrb[0].mxu0
  %v3688 = vpop.f32.mrb[0].mxu0
  %v3689 = vpop.f32.mrb[0].mxu0
  %3690 = vdwg.mxu0
  %v3691 = vadd.f32 %v3584, %v3686
  %v3692 = vpack.c.bf16 %v1444, %v1444
  %s3693 = scalar_lea.vmem %s3, 1344
  %v3694 = vld [vmem:[%s3693] sm:$0xf]
  %v3695 = vld [vmem:[%s3693 + $0x4] sm:$0xf]
  %v3696 = vld [vmem:[%s3693 + $0x8] sm:$0xf]
  %v3697 = vld [vmem:[%s3693 + $0xc] sm:$0xf]
  %v3698 = vld [vmem:[%s3693 + $0x10] sm:$0xf]
  %v3699 = vld [vmem:[%s3693 + $0x14] sm:$0xf]
  %v3700 = vld [vmem:[%s3693 + $0x18] sm:$0xf]
  %v3701 = vld [vmem:[%s3693 + $0x1c] sm:$0xf]
  %v3702 = vld [vmem:[%s3693 + $0x20] sm:$0xf]
  %v3703 = vld [vmem:[%s3693 + $0x24] sm:$0xf]
  %v3704 = vld [vmem:[%s3693 + $0x28] sm:$0xf]
  %v3705 = vld [vmem:[%s3693 + $0x2c] sm:$0xf]
  %v3706 = vld [vmem:[%s3693 + $0x30] sm:$0xf]
  %v3707 = vld [vmem:[%s3693 + $0x34] sm:$0xf]
  %v3708 = vld [vmem:[%s3693 + $0x38] sm:$0xf]
  %v3709 = vld [vmem:[%s3693 + $0x3c] sm:$0xf]
  %v3726 = vunpack.c.l.b16 %v3694
  %v3727 = vunpack.c.l.b16 %v3695
  %v3728 = vunpack.c.l.b16 %v3696
  %v3729 = vunpack.c.l.b16 %v3697
  %v3730 = vunpack.c.l.b16 %v3698
  %v3731 = vunpack.c.l.b16 %v3699
  %v3732 = vunpack.c.l.b16 %v3700
  %v3733 = vunpack.c.l.b16 %v3701
  %v3734 = vunpack.c.l.b16 %v3702
  %v3735 = vunpack.c.l.b16 %v3703
  %v3736 = vunpack.c.l.b16 %v3704
  %v3737 = vunpack.c.l.b16 %v3705
  %v3738 = vunpack.c.l.b16 %v3706
  %v3739 = vunpack.c.l.b16 %v3707
  %v3740 = vunpack.c.l.b16 %v3708
  %v3741 = vunpack.c.l.b16 %v3709
  %v3742 = vpack.c.b16 %v3727, %v3726
  %v3743 = vpack.c.b16 %v3729, %v3728
  %v3744 = vpack.c.b16 %v3731, %v3730
  %v3745 = vpack.c.b16 %v3733, %v3732
  %v3746 = vpack.c.b16 %v3735, %v3734
  %v3747 = vpack.c.b16 %v3737, %v3736
  %v3748 = vpack.c.b16 %v3739, %v3738
  %v3749 = vpack.c.b16 %v3741, %v3740
  %3758 = vmatprep.subr.bf16.mxu0 0
  %3759 = vmatpush1.bf16.msra.mxu0 %v3742
  %3760 = vmatprep.subr.bf16.mxu0 0
  %3761 = vmatpush1.bf16.msra.mxu0 %v3743
  %3762 = vmatprep.subr.bf16.mxu0 0
  %3763 = vmatpush1.bf16.msra.mxu0 %v3744
  %3764 = vmatprep.subr.bf16.mxu0 0
  %3765 = vmatpush1.bf16.msra.mxu0 %v3745
  %3766 = vmatprep.subr.bf16.mxu0 0
  %3767 = vmatpush1.bf16.msra.mxu0 %v3746
  %3768 = vmatprep.subr.bf16.mxu0 0
  %3769 = vmatpush1.bf16.msra.mxu0 %v3747
  %3770 = vmatprep.subr.bf16.mxu0 0
  %3771 = vmatpush1.bf16.msra.mxu0 %v3748
  %3772 = vmatprep.subr.bf16.mxu0 0
  %3773 = vmatpush1.bf16.msra.mxu0 %v3749
  %3774 = vmatprep.subr.bf16.mxu0 0
  %3775 = vmatpush1.bf16.msra.mxu0 0
  %3776 = vmatprep.subr.bf16.mxu0 0
  %3777 = vmatpush1.bf16.msra.mxu0 0
  %3778 = vmatprep.subr.bf16.mxu0 0
  %3779 = vmatpush1.bf16.msra.mxu0 0
  %3780 = vmatprep.subr.bf16.mxu0 0
  %3781 = vmatpush1.bf16.msra.mxu0 0
  %3782 = vmatprep.subr.bf16.mxu0 0
  %3783 = vmatpush1.bf16.msra.mxu0 0
  %3784 = vmatprep.subr.bf16.mxu0 0
  %3785 = vmatpush1.bf16.msra.mxu0 0
  %3786 = vmatprep.subr.bf16.mxu0 0
  %3787 = vmatpush1.bf16.msra.mxu0 0
  %3788 = vmatprep.subr.bf16.mxu0 0
  %3789 = vmatpush1.bf16.msra.mxu0 0
  %3790 = vmatprep.mubr.bf16.mxu0 0
  %3791 = vmatmul.mubr.bf16.gmra.mrb[0].mxu0 %v3692
  %v3792 = vpop.f32.mrb[0].mxu0
  %v3793 = vadd.f32 0.0, %v3792
  %v3794 = vpop.f32.mrb[0].mxu0
  %v3795 = vpop.f32.mrb[0].mxu0
  %v3796 = vpop.f32.mrb[0].mxu0
  %3797 = vdwg.mxu0
  %v3798 = vadd.f32 %v3691, %v3793
  %v3799 = vpack.c.bf16 %v1445, %v1445
  %s3800 = scalar_lea.vmem %s3, 1408
  %v3801 = vld [vmem:[%s3800] sm:$0xf]
  %v3802 = vld [vmem:[%s3800 + $0x4] sm:$0xf]
  %v3803 = vld [vmem:[%s3800 + $0x8] sm:$0xf]
  %v3804 = vld [vmem:[%s3800 + $0xc] sm:$0xf]
  %v3805 = vld [vmem:[%s3800 + $0x10] sm:$0xf]
  %v3806 = vld [vmem:[%s3800 + $0x14] sm:$0xf]
  %v3807 = vld [vmem:[%s3800 + $0x18] sm:$0xf]
  %v3808 = vld [vmem:[%s3800 + $0x1c] sm:$0xf]
  %v3809 = vld [vmem:[%s3800 + $0x20] sm:$0xf]
  %v3810 = vld [vmem:[%s3800 + $0x24] sm:$0xf]
  %v3811 = vld [vmem:[%s3800 + $0x28] sm:$0xf]
  %v3812 = vld [vmem:[%s3800 + $0x2c] sm:$0xf]
  %v3813 = vld [vmem:[%s3800 + $0x30] sm:$0xf]
  %v3814 = vld [vmem:[%s3800 + $0x34] sm:$0xf]
  %v3815 = vld [vmem:[%s3800 + $0x38] sm:$0xf]
  %v3816 = vld [vmem:[%s3800 + $0x3c] sm:$0xf]
  %v3833 = vunpack.c.l.b16 %v3801
  %v3834 = vunpack.c.l.b16 %v3802
  %v3835 = vunpack.c.l.b16 %v3803
  %v3836 = vunpack.c.l.b16 %v3804
  %v3837 = vunpack.c.l.b16 %v3805
  %v3838 = vunpack.c.l.b16 %v3806
  %v3839 = vunpack.c.l.b16 %v3807
  %v3840 = vunpack.c.l.b16 %v3808
  %v3841 = vunpack.c.l.b16 %v3809
  %v3842 = vunpack.c.l.b16 %v3810
  %v3843 = vunpack.c.l.b16 %v3811
  %v3844 = vunpack.c.l.b16 %v3812
  %v3845 = vunpack.c.l.b16 %v3813
  %v3846 = vunpack.c.l.b16 %v3814
  %v3847 = vunpack.c.l.b16 %v3815
  %v3848 = vunpack.c.l.b16 %v3816
  %v3849 = vpack.c.b16 %v3834, %v3833
  %v3850 = vpack.c.b16 %v3836, %v3835
  %v3851 = vpack.c.b16 %v3838, %v3837
  %v3852 = vpack.c.b16 %v3840, %v3839
  %v3853 = vpack.c.b16 %v3842, %v3841
  %v3854 = vpack.c.b16 %v3844, %v3843
  %v3855 = vpack.c.b16 %v3846, %v3845
  %v3856 = vpack.c.b16 %v3848, %v3847
  %3865 = vmatprep.subr.bf16.mxu0 0
  %3866 = vmatpush1.bf16.msra.mxu0 %v3849
  %3867 = vmatprep.subr.bf16.mxu0 0
  %3868 = vmatpush1.bf16.msra.mxu0 %v3850
  %3869 = vmatprep.subr.bf16.mxu0 0
  %3870 = vmatpush1.bf16.msra.mxu0 %v3851
  %3871 = vmatprep.subr.bf16.mxu0 0
  %3872 = vmatpush1.bf16.msra.mxu0 %v3852
  %3873 = vmatprep.subr.bf16.mxu0 0
  %3874 = vmatpush1.bf16.msra.mxu0 %v3853
  %3875 = vmatprep.subr.bf16.mxu0 0
  %3876 = vmatpush1.bf16.msra.mxu0 %v3854
  %3877 = vmatprep.subr.bf16.mxu0 0
  %3878 = vmatpush1.bf16.msra.mxu0 %v3855
  %3879 = vmatprep.subr.bf16.mxu0 0
  %3880 = vmatpush1.bf16.msra.mxu0 %v3856
  %3881 = vmatprep.subr.bf16.mxu0 0
  %3882 = vmatpush1.bf16.msra.mxu0 0
  %3883 = vmatprep.subr.bf16.mxu0 0
  %3884 = vmatpush1.bf16.msra.mxu0 0
  %3885 = vmatprep.subr.bf16.mxu0 0
  %3886 = vmatpush1.bf16.msra.mxu0 0
  %3887 = vmatprep.subr.bf16.mxu0 0
  %3888 = vmatpush1.bf16.msra.mxu0 0
  %3889 = vmatprep.subr.bf16.mxu0 0
  %3890 = vmatpush1.bf16.msra.mxu0 0
  %3891 = vmatprep.subr.bf16.mxu0 0
  %3892 = vmatpush1.bf16.msra.mxu0 0
  %3893 = vmatprep.subr.bf16.mxu0 0
  %3894 = vmatpush1.bf16.msra.mxu0 0
  %3895 = vmatprep.subr.bf16.mxu0 0
  %3896 = vmatpush1.bf16.msra.mxu0 0
  %3897 = vmatprep.mubr.bf16.mxu0 0
  %3898 = vmatmul.mubr.bf16.gmra.mrb[0].mxu0 %v3799
  %v3899 = vpop.f32.mrb[0].mxu0
  %v3900 = vadd.f32 0.0, %v3899
  %v3901 = vpop.f32.mrb[0].mxu0
  %v3902 = vpop.f32.mrb[0].mxu0
  %v3903 = vpop.f32.mrb[0].mxu0
  %3904 = vdwg.mxu0
  %v3905 = vadd.f32 %v3798, %v3900
  %v3906 = vpack.c.bf16 %v1446, %v1446
  %s3907 = scalar_lea.vmem %s3, 1472
  %v3908 = vld [vmem:[%s3907] sm:$0xf]
  %v3909 = vld [vmem:[%s3907 + $0x4] sm:$0xf]
  %v3910 = vld [vmem:[%s3907 + $0x8] sm:$0xf]
  %v3911 = vld [vmem:[%s3907 + $0xc] sm:$0xf]
  %v3912 = vld [vmem:[%s3907 + $0x10] sm:$0xf]
  %v3913 = vld [vmem:[%s3907 + $0x14] sm:$0xf]
  %v3914 = vld [vmem:[%s3907 + $0x18] sm:$0xf]
  %v3915 = vld [vmem:[%s3907 + $0x1c] sm:$0xf]
  %v3916 = vld [vmem:[%s3907 + $0x20] sm:$0xf]
  %v3917 = vld [vmem:[%s3907 + $0x24] sm:$0xf]
  %v3918 = vld [vmem:[%s3907 + $0x28] sm:$0xf]
  %v3919 = vld [vmem:[%s3907 + $0x2c] sm:$0xf]
  %v3920 = vld [vmem:[%s3907 + $0x30] sm:$0xf]
  %v3921 = vld [vmem:[%s3907 + $0x34] sm:$0xf]
  %v3922 = vld [vmem:[%s3907 + $0x38] sm:$0xf]
  %v3923 = vld [vmem:[%s3907 + $0x3c] sm:$0xf]
  %v3940 = vunpack.c.l.b16 %v3908
  %v3941 = vunpack.c.l.b16 %v3909
  %v3942 = vunpack.c.l.b16 %v3910
  %v3943 = vunpack.c.l.b16 %v3911
  %v3944 = vunpack.c.l.b16 %v3912
  %v3945 = vunpack.c.l.b16 %v3913
  %v3946 = vunpack.c.l.b16 %v3914
  %v3947 = vunpack.c.l.b16 %v3915
  %v3948 = vunpack.c.l.b16 %v3916
  %v3949 = vunpack.c.l.b16 %v3917
  %v3950 = vunpack.c.l.b16 %v3918
  %v3951 = vunpack.c.l.b16 %v3919
  %v3952 = vunpack.c.l.b16 %v3920
  %v3953 = vunpack.c.l.b16 %v3921
  %v3954 = vunpack.c.l.b16 %v3922
  %v3955 = vunpack.c.l.b16 %v3923
  %v3956 = vpack.c.b16 %v3941, %v3940
  %v3957 = vpack.c.b16 %v3943, %v3942
  %v3958 = vpack.c.b16 %v3945, %v3944
  %v3959 = vpack.c.b16 %v3947, %v3946
  %v3960 = vpack.c.b16 %v3949, %v3948
  %v3961 = vpack.c.b16 %v3951, %v3950
  %v3962 = vpack.c.b16 %v3953, %v3952
  %v3963 = vpack.c.b16 %v3955, %v3954
  %3972 = vmatprep.subr.bf16.mxu0 0
  %3973 = vmatpush1.bf16.msra.mxu0 %v3956
  %3974 = vmatprep.subr.bf16.mxu0 0
  %3975 = vmatpush1.bf16.msra.mxu0 %v3957
  %3976 = vmatprep.subr.bf16.mxu0 0
  %3977 = vmatpush1.bf16.msra.mxu0 %v3958
  %3978 = vmatprep.subr.bf16.mxu0 0
  %3979 = vmatpush1.bf16.msra.mxu0 %v3959
  %3980 = vmatprep.subr.bf16.mxu0 0
  %3981 = vmatpush1.bf16.msra.mxu0 %v3960
  %3982 = vmatprep.subr.bf16.mxu0 0
  %3983 = vmatpush1.bf16.msra.mxu0 %v3961
  %3984 = vmatprep.subr.bf16.mxu0 0
  %3985 = vmatpush1.bf16.msra.mxu0 %v3962
  %3986 = vmatprep.subr.bf16.mxu0 0
  %3987 = vmatpush1.bf16.msra.mxu0 %v3963
  %3988 = vmatprep.subr.bf16.mxu0 0
  %3989 = vmatpush1.bf16.msra.mxu0 0
  %3990 = vmatprep.subr.bf16.mxu0 0
  %3991 = vmatpush1.bf16.msra.mxu0 0
  %3992 = vmatprep.subr.bf16.mxu0 0
  %3993 = vmatpush1.bf16.msra.mxu0 0
  %3994 = vmatprep.subr.bf16.mxu0 0
  %3995 = vmatpush1.bf16.msra.mxu0 0
  %3996 = vmatprep.subr.bf16.mxu0 0
  %3997 = vmatpush1.bf16.msra.mxu0 0
  %3998 = vmatprep.subr.bf16.mxu0 0
  %3999 = vmatpush1.bf16.msra.mxu0 0
  %4000 = vmatprep.subr.bf16.mxu0 0
  %4001 = vmatpush1.bf16.msra.mxu0 0
  %4002 = vmatprep.subr.bf16.mxu0 0
  %4003 = vmatpush1.bf16.msra.mxu0 0
  %4004 = vmatprep.mubr.bf16.mxu0 0
  %4005 = vmatmul.mubr.bf16.gmra.mrb[0].mxu0 %v3906
  %v4006 = vpop.f32.mrb[0].mxu0
  %v4007 = vadd.f32 0.0, %v4006
  %v4008 = vpop.f32.mrb[0].mxu0
  %v4009 = vpop.f32.mrb[0].mxu0
  %v4010 = vpop.f32.mrb[0].mxu0
  %4011 = vdwg.mxu0
  %v4012 = vadd.f32 %v3905, %v4007
  %v4013 = vpack.c.bf16 %v1447, %v1447
  %s4014 = scalar_lea.vmem %s3, 1536
  %v4015 = vld [vmem:[%s4014] sm:$0xf]
  %v4016 = vld [vmem:[%s4014 + $0x4] sm:$0xf]
  %v4017 = vld [vmem:[%s4014 + $0x8] sm:$0xf]
  %v4018 = vld [vmem:[%s4014 + $0xc] sm:$0xf]
  %v4019 = vld [vmem:[%s4014 + $0x10] sm:$0xf]
  %v4020 = vld [vmem:[%s4014 + $0x14] sm:$0xf]
  %v4021 = vld [vmem:[%s4014 + $0x18] sm:$0xf]
  %v4022 = vld [vmem:[%s4014 + $0x1c] sm:$0xf]
  %v4023 = vld [vmem:[%s4014 + $0x20] sm:$0xf]
  %v4024 = vld [vmem:[%s4014 + $0x24] sm:$0xf]
  %v4025 = vld [vmem:[%s4014 + $0x28] sm:$0xf]
  %v4026 = vld [vmem:[%s4014 + $0x2c] sm:$0xf]
  %v4027 = vld [vmem:[%s4014 + $0x30] sm:$0xf]
  %v4028 = vld [vmem:[%s4014 + $0x34] sm:$0xf]
  %v4029 = vld [vmem:[%s4014 + $0x38] sm:$0xf]
  %v4030 = vld [vmem:[%s4014 + $0x3c] sm:$0xf]
  %v4047 = vunpack.c.l.b16 %v4015
  %v4048 = vunpack.c.l.b16 %v4016
  %v4049 = vunpack.c.l.b16 %v4017
  %v4050 = vunpack.c.l.b16 %v4018
  %v4051 = vunpack.c.l.b16 %v4019
  %v4052 = vunpack.c.l.b16 %v4020
  %v4053 = vunpack.c.l.b16 %v4021
  %v4054 = vunpack.c.l.b16 %v4022
  %v4055 = vunpack.c.l.b16 %v4023
  %v4056 = vunpack.c.l.b16 %v4024
  %v4057 = vunpack.c.l.b16 %v4025
  %v4058 = vunpack.c.l.b16 %v4026
  %v4059 = vunpack.c.l.b16 %v4027
  %v4060 = vunpack.c.l.b16 %v4028
  %v4061 = vunpack.c.l.b16 %v4029
  %v4062 = vunpack.c.l.b16 %v4030
  %v4063 = vpack.c.b16 %v4048, %v4047
  %v4064 = vpack.c.b16 %v4050, %v4049
  %v4065 = vpack.c.b16 %v4052, %v4051
  %v4066 = vpack.c.b16 %v4054, %v4053
  %v4067 = vpack.c.b16 %v4056, %v4055
  %v4068 = vpack.c.b16 %v4058, %v4057
  %v4069 = vpack.c.b16 %v4060, %v4059
  %v4070 = vpack.c.b16 %v4062, %v4061
  %4079 = vmatprep.subr.bf16.mxu0 0
  %4080 = vmatpush1.bf16.msra.mxu0 %v4063
  %4081 = vmatprep.subr.bf16.mxu0 0
  %4082 = vmatpush1.bf16.msra.mxu0 %v4064
  %4083 = vmatprep.subr.bf16.mxu0 0
  %4084 = vmatpush1.bf16.msra.mxu0 %v4065
  %4085 = vmatprep.subr.bf16.mxu0 0
  %4086 = vmatpush1.bf16.msra.mxu0 %v4066
  %4087 = vmatprep.subr.bf16.mxu0 0
  %4088 = vmatpush1.bf16.msra.mxu0 %v4067
  %4089 = vmatprep.subr.bf16.mxu0 0
  %4090 = vmatpush1.bf16.msra.mxu0 %v4068
  %4091 = vmatprep.subr.bf16.mxu0 0
  %4092 = vmatpush1.bf16.msra.mxu0 %v4069
  %4093 = vmatprep.subr.bf16.mxu0 0
  %4094 = vmatpush1.bf16.msra.mxu0 %v4070
  %4095 = vmatprep.subr.bf16.mxu0 0
  %4096 = vmatpush1.bf16.msra.mxu0 0
  %4097 = vmatprep.subr.bf16.mxu0 0
  %4098 = vmatpush1.bf16.msra.mxu0 0
  %4099 = vmatprep.subr.bf16.mxu0 0
  %4100 = vmatpush1.bf16.msra.mxu0 0
  %4101 = vmatprep.subr.bf16.mxu0 0
  %4102 = vmatpush1.bf16.msra.mxu0 0
  %4103 = vmatprep.subr.bf16.mxu0 0
  %4104 = vmatpush1.bf16.msra.mxu0 0
  %4105 = vmatprep.subr.bf16.mxu0 0
  %4106 = vmatpush1.bf16.msra.mxu0 0
  %4107 = vmatprep.subr.bf16.mxu0 0
  %4108 = vmatpush1.bf16.msra.mxu0 0
  %4109 = vmatprep.subr.bf16.mxu0 0
  %4110 = vmatpush1.bf16.msra.mxu0 0
  %4111 = vmatprep.mubr.bf16.mxu0 0
  %4112 = vmatmul.mubr.bf16.gmra.mrb[0].mxu0 %v4013
  %v4113 = vpop.f32.mrb[0].mxu0
  %v4114 = vadd.f32 0.0, %v4113
  %v4115 = vpop.f32.mrb[0].mxu0
  %v4116 = vpop.f32.mrb[0].mxu0
  %v4117 = vpop.f32.mrb[0].mxu0
  %4118 = vdwg.mxu0
  %v4119 = vadd.f32 %v4012, %v4114
  %v4120 = vld [vmem:[%s4] sm:$0x1]
  %v4122 = vlaneseq
  %v4123 = vshrl.u32 %v4122, 7
  %v4124 = vsub.s32 0, %v4123
  %v4125 = vrot.slane %v4120, %v4124
  %v4127 = vadd.f32 %v4119, %v4125
  %v4128 = vmax.f32 %v4127, 0.0
  %v4129 = vpack.c.bf16 %v4128, %v4128
  %v4130 = vld [vmem:[%s5] sm:$0xf]
  %v4131 = vld [vmem:[%s5 + $0x4] sm:$0xf]
  %v4132 = vld [vmem:[%s5 + $0x8] sm:$0xf]
  %v4133 = vld [vmem:[%s5 + $0xc] sm:$0xf]
  %v4134 = vld [vmem:[%s5 + $0x10] sm:$0xf]
  %v4135 = vld [vmem:[%s5 + $0x14] sm:$0xf]
  %v4136 = vld [vmem:[%s5 + $0x18] sm:$0xf]
  %v4137 = vld [vmem:[%s5 + $0x1c] sm:$0xf]
  %v4138 = vld [vmem:[%s5 + $0x20] sm:$0xf]
  %v4139 = vld [vmem:[%s5 + $0x24] sm:$0xf]
  %v4140 = vld [vmem:[%s5 + $0x28] sm:$0xf]
  %v4141 = vld [vmem:[%s5 + $0x2c] sm:$0xf]
  %v4142 = vld [vmem:[%s5 + $0x30] sm:$0xf]
  %v4143 = vld [vmem:[%s5 + $0x34] sm:$0xf]
  %v4144 = vld [vmem:[%s5 + $0x38] sm:$0xf]
  %v4145 = vld [vmem:[%s5 + $0x3c] sm:$0xf]
  %v4146 = vld [vmem:[%s6] sm:$0x1]
  %v4148 = vlaneseq
  %v4149 = vshrl.u32 %v4148, 7
  %v4150 = vsub.s32 0, %v4149
  %v4151 = vrot.slane %v4146, %v4150
  %v4169 = vunpack.c.l.b16 %v4130
  %v4170 = vunpack.c.l.b16 %v4131
  %v4171 = vunpack.c.l.b16 %v4132
  %v4172 = vunpack.c.l.b16 %v4133
  %v4173 = vunpack.c.l.b16 %v4134
  %v4174 = vunpack.c.l.b16 %v4135
  %v4175 = vunpack.c.l.b16 %v4136
  %v4176 = vunpack.c.l.b16 %v4137
  %v4177 = vunpack.c.l.b16 %v4138
  %v4178 = vunpack.c.l.b16 %v4139
  %v4179 = vunpack.c.l.b16 %v4140
  %v4180 = vunpack.c.l.b16 %v4141
  %v4181 = vunpack.c.l.b16 %v4142
  %v4182 = vunpack.c.l.b16 %v4143
  %v4183 = vunpack.c.l.b16 %v4144
  %v4184 = vunpack.c.l.b16 %v4145
  %v4185 = vpack.c.b16 %v4170, %v4169
  %v4186 = vpack.c.b16 %v4172, %v4171
  %v4187 = vpack.c.b16 %v4174, %v4173
  %v4188 = vpack.c.b16 %v4176, %v4175
  %v4189 = vpack.c.b16 %v4178, %v4177
  %v4190 = vpack.c.b16 %v4180, %v4179
  %v4191 = vpack.c.b16 %v4182, %v4181
  %v4192 = vpack.c.b16 %v4184, %v4183
  %4201 = vmatprep.subr.bf16.mxu0 0
  %4202 = vmatpush1.bf16.msra.mxu0 %v4185
  %4203 = vmatprep.subr.bf16.mxu0 0
  %4204 = vmatpush1.bf16.msra.mxu0 %v4186
  %4205 = vmatprep.subr.bf16.mxu0 0
  %4206 = vmatpush1.bf16.msra.mxu0 %v4187
  %4207 = vmatprep.subr.bf16.mxu0 0
  %4208 = vmatpush1.bf16.msra.mxu0 %v4188
  %4209 = vmatprep.subr.bf16.mxu0 0
  %4210 = vmatpush1.bf16.msra.mxu0 %v4189
  %4211 = vmatprep.subr.bf16.mxu0 0
  %4212 = vmatpush1.bf16.msra.mxu0 %v4190
  %4213 = vmatprep.subr.bf16.mxu0 0
  %4214 = vmatpush1.bf16.msra.mxu0 %v4191
  %4215 = vmatprep.subr.bf16.mxu0 0
  %4216 = vmatpush1.bf16.msra.mxu0 %v4192
  %4217 = vmatprep.subr.bf16.mxu0 0
  %4218 = vmatpush1.bf16.msra.mxu0 0
  %4219 = vmatprep.subr.bf16.mxu0 0
  %4220 = vmatpush1.bf16.msra.mxu0 0
  %4221 = vmatprep.subr.bf16.mxu0 0
  %4222 = vmatpush1.bf16.msra.mxu0 0
  %4223 = vmatprep.subr.bf16.mxu0 0
  %4224 = vmatpush1.bf16.msra.mxu0 0
  %4225 = vmatprep.subr.bf16.mxu0 0
  %4226 = vmatpush1.bf16.msra.mxu0 0
  %4227 = vmatprep.subr.bf16.mxu0 0
  %4228 = vmatpush1.bf16.msra.mxu0 0
  %4229 = vmatprep.subr.bf16.mxu0 0
  %4230 = vmatpush1.bf16.msra.mxu0 0
  %4231 = vmatprep.subr.bf16.mxu0 0
  %4232 = vmatpush1.bf16.msra.mxu0 0
  %4233 = vmatprep.mubr.bf16.mxu0 0
  %4234 = vmatmul.mubr.bf16.gmra.mrb[0].mxu0 %v4129
  %v4235 = vpop.f32.mrb[0].mxu0
  %v4236 = vadd.f32 %v4151, %v4235
  %v4237 = vpop.f32.mrb[0].mxu0
  %v4238 = vpop.f32.mrb[0].mxu0
  %v4239 = vpop.f32.mrb[0].mxu0
  %4240 = vdwg.mxu0
  %v4241 = vmax.f32 %v4236, 0.0
  %v4242 = vpack.c.bf16 %v4241, %v4241
  %v4243 = vld [vmem:[%s7] sm:$0xf]
  %v4244 = vld [vmem:[%s7 + $0x4] sm:$0xf]
  %v4245 = vld [vmem:[%s7 + $0x8] sm:$0xf]
  %v4246 = vld [vmem:[%s7 + $0xc] sm:$0xf]
  %v4247 = vld [vmem:[%s7 + $0x10] sm:$0xf]
  %v4248 = vld [vmem:[%s7 + $0x14] sm:$0xf]
  %v4249 = vld [vmem:[%s7 + $0x18] sm:$0xf]
  %v4250 = vld [vmem:[%s7 + $0x1c] sm:$0xf]
  %v4251 = vld [vmem:[%s7 + $0x20] sm:$0xf]
  %v4252 = vld [vmem:[%s7 + $0x24] sm:$0xf]
  %v4253 = vld [vmem:[%s7 + $0x28] sm:$0xf]
  %v4254 = vld [vmem:[%s7 + $0x2c] sm:$0xf]
  %v4255 = vld [vmem:[%s7 + $0x30] sm:$0xf]
  %v4256 = vld [vmem:[%s7 + $0x34] sm:$0xf]
  %v4257 = vld [vmem:[%s7 + $0x38] sm:$0xf]
  %v4258 = vld [vmem:[%s7 + $0x3c] sm:$0xf]
  %v4259 = vld [vmem:[%s8] sm:$0x1]
  %v4261 = vlaneseq
  %v4262 = vshrl.u32 %v4261, 7
  %v4263 = vsub.s32 0, %v4262
  %v4264 = vrot.slane %v4259, %v4263
  %v4282 = vunpack.c.l.b16 %v4243
  %v4283 = vunpack.c.l.b16 %v4244
  %v4284 = vunpack.c.l.b16 %v4245
  %v4285 = vunpack.c.l.b16 %v4246
  %v4286 = vunpack.c.l.b16 %v4247
  %v4287 = vunpack.c.l.b16 %v4248
  %v4288 = vunpack.c.l.b16 %v4249
  %v4289 = vunpack.c.l.b16 %v4250
  %v4290 = vunpack.c.l.b16 %v4251
  %v4291 = vunpack.c.l.b16 %v4252
  %v4292 = vunpack.c.l.b16 %v4253
  %v4293 = vunpack.c.l.b16 %v4254
  %v4294 = vunpack.c.l.b16 %v4255
  %v4295 = vunpack.c.l.b16 %v4256
  %v4296 = vunpack.c.l.b16 %v4257
  %v4297 = vunpack.c.l.b16 %v4258
  %v4298 = vpack.c.b16 %v4283, %v4282
  %v4299 = vpack.c.b16 %v4285, %v4284
  %v4300 = vpack.c.b16 %v4287, %v4286
  %v4301 = vpack.c.b16 %v4289, %v4288
  %v4302 = vpack.c.b16 %v4291, %v4290
  %v4303 = vpack.c.b16 %v4293, %v4292
  %v4304 = vpack.c.b16 %v4295, %v4294
  %v4305 = vpack.c.b16 %v4297, %v4296
  %4314 = vmatprep.subr.bf16.mxu0 0
  %4315 = vmatpush1.bf16.msra.mxu0 %v4298
  %4316 = vmatprep.subr.bf16.mxu0 0
  %4317 = vmatpush1.bf16.msra.mxu0 %v4299
  %4318 = vmatprep.subr.bf16.mxu0 0
  %4319 = vmatpush1.bf16.msra.mxu0 %v4300
  %4320 = vmatprep.subr.bf16.mxu0 0
  %4321 = vmatpush1.bf16.msra.mxu0 %v4301
  %4322 = vmatprep.subr.bf16.mxu0 0
  %4323 = vmatpush1.bf16.msra.mxu0 %v4302
  %4324 = vmatprep.subr.bf16.mxu0 0
  %4325 = vmatpush1.bf16.msra.mxu0 %v4303
  %4326 = vmatprep.subr.bf16.mxu0 0
  %4327 = vmatpush1.bf16.msra.mxu0 %v4304
  %4328 = vmatprep.subr.bf16.mxu0 0
  %4329 = vmatpush1.bf16.msra.mxu0 %v4305
  %4330 = vmatprep.subr.bf16.mxu0 0
  %4331 = vmatpush1.bf16.msra.mxu0 0
  %4332 = vmatprep.subr.bf16.mxu0 0
  %4333 = vmatpush1.bf16.msra.mxu0 0
  %4334 = vmatprep.subr.bf16.mxu0 0
  %4335 = vmatpush1.bf16.msra.mxu0 0
  %4336 = vmatprep.subr.bf16.mxu0 0
  %4337 = vmatpush1.bf16.msra.mxu0 0
  %4338 = vmatprep.subr.bf16.mxu0 0
  %4339 = vmatpush1.bf16.msra.mxu0 0
  %4340 = vmatprep.subr.bf16.mxu0 0
  %4341 = vmatpush1.bf16.msra.mxu0 0
  %4342 = vmatprep.subr.bf16.mxu0 0
  %4343 = vmatpush1.bf16.msra.mxu0 0
  %4344 = vmatprep.subr.bf16.mxu0 0
  %4345 = vmatpush1.bf16.msra.mxu0 0
  %4346 = vmatprep.mubr.bf16.mxu0 0
  %4347 = vmatmul.mubr.bf16.gmra.mrb[0].mxu0 %v4242
  %v4348 = vpop.f32.mrb[0].mxu0
  %v4349 = vadd.f32 %v4264, %v4348
  %v4350 = vpop.f32.mrb[0].mxu0
  %v4351 = vpop.f32.mrb[0].mxu0
  %v4352 = vpop.f32.mrb[0].mxu0
  %4353 = vdwg.mxu0
  %4354 = vst [vmem:[%s9] sm:$0xff] %v4349
  // Predicated region
  $region38: #{lenet_forward.3} parent=0 // pred_check
    _
  $region39: #{lenet_forward.3} parent=0 // pred_check_branch
    %4356 = sbr.rel (0) target = $region41
  $region40: #{lenet_forward.3} parent=0 // pred_region
    _
  $region41: #{lenet_forward.3} parent=0 // pred_fallthru
    _
  // Predicated region
  $region42: #{lenet_forward.3} parent=0 // pred_check
    _
  $region43: #{lenet_forward.3} parent=0 // pred_check_branch
    %4358 = sbr.rel (0) target = $region45
  $region44: #{lenet_forward.3} parent=0 // pred_region
    _
  $region45: #{lenet_forward.3} parent=0 // pred_fallthru
    _

</llo_original>
